<compile_context>
chip_gen: v7x
topology: tpu7x:2x2x1
jax: 0.10.0
libtpu: 0.0.40
codegen_flags: <defaults>
</compile_context>

<pallas_src>
import numpy as np
import jax
import jax.numpy as jnp
from jax import lax
from jax.experimental import pallas as pl
from jax.experimental.pallas import tpu as pltpu


_VMEM = pltpu.MemorySpace.VMEM
_SMEM = pltpu.MemorySpace.SMEM


def _vmem_specs(n):
    return [pl.BlockSpec(memory_space=_VMEM) for _ in range(n)]


def _fiota(shape, dim):
    # int32 iota then convert: safest iota path on Mosaic.
    return lax.broadcasted_iota(jnp.int32, shape, dim).astype(jnp.float32)


def _sigmoid(x):
    # explicit exp/reciprocal form (avoids any doubt about lax.logistic lowering)
    return 1.0 / (1.0 + jnp.exp(-x))


# ----------------------------------------------------------------------------
# Synthetic landmark index constants.
# TODO(synk): the real MediaPipe eye-contour / blendshape index constants are
#             external data files; deterministic synthetic index sets are used.
# ----------------------------------------------------------------------------
EYE_LANDMARK_IDS = np.concatenate(
    [np.arange(100, 171), np.arange(300, 371)]).astype(np.int32)               # 142 = 71 left + 71 right
BLENDSHAPE_MODEL_LANDMARKS_SUBSET = np.round(np.linspace(0, 477, 146)).astype(np.int32)  # 146


# ----------------------------------------------------------------------------
# Kernel 1: fused face landmark network.
#   raw HWC bf16 pixels (192, 576) -> dense (preproc folded) -> GELU -> mean
#   -> planar head (1, 2048), x/y mapped to pixel space in-kernel.
# ----------------------------------------------------------------------------
def _face_kernel(img_ref, w1_ref, b1_ref, w2_ref, b2_ref, o_ref):
    h = jnp.dot(img_ref[...], w1_ref[...], preferred_element_type=jnp.float32)   # (192, 128)
    # TODO(synk): tanh-GELU (approximate) vs PyTorch's exact erf GELU.
    h = jax.nn.gelu(h + b1_ref[...], approximate=True)
    g = jnp.mean(h, axis=0, keepdims=True)                                        # (1, 128)
    o = jnp.dot(g.astype(jnp.bfloat16), w2_ref[...],
                preferred_element_type=jnp.float32) + b2_ref[...]                 # (1, 2048)
    lane = lax.broadcasted_iota(jnp.int32, (1, 2048), 1)
    # Synthetic regression head: x,y logits -> pixel space; z / confidence raw.
    o_ref[...] = jnp.where(lane < 1024, _sigmoid(o) * 192.0, o)


# ----------------------------------------------------------------------------
# Kernel 2: fused iris landmarker (both eyes) + landmark refinement gather +
#           blendshape MLP-Mixer.
# ----------------------------------------------------------------------------
def _iris_mixer_kernel(bounds_ref, face_ref, img_ref,
                       iw1_ref, ib1_ref, iw2_ref, ib2_ref,
                       gface_ref, gxl_ref, gxr_ref, gyl_ref, gyr_ref,
                       mwx_ref, mwy_ref, mbi_ref, mtw_ref, mtb_ref,
                       mcw_ref, mcb_ref, mow_ref, mob_ref,
                       eye_ref, bs_ref):
    f32 = jnp.float32
    bf16 = jnp.bfloat16

    # --- per-eye crop bounds (SMEM scalars): row 0 = left eye, row 1 = right.
    # cols: [floor(top), floor(bottom), floor(left), floor(right), left, top, w, h]
    flt_l, flb_l = bounds_ref[0, 0], bounds_ref[0, 1]
    fll_l, flr_l = bounds_ref[0, 2], bounds_ref[0, 3]
    left_l, top_l, w_l = bounds_ref[0, 4], bounds_ref[0, 5], bounds_ref[0, 6]
    flt_r, flb_r = bounds_ref[1, 0], bounds_ref[1, 1]
    fll_r, flr_r = bounds_ref[1, 2], bounds_ref[1, 3]
    left_r, top_r, w_r = bounds_ref[1, 4], bounds_ref[1, 5], bounds_ref[1, 6]

    # --- nearest-neighbour 64x64 eye-crop resample as one-hot selection matmuls;
    #     selectors are built in-kernel (VPU iota + compares) and kept bf16.
    # TODO(synk): nearest-neighbour convention differs from cv2 crop+resize
    #             border behaviour of the reference pad_image path.
    r = _fiota((128, 192), 0)
    c = _fiota((128, 192), 1)
    is_l = r < 64.0
    rr = jnp.where(is_l, r, r - 64.0)
    ft = jnp.where(is_l, flt_l, flt_r)
    fb = jnp.where(is_l, flb_l, flb_r)
    ys = ft + (fb - ft) * (rr + 0.5) * (1.0 / 64.0)
    yi = jnp.clip(jnp.floor(ys), 0.0, 191.0)
    rowsel = jnp.where(c == yi, 1.0, 0.0).astype(bf16)                            # (128, 192)

    # rows of the raw HWC image at the selected y positions (left rows 0:64, right 64:128)
    t_rows = jnp.dot(rowsel, img_ref[...], preferred_element_type=f32)            # (128, 576)
    t_bf = t_rows.astype(bf16)                                                    # exact for 0..255 integers

    # column selector picks (x, channel) pairs out of the interleaved HWC row:
    # source col = x*3 + ch ; destination feature = ch*64 + kx
    s = _fiota((576, 192), 0)
    d = _fiota((576, 192), 1)
    x_src = jnp.floor((s + 0.5) * (1.0 / 3.0))
    c_src = s - 3.0 * x_src
    c_dst = jnp.floor(d * (1.0 / 64.0))
    kx = d - 64.0 * c_dst

    def make_colsel(fl_, fr_):
        xs = fl_ + (fr_ - fl_) * (kx + 0.5) * (1.0 / 64.0)
        xi = jnp.clip(jnp.floor(xs), 0.0, 191.0)
        return jnp.where((x_src == xi) & (c_src == c_dst), 1.0, 0.0).astype(bf16)  # (576, 192)

    csl = make_colsel(fll_l, flr_l)
    csr = make_colsel(fll_r, flr_r)

    crop_l = jnp.dot(t_bf[0:64, :], csl, preferred_element_type=f32)              # (64, 192) raw pixels
    crop_r = jnp.dot(t_bf[64:128, :], csr, preferred_element_type=f32)

    # --- iris dense net (shared weights, both eyes); /255 folded into iw1.
    h_l = jax.nn.gelu(jnp.dot(crop_l.astype(bf16), iw1_ref[...],
                              preferred_element_type=f32) + ib1_ref[...], approximate=True)
    h_r = jax.nn.gelu(jnp.dot(crop_r.astype(bf16), iw1_ref[...],
                              preferred_element_type=f32) + ib1_ref[...], approximate=True)
    g = jnp.concatenate([jnp.mean(h_l, axis=0, keepdims=True),
                         jnp.mean(h_r, axis=0, keepdims=True)], axis=0)           # (2, 128)
    o = jnp.dot(g.astype(bf16), iw2_ref[...],
                preferred_element_type=f32) + ib2_ref[...]                        # (2, 256) planar logits

    # --- map crop-space logits to original (192x192) pixel space.
    # planar lane layout per eye row: [0:71) contour x, [71:142) contour y,
    # [142:213) contour z, [213:218) iris x, [218:223) iris y, [223:228) iris z.
    lane = _fiota((2, 256), 1)
    row = _fiota((2, 256), 0)
    is_x = (lane < 71.0) | ((lane >= 213.0) & (lane < 218.0))
    is_y = ((lane >= 71.0) & (lane < 142.0)) | ((lane >= 218.0) & (lane < 223.0))
    w_e = jnp.where(row < 0.5, w_l, w_r)           # crop height == width
    l_e = jnp.where(row < 0.5, left_l, left_r)
    t_e = jnp.where(row < 0.5, top_l, top_r)
    sig = _sigmoid(o)
    pix = jnp.where(is_x, sig * w_e + l_e, jnp.where(is_y, sig * w_e + t_e, o))
    eye_ref[...] = pix

    # --- blendshape mixer input: refined 146-landmark x/y gather as f32 one-hot
    #     matmuls (face landmarks for un-refined ids, refined eye contours for
    #     EYE_LANDMARK_IDS, iris landmarks for ids >= 468).
    pix_l = jnp.sum(jnp.where(row < 0.5, pix, 0.0), axis=0, keepdims=True)        # (1, 256)
    pix_r = jnp.sum(jnp.where(row >= 0.5, pix, 0.0), axis=0, keepdims=True)
    face_x = face_ref[:, 0:512]                                                    # (1, 512) pixel x
    face_y = face_ref[:, 512:1024]                                                 # (1, 512) pixel y
    bs_x = (jnp.dot(face_x, gface_ref[...], preferred_element_type=f32)
            + jnp.dot(pix_l, gxl_ref[...], preferred_element_type=f32)
            + jnp.dot(pix_r, gxr_ref[...], preferred_element_type=f32))            # (1, 160)
    bs_y = (jnp.dot(face_y, gface_ref[...], preferred_element_type=f32)
            + jnp.dot(pix_l, gyl_ref[...], preferred_element_type=f32)
            + jnp.dot(pix_r, gyr_ref[...], preferred_element_type=f32))            # (1, 160)

    # --- blendshape MLP-Mixer, channel-major (64 channels x 160 tokens, lane-dense).
    h = mwx_ref[...] * bs_x + mwy_ref[...] * bs_y + mbi_ref[...]                   # (64, 160)
    tok = jnp.dot(h.astype(bf16), mtw_ref[...], preferred_element_type=f32) + mtb_ref[...]
    h = h + jax.nn.gelu(tok, approximate=True)
    ch = jnp.dot(mcw_ref[...], h.astype(bf16), preferred_element_type=f32) + mcb_ref[...]
    h = h + jax.nn.gelu(ch, approximate=True)
    tok_mask = jnp.where(lax.broadcasted_iota(jnp.int32, (64, 160), 1) < 146, 1.0, 0.0)
    gm = jnp.sum(h * tok_mask, axis=1, keepdims=True) * (1.0 / 146.0)              # (64, 1)
    bs = jnp.sum(mow_ref[...] * gm, axis=0, keepdims=True) + mob_ref[...]          # (1, 128)
    bs_ref[...] = bs


# ----------------------------------------------------------------------------
# Constant one-hot gather matrices for the refined-landmark -> blendshape input.
# ----------------------------------------------------------------------------
def _build_gather_constants():
    subset = BLENDSHAPE_MODEL_LANDMARKS_SUBSET
    left_ids = EYE_LANDMARK_IDS[:71]
    right_ids = EYE_LANDMARK_IDS[71:]
    left_pos = {int(v): k for k, v in enumerate(left_ids)}
    right_pos = {int(v): k for k, v in enumerate(right_ids)}
    gface = np.zeros((512, 160), np.float32)     # acts on face x-row / y-row
    gxl = np.zeros((256, 160), np.float32)       # act on per-eye planar pixel outputs
    gxr = np.zeros((256, 160), np.float32)
    gyl = np.zeros((256, 160), np.float32)
    gyr = np.zeros((256, 160), np.float32)
    for j, lm in enumerate(subset.tolist()):
        if lm >= 468:                            # iris landmarks
            ii = lm - 468
            if ii < 5:
                gxl[213 + ii, j] = 1.0
                gyl[218 + ii, j] = 1.0
            else:
                m = ii - 5
                gxr[213 + m, j] = 1.0
                gyr[218 + m, j] = 1.0
        elif lm in left_pos:                     # refined left-eye contour
            k = left_pos[lm]
            gxl[k, j] = 1.0
            gyl[71 + k, j] = 1.0
        elif lm in right_pos:                    # refined right-eye contour
            k = right_pos[lm]
            gxr[k, j] = 1.0
            gyr[71 + k, j] = 1.0
        else:                                    # plain facial landmark
            gface[lm, j] = 1.0
    return gface, gxl, gxr, gyl, gyr


# ----------------------------------------------------------------------------
# Deterministic synthetic parameters (no checkpoints may be loaded).
# TODO(synk): the real FacialLM_Model / IrisLM / blendshape weights are
#             checkpoints; synthetic dense stand-ins keep the pipeline shape.
# ----------------------------------------------------------------------------
def init_params(key):
    ks = jax.random.split(key, 9)
    s = 0.05
    bf = jnp.bfloat16
    p = {}

    # face net: (192, 576) raw HWC rows -> 128 -> planar head (1, 2048)
    w1 = jax.random.normal(ks[0], (576, 128), jnp.float32) * s
    p["face_w1"] = (w1 * (1.0 / 127.5)).astype(bf)        # /127.5 folded in
    p["face_b1"] = (-jnp.sum(w1, axis=0)).reshape(1, 128)  # "- 1.0" folded in
    p["face_w2"] = (jax.random.normal(ks[1], (128, 2048), jnp.float32) * s).astype(bf)
    p["face_b2"] = jnp.zeros((1, 2048), jnp.float32)

    # iris net: 64x64x3 crop (192 feats per crop row) -> 128 -> planar head (256)
    w1i = jax.random.normal(ks[2], (192, 128), jnp.float32) * s
    p["iris_w1"] = (w1i * (1.0 / 255.0)).astype(bf)        # /255 folded in
    p["iris_b1"] = jnp.zeros((1, 128), jnp.float32)
    p["iris_w2"] = (jax.random.normal(ks[3], (128, 256), jnp.float32) * s).astype(bf)
    p["iris_b2"] = jnp.zeros((1, 256), jnp.float32)

    # blendshape MLP-Mixer (channel-major orientation, token dim padded 146->160)
    p["mix_wx"] = jax.random.normal(ks[4], (64, 1), jnp.float32) * s
    p["mix_wy"] = jax.random.normal(ks[5], (64, 1), jnp.float32) * s
    p["mix_b_in"] = jnp.zeros((64, 1), jnp.float32)
    tokw = jax.random.normal(ks[6], (160, 160), jnp.float32) * s
    tmask = (jnp.arange(160) < 146).astype(jnp.float32)
    p["mix_tok_w"] = (tokw * tmask[:, None] * tmask[None, :]).astype(bf)
    p["mix_tok_b"] = jnp.zeros((1, 160), jnp.float32)
    p["mix_ch_w"] = (jax.random.normal(ks[7], (64, 64), jnp.float32) * s).astype(bf)
    p["mix_ch_b"] = jnp.zeros((64, 1), jnp.float32)
    p["mix_out_w"] = jax.random.normal(ks[8], (64, 128), jnp.float32) * s
    p["mix_out_b"] = jnp.zeros((1, 128), jnp.float32)

    gface, gxl, gxr, gyl, gyr = _build_gather_constants()
    p["g_face"] = jnp.asarray(gface)
    p["g_xl"] = jnp.asarray(gxl)
    p["g_xr"] = jnp.asarray(gxr)
    p["g_yl"] = jnp.asarray(gyl)
    p["g_yr"] = jnp.asarray(gyr)
    return p


# ----------------------------------------------------------------------------
# Pipeline glue (mirrors the PyTorch forward)
# ----------------------------------------------------------------------------
def _compute_eye_bounds(face_out):
    """16 scalar ops of XLA glue between the two kernels (pixel-space coords)."""
    def one(i0, i1):
        xl = face_out[0, i0]
        xr = face_out[0, i1]
        ya = face_out[0, 512 + i0]
        yb = face_out[0, 512 + i1]
        w = xr - xl
        hm = 0.25 * w
        l = xl - hm
        r = xr + hm
        # float floor-divide mirrors Python '//' on float landmark coords.
        t = jnp.minimum(ya, yb) - jnp.floor_divide(w, 2.0) - hm
        b = jnp.maximum(ya, yb) + jnp.floor_divide(w, 2.0) + hm
        w2 = w + 2.0 * hm
        return jnp.stack([jnp.floor(t), jnp.floor(b), jnp.floor(l), jnp.floor(r),
                          l, t, w2, w2])
    # row 0 = left eye (ids 33, 133), row 1 = right eye (ids 362, 263)
    return jnp.stack([one(33, 133), one(362, 263)], axis=0).astype(jnp.float32)    # (2, 8)


def forward(img_tensor, params):
    """img_tensor: (H, W, 3) RGB float32 in [0, 255] (a face crop).
    Returns: all_landmarks (478, 3), blendshapes (52,), padded_face (192, 192, 3)."""
    # TODO(synk): MTCNN / BlazeFace face-detection branches are disabled by
    #             default in the reference module and are omitted here.
    H, W, _ = img_tensor.shape
    padded_face = img_tensor.astype(jnp.float32)
    # TODO(synk): pad_image aspect-ratio padding for non-square inputs not implemented.
    if (H, W) != (192, 192):
        padded_face = jax.image.resize(padded_face, (192, 192, 3), method="nearest")

    # Raw bf16 pixels (exact for 0..255 integers), flattened HWC rows: no CHW
    # transpose and no patchify relayout on the critical path.
    img_bf = padded_face.astype(jnp.bfloat16).reshape(192, 576)

    # ---- kernel 1: face landmarks ------------------------------------------
    face_out = pl.pallas_call(
        _face_kernel,
        out_shape=jax.ShapeDtypeStruct((1, 2048), jnp.float32),
        in_specs=_vmem_specs(5),
        out_specs=pl.BlockSpec(memory_space=_VMEM),
    )(img_bf, params["face_w1"], params["face_b1"], params["face_w2"], params["face_b2"])

    # ---- tiny XLA glue: 16 eye-bound scalars ---------------------------------
    bounds = _compute_eye_bounds(face_out)                                          # (2, 8)

    # ---- kernel 2: iris + refinement gather + blendshape mixer --------------
    eye_out, bs_out = pl.pallas_call(
        _iris_mixer_kernel,
        out_shape=(jax.ShapeDtypeStruct((2, 256), jnp.float32),
                   jax.ShapeDtypeStruct((1, 128), jnp.float32)),
        in_specs=[pl.BlockSpec(memory_space=_SMEM)] + _vmem_specs(20),
        out_specs=(pl.BlockSpec(memory_space=_VMEM),
                   pl.BlockSpec(memory_space=_VMEM)),
    )(bounds, face_out, img_bf,
      params["iris_w1"], params["iris_b1"], params["iris_w2"], params["iris_b2"],
      params["g_face"], params["g_xl"], params["g_xr"], params["g_yl"], params["g_yr"],
      params["mix_wx"], params["mix_wy"], params["mix_b_in"],
      params["mix_tok_w"], params["mix_tok_b"],
      params["mix_ch_w"], params["mix_ch_b"],
      params["mix_out_w"], params["mix_out_b"])

    # ---- final landmark assembly (output formation only; blendshapes already
    #      computed in-kernel and do not depend on this glue) ------------------
    x = face_out[0, 0:468]
    y = face_out[0, 512:512 + 468]
    z = face_out[0, 1024:1024 + 468]
    facial = jnp.stack([x, y, z], axis=1)                                           # (468, 3)

    def eye_rows(e):
        cont = jnp.stack([eye_out[e, 0:71], eye_out[e, 71:142], eye_out[e, 142:213]], axis=1)
        iris = jnp.stack([eye_out[e, 213:218], eye_out[e, 218:223], eye_out[e, 223:228]], axis=1)
        return cont, iris

    left_cont, left_iris = eye_rows(0)
    right_cont, right_iris = eye_rows(1)

    facial = facial.at[jnp.asarray(EYE_LANDMARK_IDS)].set(
        jnp.concatenate([left_cont, right_cont], axis=0))
    all_landmarks = jnp.concatenate([facial, left_iris, right_iris], axis=0)        # (478, 3)
    all_landmarks = all_landmarks.at[:, 2].set(all_landmarks[:, 2] / padded_face.shape[0])

    blendshapes = jnp.clip(bs_out[0, :52], 0.0, 1.0)

    return all_landmarks, blendshapes, padded_face


# ----------------------------------------------------------------------------
if __name__ == "__main__":
    key = jax.random.PRNGKey(0)
    k_img, k_par = jax.random.split(key)
    # Synthetic face crop image, 192 x 192 x 3, RGB, values in [0, 255].
    img = jax.random.uniform(k_img, (192, 192, 3), dtype=jnp.float32) * 255.0
    params = init_params(k_par)

    fwd = jax.jit(forward)
    all_landmarks, blendshapes, padded_face = fwd(img, params)
    jax.block_until_ready((all_landmarks, blendshapes, padded_face))

    assert all_landmarks.shape == (478, 3)
    assert blendshapes.shape == (52,)
    assert padded_face.shape == (192, 192, 3)
    assert bool(jnp.all(jnp.isfinite(all_landmarks)))
    assert bool(jnp.all((blendshapes >= 0.0) & (blendshapes <= 1.0)))
    print("KERNEL_OK")
</pallas_src>

<mosaic_0001>
module attributes {stable_mosaic.version = 11 : i64} {
  func.func @_face_kernel(%arg0: memref<192x576xbf16, #tpu.memory_space<vmem>>, %arg1: memref<576x128xbf16, #tpu.memory_space<vmem>>, %arg2: memref<1x128xf32, #tpu.memory_space<vmem>>, %arg3: memref<128x2048xbf16, #tpu.memory_space<vmem>>, %arg4: memref<1x2048xf32, #tpu.memory_space<vmem>>, %arg5: memref<1x2048xf32, #tpu.memory_space<vmem>>) attributes {dimension_semantics = [], scalar_prefetch = 0 : i64, scratch_operands = 0 : i64, tpu.core_type = #tpu.core_type<tc>} {
    %c0 = arith.constant 0 : index
    %c0_0 = arith.constant 0 : index
    %0 = vector.load %arg0[%c0, %c0_0] : memref<192x576xbf16, #tpu.memory_space<vmem>>, vector<192x576xbf16>
    %c0_1 = arith.constant 0 : index
    %c0_2 = arith.constant 0 : index
    %1 = vector.load %arg1[%c0_1, %c0_2] : memref<576x128xbf16, #tpu.memory_space<vmem>>, vector<576x128xbf16>
    %cst = arith.constant dense<0.000000e+00> : vector<192x128xf32>
    %2 = tpu.matmul %0, %1, %cst {dimension_numbers = #tpu.dot_dimension_numbers<[1], [0], [0], [1], [0, 0, 1, 1], [], []>} : vector<192x576xbf16>, vector<576x128xbf16>, vector<192x128xf32> -> vector<192x128xf32>
    %c0_3 = arith.constant 0 : index
    %c0_4 = arith.constant 0 : index
    %3 = vector.load %arg2[%c0_3, %c0_4] : memref<1x128xf32, #tpu.memory_space<vmem>>, vector<1x128xf32>
    %4 = vector.broadcast %3 : vector<1x128xf32> to vector<192x128xf32>
    %5 = arith.addf %2, %4 : vector<192x128xf32>
    %6 = arith.mulf %5, %5 : vector<192x128xf32>
    %7 = arith.mulf %5, %6 : vector<192x128xf32>
    %cst_5 = arith.constant 4.471500e-02 : f32
    %8 = vector.broadcast %cst_5 : f32 to vector<192x128xf32>
    %9 = arith.mulf %8, %7 : vector<192x128xf32>
    %10 = arith.addf %5, %9 : vector<192x128xf32>
    %cst_6 = arith.constant 0.797884583 : f32
    %11 = vector.broadcast %cst_6 : f32 to vector<192x128xf32>
    %12 = arith.mulf %11, %10 : vector<192x128xf32>
    %13 = math.tanh %12 : vector<192x128xf32>
    %cst_7 = arith.constant 1.000000e+00 : f32
    %14 = vector.broadcast %cst_7 : f32 to vector<192x128xf32>
    %15 = arith.addf %14, %13 : vector<192x128xf32>
    %cst_8 = arith.constant 5.000000e-01 : f32
    %16 = vector.broadcast %cst_8 : f32 to vector<192x128xf32>
    %17 = arith.mulf %16, %15 : vector<192x128xf32>
    %18 = arith.mulf %5, %17 : vector<192x128xf32>
    %cst_9 = arith.constant dense<0.000000e+00> : vector<128xf32>
    %19 = vector.multi_reduction <add>, %18, %cst_9 [0] : vector<192x128xf32> to vector<128xf32>
    %20 = vector.shape_cast %19 : vector<128xf32> to vector<1x128xf32>
    %cst_10 = arith.constant 1.920000e+02 : f32
    %21 = vector.broadcast %cst_10 : f32 to vector<1x128xf32>
    %22 = arith.divf %20, %21 : vector<1x128xf32>
    %23 = arith.truncf %22 : vector<1x128xf32> to vector<1x128xbf16>
    %c0_11 = arith.constant 0 : index
    %c0_12 = arith.constant 0 : index
    %24 = vector.load %arg3[%c0_11, %c0_12] : memref<128x2048xbf16, #tpu.memory_space<vmem>>, vector<128x2048xbf16>
    %cst_13 = arith.constant dense<0.000000e+00> : vector<1x2048xf32>
    %25 = tpu.matmul %23, %24, %cst_13 {dimension_numbers = #tpu.dot_dimension_numbers<[1], [0], [0], [1], [0, 0, 1, 1], [], []>} : vector<1x128xbf16>, vector<128x2048xbf16>, vector<1x2048xf32> -> vector<1x2048xf32>
    %c0_14 = arith.constant 0 : index
    %c0_15 = arith.constant 0 : index
    %26 = vector.load %arg4[%c0_14, %c0_15] : memref<1x2048xf32, #tpu.memory_space<vmem>>, vector<1x2048xf32>
    %27 = arith.addf %25, %26 : vector<1x2048xf32>
    %28 = tpu.iota {dimensions = array<i32: 1>} : vector<1x2048xi32>
    %c1024_i32 = arith.constant 1024 : i32
    %29 = vector.broadcast %c1024_i32 : i32 to vector<1x2048xi32>
    %30 = arith.cmpi slt, %28, %29 : vector<1x2048xi32>
    %cst_16 = arith.constant 0.000000e+00 : f32
    %31 = vector.broadcast %cst_16 : f32 to vector<1x2048xf32>
    %32 = arith.subf %31, %27 : vector<1x2048xf32>
    %33 = math.exp %32 : vector<1x2048xf32>
    %cst_17 = arith.constant 1.000000e+00 : f32
    %34 = vector.broadcast %cst_17 : f32 to vector<1x2048xf32>
    %35 = arith.addf %34, %33 : vector<1x2048xf32>
    %cst_18 = arith.constant 1.000000e+00 : f32
    %36 = vector.broadcast %cst_18 : f32 to vector<1x2048xf32>
    %37 = arith.divf %36, %35 : vector<1x2048xf32>
    %cst_19 = arith.constant 1.920000e+02 : f32
    %38 = vector.broadcast %cst_19 : f32 to vector<1x2048xf32>
    %39 = arith.mulf %37, %38 : vector<1x2048xf32>
    %40 = arith.select %30, %39, %27 : vector<1x2048xi1>, vector<1x2048xf32>
    %c0_20 = arith.constant 0 : index
    %c0_21 = arith.constant 0 : index
    %41 = vector.load %arg5[%c0_20, %c0_21] : memref<1x2048xf32, #tpu.memory_space<vmem>>, vector<1x2048xf32>
    tpu.vector_store %arg5[%c0_20, %c0_21], %40 {strides = array<i32>} : memref<1x2048xf32, #tpu.memory_space<vmem>>, vector<1x2048xf32>,
    return
  }
}

module attributes {stable_mosaic.version = 11 : i64} {
  func.func @_iris_mixer_kernel(%arg0: memref<2x8xf32, #tpu.memory_space<smem>>, %arg1: memref<1x2048xf32, #tpu.memory_space<vmem>>, %arg2: memref<192x576xbf16, #tpu.memory_space<vmem>>, %arg3: memref<192x128xbf16, #tpu.memory_space<vmem>>, %arg4: memref<1x128xf32, #tpu.memory_space<vmem>>, %arg5: memref<128x256xbf16, #tpu.memory_space<vmem>>, %arg6: memref<1x256xf32, #tpu.memory_space<vmem>>, %arg7: memref<512x160xf32, #tpu.memory_space<vmem>>, %arg8: memref<256x160xf32, #tpu.memory_space<vmem>>, %arg9: memref<256x160xf32, #tpu.memory_space<vmem>>, %arg10: memref<256x160xf32, #tpu.memory_space<vmem>>, %arg11: memref<256x160xf32, #tpu.memory_space<vmem>>, %arg12: memref<64x1xf32, #tpu.memory_space<vmem>>, %arg13: memref<64x1xf32, #tpu.memory_space<vmem>>, %arg14: memref<64x1xf32, #tpu.memory_space<vmem>>, %arg15: memref<160x160xbf16, #tpu.memory_space<vmem>>, %arg16: memref<1x160xf32, #tpu.memory_space<vmem>>, %arg17: memref<64x64xbf16, #tpu.memory_space<vmem>>, %arg18: memref<64x1xf32, #tpu.memory_space<vmem>>, %arg19: memref<64x128xf32, #tpu.memory_space<vmem>>, %arg20: memref<1x128xf32, #tpu.memory_space<vmem>>, %arg21: memref<2x256xf32, #tpu.memory_space<vmem>>, %arg22: memref<1x128xf32, #tpu.memory_space<vmem>>) attributes {dimension_semantics = [], scalar_prefetch = 0 : i64, scratch_operands = 0 : i64, tpu.core_type = #tpu.core_type<tc>} {
    %c0 = arith.constant 0 : index
    %c0_0 = arith.constant 0 : index
    %0 = memref.load %arg0[%c0, %c0_0] : memref<2x8xf32, #tpu.memory_space<smem>>
    %c0_1 = arith.constant 0 : index
    %c1 = arith.constant 1 : index
    %1 = memref.load %arg0[%c0_1, %c1] : memref<2x8xf32, #tpu.memory_space<smem>>
    %c0_2 = arith.constant 0 : index
    %c2 = arith.constant 2 : index
    %2 = memref.load %arg0[%c0_2, %c2] : memref<2x8xf32, #tpu.memory_space<smem>>
    %c0_3 = arith.constant 0 : index
    %c3 = arith.constant 3 : index
    %3 = memref.load %arg0[%c0_3, %c3] : memref<2x8xf32, #tpu.memory_space<smem>>
    %c0_4 = arith.constant 0 : index
    %c4 = arith.constant 4 : index
    %4 = memref.load %arg0[%c0_4, %c4] : memref<2x8xf32, #tpu.memory_space<smem>>
    %c0_5 = arith.constant 0 : index
    %c5 = arith.constant 5 : index
    %5 = memref.load %arg0[%c0_5, %c5] : memref<2x8xf32, #tpu.memory_space<smem>>
    %c0_6 = arith.constant 0 : index
    %c6 = arith.constant 6 : index
    %6 = memref.load %arg0[%c0_6, %c6] : memref<2x8xf32, #tpu.memory_space<smem>>
    %c1_7 = arith.constant 1 : index
    %c0_8 = arith.constant 0 : index
    %7 = memref.load %arg0[%c1_7, %c0_8] : memref<2x8xf32, #tpu.memory_space<smem>>
    %c1_9 = arith.constant 1 : index
    %c1_10 = arith.constant 1 : index
    %8 = memref.load %arg0[%c1_9, %c1_10] : memref<2x8xf32, #tpu.memory_space<smem>>
    %c1_11 = arith.constant 1 : index
    %c2_12 = arith.constant 2 : index
    %9 = memref.load %arg0[%c1_11, %c2_12] : memref<2x8xf32, #tpu.memory_space<smem>>
    %c1_13 = arith.constant 1 : index
    %c3_14 = arith.constant 3 : index
    %10 = memref.load %arg0[%c1_13, %c3_14] : memref<2x8xf32, #tpu.memory_space<smem>>
    %c1_15 = arith.constant 1 : index
    %c4_16 = arith.constant 4 : index
    %11 = memref.load %arg0[%c1_15, %c4_16] : memref<2x8xf32, #tpu.memory_space<smem>>
    %c1_17 = arith.constant 1 : index
    %c5_18 = arith.constant 5 : index
    %12 = memref.load %arg0[%c1_17, %c5_18] : memref<2x8xf32, #tpu.memory_space<smem>>
    %c1_19 = arith.constant 1 : index
    %c6_20 = arith.constant 6 : index
    %13 = memref.load %arg0[%c1_19, %c6_20] : memref<2x8xf32, #tpu.memory_space<smem>>
    %14 = tpu.iota {dimensions = array<i32: 0>} : vector<128x192xi32>
    %15 = arith.sitofp %14 : vector<128x192xi32> to vector<128x192xf32>
    %16 = tpu.iota {dimensions = array<i32: 1>} : vector<128x192xi32>
    %17 = arith.sitofp %16 : vector<128x192xi32> to vector<128x192xf32>
    %cst = arith.constant 6.400000e+01 : f32
    %18 = vector.broadcast %cst : f32 to vector<128x192xf32>
    %19 = arith.cmpf olt, %15, %18 : vector<128x192xf32>
    %cst_21 = arith.constant 6.400000e+01 : f32
    %20 = vector.broadcast %cst_21 : f32 to vector<128x192xf32>
    %21 = arith.subf %15, %20 : vector<128x192xf32>
    %22 = arith.select %19, %15, %21 : vector<128x192xi1>, vector<128x192xf32>
    %23 = vector.broadcast %0 : f32 to vector<128x192xf32>
    %24 = vector.broadcast %7 : f32 to vector<128x192xf32>
    %25 = arith.select %19, %23, %24 : vector<128x192xi1>, vector<128x192xf32>
    %26 = vector.broadcast %1 : f32 to vector<128x192xf32>
    %27 = vector.broadcast %8 : f32 to vector<128x192xf32>
    %28 = arith.select %19, %26, %27 : vector<128x192xi1>, vector<128x192xf32>
    %29 = arith.subf %28, %25 : vector<128x192xf32>
    %cst_22 = arith.constant 5.000000e-01 : f32
    %30 = vector.broadcast %cst_22 : f32 to vector<128x192xf32>
    %31 = arith.addf %22, %30 : vector<128x192xf32>
    %32 = arith.mulf %29, %31 : vector<128x192xf32>
    %cst_23 = arith.constant 1.562500e-02 : f32
    %33 = vector.broadcast %cst_23 : f32 to vector<128x192xf32>
    %34 = arith.mulf %32, %33 : vector<128x192xf32>
    %35 = arith.addf %25, %34 : vector<128x192xf32>
    %36 = math.floor %35 : vector<128x192xf32>
    %cst_24 = arith.constant 0.000000e+00 : f32
    %cst_25 = arith.constant 1.910000e+02 : f32
    %37 = vector.broadcast %cst_24 : f32 to vector<128x192xf32>
    %38 = arith.maximumf %37, %36 : vector<128x192xf32>
    %39 = vector.broadcast %cst_25 : f32 to vector<128x192xf32>
    %40 = arith.minimumf %39, %38 : vector<128x192xf32>
    %41 = arith.cmpf oeq, %17, %40 : vector<128x192xf32>
    %cst_26 = arith.constant 1.000000e+00 : f32
    %cst_27 = arith.constant 0.000000e+00 : f32
    %42 = vector.broadcast %cst_26 : f32 to vector<128x192xf32>
    %43 = vector.broadcast %cst_27 : f32 to vector<128x192xf32>
    %44 = arith.select %41, %42, %43 : vector<128x192xi1>, vector<128x192xf32>
    %45 = arith.truncf %44 : vector<128x192xf32> to vector<128x192xbf16>
    %c0_28 = arith.constant 0 : index
    %c0_29 = arith.constant 0 : index
    %46 = vector.load %arg2[%c0_28, %c0_29] : memref<192x576xbf16, #tpu.memory_space<vmem>>, vector<192x576xbf16>
    %cst_30 = arith.constant dense<0.000000e+00> : vector<128x576xf32>
    %47 = tpu.matmul %45, %46, %cst_30 {dimension_numbers = #tpu.dot_dimension_numbers<[1], [0], [0], [1], [0, 0, 1, 1], [], []>} : vector<128x192xbf16>, vector<192x576xbf16>, vector<128x576xf32> -> vector<128x576xf32>
    %48 = arith.truncf %47 : vector<128x576xf32> to vector<128x576xbf16>
    %49 = tpu.iota {dimensions = array<i32: 0>} : vector<576x192xi32>
    %50 = arith.sitofp %49 : vector<576x192xi32> to vector<576x192xf32>
    %51 = tpu.iota {dimensions = array<i32: 1>} : vector<576x192xi32>
    %52 = arith.sitofp %51 : vector<576x192xi32> to vector<576x192xf32>
    %cst_31 = arith.constant 5.000000e-01 : f32
    %53 = vector.broadcast %cst_31 : f32 to vector<576x192xf32>
    %54 = arith.addf %50, %53 : vector<576x192xf32>
    %cst_32 = arith.constant 0.333333343 : f32
    %55 = vector.broadcast %cst_32 : f32 to vector<576x192xf32>
    %56 = arith.mulf %54, %55 : vector<576x192xf32>
    %57 = math.floor %56 : vector<576x192xf32>
    %cst_33 = arith.constant 3.000000e+00 : f32
    %58 = vector.broadcast %cst_33 : f32 to vector<576x192xf32>
    %59 = arith.mulf %58, %57 : vector<576x192xf32>
    %60 = arith.subf %50, %59 : vector<576x192xf32>
    %cst_34 = arith.constant 1.562500e-02 : f32
    %61 = vector.broadcast %cst_34 : f32 to vector<576x192xf32>
    %62 = arith.mulf %52, %61 : vector<576x192xf32>
    %63 = math.floor %62 : vector<576x192xf32>
    %cst_35 = arith.constant 6.400000e+01 : f32
    %64 = vector.broadcast %cst_35 : f32 to vector<576x192xf32>
    %65 = arith.mulf %64, %63 : vector<576x192xf32>
    %66 = arith.subf %52, %65 : vector<576x192xf32>
    %67 = arith.subf %3, %2 : f32
    %cst_36 = arith.constant 5.000000e-01 : f32
    %68 = vector.broadcast %cst_36 : f32 to vector<576x192xf32>
    %69 = arith.addf %66, %68 : vector<576x192xf32>
    %70 = vector.broadcast %67 : f32 to vector<576x192xf32>
    %71 = arith.mulf %70, %69 : vector<576x192xf32>
    %cst_37 = arith.constant 1.562500e-02 : f32
    %72 = vector.broadcast %cst_37 : f32 to vector<576x192xf32>
    %73 = arith.mulf %71, %72 : vector<576x192xf32>
    %74 = vector.broadcast %2 : f32 to vector<576x192xf32>
    %75 = arith.addf %74, %73 : vector<576x192xf32>
    %76 = math.floor %75 : vector<576x192xf32>
    %cst_38 = arith.constant 0.000000e+00 : f32
    %cst_39 = arith.constant 1.910000e+02 : f32
    %77 = vector.broadcast %cst_38 : f32 to vector<576x192xf32>
    %78 = arith.maximumf %77, %76 : vector<576x192xf32>
    %79 = vector.broadcast %cst_39 : f32 to vector<576x192xf32>
    %80 = arith.minimumf %79, %78 : vector<576x192xf32>
    %81 = arith.cmpf oeq, %57, %80 : vector<576x192xf32>
    %82 = arith.cmpf oeq, %60, %63 : vector<576x192xf32>
    %83 = arith.andi %81, %82 : vector<576x192xi1>
    %cst_40 = arith.constant 1.000000e+00 : f32
    %cst_41 = arith.constant 0.000000e+00 : f32
    %84 = vector.broadcast %cst_40 : f32 to vector<576x192xf32>
    %85 = vector.broadcast %cst_41 : f32 to vector<576x192xf32>
    %86 = arith.select %83, %84, %85 : vector<576x192xi1>, vector<576x192xf32>
    %87 = arith.truncf %86 : vector<576x192xf32> to vector<576x192xbf16>
    %88 = arith.subf %10, %9 : f32
    %cst_42 = arith.constant 5.000000e-01 : f32
    %89 = vector.broadcast %cst_42 : f32 to vector<576x192xf32>
    %90 = arith.addf %66, %89 : vector<576x192xf32>
    %91 = vector.broadcast %88 : f32 to vector<576x192xf32>
    %92 = arith.mulf %91, %90 : vector<576x192xf32>
    %cst_43 = arith.constant 1.562500e-02 : f32
    %93 = vector.broadcast %cst_43 : f32 to vector<576x192xf32>
    %94 = arith.mulf %92, %93 : vector<576x192xf32>
    %95 = vector.broadcast %9 : f32 to vector<576x192xf32>
    %96 = arith.addf %95, %94 : vector<576x192xf32>
    %97 = math.floor %96 : vector<576x192xf32>
    %cst_44 = arith.constant 0.000000e+00 : f32
    %cst_45 = arith.constant 1.910000e+02 : f32
    %98 = vector.broadcast %cst_44 : f32 to vector<576x192xf32>
    %99 = arith.maximumf %98, %97 : vector<576x192xf32>
    %100 = vector.broadcast %cst_45 : f32 to vector<576x192xf32>
    %101 = arith.minimumf %100, %99 : vector<576x192xf32>
    %102 = arith.cmpf oeq, %57, %101 : vector<576x192xf32>
    %103 = arith.cmpf oeq, %60, %63 : vector<576x192xf32>
    %104 = arith.andi %102, %103 : vector<576x192xi1>
    %cst_46 = arith.constant 1.000000e+00 : f32
    %cst_47 = arith.constant 0.000000e+00 : f32
    %105 = vector.broadcast %cst_46 : f32 to vector<576x192xf32>
    %106 = vector.broadcast %cst_47 : f32 to vector<576x192xf32>
    %107 = arith.select %104, %105, %106 : vector<576x192xi1>, vector<576x192xf32>
    %108 = arith.truncf %107 : vector<576x192xf32> to vector<576x192xbf16>
    %109 = vector.extract_strided_slice %48 {offsets = [0, 0], sizes = [64, 576], strides = [1, 1]} : vector<128x576xbf16> to vector<64x576xbf16>
    %cst_48 = arith.constant dense<0.000000e+00> : vector<64x192xf32>
    %110 = tpu.matmul %109, %87, %cst_48 {dimension_numbers = #tpu.dot_dimension_numbers<[1], [0], [0], [1], [0, 0, 1, 1], [], []>} : vector<64x576xbf16>, vector<576x192xbf16>, vector<64x192xf32> -> vector<64x192xf32>
    %111 = vector.extract_strided_slice %48 {offsets = [64, 0], sizes = [64, 576], strides = [1, 1]} : vector<128x576xbf16> to vector<64x576xbf16>
    %cst_49 = arith.constant dense<0.000000e+00> : vector<64x192xf32>
    %112 = tpu.matmul %111, %108, %cst_49 {dimension_numbers = #tpu.dot_dimension_numbers<[1], [0], [0], [1], [0, 0, 1, 1], [], []>} : vector<64x576xbf16>, vector<576x192xbf16>, vector<64x192xf32> -> vector<64x192xf32>
    %113 = arith.truncf %110 : vector<64x192xf32> to vector<64x192xbf16>
    %c0_50 = arith.constant 0 : index
    %c0_51 = arith.constant 0 : index
    %114 = vector.load %arg3[%c0_50, %c0_51] : memref<192x128xbf16, #tpu.memory_space<vmem>>, vector<192x128xbf16>
    %cst_52 = arith.constant dense<0.000000e+00> : vector<64x128xf32>
    %115 = tpu.matmul %113, %114, %cst_52 {dimension_numbers = #tpu.dot_dimension_numbers<[1], [0], [0], [1], [0, 0, 1, 1], [], []>} : vector<64x192xbf16>, vector<192x128xbf16>, vector<64x128xf32> -> vector<64x128xf32>
    %c0_53 = arith.constant 0 : index
    %c0_54 = arith.constant 0 : index
    %116 = vector.load %arg4[%c0_53, %c0_54] : memref<1x128xf32, #tpu.memory_space<vmem>>, vector<1x128xf32>
    %117 = vector.broadcast %116 : vector<1x128xf32> to vector<64x128xf32>
    %118 = arith.addf %115, %117 : vector<64x128xf32>
    %119 = arith.mulf %118, %118 : vector<64x128xf32>
    %120 = arith.mulf %118, %119 : vector<64x128xf32>
    %cst_55 = arith.constant 4.471500e-02 : f32
    %121 = vector.broadcast %cst_55 : f32 to vector<64x128xf32>
    %122 = arith.mulf %121, %120 : vector<64x128xf32>
    %123 = arith.addf %118, %122 : vector<64x128xf32>
    %cst_56 = arith.constant 0.797884583 : f32
    %124 = vector.broadcast %cst_56 : f32 to vector<64x128xf32>
    %125 = arith.mulf %124, %123 : vector<64x128xf32>
    %126 = math.tanh %125 : vector<64x128xf32>
    %cst_57 = arith.constant 1.000000e+00 : f32
    %127 = vector.broadcast %cst_57 : f32 to vector<64x128xf32>
    %128 = arith.addf %127, %126 : vector<64x128xf32>
    %cst_58 = arith.constant 5.000000e-01 : f32
    %129 = vector.broadcast %cst_58 : f32 to vector<64x128xf32>
    %130 = arith.mulf %129, %128 : vector<64x128xf32>
    %131 = arith.mulf %118, %130 : vector<64x128xf32>
    %132 = arith.truncf %112 : vector<64x192xf32> to vector<64x192xbf16>
    %c0_59 = arith.constant 0 : index
    %c0_60 = arith.constant 0 : index
    %133 = vector.load %arg3[%c0_59, %c0_60] : memref<192x128xbf16, #tpu.memory_space<vmem>>, vector<192x128xbf16>
    %cst_61 = arith.constant dense<0.000000e+00> : vector<64x128xf32>
    %134 = tpu.matmul %132, %133, %cst_61 {dimension_numbers = #tpu.dot_dimension_numbers<[1], [0], [0], [1], [0, 0, 1, 1], [], []>} : vector<64x192xbf16>, vector<192x128xbf16>, vector<64x128xf32> -> vector<64x128xf32>
    %c0_62 = arith.constant 0 : index
    %c0_63 = arith.constant 0 : index
    %135 = vector.load %arg4[%c0_62, %c0_63] : memref<1x128xf32, #tpu.memory_space<vmem>>, vector<1x128xf32>
    %136 = vector.broadcast %135 : vector<1x128xf32> to vector<64x128xf32>
    %137 = arith.addf %134, %136 : vector<64x128xf32>
    %138 = arith.mulf %137, %137 : vector<64x128xf32>
    %139 = arith.mulf %137, %138 : vector<64x128xf32>
    %cst_64 = arith.constant 4.471500e-02 : f32
    %140 = vector.broadcast %cst_64 : f32 to vector<64x128xf32>
    %141 = arith.mulf %140, %139 : vector<64x128xf32>
    %142 = arith.addf %137, %141 : vector<64x128xf32>
    %cst_65 = arith.constant 0.797884583 : f32
    %143 = vector.broadcast %cst_65 : f32 to vector<64x128xf32>
    %144 = arith.mulf %143, %142 : vector<64x128xf32>
    %145 = math.tanh %144 : vector<64x128xf32>
    %cst_66 = arith.constant 1.000000e+00 : f32
    %146 = vector.broadcast %cst_66 : f32 to vector<64x128xf32>
    %147 = arith.addf %146, %145 : vector<64x128xf32>
    %cst_67 = arith.constant 5.000000e-01 : f32
    %148 = vector.broadcast %cst_67 : f32 to vector<64x128xf32>
    %149 = arith.mulf %148, %147 : vector<64x128xf32>
    %150 = arith.mulf %137, %149 : vector<64x128xf32>
    %cst_68 = arith.constant dense<0.000000e+00> : vector<128xf32>
    %151 = vector.multi_reduction <add>, %131, %cst_68 [0] : vector<64x128xf32> to vector<128xf32>
    %152 = vector.shape_cast %151 : vector<128xf32> to vector<1x128xf32>
    %cst_69 = arith.constant 6.400000e+01 : f32
    %153 = vector.broadcast %cst_69 : f32 to vector<1x128xf32>
    %154 = arith.divf %152, %153 : vector<1x128xf32>
    %cst_70 = arith.constant dense<0.000000e+00> : vector<128xf32>
    %155 = vector.multi_reduction <add>, %150, %cst_70 [0] : vector<64x128xf32> to vector<128xf32>
    %156 = vector.shape_cast %155 : vector<128xf32> to vector<1x128xf32>
    %cst_71 = arith.constant 6.400000e+01 : f32
    %157 = vector.broadcast %cst_71 : f32 to vector<1x128xf32>
    %158 = arith.divf %156, %157 : vector<1x128xf32>
    %159 = tpu.concatenate %154, %158 in 0 : vector<1x128xf32>, vector<1x128xf32> -> vector<2x128xf32>
    %160 = arith.truncf %159 : vector<2x128xf32> to vector<2x128xbf16>
    %c0_72 = arith.constant 0 : index
    %c0_73 = arith.constant 0 : index
    %161 = vector.load %arg5[%c0_72, %c0_73] : memref<128x256xbf16, #tpu.memory_space<vmem>>, vector<128x256xbf16>
    %cst_74 = arith.constant dense<0.000000e+00> : vector<2x256xf32>
    %162 = tpu.matmul %160, %161, %cst_74 {dimension_numbers = #tpu.dot_dimension_numbers<[1], [0], [0], [1], [0, 0, 1, 1], [], []>} : vector<2x128xbf16>, vector<128x256xbf16>, vector<2x256xf32> -> vector<2x256xf32>
    %c0_75 = arith.constant 0 : index
    %c0_76 = arith.constant 0 : index
    %163 = vector.load %arg6[%c0_75, %c0_76] : memref<1x256xf32, #tpu.memory_space<vmem>>, vector<1x256xf32>
    %164 = vector.broadcast %163 : vector<1x256xf32> to vector<2x256xf32>
    %165 = arith.addf %162, %164 : vector<2x256xf32>
    %166 = tpu.iota {dimensions = array<i32: 1>} : vector<2x256xi32>
    %167 = arith.sitofp %166 : vector<2x256xi32> to vector<2x256xf32>
    %168 = tpu.iota {dimensions = array<i32: 0>} : vector<2x256xi32>
    %169 = arith.sitofp %168 : vector<2x256xi32> to vector<2x256xf32>
    %cst_77 = arith.constant 7.100000e+01 : f32
    %170 = vector.broadcast %cst_77 : f32 to vector<2x256xf32>
    %171 = arith.cmpf olt, %167, %170 : vector<2x256xf32>
    %cst_78 = arith.constant 2.130000e+02 : f32
    %172 = vector.broadcast %cst_78 : f32 to vector<2x256xf32>
    %173 = arith.cmpf oge, %167, %172 : vector<2x256xf32>
    %cst_79 = arith.constant 2.180000e+02 : f32
    %174 = vector.broadcast %cst_79 : f32 to vector<2x256xf32>
    %175 = arith.cmpf olt, %167, %174 : vector<2x256xf32>
    %176 = arith.andi %173, %175 : vector<2x256xi1>
    %177 = arith.ori %171, %176 : vector<2x256xi1>
    %cst_80 = arith.constant 7.100000e+01 : f32
    %178 = vector.broadcast %cst_80 : f32 to vector<2x256xf32>
    %179 = arith.cmpf oge, %167, %178 : vector<2x256xf32>
    %cst_81 = arith.constant 1.420000e+02 : f32
    %180 = vector.broadcast %cst_81 : f32 to vector<2x256xf32>
    %181 = arith.cmpf olt, %167, %180 : vector<2x256xf32>
    %182 = arith.andi %179, %181 : vector<2x256xi1>
    %cst_82 = arith.constant 2.180000e+02 : f32
    %183 = vector.broadcast %cst_82 : f32 to vector<2x256xf32>
    %184 = arith.cmpf oge, %167, %183 : vector<2x256xf32>
    %cst_83 = arith.constant 2.230000e+02 : f32
    %185 = vector.broadcast %cst_83 : f32 to vector<2x256xf32>
    %186 = arith.cmpf olt, %167, %185 : vector<2x256xf32>
    %187 = arith.andi %184, %186 : vector<2x256xi1>
    %188 = arith.ori %182, %187 : vector<2x256xi1>
    %cst_84 = arith.constant 5.000000e-01 : f32
    %189 = vector.broadcast %cst_84 : f32 to vector<2x256xf32>
    %190 = arith.cmpf olt, %169, %189 : vector<2x256xf32>
    %191 = vector.broadcast %6 : f32 to vector<2x256xf32>
    %192 = vector.broadcast %13 : f32 to vector<2x256xf32>
    %193 = arith.select %190, %191, %192 : vector<2x256xi1>, vector<2x256xf32>
    %cst_85 = arith.constant 5.000000e-01 : f32
    %194 = vector.broadcast %cst_85 : f32 to vector<2x256xf32>
    %195 = arith.cmpf olt, %169, %194 : vector<2x256xf32>
    %196 = vector.broadcast %4 : f32 to vector<2x256xf32>
    %197 = vector.broadcast %11 : f32 to vector<2x256xf32>
    %198 = arith.select %195, %196, %197 : vector<2x256xi1>, vector<2x256xf32>
    %cst_86 = arith.constant 5.000000e-01 : f32
    %199 = vector.broadcast %cst_86 : f32 to vector<2x256xf32>
    %200 = arith.cmpf olt, %169, %199 : vector<2x256xf32>
    %201 = vector.broadcast %5 : f32 to vector<2x256xf32>
    %202 = vector.broadcast %12 : f32 to vector<2x256xf32>
    %203 = arith.select %200, %201, %202 : vector<2x256xi1>, vector<2x256xf32>
    %cst_87 = arith.constant 0.000000e+00 : f32
    %204 = vector.broadcast %cst_87 : f32 to vector<2x256xf32>
    %205 = arith.subf %204, %165 : vector<2x256xf32>
    %206 = math.exp %205 : vector<2x256xf32>
    %cst_88 = arith.constant 1.000000e+00 : f32
    %207 = vector.broadcast %cst_88 : f32 to vector<2x256xf32>
    %208 = arith.addf %207, %206 : vector<2x256xf32>
    %cst_89 = arith.constant 1.000000e+00 : f32
    %209 = vector.broadcast %cst_89 : f32 to vector<2x256xf32>
    %210 = arith.divf %209, %208 : vector<2x256xf32>
    %211 = arith.mulf %210, %193 : vector<2x256xf32>
    %212 = arith.addf %211, %198 : vector<2x256xf32>
    %213 = arith.mulf %210, %193 : vector<2x256xf32>
    %214 = arith.addf %213, %203 : vector<2x256xf32>
    %215 = arith.select %188, %214, %165 : vector<2x256xi1>, vector<2x256xf32>
    %216 = arith.select %177, %212, %215 : vector<2x256xi1>, vector<2x256xf32>
    %c0_90 = arith.constant 0 : index
    %c0_91 = arith.constant 0 : index
    %217 = vector.load %arg21[%c0_90, %c0_91] : memref<2x256xf32, #tpu.memory_space<vmem>>, vector<2x256xf32>
    tpu.vector_store %arg21[%c0_90, %c0_91], %216 {strides = array<i32>} : memref<2x256xf32, #tpu.memory_space<vmem>>, vector<2x256xf32>,
    %cst_92 = arith.constant 5.000000e-01 : f32
    %218 = vector.broadcast %cst_92 : f32 to vector<2x256xf32>
    %219 = arith.cmpf olt, %169, %218 : vector<2x256xf32>
    %cst_93 = arith.constant 0.000000e+00 : f32
    %220 = vector.broadcast %cst_93 : f32 to vector<2x256xf32>
    %221 = arith.select %219, %216, %220 : vector<2x256xi1>, vector<2x256xf32>
    %cst_94 = arith.constant dense<0.000000e+00> : vector<256xf32>
    %222 = vector.multi_reduction <add>, %221, %cst_94 [0] : vector<2x256xf32> to vector<256xf32>
    %223 = vector.shape_cast %222 : vector<256xf32> to vector<1x256xf32>
    %cst_95 = arith.constant 5.000000e-01 : f32
    %224 = vector.broadcast %cst_95 : f32 to vector<2x256xf32>
    %225 = arith.cmpf oge, %169, %224 : vector<2x256xf32>
    %cst_96 = arith.constant 0.000000e+00 : f32
    %226 = vector.broadcast %cst_96 : f32 to vector<2x256xf32>
    %227 = arith.select %225, %216, %226 : vector<2x256xi1>, vector<2x256xf32>
    %cst_97 = arith.constant dense<0.000000e+00> : vector<256xf32>
    %228 = vector.multi_reduction <add>, %227, %cst_97 [0] : vector<2x256xf32> to vector<256xf32>
    %229 = vector.shape_cast %228 : vector<256xf32> to vector<1x256xf32>
    %c0_98 = arith.constant 0 : index
    %c0_99 = arith.constant 0 : index
    %230 = vector.load %arg1[%c0_98, %c0_99] : memref<1x2048xf32, #tpu.memory_space<vmem>>, vector<1x512xf32>
    %c0_100 = arith.constant 0 : index
    %c512 = arith.constant 512 : index
    %231 = vector.load %arg1[%c0_100, %c512] : memref<1x2048xf32, #tpu.memory_space<vmem>>, vector<1x512xf32>
    %c0_101 = arith.constant 0 : index
    %c0_102 = arith.constant 0 : index
    %232 = vector.load %arg7[%c0_101, %c0_102] : memref<512x160xf32, #tpu.memory_space<vmem>>, vector<512x160xf32>
    %cst_103 = arith.constant dense<0.000000e+00> : vector<1x160xf32>
    %233 = tpu.matmul %230, %232, %cst_103 {dimension_numbers = #tpu.dot_dimension_numbers<[1], [0], [0], [1], [0, 0, 1, 1], [], []>} : vector<1x512xf32>, vector<512x160xf32>, vector<1x160xf32> -> vector<1x160xf32>
    %c0_104 = arith.constant 0 : index
    %c0_105 = arith.constant 0 : index
    %234 = vector.load %arg8[%c0_104, %c0_105] : memref<256x160xf32, #tpu.memory_space<vmem>>, vector<256x160xf32>
    %cst_106 = arith.constant dense<0.000000e+00> : vector<1x160xf32>
    %235 = tpu.matmul %223, %234, %cst_106 {dimension_numbers = #tpu.dot_dimension_numbers<[1], [0], [0], [1], [0, 0, 1, 1], [], []>} : vector<1x256xf32>, vector<256x160xf32>, vector<1x160xf32> -> vector<1x160xf32>
    %236 = arith.addf %233, %235 : vector<1x160xf32>
    %c0_107 = arith.constant 0 : index
    %c0_108 = arith.constant 0 : index
    %237 = vector.load %arg9[%c0_107, %c0_108] : memref<256x160xf32, #tpu.memory_space<vmem>>, vector<256x160xf32>
    %cst_109 = arith.constant dense<0.000000e+00> : vector<1x160xf32>
    %238 = tpu.matmul %229, %237, %cst_109 {dimension_numbers = #tpu.dot_dimension_numbers<[1], [0], [0], [1], [0, 0, 1, 1], [], []>} : vector<1x256xf32>, vector<256x160xf32>, vector<1x160xf32> -> vector<1x160xf32>
    %239 = arith.addf %236, %238 : vector<1x160xf32>
    %c0_110 = arith.constant 0 : index
    %c0_111 = arith.constant 0 : index
    %240 = vector.load %arg7[%c0_110, %c0_111] : memref<512x160xf32, #tpu.memory_space<vmem>>, vector<512x160xf32>
    %cst_112 = arith.constant dense<0.000000e+00> : vector<1x160xf32>
    %241 = tpu.matmul %231, %240, %cst_112 {dimension_numbers = #tpu.dot_dimension_numbers<[1], [0], [0], [1], [0, 0, 1, 1], [], []>} : vector<1x512xf32>, vector<512x160xf32>, vector<1x160xf32> -> vector<1x160xf32>
    %c0_113 = arith.constant 0 : index
    %c0_114 = arith.constant 0 : index
    %242 = vector.load %arg10[%c0_113, %c0_114] : memref<256x160xf32, #tpu.memory_space<vmem>>, vector<256x160xf32>
    %cst_115 = arith.constant dense<0.000000e+00> : vector<1x160xf32>
    %243 = tpu.matmul %223, %242, %cst_115 {dimension_numbers = #tpu.dot_dimension_numbers<[1], [0], [0], [1], [0, 0, 1, 1], [], []>} : vector<1x256xf32>, vector<256x160xf32>, vector<1x160xf32> -> vector<1x160xf32>
    %244 = arith.addf %241, %243 : vector<1x160xf32>
    %c0_116 = arith.constant 0 : index
    %c0_117 = arith.constant 0 : index
    %245 = vector.load %arg11[%c0_116, %c0_117] : memref<256x160xf32, #tpu.memory_space<vmem>>, vector<256x160xf32>
    %cst_118 = arith.constant dense<0.000000e+00> : vector<1x160xf32>
    %246 = tpu.matmul %229, %245, %cst_118 {dimension_numbers = #tpu.dot_dimension_numbers<[1], [0], [0], [1], [0, 0, 1, 1], [], []>} : vector<1x256xf32>, vector<256x160xf32>, vector<1x160xf32> -> vector<1x160xf32>
    %247 = arith.addf %244, %246 : vector<1x160xf32>
    %c0_119 = arith.constant 0 : index
    %c0_120 = arith.constant 0 : index
    %248 = vector.load %arg12[%c0_119, %c0_120] : memref<64x1xf32, #tpu.memory_space<vmem>>, vector<64x1xf32>
    %249 = vector.broadcast %248 : vector<64x1xf32> to vector<64x160xf32>
    %250 = vector.broadcast %239 : vector<1x160xf32> to vector<64x160xf32>
    %251 = arith.mulf %249, %250 : vector<64x160xf32>
    %c0_121 = arith.constant 0 : index
    %c0_122 = arith.constant 0 : index
    %252 = vector.load %arg13[%c0_121, %c0_122] : memref<64x1xf32, #tpu.memory_space<vmem>>, vector<64x1xf32>
    %253 = vector.broadcast %252 : vector<64x1xf32> to vector<64x160xf32>
    %254 = vector.broadcast %247 : vector<1x160xf32> to vector<64x160xf32>
    %255 = arith.mulf %253, %254 : vector<64x160xf32>
    %256 = arith.addf %251, %255 : vector<64x160xf32>
    %c0_123 = arith.constant 0 : index
    %c0_124 = arith.constant 0 : index
    %257 = vector.load %arg14[%c0_123, %c0_124] : memref<64x1xf32, #tpu.memory_space<vmem>>, vector<64x1xf32>
    %258 = vector.broadcast %257 : vector<64x1xf32> to vector<64x160xf32>
    %259 = arith.addf %256, %258 : vector<64x160xf32>
    %260 = arith.truncf %259 : vector<64x160xf32> to vector<64x160xbf16>
    %c0_125 = arith.constant 0 : index
    %c0_126 = arith.constant 0 : index
    %261 = vector.load %arg15[%c0_125, %c0_126] : memref<160x160xbf16, #tpu.memory_space<vmem>>, vector<160x160xbf16>
    %cst_127 = arith.constant dense<0.000000e+00> : vector<64x160xf32>
    %262 = tpu.matmul %260, %261, %cst_127 {dimension_numbers = #tpu.dot_dimension_numbers<[1], [0], [0], [1], [0, 0, 1, 1], [], []>} : vector<64x160xbf16>, vector<160x160xbf16>, vector<64x160xf32> -> vector<64x160xf32>
    %c0_128 = arith.constant 0 : index
    %c0_129 = arith.constant 0 : index
    %263 = vector.load %arg16[%c0_128, %c0_129] : memref<1x160xf32, #tpu.memory_space<vmem>>, vector<1x160xf32>
    %264 = vector.broadcast %263 : vector<1x160xf32> to vector<64x160xf32>
    %265 = arith.addf %262, %264 : vector<64x160xf32>
    %266 = arith.mulf %265, %265 : vector<64x160xf32>
    %267 = arith.mulf %265, %266 : vector<64x160xf32>
    %cst_130 = arith.constant 4.471500e-02 : f32
    %268 = vector.broadcast %cst_130 : f32 to vector<64x160xf32>
    %269 = arith.mulf %268, %267 : vector<64x160xf32>
    %270 = arith.addf %265, %269 : vector<64x160xf32>
    %cst_131 = arith.constant 0.797884583 : f32
    %271 = vector.broadcast %cst_131 : f32 to vector<64x160xf32>
    %272 = arith.mulf %271, %270 : vector<64x160xf32>
    %273 = math.tanh %272 : vector<64x160xf32>
    %cst_132 = arith.constant 1.000000e+00 : f32
    %274 = vector.broadcast %cst_132 : f32 to vector<64x160xf32>
    %275 = arith.addf %274, %273 : vector<64x160xf32>
    %cst_133 = arith.constant 5.000000e-01 : f32
    %276 = vector.broadcast %cst_133 : f32 to vector<64x160xf32>
    %277 = arith.mulf %276, %275 : vector<64x160xf32>
    %278 = arith.mulf %265, %277 : vector<64x160xf32>
    %279 = arith.addf %259, %278 : vector<64x160xf32>
    %c0_134 = arith.constant 0 : index
    %c0_135 = arith.constant 0 : index
    %280 = vector.load %arg17[%c0_134, %c0_135] : memref<64x64xbf16, #tpu.memory_space<vmem>>, vector<64x64xbf16>
    %281 = arith.truncf %279 : vector<64x160xf32> to vector<64x160xbf16>
    %cst_136 = arith.constant dense<0.000000e+00> : vector<64x160xf32>
    %282 = tpu.matmul %280, %281, %cst_136 {dimension_numbers = #tpu.dot_dimension_numbers<[1], [0], [0], [1], [0, 0, 1, 1], [], []>} : vector<64x64xbf16>, vector<64x160xbf16>, vector<64x160xf32> -> vector<64x160xf32>
    %c0_137 = arith.constant 0 : index
    %c0_138 = arith.constant 0 : index
    %283 = vector.load %arg18[%c0_137, %c0_138] : memref<64x1xf32, #tpu.memory_space<vmem>>, vector<64x1xf32>
    %284 = vector.broadcast %283 : vector<64x1xf32> to vector<64x160xf32>
    %285 = arith.addf %282, %284 : vector<64x160xf32>
    %286 = arith.mulf %285, %285 : vector<64x160xf32>
    %287 = arith.mulf %285, %286 : vector<64x160xf32>
    %cst_139 = arith.constant 4.471500e-02 : f32
    %288 = vector.broadcast %cst_139 : f32 to vector<64x160xf32>
    %289 = arith.mulf %288, %287 : vector<64x160xf32>
    %290 = arith.addf %285, %289 : vector<64x160xf32>
    %cst_140 = arith.constant 0.797884583 : f32
    %291 = vector.broadcast %cst_140 : f32 to vector<64x160xf32>
    %292 = arith.mulf %291, %290 : vector<64x160xf32>
    %293 = math.tanh %292 : vector<64x160xf32>
    %cst_141 = arith.constant 1.000000e+00 : f32
    %294 = vector.broadcast %cst_141 : f32 to vector<64x160xf32>
    %295 = arith.addf %294, %293 : vector<64x160xf32>
    %cst_142 = arith.constant 5.000000e-01 : f32
    %296 = vector.broadcast %cst_142 : f32 to vector<64x160xf32>
    %297 = arith.mulf %296, %295 : vector<64x160xf32>
    %298 = arith.mulf %285, %297 : vector<64x160xf32>
    %299 = arith.addf %279, %298 : vector<64x160xf32>
    %300 = tpu.iota {dimensions = array<i32: 1>} : vector<64x160xi32>
    %c146_i32 = arith.constant 146 : i32
    %301 = vector.broadcast %c146_i32 : i32 to vector<64x160xi32>
    %302 = arith.cmpi slt, %300, %301 : vector<64x160xi32>
    %cst_143 = arith.constant 1.000000e+00 : f32
    %cst_144 = arith.constant 0.000000e+00 : f32
    %303 = vector.broadcast %cst_143 : f32 to vector<64x160xf32>
    %304 = vector.broadcast %cst_144 : f32 to vector<64x160xf32>
    %305 = arith.select %302, %303, %304 : vector<64x160xi1>, vector<64x160xf32>
    %306 = arith.mulf %299, %305 : vector<64x160xf32>
    %cst_145 = arith.constant dense<0.000000e+00> : vector<64xf32>
    %307 = vector.multi_reduction <add>, %306, %cst_145 [1] : vector<64x160xf32> to vector<64xf32>
    %308 = vector.shape_cast %307 : vector<64xf32> to vector<64x1xf32>
    %cst_146 = arith.constant 0.00684931502 : f32
    %309 = vector.broadcast %cst_146 : f32 to vector<64x1xf32>
    %310 = arith.mulf %308, %309 : vector<64x1xf32>
    %c0_147 = arith.constant 0 : index
    %c0_148 = arith.constant 0 : index
    %311 = vector.load %arg19[%c0_147, %c0_148] : memref<64x128xf32, #tpu.memory_space<vmem>>, vector<64x128xf32>
    %312 = vector.broadcast %310 : vector<64x1xf32> to vector<64x128xf32>
    %313 = arith.mulf %311, %312 : vector<64x128xf32>
    %cst_149 = arith.constant dense<0.000000e+00> : vector<128xf32>
    %314 = vector.multi_reduction <add>, %313, %cst_149 [0] : vector<64x128xf32> to vector<128xf32>
    %315 = vector.shape_cast %314 : vector<128xf32> to vector<1x128xf32>
    %c0_150 = arith.constant 0 : index
    %c0_151 = arith.constant 0 : index
    %316 = vector.load %arg20[%c0_150, %c0_151] : memref<1x128xf32, #tpu.memory_space<vmem>>, vector<1x128xf32>
    %317 = arith.addf %315, %316 : vector<1x128xf32>
    %c0_152 = arith.constant 0 : index
    %c0_153 = arith.constant 0 : index
    %318 = vector.load %arg22[%c0_152, %c0_153] : memref<1x128xf32, #tpu.memory_space<vmem>>, vector<1x128xf32>
    tpu.vector_store %arg22[%c0_152, %c0_153], %317 {strides = array<i32>} : memref<1x128xf32, #tpu.memory_space<vmem>>, vector<1x128xf32>,
    return
  }
}

</mosaic_0001>

<llo_original>
// kernel: forward.2
$region0: #{forward.2}
  #allocation0 [shape = 'u32[]', space=smem, size = 0x4, offset = 0x4, fixed_abs, tag = 'smem constant byte address 0x4 - core index']
  #allocation1 [shape = 'u32[144,128]{1,0:T(1,128)}', space=vmem, size = 0x12000, scoped, tag = 'internal scratch']
  %s0 = inlined_call_operand.vmem [shape: bf16[192,576], index: 0, kind: input, shape index: {}]
  %s1 = inlined_call_operand.vmem [shape: bf16[576,128], index: 1, kind: input, shape index: {}]
  %s2 = inlined_call_operand.vmem [shape: f32[1,128], index: 2, kind: input, shape index: {}]
  %s3 = inlined_call_operand.vmem [shape: bf16[128,2048], index: 3, kind: input, shape index: {}]
  %s4 = inlined_call_operand.vmem [shape: f32[1,2048], index: 4, kind: input, shape index: {}]
  %s5 = inlined_call_operand.vmem [shape: f32[1,2048], index: 5, kind: output, shape index: {}]
  %s6 = sld [smem:[#allocation0]]
  $region30: #{forward.2} parent=0
    _
  %s8 = ssub.s32 1, %s6
  %s9 = scalar_select 0, %s8, %s6
  // Predicated region
  $region2: #{forward.2} parent=0 // pred_check
    _
  $region3: #{forward.2} parent=0 // pred_check_branch
    %11 = sbr.rel (0) target = $region5
  $region4: #{forward.2} parent=0 // pred_region
    _
  $region5: #{forward.2} parent=0 // pred_fallthru
    _
  // Predicated region
  $region6: #{forward.2} parent=0 // pred_check
    _
  $region7: #{forward.2} parent=0 // pred_check_branch
    %13 = sbr.rel (0) target = $region9
  $region8: #{forward.2} parent=0 // pred_region
    _
  $region9: #{forward.2} parent=0 // pred_fallthru
    _
  // Predicated region
  $region10: #{forward.2} parent=0 // pred_check
    _
  $region11: #{forward.2} parent=0 // pred_check_branch
    %15 = sbr.rel (0) target = $region13
  $region12: #{forward.2} parent=0 // pred_region
    _
  $region13: #{forward.2} parent=0 // pred_fallthru
    _
  // Predicated region
  $region14: #{forward.2} parent=0 // pred_check
    _
  $region15: #{forward.2} parent=0 // pred_check_branch
    %17 = sbr.rel (0) target = $region17
  $region16: #{forward.2} parent=0 // pred_region
    _
  $region17: #{forward.2} parent=0 // pred_fallthru
    _
  // Predicated region
  $region18: #{forward.2} parent=0 // pred_check
    _
  $region19: #{forward.2} parent=0 // pred_check_branch
    %19 = sbr.rel (0) target = $region21
  $region20: #{forward.2} parent=0 // pred_region
    _
  $region21: #{forward.2} parent=0 // pred_fallthru
    _
  %v21 = vld [vmem:[%s0] sm:$0xff]
  %v22 = vld [vmem:[%s0 + $0x8] sm:$0xff]
  %v23 = vld [vmem:[%s0 + $0x10] sm:$0xf]
  %v24 = vld [vmem:[%s0 + $0x14] sm:$0xff]
  %v25 = vld [vmem:[%s0 + $0x1c] sm:$0xff]
  %v26 = vld [vmem:[%s0 + $0x24] sm:$0xf]
  %v27 = vld [vmem:[%s0 + $0x28] sm:$0xff]
  %v28 = vld [vmem:[%s0 + $0x30] sm:$0xff]
  %v29 = vld [vmem:[%s0 + $0x38] sm:$0xf]
  %v30 = vld [vmem:[%s0 + $0x3c] sm:$0xff]
  %v31 = vld [vmem:[%s0 + $0x44] sm:$0xff]
  %v32 = vld [vmem:[%s0 + $0x4c] sm:$0xf]
  %v33 = vld [vmem:[%s0 + $0x50] sm:$0xff]
  %v34 = vld [vmem:[%s0 + $0x58] sm:$0xff]
  %v35 = vld [vmem:[%s0 + $0x60] sm:$0xf]
  %v36 = vld [vmem:[%s0 + $0x64] sm:$0xff]
  %v37 = vld [vmem:[%s0 + $0x6c] sm:$0xff]
  %v38 = vld [vmem:[%s0 + $0x74] sm:$0xf]
  %v39 = vld [vmem:[%s0 + $0x78] sm:$0xff]
  %v40 = vld [vmem:[%s0 + $0x80] sm:$0xff]
  %v41 = vld [vmem:[%s0 + $0x88] sm:$0xf]
  %v42 = vld [vmem:[%s0 + $0x8c] sm:$0xff]
  %v43 = vld [vmem:[%s0 + $0x94] sm:$0xff]
  %v44 = vld [vmem:[%s0 + $0x9c] sm:$0xf]
  %v45 = vld [vmem:[%s0 + $0xa0] sm:$0xff]
  %v46 = vld [vmem:[%s0 + $0xa8] sm:$0xff]
  %v47 = vld [vmem:[%s0 + $0xb0] sm:$0xf]
  %v48 = vld [vmem:[%s0 + $0xb4] sm:$0xff]
  %v49 = vld [vmem:[%s0 + $0xbc] sm:$0xff]
  %v50 = vld [vmem:[%s0 + $0xc4] sm:$0xf]
  %v51 = vld [vmem:[%s0 + $0xc8] sm:$0xff]
  %v52 = vld [vmem:[%s0 + $0xd0] sm:$0xff]
  %v53 = vld [vmem:[%s0 + $0xd8] sm:$0xf]
  %v54 = vld [vmem:[%s0 + $0xdc] sm:$0xff]
  %v55 = vld [vmem:[%s0 + $0xe4] sm:$0xff]
  %v56 = vld [vmem:[%s0 + $0xec] sm:$0xf]
  %v57 = vld [vmem:[%s0 + $0xf0] sm:$0xff]
  %v58 = vld [vmem:[%s0 + $0xf8] sm:$0xff]
  %v59 = vld [vmem:[%s0 + $0x100] sm:$0xf]
  %v60 = vld [vmem:[%s0 + $0x104] sm:$0xff]
  %v61 = vld [vmem:[%s0 + $0x10c] sm:$0xff]
  %v62 = vld [vmem:[%s0 + $0x114] sm:$0xf]
  %v63 = vld [vmem:[%s0 + $0x118] sm:$0xff]
  %v64 = vld [vmem:[%s0 + $0x120] sm:$0xff]
  %v65 = vld [vmem:[%s0 + $0x128] sm:$0xf]
  %v66 = vld [vmem:[%s0 + $0x12c] sm:$0xff]
  %v67 = vld [vmem:[%s0 + $0x134] sm:$0xff]
  %v68 = vld [vmem:[%s0 + $0x13c] sm:$0xf]
  %v69 = vld [vmem:[%s0 + $0x140] sm:$0xff]
  %v70 = vld [vmem:[%s0 + $0x148] sm:$0xff]
  %v71 = vld [vmem:[%s0 + $0x150] sm:$0xf]
  %v72 = vld [vmem:[%s0 + $0x154] sm:$0xff]
  %v73 = vld [vmem:[%s0 + $0x15c] sm:$0xff]
  %v74 = vld [vmem:[%s0 + $0x164] sm:$0xf]
  %v75 = vld [vmem:[%s0 + $0x168] sm:$0xff]
  %v76 = vld [vmem:[%s0 + $0x170] sm:$0xff]
  %v77 = vld [vmem:[%s0 + $0x178] sm:$0xf]
  %v78 = vld [vmem:[%s0 + $0x17c] sm:$0xff]
  %v79 = vld [vmem:[%s0 + $0x184] sm:$0xff]
  %v80 = vld [vmem:[%s0 + $0x18c] sm:$0xf]
  %v81 = vld [vmem:[%s0 + $0x190] sm:$0xff]
  %v82 = vld [vmem:[%s0 + $0x198] sm:$0xff]
  %v83 = vld [vmem:[%s0 + $0x1a0] sm:$0xf]
  %v84 = vld [vmem:[%s0 + $0x1a4] sm:$0xff]
  %v85 = vld [vmem:[%s0 + $0x1ac] sm:$0xff]
  %v86 = vld [vmem:[%s0 + $0x1b4] sm:$0xf]
  %v87 = vld [vmem:[%s0 + $0x1b8] sm:$0xff]
  %v88 = vld [vmem:[%s0 + $0x1c0] sm:$0xff]
  %v89 = vld [vmem:[%s0 + $0x1c8] sm:$0xf]
  %v90 = vld [vmem:[%s0 + $0x1cc] sm:$0xff]
  %v91 = vld [vmem:[%s0 + $0x1d4] sm:$0xff]
  %v92 = vld [vmem:[%s0 + $0x1dc] sm:$0xf]
  %v93 = vld [vmem:[%s1] sm:$0xf]
  %v94 = vld [vmem:[%s1 + $0x4] sm:$0xf]
  %v95 = vld [vmem:[%s1 + $0x8] sm:$0xf]
  %v96 = vld [vmem:[%s1 + $0xc] sm:$0xf]
  %v97 = vld [vmem:[%s1 + $0x10] sm:$0xf]
  %v98 = vld [vmem:[%s1 + $0x14] sm:$0xf]
  %v99 = vld [vmem:[%s1 + $0x18] sm:$0xf]
  %v100 = vld [vmem:[%s1 + $0x1c] sm:$0xf]
  %v101 = vld [vmem:[%s1 + $0x20] sm:$0xf]
  %v102 = vld [vmem:[%s1 + $0x24] sm:$0xf]
  %v103 = vld [vmem:[%s1 + $0x28] sm:$0xf]
  %v104 = vld [vmem:[%s1 + $0x2c] sm:$0xf]
  %v105 = vld [vmem:[%s1 + $0x30] sm:$0xf]
  %v106 = vld [vmem:[%s1 + $0x34] sm:$0xf]
  %v107 = vld [vmem:[%s1 + $0x38] sm:$0xf]
  %v108 = vld [vmem:[%s1 + $0x3c] sm:$0xf]
  %v109 = vld [vmem:[%s1 + $0x40] sm:$0xf]
  %v110 = vld [vmem:[%s1 + $0x44] sm:$0xf]
  %v111 = vld [vmem:[%s1 + $0x48] sm:$0xf]
  %v112 = vld [vmem:[%s1 + $0x4c] sm:$0xf]
  %v113 = vld [vmem:[%s1 + $0x50] sm:$0xf]
  %v114 = vld [vmem:[%s1 + $0x54] sm:$0xf]
  %v115 = vld [vmem:[%s1 + $0x58] sm:$0xf]
  %v116 = vld [vmem:[%s1 + $0x5c] sm:$0xf]
  %v117 = vld [vmem:[%s1 + $0x60] sm:$0xf]
  %v118 = vld [vmem:[%s1 + $0x64] sm:$0xf]
  %v119 = vld [vmem:[%s1 + $0x68] sm:$0xf]
  %v120 = vld [vmem:[%s1 + $0x6c] sm:$0xf]
  %v121 = vld [vmem:[%s1 + $0x70] sm:$0xf]
  %v122 = vld [vmem:[%s1 + $0x74] sm:$0xf]
  %v123 = vld [vmem:[%s1 + $0x78] sm:$0xf]
  %v124 = vld [vmem:[%s1 + $0x7c] sm:$0xf]
  %v125 = vld [vmem:[%s1 + $0x80] sm:$0xf]
  %v126 = vld [vmem:[%s1 + $0x84] sm:$0xf]
  %v127 = vld [vmem:[%s1 + $0x88] sm:$0xf]
  %v128 = vld [vmem:[%s1 + $0x8c] sm:$0xf]
  %v129 = vld [vmem:[%s1 + $0x90] sm:$0xf]
  %v130 = vld [vmem:[%s1 + $0x94] sm:$0xf]
  %v131 = vld [vmem:[%s1 + $0x98] sm:$0xf]
  %v132 = vld [vmem:[%s1 + $0x9c] sm:$0xf]
  %v133 = vld [vmem:[%s1 + $0xa0] sm:$0xf]
  %v134 = vld [vmem:[%s1 + $0xa4] sm:$0xf]
  %v135 = vld [vmem:[%s1 + $0xa8] sm:$0xf]
  %v136 = vld [vmem:[%s1 + $0xac] sm:$0xf]
  %v137 = vld [vmem:[%s1 + $0xb0] sm:$0xf]
  %v138 = vld [vmem:[%s1 + $0xb4] sm:$0xf]
  %v139 = vld [vmem:[%s1 + $0xb8] sm:$0xf]
  %v140 = vld [vmem:[%s1 + $0xbc] sm:$0xf]
  %v141 = vld [vmem:[%s1 + $0xc0] sm:$0xf]
  %v142 = vld [vmem:[%s1 + $0xc4] sm:$0xf]
  %v143 = vld [vmem:[%s1 + $0xc8] sm:$0xf]
  %v144 = vld [vmem:[%s1 + $0xcc] sm:$0xf]
  %v145 = vld [vmem:[%s1 + $0xd0] sm:$0xf]
  %v146 = vld [vmem:[%s1 + $0xd4] sm:$0xf]
  %v147 = vld [vmem:[%s1 + $0xd8] sm:$0xf]
  %v148 = vld [vmem:[%s1 + $0xdc] sm:$0xf]
  %v149 = vld [vmem:[%s1 + $0xe0] sm:$0xf]
  %v150 = vld [vmem:[%s1 + $0xe4] sm:$0xf]
  %v151 = vld [vmem:[%s1 + $0xe8] sm:$0xf]
  %v152 = vld [vmem:[%s1 + $0xec] sm:$0xf]
  %v153 = vld [vmem:[%s1 + $0xf0] sm:$0xf]
  %v154 = vld [vmem:[%s1 + $0xf4] sm:$0xf]
  %v155 = vld [vmem:[%s1 + $0xf8] sm:$0xf]
  %v156 = vld [vmem:[%s1 + $0xfc] sm:$0xf]
  %v157 = vld [vmem:[%s1 + $0x100] sm:$0xf]
  %v158 = vld [vmem:[%s1 + $0x104] sm:$0xf]
  %v159 = vld [vmem:[%s1 + $0x108] sm:$0xf]
  %v160 = vld [vmem:[%s1 + $0x10c] sm:$0xf]
  %v161 = vld [vmem:[%s1 + $0x110] sm:$0xf]
  %v162 = vld [vmem:[%s1 + $0x114] sm:$0xf]
  %v163 = vld [vmem:[%s1 + $0x118] sm:$0xf]
  %v164 = vld [vmem:[%s1 + $0x11c] sm:$0xf]
  %v165 = vld [vmem:[%s2] sm:$0x1]
  %v167 = vlaneseq
  %v168 = vshrl.u32 %v167, 7
  %v169 = vsub.s32 0, %v168
  %v170 = vrot.slane %v165, %v169
  %v244 = vunpack.c.l.b16 %v21
  %v245 = vunpack.c.h.b16 %v21
  %v246 = vunpack.c.l.b16 %v22
  %v247 = vunpack.c.h.b16 %v22
  %v248 = vunpack.c.l.b16 %v23
  %v249 = vunpack.c.l.b16 %v24
  %v250 = vunpack.c.h.b16 %v24
  %v251 = vunpack.c.l.b16 %v25
  %v252 = vunpack.c.h.b16 %v25
  %v253 = vunpack.c.l.b16 %v26
  %v254 = vunpack.c.l.b16 %v27
  %v255 = vunpack.c.h.b16 %v27
  %v256 = vunpack.c.l.b16 %v28
  %v257 = vunpack.c.h.b16 %v28
  %v258 = vunpack.c.l.b16 %v29
  %v259 = vunpack.c.l.b16 %v30
  %v260 = vunpack.c.h.b16 %v30
  %v261 = vunpack.c.l.b16 %v31
  %v262 = vunpack.c.h.b16 %v31
  %v263 = vunpack.c.l.b16 %v32
  %v264 = vunpack.c.l.b16 %v33
  %v265 = vunpack.c.h.b16 %v33
  %v266 = vunpack.c.l.b16 %v34
  %v267 = vunpack.c.h.b16 %v34
  %v268 = vunpack.c.l.b16 %v35
  %v269 = vunpack.c.l.b16 %v36
  %v270 = vunpack.c.h.b16 %v36
  %v271 = vunpack.c.l.b16 %v37
  %v272 = vunpack.c.h.b16 %v37
  %v273 = vunpack.c.l.b16 %v38
  %v274 = vunpack.c.l.b16 %v39
  %v275 = vunpack.c.h.b16 %v39
  %v276 = vunpack.c.l.b16 %v40
  %v277 = vunpack.c.h.b16 %v40
  %v278 = vunpack.c.l.b16 %v41
  %v279 = vunpack.c.l.b16 %v42
  %v280 = vunpack.c.h.b16 %v42
  %v281 = vunpack.c.l.b16 %v43
  %v282 = vunpack.c.h.b16 %v43
  %v283 = vunpack.c.l.b16 %v44
  %v284 = vunpack.c.l.b16 %v45
  %v285 = vunpack.c.h.b16 %v45
  %v286 = vunpack.c.l.b16 %v46
  %v287 = vunpack.c.h.b16 %v46
  %v288 = vunpack.c.l.b16 %v47
  %v289 = vunpack.c.l.b16 %v48
  %v290 = vunpack.c.h.b16 %v48
  %v291 = vunpack.c.l.b16 %v49
  %v292 = vunpack.c.h.b16 %v49
  %v293 = vunpack.c.l.b16 %v50
  %v294 = vunpack.c.l.b16 %v51
  %v295 = vunpack.c.h.b16 %v51
  %v296 = vunpack.c.l.b16 %v52
  %v297 = vunpack.c.h.b16 %v52
  %v298 = vunpack.c.l.b16 %v53
  %v299 = vunpack.c.l.b16 %v54
  %v300 = vunpack.c.h.b16 %v54
  %v301 = vunpack.c.l.b16 %v55
  %v302 = vunpack.c.h.b16 %v55
  %v303 = vunpack.c.l.b16 %v56
  %v304 = vunpack.c.l.b16 %v57
  %v305 = vunpack.c.h.b16 %v57
  %v306 = vunpack.c.l.b16 %v58
  %v307 = vunpack.c.h.b16 %v58
  %v308 = vunpack.c.l.b16 %v59
  %v309 = vunpack.c.l.b16 %v60
  %v310 = vunpack.c.h.b16 %v60
  %v311 = vunpack.c.l.b16 %v61
  %v312 = vunpack.c.h.b16 %v61
  %v313 = vunpack.c.l.b16 %v62
  %v314 = vunpack.c.l.b16 %v63
  %v315 = vunpack.c.h.b16 %v63
  %v316 = vunpack.c.l.b16 %v64
  %v317 = vunpack.c.h.b16 %v64
  %v318 = vunpack.c.l.b16 %v65
  %v319 = vunpack.c.l.b16 %v66
  %v320 = vunpack.c.h.b16 %v66
  %v321 = vunpack.c.l.b16 %v67
  %v322 = vunpack.c.h.b16 %v67
  %v323 = vunpack.c.l.b16 %v68
  %v324 = vunpack.c.l.b16 %v69
  %v325 = vunpack.c.h.b16 %v69
  %v326 = vunpack.c.l.b16 %v70
  %v327 = vunpack.c.h.b16 %v70
  %v328 = vunpack.c.l.b16 %v71
  %v329 = vunpack.c.l.b16 %v72
  %v330 = vunpack.c.h.b16 %v72
  %v331 = vunpack.c.l.b16 %v73
  %v332 = vunpack.c.h.b16 %v73
  %v333 = vunpack.c.l.b16 %v74
  %v334 = vunpack.c.l.b16 %v75
  %v335 = vunpack.c.h.b16 %v75
  %v336 = vunpack.c.l.b16 %v76
  %v337 = vunpack.c.h.b16 %v76
  %v338 = vunpack.c.l.b16 %v77
  %v339 = vunpack.c.l.b16 %v78
  %v340 = vunpack.c.h.b16 %v78
  %v341 = vunpack.c.l.b16 %v79
  %v342 = vunpack.c.h.b16 %v79
  %v343 = vunpack.c.l.b16 %v80
  %v344 = vunpack.c.l.b16 %v81
  %v345 = vunpack.c.h.b16 %v81
  %v346 = vunpack.c.l.b16 %v82
  %v347 = vunpack.c.h.b16 %v82
  %v348 = vunpack.c.l.b16 %v83
  %v349 = vunpack.c.l.b16 %v84
  %v350 = vunpack.c.h.b16 %v84
  %v351 = vunpack.c.l.b16 %v85
  %v352 = vunpack.c.h.b16 %v85
  %v353 = vunpack.c.l.b16 %v86
  %v354 = vunpack.c.l.b16 %v87
  %v355 = vunpack.c.h.b16 %v87
  %v356 = vunpack.c.l.b16 %v88
  %v357 = vunpack.c.h.b16 %v88
  %v358 = vunpack.c.l.b16 %v89
  %v359 = vunpack.c.l.b16 %v90
  %v360 = vunpack.c.h.b16 %v90
  %v361 = vunpack.c.l.b16 %v91
  %v362 = vunpack.c.h.b16 %v91
  %v363 = vunpack.c.l.b16 %v92
  %v364 = vpack.c.b16 %v249, %v244
  %v365 = vpack.c.b16 %v250, %v245
  %v366 = vpack.c.b16 %v251, %v246
  %v367 = vpack.c.b16 %v252, %v247
  %v368 = vpack.c.b16 %v253, %v248
  %v369 = vpack.c.b16 %v259, %v254
  %v370 = vpack.c.b16 %v260, %v255
  %v371 = vpack.c.b16 %v261, %v256
  %v372 = vpack.c.b16 %v262, %v257
  %v373 = vpack.c.b16 %v263, %v258
  %v374 = vpack.c.b16 %v269, %v264
  %v375 = vpack.c.b16 %v270, %v265
  %v376 = vpack.c.b16 %v271, %v266
  %v377 = vpack.c.b16 %v272, %v267
  %v378 = vpack.c.b16 %v273, %v268
  %v379 = vpack.c.b16 %v279, %v274
  %v380 = vpack.c.b16 %v280, %v275
  %v381 = vpack.c.b16 %v281, %v276
  %v382 = vpack.c.b16 %v282, %v277
  %v383 = vpack.c.b16 %v283, %v278
  %v384 = vpack.c.b16 %v289, %v284
  %v385 = vpack.c.b16 %v290, %v285
  %v386 = vpack.c.b16 %v291, %v286
  %v387 = vpack.c.b16 %v292, %v287
  %v388 = vpack.c.b16 %v293, %v288
  %v389 = vpack.c.b16 %v299, %v294
  %v390 = vpack.c.b16 %v300, %v295
  %v391 = vpack.c.b16 %v301, %v296
  %v392 = vpack.c.b16 %v302, %v297
  %v393 = vpack.c.b16 %v303, %v298
  %v394 = vpack.c.b16 %v309, %v304
  %v395 = vpack.c.b16 %v310, %v305
  %v396 = vpack.c.b16 %v311, %v306
  %v397 = vpack.c.b16 %v312, %v307
  %v398 = vpack.c.b16 %v313, %v308
  %v399 = vpack.c.b16 %v319, %v314
  %v400 = vpack.c.b16 %v320, %v315
  %v401 = vpack.c.b16 %v321, %v316
  %v402 = vpack.c.b16 %v322, %v317
  %v403 = vpack.c.b16 %v323, %v318
  %v404 = vpack.c.b16 %v329, %v324
  %v405 = vpack.c.b16 %v330, %v325
  %v406 = vpack.c.b16 %v331, %v326
  %v407 = vpack.c.b16 %v332, %v327
  %v408 = vpack.c.b16 %v333, %v328
  %v409 = vpack.c.b16 %v339, %v334
  %v410 = vpack.c.b16 %v340, %v335
  %v411 = vpack.c.b16 %v341, %v336
  %v412 = vpack.c.b16 %v342, %v337
  %v413 = vpack.c.b16 %v343, %v338
  %v414 = vpack.c.b16 %v349, %v344
  %v415 = vpack.c.b16 %v350, %v345
  %v416 = vpack.c.b16 %v351, %v346
  %v417 = vpack.c.b16 %v352, %v347
  %v418 = vpack.c.b16 %v353, %v348
  %v419 = vpack.c.b16 %v359, %v354
  %v420 = vpack.c.b16 %v360, %v355
  %v421 = vpack.c.b16 %v361, %v356
  %v422 = vpack.c.b16 %v362, %v357
  %v423 = vpack.c.b16 %v363, %v358
  %v544 = vunpack.c.l.b16 %v93
  %v545 = vunpack.c.l.b16 %v94
  %v546 = vunpack.c.l.b16 %v95
  %v547 = vunpack.c.l.b16 %v96
  %v548 = vunpack.c.l.b16 %v97
  %v549 = vunpack.c.l.b16 %v98
  %v550 = vunpack.c.l.b16 %v99
  %v551 = vunpack.c.l.b16 %v100
  %v552 = vunpack.c.l.b16 %v101
  %v553 = vunpack.c.l.b16 %v102
  %v554 = vunpack.c.l.b16 %v103
  %v555 = vunpack.c.l.b16 %v104
  %v556 = vunpack.c.l.b16 %v105
  %v557 = vunpack.c.l.b16 %v106
  %v558 = vunpack.c.l.b16 %v107
  %v559 = vunpack.c.l.b16 %v108
  %v560 = vunpack.c.l.b16 %v109
  %v561 = vunpack.c.l.b16 %v110
  %v562 = vunpack.c.l.b16 %v111
  %v563 = vunpack.c.l.b16 %v112
  %v564 = vunpack.c.l.b16 %v113
  %v565 = vunpack.c.l.b16 %v114
  %v566 = vunpack.c.l.b16 %v115
  %v567 = vunpack.c.l.b16 %v116
  %v568 = vunpack.c.l.b16 %v117
  %v569 = vunpack.c.l.b16 %v118
  %v570 = vunpack.c.l.b16 %v119
  %v571 = vunpack.c.l.b16 %v120
  %v572 = vunpack.c.l.b16 %v121
  %v573 = vunpack.c.l.b16 %v122
  %v574 = vunpack.c.l.b16 %v123
  %v575 = vunpack.c.l.b16 %v124
  %v576 = vunpack.c.l.b16 %v125
  %v577 = vunpack.c.l.b16 %v126
  %v578 = vunpack.c.l.b16 %v127
  %v579 = vunpack.c.l.b16 %v128
  %v580 = vunpack.c.l.b16 %v129
  %v581 = vunpack.c.l.b16 %v130
  %v582 = vunpack.c.l.b16 %v131
  %v583 = vunpack.c.l.b16 %v132
  %v584 = vunpack.c.l.b16 %v133
  %v585 = vunpack.c.l.b16 %v134
  %v586 = vunpack.c.l.b16 %v135
  %v587 = vunpack.c.l.b16 %v136
  %v588 = vunpack.c.l.b16 %v137
  %v589 = vunpack.c.l.b16 %v138
  %v590 = vunpack.c.l.b16 %v139
  %v591 = vunpack.c.l.b16 %v140
  %v592 = vunpack.c.l.b16 %v141
  %v593 = vunpack.c.l.b16 %v142
  %v594 = vunpack.c.l.b16 %v143
  %v595 = vunpack.c.l.b16 %v144
  %v596 = vunpack.c.l.b16 %v145
  %v597 = vunpack.c.l.b16 %v146
  %v598 = vunpack.c.l.b16 %v147
  %v599 = vunpack.c.l.b16 %v148
  %v600 = vunpack.c.l.b16 %v149
  %v601 = vunpack.c.l.b16 %v150
  %v602 = vunpack.c.l.b16 %v151
  %v603 = vunpack.c.l.b16 %v152
  %v604 = vunpack.c.l.b16 %v153
  %v605 = vunpack.c.l.b16 %v154
  %v606 = vunpack.c.l.b16 %v155
  %v607 = vunpack.c.l.b16 %v156
  %v608 = vunpack.c.l.b16 %v157
  %v609 = vunpack.c.l.b16 %v158
  %v610 = vunpack.c.l.b16 %v159
  %v611 = vunpack.c.l.b16 %v160
  %v612 = vunpack.c.l.b16 %v161
  %v613 = vunpack.c.l.b16 %v162
  %v614 = vunpack.c.l.b16 %v163
  %v615 = vunpack.c.l.b16 %v164
  %v616 = vpack.c.b16 %v545, %v544
  %v617 = vpack.c.b16 %v547, %v546
  %v618 = vpack.c.b16 %v549, %v548
  %v619 = vpack.c.b16 %v551, %v550
  %v620 = vpack.c.b16 %v553, %v552
  %v621 = vpack.c.b16 %v555, %v554
  %v622 = vpack.c.b16 %v557, %v556
  %v623 = vpack.c.b16 %v559, %v558
  %v624 = vpack.c.b16 %v561, %v560
  %v625 = vpack.c.b16 %v563, %v562
  %v626 = vpack.c.b16 %v565, %v564
  %v627 = vpack.c.b16 %v567, %v566
  %v628 = vpack.c.b16 %v569, %v568
  %v629 = vpack.c.b16 %v571, %v570
  %v630 = vpack.c.b16 %v573, %v572
  %v631 = vpack.c.b16 %v575, %v574
  %v632 = vpack.c.b16 %v577, %v576
  %v633 = vpack.c.b16 %v579, %v578
  %v634 = vpack.c.b16 %v581, %v580
  %v635 = vpack.c.b16 %v583, %v582
  %v636 = vpack.c.b16 %v585, %v584
  %v637 = vpack.c.b16 %v587, %v586
  %v638 = vpack.c.b16 %v589, %v588
  %v639 = vpack.c.b16 %v591, %v590
  %v640 = vpack.c.b16 %v593, %v592
  %v641 = vpack.c.b16 %v595, %v594
  %v642 = vpack.c.b16 %v597, %v596
  %v643 = vpack.c.b16 %v599, %v598
  %v644 = vpack.c.b16 %v601, %v600
  %v645 = vpack.c.b16 %v603, %v602
  %v646 = vpack.c.b16 %v605, %v604
  %v647 = vpack.c.b16 %v607, %v606
  %v648 = vpack.c.b16 %v609, %v608
  %v649 = vpack.c.b16 %v611, %v610
  %v650 = vpack.c.b16 %v613, %v612
  %v651 = vpack.c.b16 %v615, %v614
  %vm688 = vcmask 523264
  %v690 = vsel %vm688, %v368, 0
  %v693 = vsel %vm688, %v373, 0
  %v696 = vsel %vm688, %v378, 0
  %v699 = vsel %vm688, %v383, 0
  %v702 = vsel %vm688, %v388, 0
  %v705 = vsel %vm688, %v393, 0
  %v708 = vsel %vm688, %v398, 0
  %v711 = vsel %vm688, %v403, 0
  %v714 = vsel %vm688, %v408, 0
  %v717 = vsel %vm688, %v413, 0
  %v720 = vsel %vm688, %v418, 0
  %v723 = vsel %vm688, %v423, 0
  %725 = vmatprep.subr.bf16.mxu0 0
  %726 = vmatpush1.bf16.msra.mxu0 %v616
  %727 = vmatprep.subr.bf16.mxu0 0
  %728 = vmatpush1.bf16.msra.mxu0 %v617
  %729 = vmatprep.subr.bf16.mxu0 0
  %730 = vmatpush1.bf16.msra.mxu0 %v618
  %731 = vmatprep.subr.bf16.mxu0 0
  %732 = vmatpush1.bf16.msra.mxu0 %v619
  %733 = vmatprep.subr.bf16.mxu0 0
  %734 = vmatpush1.bf16.msra.mxu0 %v620
  %735 = vmatprep.subr.bf16.mxu0 0
  %736 = vmatpush1.bf16.msra.mxu0 %v621
  %737 = vmatprep.subr.bf16.mxu0 0
  %738 = vmatpush1.bf16.msra.mxu0 %v622
  %739 = vmatprep.subr.bf16.mxu0 0
  %740 = vmatpush1.bf16.msra.mxu0 %v623
  %741 = vmatprep.subr.bf16.mxu0 0
  %742 = vmatpush1.bf16.msra.mxu0 %v624
  %743 = vmatprep.subr.bf16.mxu0 0
  %744 = vmatpush1.bf16.msra.mxu0 %v625
  %745 = vmatprep.subr.bf16.mxu0 0
  %746 = vmatpush1.bf16.msra.mxu0 %v626
  %747 = vmatprep.subr.bf16.mxu0 0
  %748 = vmatpush1.bf16.msra.mxu0 %v627
  %749 = vmatprep.subr.bf16.mxu0 0
  %750 = vmatpush1.bf16.msra.mxu0 %v628
  %751 = vmatprep.subr.bf16.mxu0 0
  %752 = vmatpush1.bf16.msra.mxu0 %v629
  %753 = vmatprep.subr.bf16.mxu0 0
  %754 = vmatpush1.bf16.msra.mxu0 %v630
  %755 = vmatprep.subr.bf16.mxu0 0
  %756 = vmatpush1.bf16.msra.mxu0 %v631
  %757 = vmatprep.mubr.bf16.mxu0 %v365
  %758 = vmatmul.mubr.bf16.gmra.mrb[0].mxu0 %v364
  %v759 = vpop.f32.mrb[0].mxu0
  %v760 = vadd.f32 %v170, %v759
  %v761 = vpop.f32.mrb[0].mxu0
  %v762 = vpop.f32.mrb[0].mxu0
  %v763 = vadd.f32 %v170, %v762
  %v764 = vpop.f32.mrb[0].mxu0
  %765 = vmatprep.mubr.bf16.mxu0 %v370
  %766 = vmatmul.mubr.bf16.gmra.mrb[0].mxu0 %v369
  %v767 = vpop.f32.mrb[0].mxu0
  %v768 = vadd.f32 %v170, %v767
  %v769 = vpop.f32.mrb[0].mxu0
  %v770 = vpop.f32.mrb[0].mxu0
  %v771 = vadd.f32 %v170, %v770
  %v772 = vpop.f32.mrb[0].mxu0
  %773 = vmatprep.mubr.bf16.mxu0 %v375
  %774 = vmatmul.mubr.bf16.gmra.mrb[0].mxu0 %v374
  %v775 = vpop.f32.mrb[0].mxu0
  %v776 = vadd.f32 %v170, %v775
  %v777 = vpop.f32.mrb[0].mxu0
  %v778 = vpop.f32.mrb[0].mxu0
  %v779 = vadd.f32 %v170, %v778
  %v780 = vpop.f32.mrb[0].mxu0
  %781 = vmatprep.mubr.bf16.mxu0 %v380
  %782 = vmatmul.mubr.bf16.gmra.mrb[0].mxu0 %v379
  %v783 = vpop.f32.mrb[0].mxu0
  %v784 = vadd.f32 %v170, %v783
  %v785 = vpop.f32.mrb[0].mxu0
  %v786 = vpop.f32.mrb[0].mxu0
  %v787 = vadd.f32 %v170, %v786
  %v788 = vpop.f32.mrb[0].mxu0
  %789 = vmatprep.mubr.bf16.mxu0 %v385
  %790 = vmatmul.mubr.bf16.gmra.mrb[0].mxu0 %v384
  %v791 = vpop.f32.mrb[0].mxu0
  %v792 = vadd.f32 %v170, %v791
  %v793 = vpop.f32.mrb[0].mxu0
  %v794 = vpop.f32.mrb[0].mxu0
  %v795 = vadd.f32 %v170, %v794
  %v796 = vpop.f32.mrb[0].mxu0
  %797 = vmatprep.mubr.bf16.mxu0 %v390
  %798 = vmatmul.mubr.bf16.gmra.mrb[0].mxu0 %v389
  %v799 = vpop.f32.mrb[0].mxu0
  %v800 = vadd.f32 %v170, %v799
  %v801 = vpop.f32.mrb[0].mxu0
  %v802 = vpop.f32.mrb[0].mxu0
  %v803 = vadd.f32 %v170, %v802
  %v804 = vpop.f32.mrb[0].mxu0
  %805 = vmatprep.mubr.bf16.mxu0 %v395
  %806 = vmatmul.mubr.bf16.gmra.mrb[0].mxu0 %v394
  %v807 = vpop.f32.mrb[0].mxu0
  %v808 = vadd.f32 %v170, %v807
  %v809 = vpop.f32.mrb[0].mxu0
  %v810 = vpop.f32.mrb[0].mxu0
  %v811 = vadd.f32 %v170, %v810
  %v812 = vpop.f32.mrb[0].mxu0
  %813 = vmatprep.mubr.bf16.mxu0 %v400
  %814 = vmatmul.mubr.bf16.gmra.mrb[0].mxu0 %v399
  %v815 = vpop.f32.mrb[0].mxu0
  %v816 = vadd.f32 %v170, %v815
  %v817 = vpop.f32.mrb[0].mxu0
  %v818 = vpop.f32.mrb[0].mxu0
  %v819 = vadd.f32 %v170, %v818
  %v820 = vpop.f32.mrb[0].mxu0
  %821 = vmatprep.mubr.bf16.mxu0 %v405
  %822 = vmatmul.mubr.bf16.gmra.mrb[0].mxu0 %v404
  %v823 = vpop.f32.mrb[0].mxu0
  %v824 = vadd.f32 %v170, %v823
  %v825 = vpop.f32.mrb[0].mxu0
  %v826 = vpop.f32.mrb[0].mxu0
  %v827 = vadd.f32 %v170, %v826
  %v828 = vpop.f32.mrb[0].mxu0
  %829 = vmatprep.mubr.bf16.mxu0 %v410
  %830 = vmatmul.mubr.bf16.gmra.mrb[0].mxu0 %v409
  %v831 = vpop.f32.mrb[0].mxu0
  %v832 = vadd.f32 %v170, %v831
  %v833 = vpop.f32.mrb[0].mxu0
  %v834 = vpop.f32.mrb[0].mxu0
  %v835 = vadd.f32 %v170, %v834
  %v836 = vpop.f32.mrb[0].mxu0
  %837 = vmatprep.mubr.bf16.mxu0 %v415
  %838 = vmatmul.mubr.bf16.gmra.mrb[0].mxu0 %v414
  %v839 = vpop.f32.mrb[0].mxu0
  %v840 = vadd.f32 %v170, %v839
  %v841 = vpop.f32.mrb[0].mxu0
  %v842 = vpop.f32.mrb[0].mxu0
  %v843 = vadd.f32 %v170, %v842
  %v844 = vpop.f32.mrb[0].mxu0
  %845 = vmatprep.mubr.bf16.mxu0 %v420
  %846 = vmatmul.mubr.bf16.gmra.mrb[0].mxu0 %v419
  %v847 = vpop.f32.mrb[0].mxu0
  %v848 = vadd.f32 %v170, %v847
  %v849 = vpop.f32.mrb[0].mxu0
  %v850 = vpop.f32.mrb[0].mxu0
  %v851 = vadd.f32 %v170, %v850
  %v852 = vpop.f32.mrb[0].mxu0
  %853 = vdwg.mxu0
  %854 = vmatprep.subr.bf16.mxu0 0
  %855 = vmatpush1.bf16.msra.mxu0 %v632
  %856 = vmatprep.subr.bf16.mxu0 0
  %857 = vmatpush1.bf16.msra.mxu0 %v633
  %858 = vmatprep.subr.bf16.mxu0 0
  %859 = vmatpush1.bf16.msra.mxu0 %v634
  %860 = vmatprep.subr.bf16.mxu0 0
  %861 = vmatpush1.bf16.msra.mxu0 %v635
  %862 = vmatprep.subr.bf16.mxu0 0
  %863 = vmatpush1.bf16.msra.mxu0 %v636
  %864 = vmatprep.subr.bf16.mxu0 0
  %865 = vmatpush1.bf16.msra.mxu0 %v637
  %866 = vmatprep.subr.bf16.mxu0 0
  %867 = vmatpush1.bf16.msra.mxu0 %v638
  %868 = vmatprep.subr.bf16.mxu0 0
  %869 = vmatpush1.bf16.msra.mxu0 %v639
  %870 = vmatprep.subr.bf16.mxu0 0
  %871 = vmatpush1.bf16.msra.mxu0 %v640
  %872 = vmatprep.subr.bf16.mxu0 0
  %873 = vmatpush1.bf16.msra.mxu0 %v641
  %874 = vmatprep.subr.bf16.mxu0 0
  %875 = vmatpush1.bf16.msra.mxu0 %v642
  %876 = vmatprep.subr.bf16.mxu0 0
  %877 = vmatpush1.bf16.msra.mxu0 %v643
  %878 = vmatprep.subr.bf16.mxu0 0
  %879 = vmatpush1.bf16.msra.mxu0 %v644
  %880 = vmatprep.subr.bf16.mxu0 0
  %881 = vmatpush1.bf16.msra.mxu0 %v645
  %882 = vmatprep.subr.bf16.mxu0 0
  %883 = vmatpush1.bf16.msra.mxu0 %v646
  %884 = vmatprep.subr.bf16.mxu0 0
  %885 = vmatpush1.bf16.msra.mxu0 %v647
  %886 = vmatprep.mubr.bf16.mxu0 %v367
  %887 = vmatmul.mubr.bf16.gmra.mrb[0].mxu0 %v366
  %v888 = vpop.f32.mrb[0].mxu0
  %v889 = vadd.f32 %v760, %v888
  %v890 = vpop.f32.mrb[0].mxu0
  %v891 = vpop.f32.mrb[0].mxu0
  %v892 = vadd.f32 %v763, %v891
  %v893 = vpop.f32.mrb[0].mxu0
  %894 = vmatprep.mubr.bf16.mxu0 %v372
  %895 = vmatmul.mubr.bf16.gmra.mrb[0].mxu0 %v371
  %v896 = vpop.f32.mrb[0].mxu0
  %v897 = vadd.f32 %v768, %v896
  %v898 = vpop.f32.mrb[0].mxu0
  %v899 = vpop.f32.mrb[0].mxu0
  %v900 = vadd.f32 %v771, %v899
  %v901 = vpop.f32.mrb[0].mxu0
  %902 = vmatprep.mubr.bf16.mxu0 %v377
  %903 = vmatmul.mubr.bf16.gmra.mrb[0].mxu0 %v376
  %v904 = vpop.f32.mrb[0].mxu0
  %v905 = vadd.f32 %v776, %v904
  %v906 = vpop.f32.mrb[0].mxu0
  %v907 = vpop.f32.mrb[0].mxu0
  %v908 = vadd.f32 %v779, %v907
  %v909 = vpop.f32.mrb[0].mxu0
  %910 = vmatprep.mubr.bf16.mxu0 %v382
  %911 = vmatmul.mubr.bf16.gmra.mrb[0].mxu0 %v381
  %v912 = vpop.f32.mrb[0].mxu0
  %v913 = vadd.f32 %v784, %v912
  %v914 = vpop.f32.mrb[0].mxu0
  %v915 = vpop.f32.mrb[0].mxu0
  %v916 = vadd.f32 %v787, %v915
  %v917 = vpop.f32.mrb[0].mxu0
  %918 = vmatprep.mubr.bf16.mxu0 %v387
  %919 = vmatmul.mubr.bf16.gmra.mrb[0].mxu0 %v386
  %v920 = vpop.f32.mrb[0].mxu0
  %v921 = vadd.f32 %v792, %v920
  %v922 = vpop.f32.mrb[0].mxu0
  %v923 = vpop.f32.mrb[0].mxu0
  %v924 = vadd.f32 %v795, %v923
  %v925 = vpop.f32.mrb[0].mxu0
  %926 = vmatprep.mubr.bf16.mxu0 %v392
  %927 = vmatmul.mubr.bf16.gmra.mrb[0].mxu0 %v391
  %v928 = vpop.f32.mrb[0].mxu0
  %v929 = vadd.f32 %v800, %v928
  %v930 = vpop.f32.mrb[0].mxu0
  %v931 = vpop.f32.mrb[0].mxu0
  %v932 = vadd.f32 %v803, %v931
  %v933 = vpop.f32.mrb[0].mxu0
  %934 = vmatprep.mubr.bf16.mxu0 %v397
  %935 = vmatmul.mubr.bf16.gmra.mrb[0].mxu0 %v396
  %v936 = vpop.f32.mrb[0].mxu0
  %v937 = vadd.f32 %v808, %v936
  %v938 = vpop.f32.mrb[0].mxu0
  %v939 = vpop.f32.mrb[0].mxu0
  %v940 = vadd.f32 %v811, %v939
  %v941 = vpop.f32.mrb[0].mxu0
  %942 = vmatprep.mubr.bf16.mxu0 %v402
  %943 = vmatmul.mubr.bf16.gmra.mrb[0].mxu0 %v401
  %v944 = vpop.f32.mrb[0].mxu0
  %v945 = vadd.f32 %v816, %v944
  %v946 = vpop.f32.mrb[0].mxu0
  %v947 = vpop.f32.mrb[0].mxu0
  %v948 = vadd.f32 %v819, %v947
  %v949 = vpop.f32.mrb[0].mxu0
  %950 = vmatprep.mubr.bf16.mxu0 %v407
  %951 = vmatmul.mubr.bf16.gmra.mrb[0].mxu0 %v406
  %v952 = vpop.f32.mrb[0].mxu0
  %v953 = vadd.f32 %v824, %v952
  %v954 = vpop.f32.mrb[0].mxu0
  %v955 = vpop.f32.mrb[0].mxu0
  %v956 = vadd.f32 %v827, %v955
  %v957 = vpop.f32.mrb[0].mxu0
  %958 = vmatprep.mubr.bf16.mxu0 %v412
  %959 = vmatmul.mubr.bf16.gmra.mrb[0].mxu0 %v411
  %v960 = vpop.f32.mrb[0].mxu0
  %v961 = vadd.f32 %v832, %v960
  %v962 = vpop.f32.mrb[0].mxu0
  %v963 = vpop.f32.mrb[0].mxu0
  %v964 = vadd.f32 %v835, %v963
  %v965 = vpop.f32.mrb[0].mxu0
  %966 = vmatprep.mubr.bf16.mxu0 %v417
  %967 = vmatmul.mubr.bf16.gmra.mrb[0].mxu0 %v416
  %v968 = vpop.f32.mrb[0].mxu0
  %v969 = vadd.f32 %v840, %v968
  %v970 = vpop.f32.mrb[0].mxu0
  %v971 = vpop.f32.mrb[0].mxu0
  %v972 = vadd.f32 %v843, %v971
  %v973 = vpop.f32.mrb[0].mxu0
  %974 = vmatprep.mubr.bf16.mxu0 %v422
  %975 = vmatmul.mubr.bf16.gmra.mrb[0].mxu0 %v421
  %v976 = vpop.f32.mrb[0].mxu0
  %v977 = vadd.f32 %v848, %v976
  %v978 = vpop.f32.mrb[0].mxu0
  %v979 = vpop.f32.mrb[0].mxu0
  %v980 = vadd.f32 %v851, %v979
  %v981 = vpop.f32.mrb[0].mxu0
  %982 = vdwg.mxu0
  %983 = vmatprep.subr.bf16.mxu0 0
  %984 = vmatpush1.bf16.msra.mxu0 %v648
  %985 = vmatprep.subr.bf16.mxu0 0
  %986 = vmatpush1.bf16.msra.mxu0 %v649
  %987 = vmatprep.subr.bf16.mxu0 0
  %988 = vmatpush1.bf16.msra.mxu0 %v650
  %989 = vmatprep.subr.bf16.mxu0 0
  %990 = vmatpush1.bf16.msra.mxu0 %v651
  %991 = vmatprep.subr.bf16.mxu0 0
  %992 = vmatpush1.bf16.msra.mxu0 0
  %993 = vmatprep.subr.bf16.mxu0 0
  %994 = vmatpush1.bf16.msra.mxu0 0
  %995 = vmatprep.subr.bf16.mxu0 0
  %996 = vmatpush1.bf16.msra.mxu0 0
  %997 = vmatprep.subr.bf16.mxu0 0
  %998 = vmatpush1.bf16.msra.mxu0 0
  %999 = vmatprep.subr.bf16.mxu0 0
  %1000 = vmatpush1.bf16.msra.mxu0 0
  %1001 = vmatprep.subr.bf16.mxu0 0
  %1002 = vmatpush1.bf16.msra.mxu0 0
  %1003 = vmatprep.subr.bf16.mxu0 0
  %1004 = vmatpush1.bf16.msra.mxu0 0
  %1005 = vmatprep.subr.bf16.mxu0 0
  %1006 = vmatpush1.bf16.msra.mxu0 0
  %1007 = vmatprep.subr.bf16.mxu0 0
  %1008 = vmatpush1.bf16.msra.mxu0 0
  %1009 = vmatprep.subr.bf16.mxu0 0
  %1010 = vmatpush1.bf16.msra.mxu0 0
  %1011 = vmatprep.subr.bf16.mxu0 0
  %1012 = vmatpush1.bf16.msra.mxu0 0
  %1013 = vmatprep.subr.bf16.mxu0 0
  %1014 = vmatpush1.bf16.msra.mxu0 0
  %1015 = vmatprep.mubr.bf16.mxu0 0
  %1016 = vmatmul.mubr.bf16.gmra.mrb[0].mxu0 %v690
  %v1017 = vpop.f32.mrb[0].mxu0
  %v1018 = vadd.f32 %v889, %v1017
  %v1019 = vpop.f32.mrb[0].mxu0
  %v1020 = vpop.f32.mrb[0].mxu0
  %v1021 = vadd.f32 %v892, %v1020
  %v1022 = vpop.f32.mrb[0].mxu0
  %1023 = vmatprep.mubr.bf16.mxu0 0
  %1024 = vmatmul.mubr.bf16.gmra.mrb[0].mxu0 %v693
  %v1025 = vpop.f32.mrb[0].mxu0
  %v1026 = vadd.f32 %v897, %v1025
  %v1027 = vpop.f32.mrb[0].mxu0
  %v1028 = vpop.f32.mrb[0].mxu0
  %v1029 = vadd.f32 %v900, %v1028
  %v1030 = vpop.f32.mrb[0].mxu0
  %1031 = vmatprep.mubr.bf16.mxu0 0
  %1032 = vmatmul.mubr.bf16.gmra.mrb[0].mxu0 %v696
  %v1033 = vpop.f32.mrb[0].mxu0
  %v1034 = vadd.f32 %v905, %v1033
  %v1035 = vpop.f32.mrb[0].mxu0
  %v1036 = vpop.f32.mrb[0].mxu0
  %v1037 = vadd.f32 %v908, %v1036
  %v1038 = vpop.f32.mrb[0].mxu0
  %1039 = vmatprep.mubr.bf16.mxu0 0
  %1040 = vmatmul.mubr.bf16.gmra.mrb[0].mxu0 %v699
  %v1041 = vpop.f32.mrb[0].mxu0
  %v1042 = vadd.f32 %v913, %v1041
  %v1043 = vpop.f32.mrb[0].mxu0
  %v1044 = vpop.f32.mrb[0].mxu0
  %v1045 = vadd.f32 %v916, %v1044
  %v1046 = vpop.f32.mrb[0].mxu0
  %1047 = vmatprep.mubr.bf16.mxu0 0
  %1048 = vmatmul.mubr.bf16.gmra.mrb[0].mxu0 %v702
  %v1049 = vpop.f32.mrb[0].mxu0
  %v1050 = vadd.f32 %v921, %v1049
  %v1051 = vpop.f32.mrb[0].mxu0
  %v1052 = vpop.f32.mrb[0].mxu0
  %v1053 = vadd.f32 %v924, %v1052
  %v1054 = vpop.f32.mrb[0].mxu0
  %1055 = vmatprep.mubr.bf16.mxu0 0
  %1056 = vmatmul.mubr.bf16.gmra.mrb[0].mxu0 %v705
  %v1057 = vpop.f32.mrb[0].mxu0
  %v1058 = vadd.f32 %v929, %v1057
  %v1059 = vpop.f32.mrb[0].mxu0
  %v1060 = vpop.f32.mrb[0].mxu0
  %v1061 = vadd.f32 %v932, %v1060
  %v1062 = vpop.f32.mrb[0].mxu0
  %1063 = vmatprep.mubr.bf16.mxu0 0
  %1064 = vmatmul.mubr.bf16.gmra.mrb[0].mxu0 %v708
  %v1065 = vpop.f32.mrb[0].mxu0
  %v1066 = vadd.f32 %v937, %v1065
  %v1067 = vpop.f32.mrb[0].mxu0
  %v1068 = vpop.f32.mrb[0].mxu0
  %v1069 = vadd.f32 %v940, %v1068
  %v1070 = vpop.f32.mrb[0].mxu0
  %1071 = vmatprep.mubr.bf16.mxu0 0
  %1072 = vmatmul.mubr.bf16.gmra.mrb[0].mxu0 %v711
  %v1073 = vpop.f32.mrb[0].mxu0
  %v1074 = vadd.f32 %v945, %v1073
  %v1075 = vpop.f32.mrb[0].mxu0
  %v1076 = vpop.f32.mrb[0].mxu0
  %v1077 = vadd.f32 %v948, %v1076
  %v1078 = vpop.f32.mrb[0].mxu0
  %1079 = vmatprep.mubr.bf16.mxu0 0
  %1080 = vmatmul.mubr.bf16.gmra.mrb[0].mxu0 %v714
  %v1081 = vpop.f32.mrb[0].mxu0
  %v1082 = vadd.f32 %v953, %v1081
  %v1083 = vpop.f32.mrb[0].mxu0
  %v1084 = vpop.f32.mrb[0].mxu0
  %v1085 = vadd.f32 %v956, %v1084
  %v1086 = vpop.f32.mrb[0].mxu0
  %1087 = vmatprep.mubr.bf16.mxu0 0
  %1088 = vmatmul.mubr.bf16.gmra.mrb[0].mxu0 %v717
  %v1089 = vpop.f32.mrb[0].mxu0
  %v1090 = vadd.f32 %v961, %v1089
  %v1091 = vpop.f32.mrb[0].mxu0
  %v1092 = vpop.f32.mrb[0].mxu0
  %v1093 = vadd.f32 %v964, %v1092
  %v1094 = vpop.f32.mrb[0].mxu0
  %1095 = vmatprep.mubr.bf16.mxu0 0
  %1096 = vmatmul.mubr.bf16.gmra.mrb[0].mxu0 %v720
  %v1097 = vpop.f32.mrb[0].mxu0
  %v1098 = vadd.f32 %v969, %v1097
  %v1099 = vpop.f32.mrb[0].mxu0
  %v1100 = vpop.f32.mrb[0].mxu0
  %v1101 = vadd.f32 %v972, %v1100
  %v1102 = vpop.f32.mrb[0].mxu0
  %1103 = vmatprep.mubr.bf16.mxu0 0
  %1104 = vmatmul.mubr.bf16.gmra.mrb[0].mxu0 %v723
  %v1105 = vpop.f32.mrb[0].mxu0
  %v1106 = vadd.f32 %v977, %v1105
  %v1107 = vpop.f32.mrb[0].mxu0
  %v1108 = vpop.f32.mrb[0].mxu0
  %v1109 = vadd.f32 %v980, %v1108
  %v1110 = vpop.f32.mrb[0].mxu0
  %1111 = vdwg.mxu0
  %v1112 = vmul.f32 %v1018, %v1018
  %v1113 = vmul.f32 %v1021, %v1021
  %v1114 = vmul.f32 %v1026, %v1026
  %v1115 = vmul.f32 %v1029, %v1029
  %v1116 = vmul.f32 %v1034, %v1034
  %v1117 = vmul.f32 %v1037, %v1037
  %v1118 = vmul.f32 %v1042, %v1042
  %v1119 = vmul.f32 %v1045, %v1045
  %v1120 = vmul.f32 %v1050, %v1050
  %v1121 = vmul.f32 %v1053, %v1053
  %v1122 = vmul.f32 %v1058, %v1058
  %v1123 = vmul.f32 %v1061, %v1061
  %v1124 = vmul.f32 %v1066, %v1066
  %v1125 = vmul.f32 %v1069, %v1069
  %v1126 = vmul.f32 %v1074, %v1074
  %v1127 = vmul.f32 %v1077, %v1077
  %v1128 = vmul.f32 %v1082, %v1082
  %v1129 = vmul.f32 %v1085, %v1085
  %v1130 = vmul.f32 %v1090, %v1090
  %v1131 = vmul.f32 %v1093, %v1093
  %v1132 = vmul.f32 %v1098, %v1098
  %v1133 = vmul.f32 %v1101, %v1101
  %v1134 = vmul.f32 %v1106, %v1106
  %v1135 = vmul.f32 %v1109, %v1109
  %v1136 = vmul.f32 %v1018, %v1112
  %v1137 = vmul.f32 %v1021, %v1113
  %v1138 = vmul.f32 %v1026, %v1114
  %v1139 = vmul.f32 %v1029, %v1115
  %v1140 = vmul.f32 %v1034, %v1116
  %v1141 = vmul.f32 %v1037, %v1117
  %v1142 = vmul.f32 %v1042, %v1118
  %v1143 = vmul.f32 %v1045, %v1119
  %v1144 = vmul.f32 %v1050, %v1120
  %v1145 = vmul.f32 %v1053, %v1121
  %v1146 = vmul.f32 %v1058, %v1122
  %v1147 = vmul.f32 %v1061, %v1123
  %v1148 = vmul.f32 %v1066, %v1124
  %v1149 = vmul.f32 %v1069, %v1125
  %v1150 = vmul.f32 %v1074, %v1126
  %v1151 = vmul.f32 %v1077, %v1127
  %v1152 = vmul.f32 %v1082, %v1128
  %v1153 = vmul.f32 %v1085, %v1129
  %v1154 = vmul.f32 %v1090, %v1130
  %v1155 = vmul.f32 %v1093, %v1131
  %v1156 = vmul.f32 %v1098, %v1132
  %v1157 = vmul.f32 %v1101, %v1133
  %v1158 = vmul.f32 %v1106, %v1134
  %v1159 = vmul.f32 %v1109, %v1135
  %v1160 = vmul.f32 %v1136, 0.044715
  %v1161 = vmul.f32 %v1137, 0.044715
  %v1162 = vmul.f32 %v1138, 0.044715
  %v1163 = vmul.f32 %v1139, 0.044715
  %v1164 = vmul.f32 %v1140, 0.044715
  %v1165 = vmul.f32 %v1141, 0.044715
  %v1166 = vmul.f32 %v1142, 0.044715
  %v1167 = vmul.f32 %v1143, 0.044715
  %v1168 = vmul.f32 %v1144, 0.044715
  %v1169 = vmul.f32 %v1145, 0.044715
  %v1170 = vmul.f32 %v1146, 0.044715
  %v1171 = vmul.f32 %v1147, 0.044715
  %v1172 = vmul.f32 %v1148, 0.044715
  %v1173 = vmul.f32 %v1149, 0.044715
  %v1174 = vmul.f32 %v1150, 0.044715
  %v1175 = vmul.f32 %v1151, 0.044715
  %v1176 = vmul.f32 %v1152, 0.044715
  %v1177 = vmul.f32 %v1153, 0.044715
  %v1178 = vmul.f32 %v1154, 0.044715
  %v1179 = vmul.f32 %v1155, 0.044715
  %v1180 = vmul.f32 %v1156, 0.044715
  %v1181 = vmul.f32 %v1157, 0.044715
  %v1182 = vmul.f32 %v1158, 0.044715
  %v1183 = vmul.f32 %v1159, 0.044715
  %v1184 = vadd.f32 %v1018, %v1160
  %v1185 = vadd.f32 %v1021, %v1161
  %v1186 = vadd.f32 %v1026, %v1162
  %v1187 = vadd.f32 %v1029, %v1163
  %v1188 = vadd.f32 %v1034, %v1164
  %v1189 = vadd.f32 %v1037, %v1165
  %v1190 = vadd.f32 %v1042, %v1166
  %v1191 = vadd.f32 %v1045, %v1167
  %v1192 = vadd.f32 %v1050, %v1168
  %v1193 = vadd.f32 %v1053, %v1169
  %v1194 = vadd.f32 %v1058, %v1170
  %v1195 = vadd.f32 %v1061, %v1171
  %v1196 = vadd.f32 %v1066, %v1172
  %v1197 = vadd.f32 %v1069, %v1173
  %v1198 = vadd.f32 %v1074, %v1174
  %v1199 = vadd.f32 %v1077, %v1175
  %v1200 = vadd.f32 %v1082, %v1176
  %v1201 = vadd.f32 %v1085, %v1177
  %v1202 = vadd.f32 %v1090, %v1178
  %v1203 = vadd.f32 %v1093, %v1179
  %v1204 = vadd.f32 %v1098, %v1180
  %v1205 = vadd.f32 %v1101, %v1181
  %v1206 = vadd.f32 %v1106, %v1182
  %v1207 = vadd.f32 %v1109, %v1183
  %v1208 = vmul.f32 %v1184, 0.7978846
  %v1209 = vmul.f32 %v1185, 0.7978846
  %v1210 = vmul.f32 %v1186, 0.7978846
  %v1211 = vmul.f32 %v1187, 0.7978846
  %v1212 = vmul.f32 %v1188, 0.7978846
  %v1213 = vmul.f32 %v1189, 0.7978846
  %v1214 = vmul.f32 %v1190, 0.7978846
  %v1215 = vmul.f32 %v1191, 0.7978846
  %v1216 = vmul.f32 %v1192, 0.7978846
  %v1217 = vmul.f32 %v1193, 0.7978846
  %v1218 = vmul.f32 %v1194, 0.7978846
  %v1219 = vmul.f32 %v1195, 0.7978846
  %v1220 = vmul.f32 %v1196, 0.7978846
  %v1221 = vmul.f32 %v1197, 0.7978846
  %v1222 = vmul.f32 %v1198, 0.7978846
  %v1223 = vmul.f32 %v1199, 0.7978846
  %v1224 = vmul.f32 %v1200, 0.7978846
  %v1225 = vmul.f32 %v1201, 0.7978846
  %v1226 = vmul.f32 %v1202, 0.7978846
  %v1227 = vmul.f32 %v1203, 0.7978846
  %v1228 = vmul.f32 %v1204, 0.7978846
  %v1229 = vmul.f32 %v1205, 0.7978846
  %v1230 = vmul.f32 %v1206, 0.7978846
  %v1231 = vmul.f32 %v1207, 0.7978846
  %v1232 = vtanh.pop %v1208
  %v1233 = vtanh.pop %v1209
  %v1234 = vtanh.pop %v1210
  %v1235 = vtanh.pop %v1211
  %v1236 = vtanh.pop %v1212
  %v1237 = vtanh.pop %v1213
  %v1238 = vtanh.pop %v1214
  %v1239 = vtanh.pop %v1215
  %v1240 = vtanh.pop %v1216
  %v1241 = vtanh.pop %v1217
  %v1242 = vtanh.pop %v1218
  %v1243 = vtanh.pop %v1219
  %v1244 = vtanh.pop %v1220
  %v1245 = vtanh.pop %v1221
  %v1246 = vtanh.pop %v1222
  %v1247 = vtanh.pop %v1223
  %v1248 = vtanh.pop %v1224
  %v1249 = vtanh.pop %v1225
  %v1250 = vtanh.pop %v1226
  %v1251 = vtanh.pop %v1227
  %v1252 = vtanh.pop %v1228
  %v1253 = vtanh.pop %v1229
  %v1254 = vtanh.pop %v1230
  %v1255 = vtanh.pop %v1231
  %v1256 = vadd.f32 %v1232, 1.0
  %v1257 = vadd.f32 %v1233, 1.0
  %v1258 = vadd.f32 %v1234, 1.0
  %v1259 = vadd.f32 %v1235, 1.0
  %v1260 = vadd.f32 %v1236, 1.0
  %v1261 = vadd.f32 %v1237, 1.0
  %v1262 = vadd.f32 %v1238, 1.0
  %v1263 = vadd.f32 %v1239, 1.0
  %v1264 = vadd.f32 %v1240, 1.0
  %v1265 = vadd.f32 %v1241, 1.0
  %v1266 = vadd.f32 %v1242, 1.0
  %v1267 = vadd.f32 %v1243, 1.0
  %v1268 = vadd.f32 %v1244, 1.0
  %v1269 = vadd.f32 %v1245, 1.0
  %v1270 = vadd.f32 %v1246, 1.0
  %v1271 = vadd.f32 %v1247, 1.0
  %v1272 = vadd.f32 %v1248, 1.0
  %v1273 = vadd.f32 %v1249, 1.0
  %v1274 = vadd.f32 %v1250, 1.0
  %v1275 = vadd.f32 %v1251, 1.0
  %v1276 = vadd.f32 %v1252, 1.0
  %v1277 = vadd.f32 %v1253, 1.0
  %v1278 = vadd.f32 %v1254, 1.0
  %v1279 = vadd.f32 %v1255, 1.0
  %v1280 = vmul.f32 %v1256, 0.5
  %v1281 = vmul.f32 %v1257, 0.5
  %v1282 = vmul.f32 %v1258, 0.5
  %v1283 = vmul.f32 %v1259, 0.5
  %v1284 = vmul.f32 %v1260, 0.5
  %v1285 = vmul.f32 %v1261, 0.5
  %v1286 = vmul.f32 %v1262, 0.5
  %v1287 = vmul.f32 %v1263, 0.5
  %v1288 = vmul.f32 %v1264, 0.5
  %v1289 = vmul.f32 %v1265, 0.5
  %v1290 = vmul.f32 %v1266, 0.5
  %v1291 = vmul.f32 %v1267, 0.5
  %v1292 = vmul.f32 %v1268, 0.5
  %v1293 = vmul.f32 %v1269, 0.5
  %v1294 = vmul.f32 %v1270, 0.5
  %v1295 = vmul.f32 %v1271, 0.5
  %v1296 = vmul.f32 %v1272, 0.5
  %v1297 = vmul.f32 %v1273, 0.5
  %v1298 = vmul.f32 %v1274, 0.5
  %v1299 = vmul.f32 %v1275, 0.5
  %v1300 = vmul.f32 %v1276, 0.5
  %v1301 = vmul.f32 %v1277, 0.5
  %v1302 = vmul.f32 %v1278, 0.5
  %v1303 = vmul.f32 %v1279, 0.5
  %v1304 = vmul.f32 %v1018, %v1280
  %v1305 = vmul.f32 %v1021, %v1281
  %v1306 = vmul.f32 %v1026, %v1282
  %v1307 = vmul.f32 %v1029, %v1283
  %v1308 = vmul.f32 %v1034, %v1284
  %v1309 = vmul.f32 %v1037, %v1285
  %v1310 = vmul.f32 %v1042, %v1286
  %v1311 = vmul.f32 %v1045, %v1287
  %v1312 = vmul.f32 %v1050, %v1288
  %v1313 = vmul.f32 %v1053, %v1289
  %v1314 = vmul.f32 %v1058, %v1290
  %v1315 = vmul.f32 %v1061, %v1291
  %v1316 = vmul.f32 %v1066, %v1292
  %v1317 = vmul.f32 %v1069, %v1293
  %v1318 = vmul.f32 %v1074, %v1294
  %v1319 = vmul.f32 %v1077, %v1295
  %v1320 = vmul.f32 %v1082, %v1296
  %v1321 = vmul.f32 %v1085, %v1297
  %v1322 = vmul.f32 %v1090, %v1298
  %v1323 = vmul.f32 %v1093, %v1299
  %v1324 = vmul.f32 %v1098, %v1300
  %v1325 = vmul.f32 %v1101, %v1301
  %v1326 = vmul.f32 %v1106, %v1302
  %v1327 = vmul.f32 %v1109, %v1303
  %v1328 = vadd.f32 %v1304, %v1305
  %v1329 = vadd.f32 %v1328, %v1306
  %v1330 = vadd.f32 %v1329, %v1307
  %v1331 = vadd.f32 %v1330, %v1308
  %v1332 = vadd.f32 %v1331, %v1309
  %v1333 = vadd.f32 %v1332, %v1310
  %v1334 = vadd.f32 %v1333, %v1311
  %v1335 = vadd.f32 %v1334, %v1312
  %v1336 = vadd.f32 %v1335, %v1313
  %v1337 = vadd.f32 %v1336, %v1314
  %v1338 = vadd.f32 %v1337, %v1315
  %v1339 = vadd.f32 %v1338, %v1316
  %v1340 = vadd.f32 %v1339, %v1317
  %v1341 = vadd.f32 %v1340, %v1318
  %v1342 = vadd.f32 %v1341, %v1319
  %v1343 = vadd.f32 %v1342, %v1320
  %v1344 = vadd.f32 %v1343, %v1321
  %v1345 = vadd.f32 %v1344, %v1322
  %v1346 = vadd.f32 %v1345, %v1323
  %v1347 = vadd.f32 %v1346, %v1324
  %v1348 = vadd.f32 %v1347, %v1325
  %v1349 = vadd.f32 %v1348, %v1326
  %v1350 = vadd.f32 %v1349, %v1327
  %v1351 = vrot.slane %v1350, 4
  %v1352 = vadd.f32 %v1350, %v1351
  %v1353 = vrot.slane %v1352, 2
  %v1354 = vadd.f32 %v1352, %v1353
  %v1355 = vrot.slane %v1354, 1
  %v1356 = vadd.f32 %v1354, %v1355
  %v1357 = vrcp.pop 192.0
  %v1358 = vmul.f32 %v1356, %v1357
  %v1359 = vpack.c.bf16 %v1358, %v1358
  %v1360 = vld [vmem:[%s3] sm:$0xff]
  %v1361 = vld [vmem:[%s3 + $0x8] sm:$0xff]
  %v1362 = vld [vmem:[%s3 + $0x10] sm:$0xff]
  %v1363 = vld [vmem:[%s3 + $0x18] sm:$0xff]
  %v1364 = vld [vmem:[%s3 + $0x20] sm:$0xff]
  %v1365 = vld [vmem:[%s3 + $0x28] sm:$0xff]
  %v1366 = vld [vmem:[%s3 + $0x30] sm:$0xff]
  %v1367 = vld [vmem:[%s3 + $0x38] sm:$0xff]
  %v1368 = vld [vmem:[%s3 + $0x40] sm:$0xff]
  %v1369 = vld [vmem:[%s3 + $0x48] sm:$0xff]
  %v1370 = vld [vmem:[%s3 + $0x50] sm:$0xff]
  %v1371 = vld [vmem:[%s3 + $0x58] sm:$0xff]
  %v1372 = vld [vmem:[%s3 + $0x60] sm:$0xff]
  %v1373 = vld [vmem:[%s3 + $0x68] sm:$0xff]
  %v1374 = vld [vmem:[%s3 + $0x70] sm:$0xff]
  %v1375 = vld [vmem:[%s3 + $0x78] sm:$0xff]
  %v1376 = vld [vmem:[%s3 + $0x80] sm:$0xff]
  %v1377 = vld [vmem:[%s3 + $0x88] sm:$0xff]
  %v1378 = vld [vmem:[%s3 + $0x90] sm:$0xff]
  %v1379 = vld [vmem:[%s3 + $0x98] sm:$0xff]
  %v1380 = vld [vmem:[%s3 + $0xa0] sm:$0xff]
  %v1381 = vld [vmem:[%s3 + $0xa8] sm:$0xff]
  %v1382 = vld [vmem:[%s3 + $0xb0] sm:$0xff]
  %v1383 = vld [vmem:[%s3 + $0xb8] sm:$0xff]
  %v1384 = vld [vmem:[%s3 + $0xc0] sm:$0xff]
  %v1385 = vld [vmem:[%s3 + $0xc8] sm:$0xff]
  %v1386 = vld [vmem:[%s3 + $0xd0] sm:$0xff]
  %v1387 = vld [vmem:[%s3 + $0xd8] sm:$0xff]
  %v1388 = vld [vmem:[%s3 + $0xe0] sm:$0xff]
  %v1389 = vld [vmem:[%s3 + $0xe8] sm:$0xff]
  %v1390 = vld [vmem:[%s3 + $0xf0] sm:$0xff]
  %v1391 = vld [vmem:[%s3 + $0xf8] sm:$0xff]
  %v1392 = vld [vmem:[%s3 + $0x100] sm:$0xff]
  %v1393 = vld [vmem:[%s3 + $0x108] sm:$0xff]
  %v1394 = vld [vmem:[%s3 + $0x110] sm:$0xff]
  %v1395 = vld [vmem:[%s3 + $0x118] sm:$0xff]
  %v1396 = vld [vmem:[%s3 + $0x120] sm:$0xff]
  %v1397 = vld [vmem:[%s3 + $0x128] sm:$0xff]
  %v1398 = vld [vmem:[%s3 + $0x130] sm:$0xff]
  %v1399 = vld [vmem:[%s3 + $0x138] sm:$0xff]
  %v1400 = vld [vmem:[%s3 + $0x140] sm:$0xff]
  %v1401 = vld [vmem:[%s3 + $0x148] sm:$0xff]
  %v1402 = vld [vmem:[%s3 + $0x150] sm:$0xff]
  %v1403 = vld [vmem:[%s3 + $0x158] sm:$0xff]
  %v1404 = vld [vmem:[%s3 + $0x160] sm:$0xff]
  %v1405 = vld [vmem:[%s3 + $0x168] sm:$0xff]
  %v1406 = vld [vmem:[%s3 + $0x170] sm:$0xff]
  %v1407 = vld [vmem:[%s3 + $0x178] sm:$0xff]
  %v1408 = vld [vmem:[%s3 + $0x180] sm:$0xff]
  %v1409 = vld [vmem:[%s3 + $0x188] sm:$0xff]
  %v1410 = vld [vmem:[%s3 + $0x190] sm:$0xff]
  %v1411 = vld [vmem:[%s3 + $0x198] sm:$0xff]
  %v1412 = vld [vmem:[%s3 + $0x1a0] sm:$0xff]
  %v1413 = vld [vmem:[%s3 + $0x1a8] sm:$0xff]
  %v1414 = vld [vmem:[%s3 + $0x1b0] sm:$0xff]
  %v1415 = vld [vmem:[%s3 + $0x1b8] sm:$0xff]
  %v1416 = vld [vmem:[%s3 + $0x1c0] sm:$0xff]
  %v1417 = vld [vmem:[%s3 + $0x1c8] sm:$0xff]
  %v1418 = vld [vmem:[%s3 + $0x1d0] sm:$0xff]
  %v1419 = vld [vmem:[%s3 + $0x1d8] sm:$0xff]
  %v1420 = vld [vmem:[%s3 + $0x1e0] sm:$0xff]
  %v1421 = vld [vmem:[%s3 + $0x1e8] sm:$0xff]
  %v1422 = vld [vmem:[%s3 + $0x1f0] sm:$0xff]
  %v1423 = vld [vmem:[%s3 + $0x1f8] sm:$0xff]
  %v1424 = vld [vmem:[%s3 + $0x200] sm:$0xff]
  %v1425 = vld [vmem:[%s3 + $0x208] sm:$0xff]
  %v1426 = vld [vmem:[%s3 + $0x210] sm:$0xff]
  %v1427 = vld [vmem:[%s3 + $0x218] sm:$0xff]
  %v1428 = vld [vmem:[%s3 + $0x220] sm:$0xff]
  %v1429 = vld [vmem:[%s3 + $0x228] sm:$0xff]
  %v1430 = vld [vmem:[%s3 + $0x230] sm:$0xff]
  %v1431 = vld [vmem:[%s3 + $0x238] sm:$0xff]
  %v1432 = vld [vmem:[%s3 + $0x240] sm:$0xff]
  %v1433 = vld [vmem:[%s3 + $0x248] sm:$0xff]
  %v1434 = vld [vmem:[%s3 + $0x250] sm:$0xff]
  %v1435 = vld [vmem:[%s3 + $0x258] sm:$0xff]
  %v1436 = vld [vmem:[%s3 + $0x260] sm:$0xff]
  %v1437 = vld [vmem:[%s3 + $0x268] sm:$0xff]
  %v1438 = vld [vmem:[%s3 + $0x270] sm:$0xff]
  %v1439 = vld [vmem:[%s3 + $0x278] sm:$0xff]
  %v1440 = vld [vmem:[%s3 + $0x280] sm:$0xff]
  %v1441 = vld [vmem:[%s3 + $0x288] sm:$0xff]
  %v1442 = vld [vmem:[%s3 + $0x290] sm:$0xff]
  %v1443 = vld [vmem:[%s3 + $0x298] sm:$0xff]
  %v1444 = vld [vmem:[%s3 + $0x2a0] sm:$0xff]
  %v1445 = vld [vmem:[%s3 + $0x2a8] sm:$0xff]
  %v1446 = vld [vmem:[%s3 + $0x2b0] sm:$0xff]
  %v1447 = vld [vmem:[%s3 + $0x2b8] sm:$0xff]
  %v1448 = vld [vmem:[%s3 + $0x2c0] sm:$0xff]
  %v1449 = vld [vmem:[%s3 + $0x2c8] sm:$0xff]
  %v1450 = vld [vmem:[%s3 + $0x2d0] sm:$0xff]
  %v1451 = vld [vmem:[%s3 + $0x2d8] sm:$0xff]
  %v1452 = vld [vmem:[%s3 + $0x2e0] sm:$0xff]
  %v1453 = vld [vmem:[%s3 + $0x2e8] sm:$0xff]
  %v1454 = vld [vmem:[%s3 + $0x2f0] sm:$0xff]
  %v1455 = vld [vmem:[%s3 + $0x2f8] sm:$0xff]
  %v1456 = vld [vmem:[%s3 + $0x300] sm:$0xff]
  %v1457 = vld [vmem:[%s3 + $0x308] sm:$0xff]
  %v1458 = vld [vmem:[%s3 + $0x310] sm:$0xff]
  %v1459 = vld [vmem:[%s3 + $0x318] sm:$0xff]
  %v1460 = vld [vmem:[%s3 + $0x320] sm:$0xff]
  %v1461 = vld [vmem:[%s3 + $0x328] sm:$0xff]
  %v1462 = vld [vmem:[%s3 + $0x330] sm:$0xff]
  %v1463 = vld [vmem:[%s3 + $0x338] sm:$0xff]
  %v1464 = vld [vmem:[%s3 + $0x340] sm:$0xff]
  %v1465 = vld [vmem:[%s3 + $0x348] sm:$0xff]
  %v1466 = vld [vmem:[%s3 + $0x350] sm:$0xff]
  %v1467 = vld [vmem:[%s3 + $0x358] sm:$0xff]
  %v1468 = vld [vmem:[%s3 + $0x360] sm:$0xff]
  %v1469 = vld [vmem:[%s3 + $0x368] sm:$0xff]
  %v1470 = vld [vmem:[%s3 + $0x370] sm:$0xff]
  %v1471 = vld [vmem:[%s3 + $0x378] sm:$0xff]
  %v1472 = vld [vmem:[%s3 + $0x380] sm:$0xff]
  %v1473 = vld [vmem:[%s3 + $0x388] sm:$0xff]
  %v1474 = vld [vmem:[%s3 + $0x390] sm:$0xff]
  %v1475 = vld [vmem:[%s3 + $0x398] sm:$0xff]
  %v1476 = vld [vmem:[%s3 + $0x3a0] sm:$0xff]
  %v1477 = vld [vmem:[%s3 + $0x3a8] sm:$0xff]
  %v1478 = vld [vmem:[%s3 + $0x3b0] sm:$0xff]
  %v1479 = vld [vmem:[%s3 + $0x3b8] sm:$0xff]
  %v1480 = vld [vmem:[%s3 + $0x3c0] sm:$0xff]
  %v1481 = vld [vmem:[%s3 + $0x3c8] sm:$0xff]
  %v1482 = vld [vmem:[%s3 + $0x3d0] sm:$0xff]
  %v1483 = vld [vmem:[%s3 + $0x3d8] sm:$0xff]
  %v1484 = vld [vmem:[%s3 + $0x3e0] sm:$0xff]
  %v1485 = vld [vmem:[%s3 + $0x3e8] sm:$0xff]
  %v1486 = vld [vmem:[%s3 + $0x3f0] sm:$0xff]
  %v1487 = vld [vmem:[%s3 + $0x3f8] sm:$0xff]
  %v1488 = vld [vmem:[%s4] sm:$0xff]
  %v1489 = vld [vmem:[%s4 + $0x8] sm:$0xff]
  %v1618 = vunpack.c.l.b16 %v1360
  %v1619 = vunpack.c.h.b16 %v1360
  %v1620 = vunpack.c.l.b16 %v1361
  %v1621 = vunpack.c.h.b16 %v1361
  %v1622 = vunpack.c.l.b16 %v1362
  %v1623 = vunpack.c.h.b16 %v1362
  %v1624 = vunpack.c.l.b16 %v1363
  %v1625 = vunpack.c.h.b16 %v1363
  %v1626 = vunpack.c.l.b16 %v1364
  %v1627 = vunpack.c.h.b16 %v1364
  %v1628 = vunpack.c.l.b16 %v1365
  %v1629 = vunpack.c.h.b16 %v1365
  %v1630 = vunpack.c.l.b16 %v1366
  %v1631 = vunpack.c.h.b16 %v1366
  %v1632 = vunpack.c.l.b16 %v1367
  %v1633 = vunpack.c.h.b16 %v1367
  %v1634 = vunpack.c.l.b16 %v1368
  %v1635 = vunpack.c.h.b16 %v1368
  %v1636 = vunpack.c.l.b16 %v1369
  %v1637 = vunpack.c.h.b16 %v1369
  %v1638 = vunpack.c.l.b16 %v1370
  %v1639 = vunpack.c.h.b16 %v1370
  %v1640 = vunpack.c.l.b16 %v1371
  %v1641 = vunpack.c.h.b16 %v1371
  %v1642 = vunpack.c.l.b16 %v1372
  %v1643 = vunpack.c.h.b16 %v1372
  %v1644 = vunpack.c.l.b16 %v1373
  %v1645 = vunpack.c.h.b16 %v1373
  %v1646 = vunpack.c.l.b16 %v1374
  %v1647 = vunpack.c.h.b16 %v1374
  %v1648 = vunpack.c.l.b16 %v1375
  %v1649 = vunpack.c.h.b16 %v1375
  %v1650 = vunpack.c.l.b16 %v1376
  %v1651 = vunpack.c.h.b16 %v1376
  %v1652 = vunpack.c.l.b16 %v1377
  %v1653 = vunpack.c.h.b16 %v1377
  %v1654 = vunpack.c.l.b16 %v1378
  %v1655 = vunpack.c.h.b16 %v1378
  %v1656 = vunpack.c.l.b16 %v1379
  %v1657 = vunpack.c.h.b16 %v1379
  %v1658 = vunpack.c.l.b16 %v1380
  %v1659 = vunpack.c.h.b16 %v1380
  %v1660 = vunpack.c.l.b16 %v1381
  %v1661 = vunpack.c.h.b16 %v1381
  %v1662 = vunpack.c.l.b16 %v1382
  %v1663 = vunpack.c.h.b16 %v1382
  %v1664 = vunpack.c.l.b16 %v1383
  %v1665 = vunpack.c.h.b16 %v1383
  %v1666 = vunpack.c.l.b16 %v1384
  %v1667 = vunpack.c.h.b16 %v1384
  %v1668 = vunpack.c.l.b16 %v1385
  %v1669 = vunpack.c.h.b16 %v1385
  %v1670 = vunpack.c.l.b16 %v1386
  %v1671 = vunpack.c.h.b16 %v1386
  %v1672 = vunpack.c.l.b16 %v1387
  %v1673 = vunpack.c.h.b16 %v1387
  %v1674 = vunpack.c.l.b16 %v1388
  %v1675 = vunpack.c.h.b16 %v1388
  %v1676 = vunpack.c.l.b16 %v1389
  %v1677 = vunpack.c.h.b16 %v1389
  %v1678 = vunpack.c.l.b16 %v1390
  %v1679 = vunpack.c.h.b16 %v1390
  %v1680 = vunpack.c.l.b16 %v1391
  %v1681 = vunpack.c.h.b16 %v1391
  %v1682 = vunpack.c.l.b16 %v1392
  %v1683 = vunpack.c.h.b16 %v1392
  %v1684 = vunpack.c.l.b16 %v1393
  %v1685 = vunpack.c.h.b16 %v1393
  %v1686 = vunpack.c.l.b16 %v1394
  %v1687 = vunpack.c.h.b16 %v1394
  %v1688 = vunpack.c.l.b16 %v1395
  %v1689 = vunpack.c.h.b16 %v1395
  %v1690 = vunpack.c.l.b16 %v1396
  %v1691 = vunpack.c.h.b16 %v1396
  %v1692 = vunpack.c.l.b16 %v1397
  %v1693 = vunpack.c.h.b16 %v1397
  %v1694 = vunpack.c.l.b16 %v1398
  %v1695 = vunpack.c.h.b16 %v1398
  %v1696 = vunpack.c.l.b16 %v1399
  %v1697 = vunpack.c.h.b16 %v1399
  %v1698 = vunpack.c.l.b16 %v1400
  %v1699 = vunpack.c.h.b16 %v1400
  %v1700 = vunpack.c.l.b16 %v1401
  %v1701 = vunpack.c.h.b16 %v1401
  %v1702 = vunpack.c.l.b16 %v1402
  %v1703 = vunpack.c.h.b16 %v1402
  %v1704 = vunpack.c.l.b16 %v1403
  %v1705 = vunpack.c.h.b16 %v1403
  %v1706 = vunpack.c.l.b16 %v1404
  %v1707 = vunpack.c.h.b16 %v1404
  %v1708 = vunpack.c.l.b16 %v1405
  %v1709 = vunpack.c.h.b16 %v1405
  %v1710 = vunpack.c.l.b16 %v1406
  %v1711 = vunpack.c.h.b16 %v1406
  %v1712 = vunpack.c.l.b16 %v1407
  %v1713 = vunpack.c.h.b16 %v1407
  %v1714 = vunpack.c.l.b16 %v1408
  %v1715 = vunpack.c.h.b16 %v1408
  %v1716 = vunpack.c.l.b16 %v1409
  %v1717 = vunpack.c.h.b16 %v1409
  %v1718 = vunpack.c.l.b16 %v1410
  %v1719 = vunpack.c.h.b16 %v1410
  %v1720 = vunpack.c.l.b16 %v1411
  %v1721 = vunpack.c.h.b16 %v1411
  %v1722 = vunpack.c.l.b16 %v1412
  %v1723 = vunpack.c.h.b16 %v1412
  %v1724 = vunpack.c.l.b16 %v1413
  %v1725 = vunpack.c.h.b16 %v1413
  %v1726 = vunpack.c.l.b16 %v1414
  %v1727 = vunpack.c.h.b16 %v1414
  %v1728 = vunpack.c.l.b16 %v1415
  %v1729 = vunpack.c.h.b16 %v1415
  %v1730 = vunpack.c.l.b16 %v1416
  %v1731 = vunpack.c.h.b16 %v1416
  %v1732 = vunpack.c.l.b16 %v1417
  %v1733 = vunpack.c.h.b16 %v1417
  %v1734 = vunpack.c.l.b16 %v1418
  %v1735 = vunpack.c.h.b16 %v1418
  %v1736 = vunpack.c.l.b16 %v1419
  %v1737 = vunpack.c.h.b16 %v1419
  %v1738 = vunpack.c.l.b16 %v1420
  %v1739 = vunpack.c.h.b16 %v1420
  %v1740 = vunpack.c.l.b16 %v1421
  %v1741 = vunpack.c.h.b16 %v1421
  %v1742 = vunpack.c.l.b16 %v1422
  %v1743 = vunpack.c.h.b16 %v1422
  %v1744 = vunpack.c.l.b16 %v1423
  %v1745 = vunpack.c.h.b16 %v1423
  %v1746 = vunpack.c.l.b16 %v1424
  %v1747 = vunpack.c.h.b16 %v1424
  %v1748 = vunpack.c.l.b16 %v1425
  %v1749 = vunpack.c.h.b16 %v1425
  %v1750 = vunpack.c.l.b16 %v1426
  %v1751 = vunpack.c.h.b16 %v1426
  %v1752 = vunpack.c.l.b16 %v1427
  %v1753 = vunpack.c.h.b16 %v1427
  %v1754 = vunpack.c.l.b16 %v1428
  %v1755 = vunpack.c.h.b16 %v1428
  %v1756 = vunpack.c.l.b16 %v1429
  %v1757 = vunpack.c.h.b16 %v1429
  %v1758 = vunpack.c.l.b16 %v1430
  %v1759 = vunpack.c.h.b16 %v1430
  %v1760 = vunpack.c.l.b16 %v1431
  %v1761 = vunpack.c.h.b16 %v1431
  %v1762 = vunpack.c.l.b16 %v1432
  %v1763 = vunpack.c.h.b16 %v1432
  %v1764 = vunpack.c.l.b16 %v1433
  %v1765 = vunpack.c.h.b16 %v1433
  %v1766 = vunpack.c.l.b16 %v1434
  %v1767 = vunpack.c.h.b16 %v1434
  %v1768 = vunpack.c.l.b16 %v1435
  %v1769 = vunpack.c.h.b16 %v1435
  %v1770 = vunpack.c.l.b16 %v1436
  %v1771 = vunpack.c.h.b16 %v1436
  %v1772 = vunpack.c.l.b16 %v1437
  %v1773 = vunpack.c.h.b16 %v1437
  %v1774 = vunpack.c.l.b16 %v1438
  %v1775 = vunpack.c.h.b16 %v1438
  %v1776 = vunpack.c.l.b16 %v1439
  %v1777 = vunpack.c.h.b16 %v1439
  %v1778 = vunpack.c.l.b16 %v1440
  %v1779 = vunpack.c.h.b16 %v1440
  %v1780 = vunpack.c.l.b16 %v1441
  %v1781 = vunpack.c.h.b16 %v1441
  %v1782 = vunpack.c.l.b16 %v1442
  %v1783 = vunpack.c.h.b16 %v1442
  %v1784 = vunpack.c.l.b16 %v1443
  %v1785 = vunpack.c.h.b16 %v1443
  %v1786 = vunpack.c.l.b16 %v1444
  %v1787 = vunpack.c.h.b16 %v1444
  %v1788 = vunpack.c.l.b16 %v1445
  %v1789 = vunpack.c.h.b16 %v1445
  %v1790 = vunpack.c.l.b16 %v1446
  %v1791 = vunpack.c.h.b16 %v1446
  %v1792 = vunpack.c.l.b16 %v1447
  %v1793 = vunpack.c.h.b16 %v1447
  %v1794 = vunpack.c.l.b16 %v1448
  %v1795 = vunpack.c.h.b16 %v1448
  %v1796 = vunpack.c.l.b16 %v1449
  %v1797 = vunpack.c.h.b16 %v1449
  %v1798 = vunpack.c.l.b16 %v1450
  %v1799 = vunpack.c.h.b16 %v1450
  %v1800 = vunpack.c.l.b16 %v1451
  %v1801 = vunpack.c.h.b16 %v1451
  %v1802 = vunpack.c.l.b16 %v1452
  %v1803 = vunpack.c.h.b16 %v1452
  %v1804 = vunpack.c.l.b16 %v1453
  %v1805 = vunpack.c.h.b16 %v1453
  %v1806 = vunpack.c.l.b16 %v1454
  %v1807 = vunpack.c.h.b16 %v1454
  %v1808 = vunpack.c.l.b16 %v1455
  %v1809 = vunpack.c.h.b16 %v1455
  %v1810 = vunpack.c.l.b16 %v1456
  %v1811 = vunpack.c.h.b16 %v1456
  %v1812 = vunpack.c.l.b16 %v1457
  %v1813 = vunpack.c.h.b16 %v1457
  %v1814 = vunpack.c.l.b16 %v1458
  %v1815 = vunpack.c.h.b16 %v1458
  %v1816 = vunpack.c.l.b16 %v1459
  %v1817 = vunpack.c.h.b16 %v1459
  %v1818 = vunpack.c.l.b16 %v1460
  %v1819 = vunpack.c.h.b16 %v1460
  %v1820 = vunpack.c.l.b16 %v1461
  %v1821 = vunpack.c.h.b16 %v1461
  %v1822 = vunpack.c.l.b16 %v1462
  %v1823 = vunpack.c.h.b16 %v1462
  %v1824 = vunpack.c.l.b16 %v1463
  %v1825 = vunpack.c.h.b16 %v1463
  %v1826 = vunpack.c.l.b16 %v1464
  %v1827 = vunpack.c.h.b16 %v1464
  %v1828 = vunpack.c.l.b16 %v1465
  %v1829 = vunpack.c.h.b16 %v1465
  %v1830 = vunpack.c.l.b16 %v1466
  %v1831 = vunpack.c.h.b16 %v1466
  %v1832 = vunpack.c.l.b16 %v1467
  %v1833 = vunpack.c.h.b16 %v1467
  %v1834 = vunpack.c.l.b16 %v1468
  %v1835 = vunpack.c.h.b16 %v1468
  %v1836 = vunpack.c.l.b16 %v1469
  %v1837 = vunpack.c.h.b16 %v1469
  %v1838 = vunpack.c.l.b16 %v1470
  %v1839 = vunpack.c.h.b16 %v1470
  %v1840 = vunpack.c.l.b16 %v1471
  %v1841 = vunpack.c.h.b16 %v1471
  %v1842 = vunpack.c.l.b16 %v1472
  %v1843 = vunpack.c.h.b16 %v1472
  %v1844 = vunpack.c.l.b16 %v1473
  %v1845 = vunpack.c.h.b16 %v1473
  %v1846 = vunpack.c.l.b16 %v1474
  %v1847 = vunpack.c.h.b16 %v1474
  %v1848 = vunpack.c.l.b16 %v1475
  %v1849 = vunpack.c.h.b16 %v1475
  %v1850 = vunpack.c.l.b16 %v1476
  %v1851 = vunpack.c.h.b16 %v1476
  %v1852 = vunpack.c.l.b16 %v1477
  %v1853 = vunpack.c.h.b16 %v1477
  %v1854 = vunpack.c.l.b16 %v1478
  %v1855 = vunpack.c.h.b16 %v1478
  %v1856 = vunpack.c.l.b16 %v1479
  %v1857 = vunpack.c.h.b16 %v1479
  %v1858 = vunpack.c.l.b16 %v1480
  %v1859 = vunpack.c.h.b16 %v1480
  %v1860 = vunpack.c.l.b16 %v1481
  %v1861 = vunpack.c.h.b16 %v1481
  %v1862 = vunpack.c.l.b16 %v1482
  %v1863 = vunpack.c.h.b16 %v1482
  %v1864 = vunpack.c.l.b16 %v1483
  %v1865 = vunpack.c.h.b16 %v1483
  %v1866 = vunpack.c.l.b16 %v1484
  %v1867 = vunpack.c.h.b16 %v1484
  %v1868 = vunpack.c.l.b16 %v1485
  %v1869 = vunpack.c.h.b16 %v1485
  %v1870 = vunpack.c.l.b16 %v1486
  %v1871 = vunpack.c.h.b16 %v1486
  %v1872 = vunpack.c.l.b16 %v1487
  %v1873 = vunpack.c.h.b16 %v1487
  %v1874 = vpack.c.b16 %v1634, %v1618
  %v1875 = vpack.c.b16 %v1635, %v1619
  %v1876 = vpack.c.b16 %v1636, %v1620
  %v1877 = vpack.c.b16 %v1637, %v1621
  %v1878 = vpack.c.b16 %v1638, %v1622
  %v1879 = vpack.c.b16 %v1639, %v1623
  %v1880 = vpack.c.b16 %v1640, %v1624
  %v1881 = vpack.c.b16 %v1641, %v1625
  %v1882 = vpack.c.b16 %v1642, %v1626
  %v1883 = vpack.c.b16 %v1643, %v1627
  %v1884 = vpack.c.b16 %v1644, %v1628
  %v1885 = vpack.c.b16 %v1645, %v1629
  %v1886 = vpack.c.b16 %v1646, %v1630
  %v1887 = vpack.c.b16 %v1647, %v1631
  %v1888 = vpack.c.b16 %v1648, %v1632
  %v1889 = vpack.c.b16 %v1649, %v1633
  %v1890 = vpack.c.b16 %v1666, %v1650
  %v1891 = vpack.c.b16 %v1667, %v1651
  %v1892 = vpack.c.b16 %v1668, %v1652
  %v1893 = vpack.c.b16 %v1669, %v1653
  %v1894 = vpack.c.b16 %v1670, %v1654
  %v1895 = vpack.c.b16 %v1671, %v1655
  %v1896 = vpack.c.b16 %v1672, %v1656
  %v1897 = vpack.c.b16 %v1673, %v1657
  %v1898 = vpack.c.b16 %v1674, %v1658
  %v1899 = vpack.c.b16 %v1675, %v1659
  %v1900 = vpack.c.b16 %v1676, %v1660
  %v1901 = vpack.c.b16 %v1677, %v1661
  %v1902 = vpack.c.b16 %v1678, %v1662
  %v1903 = vpack.c.b16 %v1679, %v1663
  %v1904 = vpack.c.b16 %v1680, %v1664
  %v1905 = vpack.c.b16 %v1681, %v1665
  %v1906 = vpack.c.b16 %v1698, %v1682
  %v1907 = vpack.c.b16 %v1699, %v1683
  %v1908 = vpack.c.b16 %v1700, %v1684
  %v1909 = vpack.c.b16 %v1701, %v1685
  %v1910 = vpack.c.b16 %v1702, %v1686
  %v1911 = vpack.c.b16 %v1703, %v1687
  %v1912 = vpack.c.b16 %v1704, %v1688
  %v1913 = vpack.c.b16 %v1705, %v1689
  %v1914 = vpack.c.b16 %v1706, %v1690
  %v1915 = vpack.c.b16 %v1707, %v1691
  %v1916 = vpack.c.b16 %v1708, %v1692
  %v1917 = vpack.c.b16 %v1709, %v1693
  %v1918 = vpack.c.b16 %v1710, %v1694
  %v1919 = vpack.c.b16 %v1711, %v1695
  %v1920 = vpack.c.b16 %v1712, %v1696
  %v1921 = vpack.c.b16 %v1713, %v1697
  %v1922 = vpack.c.b16 %v1730, %v1714
  %v1923 = vpack.c.b16 %v1731, %v1715
  %v1924 = vpack.c.b16 %v1732, %v1716
  %v1925 = vpack.c.b16 %v1733, %v1717
  %v1926 = vpack.c.b16 %v1734, %v1718
  %v1927 = vpack.c.b16 %v1735, %v1719
  %v1928 = vpack.c.b16 %v1736, %v1720
  %v1929 = vpack.c.b16 %v1737, %v1721
  %v1930 = vpack.c.b16 %v1738, %v1722
  %v1931 = vpack.c.b16 %v1739, %v1723
  %v1932 = vpack.c.b16 %v1740, %v1724
  %v1933 = vpack.c.b16 %v1741, %v1725
  %v1934 = vpack.c.b16 %v1742, %v1726
  %v1935 = vpack.c.b16 %v1743, %v1727
  %v1936 = vpack.c.b16 %v1744, %v1728
  %v1937 = vpack.c.b16 %v1745, %v1729
  %v1938 = vpack.c.b16 %v1762, %v1746
  %v1939 = vpack.c.b16 %v1763, %v1747
  %v1940 = vpack.c.b16 %v1764, %v1748
  %v1941 = vpack.c.b16 %v1765, %v1749
  %v1942 = vpack.c.b16 %v1766, %v1750
  %v1943 = vpack.c.b16 %v1767, %v1751
  %v1944 = vpack.c.b16 %v1768, %v1752
  %v1945 = vpack.c.b16 %v1769, %v1753
  %v1946 = vpack.c.b16 %v1770, %v1754
  %v1947 = vpack.c.b16 %v1771, %v1755
  %v1948 = vpack.c.b16 %v1772, %v1756
  %v1949 = vpack.c.b16 %v1773, %v1757
  %v1950 = vpack.c.b16 %v1774, %v1758
  %v1951 = vpack.c.b16 %v1775, %v1759
  %v1952 = vpack.c.b16 %v1776, %v1760
  %v1953 = vpack.c.b16 %v1777, %v1761
  %v1954 = vpack.c.b16 %v1794, %v1778
  %v1955 = vpack.c.b16 %v1795, %v1779
  %v1956 = vpack.c.b16 %v1796, %v1780
  %v1957 = vpack.c.b16 %v1797, %v1781
  %v1958 = vpack.c.b16 %v1798, %v1782
  %v1959 = vpack.c.b16 %v1799, %v1783
  %v1960 = vpack.c.b16 %v1800, %v1784
  %v1961 = vpack.c.b16 %v1801, %v1785
  %v1962 = vpack.c.b16 %v1802, %v1786
  %v1963 = vpack.c.b16 %v1803, %v1787
  %v1964 = vpack.c.b16 %v1804, %v1788
  %v1965 = vpack.c.b16 %v1805, %v1789
  %v1966 = vpack.c.b16 %v1806, %v1790
  %v1967 = vpack.c.b16 %v1807, %v1791
  %v1968 = vpack.c.b16 %v1808, %v1792
  %v1969 = vpack.c.b16 %v1809, %v1793
  %v1970 = vpack.c.b16 %v1826, %v1810
  %v1971 = vpack.c.b16 %v1827, %v1811
  %v1972 = vpack.c.b16 %v1828, %v1812
  %v1973 = vpack.c.b16 %v1829, %v1813
  %v1974 = vpack.c.b16 %v1830, %v1814
  %v1975 = vpack.c.b16 %v1831, %v1815
  %v1976 = vpack.c.b16 %v1832, %v1816
  %v1977 = vpack.c.b16 %v1833, %v1817
  %v1978 = vpack.c.b16 %v1834, %v1818
  %v1979 = vpack.c.b16 %v1835, %v1819
  %v1980 = vpack.c.b16 %v1836, %v1820
  %v1981 = vpack.c.b16 %v1837, %v1821
  %v1982 = vpack.c.b16 %v1838, %v1822
  %v1983 = vpack.c.b16 %v1839, %v1823
  %v1984 = vpack.c.b16 %v1840, %v1824
  %v1985 = vpack.c.b16 %v1841, %v1825
  %v1986 = vpack.c.b16 %v1858, %v1842
  %v1987 = vpack.c.b16 %v1859, %v1843
  %v1988 = vpack.c.b16 %v1860, %v1844
  %v1989 = vpack.c.b16 %v1861, %v1845
  %v1990 = vpack.c.b16 %v1862, %v1846
  %v1991 = vpack.c.b16 %v1863, %v1847
  %v1992 = vpack.c.b16 %v1864, %v1848
  %v1993 = vpack.c.b16 %v1865, %v1849
  %v1994 = vpack.c.b16 %v1866, %v1850
  %v1995 = vpack.c.b16 %v1867, %v1851
  %v1996 = vpack.c.b16 %v1868, %v1852
  %v1997 = vpack.c.b16 %v1869, %v1853
  %v1998 = vpack.c.b16 %v1870, %v1854
  %v1999 = vpack.c.b16 %v1871, %v1855
  %v2000 = vpack.c.b16 %v1872, %v1856
  %v2001 = vpack.c.b16 %v1873, %v1857
  %v2132 = vlaneseq
  %v2133 = vshrl.u32 %v2132, 7
  %v2134 = vsub.s32 0, %v2133
  %v2135 = vrot.slane %v1488, %v2134
  %v2136 = vlaneseq
  %v2137 = vshrl.u32 %v2136, 7
  %v2138 = vsub.s32 1, %v2137
  %v2139 = vrot.slane %v1488, %v2138
  %v2140 = vlaneseq
  %v2141 = vshrl.u32 %v2140, 7
  %v2142 = vsub.s32 2, %v2141
  %v2143 = vrot.slane %v1488, %v2142
  %v2144 = vlaneseq
  %v2145 = vshrl.u32 %v2144, 7
  %v2146 = vsub.s32 3, %v2145
  %v2147 = vrot.slane %v1488, %v2146
  %v2148 = vlaneseq
  %v2149 = vshrl.u32 %v2148, 7
  %v2150 = vsub.s32 4, %v2149
  %v2151 = vrot.slane %v1488, %v2150
  %v2152 = vlaneseq
  %v2153 = vshrl.u32 %v2152, 7
  %v2154 = vsub.s32 5, %v2153
  %v2155 = vrot.slane %v1488, %v2154
  %v2156 = vlaneseq
  %v2157 = vshrl.u32 %v2156, 7
  %v2158 = vsub.s32 6, %v2157
  %v2159 = vrot.slane %v1488, %v2158
  %v2160 = vlaneseq
  %v2161 = vshrl.u32 %v2160, 7
  %v2162 = vsub.s32 7, %v2161
  %v2163 = vrot.slane %v1488, %v2162
  %v2164 = vlaneseq
  %v2165 = vshrl.u32 %v2164, 7
  %v2166 = vsub.s32 0, %v2165
  %v2167 = vrot.slane %v1489, %v2166
  %v2168 = vlaneseq
  %v2169 = vshrl.u32 %v2168, 7
  %v2170 = vsub.s32 1, %v2169
  %v2171 = vrot.slane %v1489, %v2170
  %v2172 = vlaneseq
  %v2173 = vshrl.u32 %v2172, 7
  %v2174 = vsub.s32 2, %v2173
  %v2175 = vrot.slane %v1489, %v2174
  %v2176 = vlaneseq
  %v2177 = vshrl.u32 %v2176, 7
  %v2178 = vsub.s32 3, %v2177
  %v2179 = vrot.slane %v1489, %v2178
  %v2180 = vlaneseq
  %v2181 = vshrl.u32 %v2180, 7
  %v2182 = vsub.s32 4, %v2181
  %v2183 = vrot.slane %v1489, %v2182
  %v2184 = vlaneseq
  %v2185 = vshrl.u32 %v2184, 7
  %v2186 = vsub.s32 5, %v2185
  %v2187 = vrot.slane %v1489, %v2186
  %v2188 = vlaneseq
  %v2189 = vshrl.u32 %v2188, 7
  %v2190 = vsub.s32 6, %v2189
  %v2191 = vrot.slane %v1489, %v2190
  %v2192 = vlaneseq
  %v2193 = vshrl.u32 %v2192, 7
  %v2194 = vsub.s32 7, %v2193
  %v2195 = vrot.slane %v1489, %v2194
  %2212 = vmatprep.subr.bf16.mxu0 %v1875
  %2213 = vmatpush1.bf16.msra.mxu0 %v1874
  %2214 = vmatprep.subr.bf16.mxu0 %v1891
  %2215 = vmatpush1.bf16.msra.mxu0 %v1890
  %2216 = vmatprep.subr.bf16.mxu0 %v1907
  %2217 = vmatpush1.bf16.msra.mxu0 %v1906
  %2218 = vmatprep.subr.bf16.mxu0 %v1923
  %2219 = vmatpush1.bf16.msra.mxu0 %v1922
  %2220 = vmatprep.subr.bf16.mxu0 %v1939
  %2221 = vmatpush1.bf16.msra.mxu0 %v1938
  %2222 = vmatprep.subr.bf16.mxu0 %v1955
  %2223 = vmatpush1.bf16.msra.mxu0 %v1954
  %2224 = vmatprep.subr.bf16.mxu0 %v1971
  %2225 = vmatpush1.bf16.msra.mxu0 %v1970
  %2226 = vmatprep.subr.bf16.mxu0 %v1987
  %2227 = vmatpush1.bf16.msra.mxu0 %v1986
  %2228 = vmatprep.subr.bf16.mxu0 0
  %2229 = vmatpush1.bf16.msra.mxu0 0
  %2230 = vmatprep.subr.bf16.mxu0 0
  %2231 = vmatpush1.bf16.msra.mxu0 0
  %2232 = vmatprep.subr.bf16.mxu0 0
  %2233 = vmatpush1.bf16.msra.mxu0 0
  %2234 = vmatprep.subr.bf16.mxu0 0
  %2235 = vmatpush1.bf16.msra.mxu0 0
  %2236 = vmatprep.subr.bf16.mxu0 0
  %2237 = vmatpush1.bf16.msra.mxu0 0
  %2238 = vmatprep.subr.bf16.mxu0 0
  %2239 = vmatpush1.bf16.msra.mxu0 0
  %2240 = vmatprep.subr.bf16.mxu0 0
  %2241 = vmatpush1.bf16.msra.mxu0 0
  %2242 = vmatprep.subr.bf16.mxu0 0
  %2243 = vmatpush1.bf16.msra.mxu0 0
  %2244 = vmatprep.mubr.bf16.mxu0 0
  %2245 = vmatmul.mubr.bf16.gmra.mrb[0].mxu0 %v1359
  %v2246 = vpop.f32.mrb[0].mxu0
  %v2247 = vadd.f32 %v2135, %v2246
  %v2248 = vpop.f32.mrb[0].mxu0
  %v2249 = vadd.f32 %v2139, %v2248
  %v2250 = vpop.f32.mrb[0].mxu0
  %v2251 = vpop.f32.mrb[0].mxu0
  %2252 = vdwg.mxu0
  %2253 = vmatprep.subr.bf16.mxu0 %v1877
  %2254 = vmatpush1.bf16.msra.mxu0 %v1876
  %2255 = vmatprep.subr.bf16.mxu0 %v1893
  %2256 = vmatpush1.bf16.msra.mxu0 %v1892
  %2257 = vmatprep.subr.bf16.mxu0 %v1909
  %2258 = vmatpush1.bf16.msra.mxu0 %v1908
  %2259 = vmatprep.subr.bf16.mxu0 %v1925
  %2260 = vmatpush1.bf16.msra.mxu0 %v1924
  %2261 = vmatprep.subr.bf16.mxu0 %v1941
  %2262 = vmatpush1.bf16.msra.mxu0 %v1940
  %2263 = vmatprep.subr.bf16.mxu0 %v1957
  %2264 = vmatpush1.bf16.msra.mxu0 %v1956
  %2265 = vmatprep.subr.bf16.mxu0 %v1973
  %2266 = vmatpush1.bf16.msra.mxu0 %v1972
  %2267 = vmatprep.subr.bf16.mxu0 %v1989
  %2268 = vmatpush1.bf16.msra.mxu0 %v1988
  %2269 = vmatprep.subr.bf16.mxu0 0
  %2270 = vmatpush1.bf16.msra.mxu0 0
  %2271 = vmatprep.subr.bf16.mxu0 0
  %2272 = vmatpush1.bf16.msra.mxu0 0
  %2273 = vmatprep.subr.bf16.mxu0 0
  %2274 = vmatpush1.bf16.msra.mxu0 0
  %2275 = vmatprep.subr.bf16.mxu0 0
  %2276 = vmatpush1.bf16.msra.mxu0 0
  %2277 = vmatprep.subr.bf16.mxu0 0
  %2278 = vmatpush1.bf16.msra.mxu0 0
  %2279 = vmatprep.subr.bf16.mxu0 0
  %2280 = vmatpush1.bf16.msra.mxu0 0
  %2281 = vmatprep.subr.bf16.mxu0 0
  %2282 = vmatpush1.bf16.msra.mxu0 0
  %2283 = vmatprep.subr.bf16.mxu0 0
  %2284 = vmatpush1.bf16.msra.mxu0 0
  %2285 = vmatprep.mubr.bf16.mxu0 0
  %2286 = vmatmul.mubr.bf16.gmra.mrb[0].mxu0 %v1359
  %v2287 = vpop.f32.mrb[0].mxu0
  %v2288 = vadd.f32 %v2143, %v2287
  %v2289 = vpop.f32.mrb[0].mxu0
  %v2290 = vadd.f32 %v2147, %v2289
  %v2291 = vpop.f32.mrb[0].mxu0
  %v2292 = vpop.f32.mrb[0].mxu0
  %2293 = vdwg.mxu0
  %2294 = vmatprep.subr.bf16.mxu0 %v1879
  %2295 = vmatpush1.bf16.msra.mxu0 %v1878
  %2296 = vmatprep.subr.bf16.mxu0 %v1895
  %2297 = vmatpush1.bf16.msra.mxu0 %v1894
  %2298 = vmatprep.subr.bf16.mxu0 %v1911
  %2299 = vmatpush1.bf16.msra.mxu0 %v1910
  %2300 = vmatprep.subr.bf16.mxu0 %v1927
  %2301 = vmatpush1.bf16.msra.mxu0 %v1926
  %2302 = vmatprep.subr.bf16.mxu0 %v1943
  %2303 = vmatpush1.bf16.msra.mxu0 %v1942
  %2304 = vmatprep.subr.bf16.mxu0 %v1959
  %2305 = vmatpush1.bf16.msra.mxu0 %v1958
  %2306 = vmatprep.subr.bf16.mxu0 %v1975
  %2307 = vmatpush1.bf16.msra.mxu0 %v1974
  %2308 = vmatprep.subr.bf16.mxu0 %v1991
  %2309 = vmatpush1.bf16.msra.mxu0 %v1990
  %2310 = vmatprep.subr.bf16.mxu0 0
  %2311 = vmatpush1.bf16.msra.mxu0 0
  %2312 = vmatprep.subr.bf16.mxu0 0
  %2313 = vmatpush1.bf16.msra.mxu0 0
  %2314 = vmatprep.subr.bf16.mxu0 0
  %2315 = vmatpush1.bf16.msra.mxu0 0
  %2316 = vmatprep.subr.bf16.mxu0 0
  %2317 = vmatpush1.bf16.msra.mxu0 0
  %2318 = vmatprep.subr.bf16.mxu0 0
  %2319 = vmatpush1.bf16.msra.mxu0 0
  %2320 = vmatprep.subr.bf16.mxu0 0
  %2321 = vmatpush1.bf16.msra.mxu0 0
  %2322 = vmatprep.subr.bf16.mxu0 0
  %2323 = vmatpush1.bf16.msra.mxu0 0
  %2324 = vmatprep.subr.bf16.mxu0 0
  %2325 = vmatpush1.bf16.msra.mxu0 0
  %2326 = vmatprep.mubr.bf16.mxu0 0
  %2327 = vmatmul.mubr.bf16.gmra.mrb[0].mxu0 %v1359
  %v2328 = vpop.f32.mrb[0].mxu0
  %v2329 = vadd.f32 %v2151, %v2328
  %v2330 = vpop.f32.mrb[0].mxu0
  %v2331 = vadd.f32 %v2155, %v2330
  %v2332 = vpop.f32.mrb[0].mxu0
  %v2333 = vpop.f32.mrb[0].mxu0
  %2334 = vdwg.mxu0
  %2335 = vmatprep.subr.bf16.mxu0 %v1881
  %2336 = vmatpush1.bf16.msra.mxu0 %v1880
  %2337 = vmatprep.subr.bf16.mxu0 %v1897
  %2338 = vmatpush1.bf16.msra.mxu0 %v1896
  %2339 = vmatprep.subr.bf16.mxu0 %v1913
  %2340 = vmatpush1.bf16.msra.mxu0 %v1912
  %2341 = vmatprep.subr.bf16.mxu0 %v1929
  %2342 = vmatpush1.bf16.msra.mxu0 %v1928
  %2343 = vmatprep.subr.bf16.mxu0 %v1945
  %2344 = vmatpush1.bf16.msra.mxu0 %v1944
  %2345 = vmatprep.subr.bf16.mxu0 %v1961
  %2346 = vmatpush1.bf16.msra.mxu0 %v1960
  %2347 = vmatprep.subr.bf16.mxu0 %v1977
  %2348 = vmatpush1.bf16.msra.mxu0 %v1976
  %2349 = vmatprep.subr.bf16.mxu0 %v1993
  %2350 = vmatpush1.bf16.msra.mxu0 %v1992
  %2351 = vmatprep.subr.bf16.mxu0 0
  %2352 = vmatpush1.bf16.msra.mxu0 0
  %2353 = vmatprep.subr.bf16.mxu0 0
  %2354 = vmatpush1.bf16.msra.mxu0 0
  %2355 = vmatprep.subr.bf16.mxu0 0
  %2356 = vmatpush1.bf16.msra.mxu0 0
  %2357 = vmatprep.subr.bf16.mxu0 0
  %2358 = vmatpush1.bf16.msra.mxu0 0
  %2359 = vmatprep.subr.bf16.mxu0 0
  %2360 = vmatpush1.bf16.msra.mxu0 0
  %2361 = vmatprep.subr.bf16.mxu0 0
  %2362 = vmatpush1.bf16.msra.mxu0 0
  %2363 = vmatprep.subr.bf16.mxu0 0
  %2364 = vmatpush1.bf16.msra.mxu0 0
  %2365 = vmatprep.subr.bf16.mxu0 0
  %2366 = vmatpush1.bf16.msra.mxu0 0
  %2367 = vmatprep.mubr.bf16.mxu0 0
  %2368 = vmatmul.mubr.bf16.gmra.mrb[0].mxu0 %v1359
  %v2369 = vpop.f32.mrb[0].mxu0
  %v2370 = vadd.f32 %v2159, %v2369
  %v2371 = vpop.f32.mrb[0].mxu0
  %v2372 = vadd.f32 %v2163, %v2371
  %v2373 = vpop.f32.mrb[0].mxu0
  %v2374 = vpop.f32.mrb[0].mxu0
  %2375 = vdwg.mxu0
  %2376 = vmatprep.subr.bf16.mxu0 %v1883
  %2377 = vmatpush1.bf16.msra.mxu0 %v1882
  %2378 = vmatprep.subr.bf16.mxu0 %v1899
  %2379 = vmatpush1.bf16.msra.mxu0 %v1898
  %2380 = vmatprep.subr.bf16.mxu0 %v1915
  %2381 = vmatpush1.bf16.msra.mxu0 %v1914
  %2382 = vmatprep.subr.bf16.mxu0 %v1931
  %2383 = vmatpush1.bf16.msra.mxu0 %v1930
  %2384 = vmatprep.subr.bf16.mxu0 %v1947
  %2385 = vmatpush1.bf16.msra.mxu0 %v1946
  %2386 = vmatprep.subr.bf16.mxu0 %v1963
  %2387 = vmatpush1.bf16.msra.mxu0 %v1962
  %2388 = vmatprep.subr.bf16.mxu0 %v1979
  %2389 = vmatpush1.bf16.msra.mxu0 %v1978
  %2390 = vmatprep.subr.bf16.mxu0 %v1995
  %2391 = vmatpush1.bf16.msra.mxu0 %v1994
  %2392 = vmatprep.subr.bf16.mxu0 0
  %2393 = vmatpush1.bf16.msra.mxu0 0
  %2394 = vmatprep.subr.bf16.mxu0 0
  %2395 = vmatpush1.bf16.msra.mxu0 0
  %2396 = vmatprep.subr.bf16.mxu0 0
  %2397 = vmatpush1.bf16.msra.mxu0 0
  %2398 = vmatprep.subr.bf16.mxu0 0
  %2399 = vmatpush1.bf16.msra.mxu0 0
  %2400 = vmatprep.subr.bf16.mxu0 0
  %2401 = vmatpush1.bf16.msra.mxu0 0
  %2402 = vmatprep.subr.bf16.mxu0 0
  %2403 = vmatpush1.bf16.msra.mxu0 0
  %2404 = vmatprep.subr.bf16.mxu0 0
  %2405 = vmatpush1.bf16.msra.mxu0 0
  %2406 = vmatprep.subr.bf16.mxu0 0
  %2407 = vmatpush1.bf16.msra.mxu0 0
  %2408 = vmatprep.mubr.bf16.mxu0 0
  %2409 = vmatmul.mubr.bf16.gmra.mrb[0].mxu0 %v1359
  %v2410 = vpop.f32.mrb[0].mxu0
  %v2411 = vadd.f32 %v2167, %v2410
  %v2412 = vpop.f32.mrb[0].mxu0
  %v2413 = vadd.f32 %v2171, %v2412
  %v2414 = vpop.f32.mrb[0].mxu0
  %v2415 = vpop.f32.mrb[0].mxu0
  %2416 = vdwg.mxu0
  %2417 = vmatprep.subr.bf16.mxu0 %v1885
  %2418 = vmatpush1.bf16.msra.mxu0 %v1884
  %2419 = vmatprep.subr.bf16.mxu0 %v1901
  %2420 = vmatpush1.bf16.msra.mxu0 %v1900
  %2421 = vmatprep.subr.bf16.mxu0 %v1917
  %2422 = vmatpush1.bf16.msra.mxu0 %v1916
  %2423 = vmatprep.subr.bf16.mxu0 %v1933
  %2424 = vmatpush1.bf16.msra.mxu0 %v1932
  %2425 = vmatprep.subr.bf16.mxu0 %v1949
  %2426 = vmatpush1.bf16.msra.mxu0 %v1948
  %2427 = vmatprep.subr.bf16.mxu0 %v1965
  %2428 = vmatpush1.bf16.msra.mxu0 %v1964
  %2429 = vmatprep.subr.bf16.mxu0 %v1981
  %2430 = vmatpush1.bf16.msra.mxu0 %v1980
  %2431 = vmatprep.subr.bf16.mxu0 %v1997
  %2432 = vmatpush1.bf16.msra.mxu0 %v1996
  %2433 = vmatprep.subr.bf16.mxu0 0
  %2434 = vmatpush1.bf16.msra.mxu0 0
  %2435 = vmatprep.subr.bf16.mxu0 0
  %2436 = vmatpush1.bf16.msra.mxu0 0
  %2437 = vmatprep.subr.bf16.mxu0 0
  %2438 = vmatpush1.bf16.msra.mxu0 0
  %2439 = vmatprep.subr.bf16.mxu0 0
  %2440 = vmatpush1.bf16.msra.mxu0 0
  %2441 = vmatprep.subr.bf16.mxu0 0
  %2442 = vmatpush1.bf16.msra.mxu0 0
  %2443 = vmatprep.subr.bf16.mxu0 0
  %2444 = vmatpush1.bf16.msra.mxu0 0
  %2445 = vmatprep.subr.bf16.mxu0 0
  %2446 = vmatpush1.bf16.msra.mxu0 0
  %2447 = vmatprep.subr.bf16.mxu0 0
  %2448 = vmatpush1.bf16.msra.mxu0 0
  %2449 = vmatprep.mubr.bf16.mxu0 0
  %2450 = vmatmul.mubr.bf16.gmra.mrb[0].mxu0 %v1359
  %v2451 = vpop.f32.mrb[0].mxu0
  %v2452 = vadd.f32 %v2175, %v2451
  %v2453 = vpop.f32.mrb[0].mxu0
  %v2454 = vadd.f32 %v2179, %v2453
  %v2455 = vpop.f32.mrb[0].mxu0
  %v2456 = vpop.f32.mrb[0].mxu0
  %2457 = vdwg.mxu0
  %2458 = vmatprep.subr.bf16.mxu0 %v1887
  %2459 = vmatpush1.bf16.msra.mxu0 %v1886
  %2460 = vmatprep.subr.bf16.mxu0 %v1903
  %2461 = vmatpush1.bf16.msra.mxu0 %v1902
  %2462 = vmatprep.subr.bf16.mxu0 %v1919
  %2463 = vmatpush1.bf16.msra.mxu0 %v1918
  %2464 = vmatprep.subr.bf16.mxu0 %v1935
  %2465 = vmatpush1.bf16.msra.mxu0 %v1934
  %2466 = vmatprep.subr.bf16.mxu0 %v1951
  %2467 = vmatpush1.bf16.msra.mxu0 %v1950
  %2468 = vmatprep.subr.bf16.mxu0 %v1967
  %2469 = vmatpush1.bf16.msra.mxu0 %v1966
  %2470 = vmatprep.subr.bf16.mxu0 %v1983
  %2471 = vmatpush1.bf16.msra.mxu0 %v1982
  %2472 = vmatprep.subr.bf16.mxu0 %v1999
  %2473 = vmatpush1.bf16.msra.mxu0 %v1998
  %2474 = vmatprep.subr.bf16.mxu0 0
  %2475 = vmatpush1.bf16.msra.mxu0 0
  %2476 = vmatprep.subr.bf16.mxu0 0
  %2477 = vmatpush1.bf16.msra.mxu0 0
  %2478 = vmatprep.subr.bf16.mxu0 0
  %2479 = vmatpush1.bf16.msra.mxu0 0
  %2480 = vmatprep.subr.bf16.mxu0 0
  %2481 = vmatpush1.bf16.msra.mxu0 0
  %2482 = vmatprep.subr.bf16.mxu0 0
  %2483 = vmatpush1.bf16.msra.mxu0 0
  %2484 = vmatprep.subr.bf16.mxu0 0
  %2485 = vmatpush1.bf16.msra.mxu0 0
  %2486 = vmatprep.subr.bf16.mxu0 0
  %2487 = vmatpush1.bf16.msra.mxu0 0
  %2488 = vmatprep.subr.bf16.mxu0 0
  %2489 = vmatpush1.bf16.msra.mxu0 0
  %2490 = vmatprep.mubr.bf16.mxu0 0
  %2491 = vmatmul.mubr.bf16.gmra.mrb[0].mxu0 %v1359
  %v2492 = vpop.f32.mrb[0].mxu0
  %v2493 = vadd.f32 %v2183, %v2492
  %v2494 = vpop.f32.mrb[0].mxu0
  %v2495 = vadd.f32 %v2187, %v2494
  %v2496 = vpop.f32.mrb[0].mxu0
  %v2497 = vpop.f32.mrb[0].mxu0
  %2498 = vdwg.mxu0
  %2499 = vmatprep.subr.bf16.mxu0 %v1889
  %2500 = vmatpush1.bf16.msra.mxu0 %v1888
  %2501 = vmatprep.subr.bf16.mxu0 %v1905
  %2502 = vmatpush1.bf16.msra.mxu0 %v1904
  %2503 = vmatprep.subr.bf16.mxu0 %v1921
  %2504 = vmatpush1.bf16.msra.mxu0 %v1920
  %2505 = vmatprep.subr.bf16.mxu0 %v1937
  %2506 = vmatpush1.bf16.msra.mxu0 %v1936
  %2507 = vmatprep.subr.bf16.mxu0 %v1953
  %2508 = vmatpush1.bf16.msra.mxu0 %v1952
  %2509 = vmatprep.subr.bf16.mxu0 %v1969
  %2510 = vmatpush1.bf16.msra.mxu0 %v1968
  %2511 = vmatprep.subr.bf16.mxu0 %v1985
  %2512 = vmatpush1.bf16.msra.mxu0 %v1984
  %2513 = vmatprep.subr.bf16.mxu0 %v2001
  %2514 = vmatpush1.bf16.msra.mxu0 %v2000
  %2515 = vmatprep.subr.bf16.mxu0 0
  %2516 = vmatpush1.bf16.msra.mxu0 0
  %2517 = vmatprep.subr.bf16.mxu0 0
  %2518 = vmatpush1.bf16.msra.mxu0 0
  %2519 = vmatprep.subr.bf16.mxu0 0
  %2520 = vmatpush1.bf16.msra.mxu0 0
  %2521 = vmatprep.subr.bf16.mxu0 0
  %2522 = vmatpush1.bf16.msra.mxu0 0
  %2523 = vmatprep.subr.bf16.mxu0 0
  %2524 = vmatpush1.bf16.msra.mxu0 0
  %2525 = vmatprep.subr.bf16.mxu0 0
  %2526 = vmatpush1.bf16.msra.mxu0 0
  %2527 = vmatprep.subr.bf16.mxu0 0
  %2528 = vmatpush1.bf16.msra.mxu0 0
  %2529 = vmatprep.subr.bf16.mxu0 0
  %2530 = vmatpush1.bf16.msra.mxu0 0
  %2531 = vmatprep.mubr.bf16.mxu0 0
  %2532 = vmatmul.mubr.bf16.gmra.mrb[0].mxu0 %v1359
  %v2533 = vpop.f32.mrb[0].mxu0
  %v2534 = vadd.f32 %v2191, %v2533
  %v2535 = vpop.f32.mrb[0].mxu0
  %v2536 = vadd.f32 %v2195, %v2535
  %v2537 = vpop.f32.mrb[0].mxu0
  %v2538 = vpop.f32.mrb[0].mxu0
  %2539 = vdwg.mxu0
  %v2540 = vlaneseq
  %v2541 = vand.u32 %v2540, 127
  %v2542 = vadd.s32 %v2541, 128
  %v2543 = vadd.s32 %v2541, 256
  %v2544 = vadd.s32 %v2541, 384
  %v2545 = vadd.s32 %v2541, 512
  %v2546 = vadd.s32 %v2541, 640
  %v2547 = vadd.s32 %v2541, 768
  %v2548 = vadd.s32 %v2541, 896
  %v2549 = vadd.s32 %v2541, 1024
  %v2550 = vadd.s32 %v2541, 1152
  %v2551 = vadd.s32 %v2541, 1280
  %v2552 = vadd.s32 %v2541, 1408
  %v2553 = vadd.s32 %v2541, 1536
  %v2554 = vadd.s32 %v2541, 1664
  %v2555 = vadd.s32 %v2541, 1792
  %v2556 = vadd.s32 %v2541, 1920
  %vm2557 = vcmp.lt.s32.totalorder %v2541, 1024
  %vm2558 = vcmp.lt.s32.totalorder %v2542, 1024
  %vm2559 = vcmp.lt.s32.totalorder %v2543, 1024
  %vm2560 = vcmp.lt.s32.totalorder %v2544, 1024
  %vm2561 = vcmp.lt.s32.totalorder %v2545, 1024
  %vm2562 = vcmp.lt.s32.totalorder %v2546, 1024
  %vm2563 = vcmp.lt.s32.totalorder %v2547, 1024
  %vm2564 = vcmp.lt.s32.totalorder %v2548, 1024
  %vm2565 = vcmp.lt.s32.totalorder %v2549, 1024
  %vm2566 = vcmp.lt.s32.totalorder %v2550, 1024
  %vm2567 = vcmp.lt.s32.totalorder %v2551, 1024
  %vm2568 = vcmp.lt.s32.totalorder %v2552, 1024
  %vm2569 = vcmp.lt.s32.totalorder %v2553, 1024
  %vm2570 = vcmp.lt.s32.totalorder %v2554, 1024
  %vm2571 = vcmp.lt.s32.totalorder %v2555, 1024
  %vm2572 = vcmp.lt.s32.totalorder %v2556, 1024
  %v2573 = vsub.f32 0.0, %v2247
  %v2574 = vsub.f32 0.0, %v2249
  %v2575 = vsub.f32 0.0, %v2288
  %v2576 = vsub.f32 0.0, %v2290
  %v2577 = vsub.f32 0.0, %v2329
  %v2578 = vsub.f32 0.0, %v2331
  %v2579 = vsub.f32 0.0, %v2370
  %v2580 = vsub.f32 0.0, %v2372
  %v2581 = vsub.f32 0.0, %v2411
  %v2582 = vsub.f32 0.0, %v2413
  %v2583 = vsub.f32 0.0, %v2452
  %v2584 = vsub.f32 0.0, %v2454
  %v2585 = vsub.f32 0.0, %v2493
  %v2586 = vsub.f32 0.0, %v2495
  %v2587 = vsub.f32 0.0, %v2534
  %v2588 = vsub.f32 0.0, %v2536
  %v2589 = vmul.f32 %v2573, 1.442695
  %v2590 = vpow.pop %v2589
  %v2591 = vmul.f32 %v2574, 1.442695
  %v2592 = vpow.pop %v2591
  %v2593 = vmul.f32 %v2575, 1.442695
  %v2594 = vpow.pop %v2593
  %v2595 = vmul.f32 %v2576, 1.442695
  %v2596 = vpow.pop %v2595
  %v2597 = vmul.f32 %v2577, 1.442695
  %v2598 = vpow.pop %v2597
  %v2599 = vmul.f32 %v2578, 1.442695
  %v2600 = vpow.pop %v2599
  %v2601 = vmul.f32 %v2579, 1.442695
  %v2602 = vpow.pop %v2601
  %v2603 = vmul.f32 %v2580, 1.442695
  %v2604 = vpow.pop %v2603
  %v2605 = vmul.f32 %v2581, 1.442695
  %v2606 = vpow.pop %v2605
  %v2607 = vmul.f32 %v2582, 1.442695
  %v2608 = vpow.pop %v2607
  %v2609 = vmul.f32 %v2583, 1.442695
  %v2610 = vpow.pop %v2609
  %v2611 = vmul.f32 %v2584, 1.442695
  %v2612 = vpow.pop %v2611
  %v2613 = vmul.f32 %v2585, 1.442695
  %v2614 = vpow.pop %v2613
  %v2615 = vmul.f32 %v2586, 1.442695
  %v2616 = vpow.pop %v2615
  %v2617 = vmul.f32 %v2587, 1.442695
  %v2618 = vpow.pop %v2617
  %v2619 = vmul.f32 %v2588, 1.442695
  %v2620 = vpow.pop %v2619
  %v2621 = vadd.f32 %v2590, 1.0
  %v2622 = vadd.f32 %v2592, 1.0
  %v2623 = vadd.f32 %v2594, 1.0
  %v2624 = vadd.f32 %v2596, 1.0
  %v2625 = vadd.f32 %v2598, 1.0
  %v2626 = vadd.f32 %v2600, 1.0
  %v2627 = vadd.f32 %v2602, 1.0
  %v2628 = vadd.f32 %v2604, 1.0
  %v2629 = vadd.f32 %v2606, 1.0
  %v2630 = vadd.f32 %v2608, 1.0
  %v2631 = vadd.f32 %v2610, 1.0
  %v2632 = vadd.f32 %v2612, 1.0
  %v2633 = vadd.f32 %v2614, 1.0
  %v2634 = vadd.f32 %v2616, 1.0
  %v2635 = vadd.f32 %v2618, 1.0
  %v2636 = vadd.f32 %v2620, 1.0
  %v2637 = vrcp.pop %v2621
  %v2638 = vmul.f32 1.0, %v2637
  %v2639 = vrcp.pop %v2622
  %v2640 = vmul.f32 1.0, %v2639
  %v2641 = vrcp.pop %v2623
  %v2642 = vmul.f32 1.0, %v2641
  %v2643 = vrcp.pop %v2624
  %v2644 = vmul.f32 1.0, %v2643
  %v2645 = vrcp.pop %v2625
  %v2646 = vmul.f32 1.0, %v2645
  %v2647 = vrcp.pop %v2626
  %v2648 = vmul.f32 1.0, %v2647
  %v2649 = vrcp.pop %v2627
  %v2650 = vmul.f32 1.0, %v2649
  %v2651 = vrcp.pop %v2628
  %v2652 = vmul.f32 1.0, %v2651
  %v2653 = vrcp.pop %v2629
  %v2654 = vmul.f32 1.0, %v2653
  %v2655 = vrcp.pop %v2630
  %v2656 = vmul.f32 1.0, %v2655
  %v2657 = vrcp.pop %v2631
  %v2658 = vmul.f32 1.0, %v2657
  %v2659 = vrcp.pop %v2632
  %v2660 = vmul.f32 1.0, %v2659
  %v2661 = vrcp.pop %v2633
  %v2662 = vmul.f32 1.0, %v2661
  %v2663 = vrcp.pop %v2634
  %v2664 = vmul.f32 1.0, %v2663
  %v2665 = vrcp.pop %v2635
  %v2666 = vmul.f32 1.0, %v2665
  %v2667 = vrcp.pop %v2636
  %v2668 = vmul.f32 1.0, %v2667
  %v2669 = vmul.f32 %v2638, 192.0
  %v2670 = vmul.f32 %v2640, 192.0
  %v2671 = vmul.f32 %v2642, 192.0
  %v2672 = vmul.f32 %v2644, 192.0
  %v2673 = vmul.f32 %v2646, 192.0
  %v2674 = vmul.f32 %v2648, 192.0
  %v2675 = vmul.f32 %v2650, 192.0
  %v2676 = vmul.f32 %v2652, 192.0
  %v2677 = vmul.f32 %v2654, 192.0
  %v2678 = vmul.f32 %v2656, 192.0
  %v2679 = vmul.f32 %v2658, 192.0
  %v2680 = vmul.f32 %v2660, 192.0
  %v2681 = vmul.f32 %v2662, 192.0
  %v2682 = vmul.f32 %v2664, 192.0
  %v2683 = vmul.f32 %v2666, 192.0
  %v2684 = vmul.f32 %v2668, 192.0
  %v2685 = vsel %vm2557, %v2669, %v2247
  %v2686 = vsel %vm2558, %v2670, %v2249
  %v2687 = vsel %vm2559, %v2671, %v2288
  %v2688 = vsel %vm2560, %v2672, %v2290
  %v2689 = vsel %vm2561, %v2673, %v2329
  %v2690 = vsel %vm2562, %v2674, %v2331
  %v2691 = vsel %vm2563, %v2675, %v2370
  %v2692 = vsel %vm2564, %v2676, %v2372
  %v2693 = vsel %vm2565, %v2677, %v2411
  %v2694 = vsel %vm2566, %v2678, %v2413
  %v2695 = vsel %vm2567, %v2679, %v2452
  %v2696 = vsel %vm2568, %v2680, %v2454
  %v2697 = vsel %vm2569, %v2681, %v2493
  %v2698 = vsel %vm2570, %v2682, %v2495
  %v2699 = vsel %vm2571, %v2683, %v2534
  %v2700 = vsel %vm2572, %v2684, %v2536
  %v2717 = vcombine.low %v2685, %v2686
  %v2718 = vcombine.low %v2687, %v2688
  %v2719 = vcombine.low %v2689, %v2690
  %v2720 = vcombine.low %v2691, %v2692
  %v2722 = vunpack.c.l.s4 1966171168
  %v2723 = vunpack.c.0.s8 %v2722
  %v2724 = vlaneseq
  %v2725 = vshrl.u32 %v2724, 7
  %v2726 = vsub.s32 %v2723, %v2725
  %v2727 = vrot.slane %v2717, %v2726
  %v2729 = vunpack.c.l.s4 1966171168
  %v2730 = vunpack.c.0.s8 %v2729
  %v2731 = vlaneseq
  %v2732 = vshrl.u32 %v2731, 7
  %v2733 = vsub.s32 %v2730, %v2732
  %v2734 = vrot.slane %v2718, %v2733
  %v2736 = vunpack.c.l.s4 1966171168
  %v2737 = vunpack.c.0.s8 %v2736
  %v2738 = vlaneseq
  %v2739 = vshrl.u32 %v2738, 7
  %v2740 = vsub.s32 %v2737, %v2739
  %v2741 = vrot.slane %v2719, %v2740
  %v2743 = vunpack.c.l.s4 1966171168
  %v2744 = vunpack.c.0.s8 %v2743
  %v2745 = vlaneseq
  %v2746 = vshrl.u32 %v2745, 7
  %v2747 = vsub.s32 %v2744, %v2746
  %v2748 = vrot.slane %v2720, %v2747
  %v2749 = vcombine.low %v2727, %v2734
  %v2750 = vcombine.low %v2741, %v2748
  %v2752 = vunpack.c.l.s4 1966171168
  %v2753 = vunpack.c.0.s8 %v2752
  %v2754 = vlaneseq
  %v2755 = vshrl.u32 %v2754, 7
  %v2756 = vsub.s32 %v2753, %v2755
  %v2757 = vrot.slane %v2749, %v2756
  %v2759 = vunpack.c.l.s4 1966171168
  %v2760 = vunpack.c.0.s8 %v2759
  %v2761 = vlaneseq
  %v2762 = vshrl.u32 %v2761, 7
  %v2763 = vsub.s32 %v2760, %v2762
  %v2764 = vrot.slane %v2750, %v2763
  %v2765 = vcombine.low %v2757, %v2764
  %v2766 = vcombine.low %v2693, %v2694
  %v2767 = vcombine.low %v2695, %v2696
  %v2768 = vcombine.low %v2697, %v2698
  %v2769 = vcombine.low %v2699, %v2700
  %v2771 = vunpack.c.l.s4 1966171168
  %v2772 = vunpack.c.0.s8 %v2771
  %v2773 = vlaneseq
  %v2774 = vshrl.u32 %v2773, 7
  %v2775 = vsub.s32 %v2772, %v2774
  %v2776 = vrot.slane %v2766, %v2775
  %v2778 = vunpack.c.l.s4 1966171168
  %v2779 = vunpack.c.0.s8 %v2778
  %v2780 = vlaneseq
  %v2781 = vshrl.u32 %v2780, 7
  %v2782 = vsub.s32 %v2779, %v2781
  %v2783 = vrot.slane %v2767, %v2782
  %v2785 = vunpack.c.l.s4 1966171168
  %v2786 = vunpack.c.0.s8 %v2785
  %v2787 = vlaneseq
  %v2788 = vshrl.u32 %v2787, 7
  %v2789 = vsub.s32 %v2786, %v2788
  %v2790 = vrot.slane %v2768, %v2789
  %v2792 = vunpack.c.l.s4 1966171168
  %v2793 = vunpack.c.0.s8 %v2792
  %v2794 = vlaneseq
  %v2795 = vshrl.u32 %v2794, 7
  %v2796 = vsub.s32 %v2793, %v2795
  %v2797 = vrot.slane %v2769, %v2796
  %v2798 = vcombine.low %v2776, %v2783
  %v2799 = vcombine.low %v2790, %v2797
  %v2801 = vunpack.c.l.s4 1966171168
  %v2802 = vunpack.c.0.s8 %v2801
  %v2803 = vlaneseq
  %v2804 = vshrl.u32 %v2803, 7
  %v2805 = vsub.s32 %v2802, %v2804
  %v2806 = vrot.slane %v2798, %v2805
  %v2808 = vunpack.c.l.s4 1966171168
  %v2809 = vunpack.c.0.s8 %v2808
  %v2810 = vlaneseq
  %v2811 = vshrl.u32 %v2810, 7
  %v2812 = vsub.s32 %v2809, %v2811
  %v2813 = vrot.slane %v2799, %v2812
  %v2814 = vcombine.low %v2806, %v2813
  %2817 = vst [vmem:[%s5] sm:$0xff] %v2765
  %2818 = vst [vmem:[%s5 + $0x8] sm:$0xff] %v2814
  // Predicated region
  $region22: #{forward.2} parent=0 // pred_check
    _
  $region23: #{forward.2} parent=0 // pred_check_branch
    %2820 = sbr.rel (0) target = $region25
  $region24: #{forward.2} parent=0 // pred_region
    _
  $region25: #{forward.2} parent=0 // pred_fallthru
    _
  // Predicated region
  $region26: #{forward.2} parent=0 // pred_check
    _
  $region27: #{forward.2} parent=0 // pred_check_branch
    %2822 = sbr.rel (0) target = $region29
  $region28: #{forward.2} parent=0 // pred_region
    _
  $region29: #{forward.2} parent=0 // pred_fallthru
    _

// kernel: forward.3
$region0: #{forward.3}
  #allocation0 [shape = 'u32[]', space=smem, size = 0x4, offset = 0x4, fixed_abs, tag = 'smem constant byte address 0x4 - core index']
  #allocation1 [shape = 'u32[144,128]{1,0:T(1,128)}', space=vmem, size = 0x12000, scoped, tag = 'internal scratch']
  %s0 = inlined_call_operand.vmem [shape: f32[2,8], index: 0, kind: input, shape index: {}]
  %s1 = inlined_call_operand.vmem [shape: f32[1,2048], index: 1, kind: input, shape index: {}]
  %s2 = inlined_call_operand.vmem [shape: bf16[192,576], index: 2, kind: input, shape index: {}]
  %s3 = inlined_call_operand.vmem [shape: bf16[192,128], index: 3, kind: input, shape index: {}]
  %s4 = inlined_call_operand.vmem [shape: f32[1,128], index: 4, kind: input, shape index: {}]
  %s5 = inlined_call_operand.vmem [shape: bf16[128,256], index: 5, kind: input, shape index: {}]
  %s6 = inlined_call_operand.vmem [shape: f32[1,256], index: 6, kind: input, shape index: {}]
  %s7 = inlined_call_operand.vmem [shape: f32[512,160], index: 7, kind: input, shape index: {}]
  %s8 = inlined_call_operand.vmem [shape: f32[256,160], index: 8, kind: input, shape index: {}]
  %s9 = inlined_call_operand.vmem [shape: f32[256,160], index: 9, kind: input, shape index: {}]
  %s10 = inlined_call_operand.vmem [shape: f32[256,160], index: 10, kind: input, shape index: {}]
  %s11 = inlined_call_operand.vmem [shape: f32[256,160], index: 11, kind: input, shape index: {}]
  %s12 = inlined_call_operand.vmem [shape: f32[64,1], index: 12, kind: input, shape index: {}]
  %s13 = inlined_call_operand.vmem [shape: f32[64,1], index: 13, kind: input, shape index: {}]
  %s14 = inlined_call_operand.vmem [shape: f32[64,1], index: 14, kind: input, shape index: {}]
  %s15 = inlined_call_operand.vmem [shape: bf16[160,160], index: 15, kind: input, shape index: {}]
  %s16 = inlined_call_operand.vmem [shape: f32[1,160], index: 16, kind: input, shape index: {}]
  %s17 = inlined_call_operand.vmem [shape: bf16[64,64], index: 17, kind: input, shape index: {}]
  %s18 = inlined_call_operand.vmem [shape: f32[64,1], index: 18, kind: input, shape index: {}]
  %s19 = inlined_call_operand.vmem [shape: f32[64,128], index: 19, kind: input, shape index: {}]
  %s20 = inlined_call_operand.vmem [shape: f32[1,128], index: 20, kind: input, shape index: {}]
  %s21 = inlined_call_operand.vmem [shape: f32[2,256], index: 21, kind: output, shape index: {0}]
  %s22 = inlined_call_operand.vmem [shape: f32[1,128], index: 22, kind: output, shape index: {1}]
  %23 = xla_tuple %s21, %s22
  %s24 = sld [smem:[#allocation0]]
  $region106: #{forward.3} parent=0
    _
  %s26 = ssub.s32 1, %s24
  %s27 = scalar_select 0, %s26, %s24
  $region1: #{forward.3} parent=0
    #allocation2 [shape = 'u8[1024]{0}', space=smem, size = 0x400, scoped, tag = 'input window, operand 0, single buffered']
    #allocation3 [shape = 's32[1]{0}', space=sflag, size = 0x4, scoped, tag = 'scoped memory for forward.3']
    %28 = vsyncpa [#allocation3], 0
    // Predicated region
    $region2: #{forward.3} parent=1 // pred_check
      _
    $region3: #{forward.3} parent=1 // pred_check_branch
      %30 = sbr.rel (0) target = $region5
    $region4: #{forward.3} parent=1 // pred_region
      %s32 = ssub.s32 32, 32
      %33 = vsyncadd [#allocation3], %s32
      %s35 = sshll.u32 %s0, 4
      %s36 = int_to_ptr.vmem [resolvable:$true] %s35
      %38 = dma.vmem_to_smem %s36, 32, [#allocation2], [#allocation3]
    $region5: #{forward.3} parent=1 // pred_fallthru
      _
    // Predicated region
    $region6: #{forward.3} parent=1 // pred_check
      _
    $region7: #{forward.3} parent=1 // pred_check_branch
      %40 = sbr.rel (0) target = $region9
    $region8: #{forward.3} parent=1 // pred_region
      _
    $region9: #{forward.3} parent=1 // pred_fallthru
      _
    // Predicated region
    $region10: #{forward.3} parent=1 // pred_check
      _
    $region11: #{forward.3} parent=1 // pred_check_branch
      %42 = sbr.rel (0) target = $region13
    $region12: #{forward.3} parent=1 // pred_region
      _
    $region13: #{forward.3} parent=1 // pred_fallthru
      _
    // Predicated region
    $region14: #{forward.3} parent=1 // pred_check
      _
    $region15: #{forward.3} parent=1 // pred_check_branch
      %44 = sbr.rel (0) target = $region17
    $region16: #{forward.3} parent=1 // pred_region
      _
    $region17: #{forward.3} parent=1 // pred_fallthru
      _
    // Predicated region
    $region18: #{forward.3} parent=1 // pred_check
      _
    $region19: #{forward.3} parent=1 // pred_check_branch
      %46 = sbr.rel (0) target = $region21
    $region20: #{forward.3} parent=1 // pred_region
      _
    $region21: #{forward.3} parent=1 // pred_fallthru
      _
    // Predicated region
    $region22: #{forward.3} parent=1 // pred_check
      _
    $region23: #{forward.3} parent=1 // pred_check_branch
      %48 = sbr.rel (0) target = $region25
    $region24: #{forward.3} parent=1 // pred_region
      _
    $region25: #{forward.3} parent=1 // pred_fallthru
      _
    // Predicated region
    $region26: #{forward.3} parent=1 // pred_check
      _
    $region27: #{forward.3} parent=1 // pred_check_branch
      %50 = sbr.rel (0) target = $region29
    $region28: #{forward.3} parent=1 // pred_region
      _
    $region29: #{forward.3} parent=1 // pred_fallthru
      _
    // Predicated region
    $region30: #{forward.3} parent=1 // pred_check
      _
    $region31: #{forward.3} parent=1 // pred_check_branch
      %52 = sbr.rel (0) target = $region33
    $region32: #{forward.3} parent=1 // pred_region
      _
    $region33: #{forward.3} parent=1 // pred_fallthru
      _
    // Predicated region
    $region34: #{forward.3} parent=1 // pred_check
      _
    $region35: #{forward.3} parent=1 // pred_check_branch
      %54 = sbr.rel (0) target = $region37
    $region36: #{forward.3} parent=1 // pred_region
      _
    $region37: #{forward.3} parent=1 // pred_fallthru
      _
    // Predicated region
    $region38: #{forward.3} parent=1 // pred_check
      _
    $region39: #{forward.3} parent=1 // pred_check_branch
      %56 = sbr.rel (0) target = $region41
    $region40: #{forward.3} parent=1 // pred_region
      _
    $region41: #{forward.3} parent=1 // pred_fallthru
      _
    // Predicated region
    $region42: #{forward.3} parent=1 // pred_check
      _
    $region43: #{forward.3} parent=1 // pred_check_branch
      %58 = sbr.rel (0) target = $region45
    $region44: #{forward.3} parent=1 // pred_region
      _
    $region45: #{forward.3} parent=1 // pred_fallthru
      _
    // Predicated region
    $region46: #{forward.3} parent=1 // pred_check
      _
    $region47: #{forward.3} parent=1 // pred_check_branch
      %60 = sbr.rel (0) target = $region49
    $region48: #{forward.3} parent=1 // pred_region
      _
    $region49: #{forward.3} parent=1 // pred_fallthru
      _
    // Predicated region
    $region50: #{forward.3} parent=1 // pred_check
      _
    $region51: #{forward.3} parent=1 // pred_check_branch
      %62 = sbr.rel (0) target = $region53
    $region52: #{forward.3} parent=1 // pred_region
      _
    $region53: #{forward.3} parent=1 // pred_fallthru
      _
    // Predicated region
    $region54: #{forward.3} parent=1 // pred_check
      _
    $region55: #{forward.3} parent=1 // pred_check_branch
      %64 = sbr.rel (0) target = $region57
    $region56: #{forward.3} parent=1 // pred_region
      _
    $region57: #{forward.3} parent=1 // pred_fallthru
      _
    // Predicated region
    $region58: #{forward.3} parent=1 // pred_check
      _
    $region59: #{forward.3} parent=1 // pred_check_branch
      %66 = sbr.rel (0) target = $region61
    $region60: #{forward.3} parent=1 // pred_region
      _
    $region61: #{forward.3} parent=1 // pred_fallthru
      _
    // Predicated region
    $region62: #{forward.3} parent=1 // pred_check
      _
    $region63: #{forward.3} parent=1 // pred_check_branch
      %68 = sbr.rel (0) target = $region65
    $region64: #{forward.3} parent=1 // pred_region
      _
    $region65: #{forward.3} parent=1 // pred_fallthru
      _
    // Predicated region
    $region66: #{forward.3} parent=1 // pred_check
      _
    $region67: #{forward.3} parent=1 // pred_check_branch
      %70 = sbr.rel (0) target = $region69
    $region68: #{forward.3} parent=1 // pred_region
      _
    $region69: #{forward.3} parent=1 // pred_fallthru
      _
    // Predicated region
    $region70: #{forward.3} parent=1 // pred_check
      _
    $region71: #{forward.3} parent=1 // pred_check_branch
      %72 = sbr.rel (0) target = $region73
    $region72: #{forward.3} parent=1 // pred_region
      _
    $region73: #{forward.3} parent=1 // pred_fallthru
      _
    // Predicated region
    $region74: #{forward.3} parent=1 // pred_check
      _
    $region75: #{forward.3} parent=1 // pred_check_branch
      %74 = sbr.rel (0) target = $region77
    $region76: #{forward.3} parent=1 // pred_region
      _
    $region77: #{forward.3} parent=1 // pred_fallthru
      _
    // Predicated region
    $region78: #{forward.3} parent=1 // pred_check
      _
    $region79: #{forward.3} parent=1 // pred_check_branch
      %76 = sbr.rel (0) target = $region81
    $region80: #{forward.3} parent=1 // pred_region
      _
    $region81: #{forward.3} parent=1 // pred_fallthru
      _
    // Predicated region
    $region82: #{forward.3} parent=1 // pred_check
      _
    $region83: #{forward.3} parent=1 // pred_check_branch
      %78 = sbr.rel (0) target = $region85
    $region84: #{forward.3} parent=1 // pred_region
      _
    $region85: #{forward.3} parent=1 // pred_fallthru
      _
    // Predicated region
    $region86: #{forward.3} parent=1 // pred_check
      _
    $region87: #{forward.3} parent=1 // pred_check_branch
      %80 = sbr.rel (0) target = $region89
    $region88: #{forward.3} parent=1 // pred_region
      %81 = dma.done [#allocation3], 32
    $region89: #{forward.3} parent=1 // pred_fallthru
      _
    %82 = sfence
    %s84 = sld [smem:[#allocation2]]
    %s85 = sld [smem:[#allocation2 + $0x1]]
    %s86 = sld [smem:[#allocation2 + $0x2]]
    %s87 = sld [smem:[#allocation2 + $0x3]]
    %s88 = sld [smem:[#allocation2 + $0x4]]
    %s89 = sld [smem:[#allocation2 + $0x5]]
    %s90 = sld [smem:[#allocation2 + $0x6]]
    %s91 = sld [smem:[#allocation2 + $0x80]]
    %s92 = sld [smem:[#allocation2 + $0x81]]
    %s93 = sld [smem:[#allocation2 + $0x82]]
    %s94 = sld [smem:[#allocation2 + $0x83]]
    %s95 = sld [smem:[#allocation2 + $0x84]]
    %s96 = sld [smem:[#allocation2 + $0x85]]
    %s97 = sld [smem:[#allocation2 + $0x86]]
    %v98 = vlaneseq
    %v99 = vshrl.u32 %v98, 7
    %v100 = vadd.s32 %v99, 8
    %v101 = vadd.s32 %v99, 16
    %v102 = vadd.s32 %v99, 24
    %v103 = vadd.s32 %v99, 32
    %v104 = vadd.s32 %v99, 40
    %v105 = vadd.s32 %v99, 48
    %v106 = vadd.s32 %v99, 56
    %v107 = vadd.s32 %v99, 64
    %v108 = vadd.s32 %v99, 72
    %v109 = vadd.s32 %v99, 80
    %v110 = vadd.s32 %v99, 88
    %v111 = vadd.s32 %v99, 96
    %v112 = vadd.s32 %v99, 104
    %v113 = vadd.s32 %v99, 112
    %v114 = vadd.s32 %v99, 120
    %v115 = vcvt.s32.f32 %v99
    %v116 = vcvt.s32.f32 %v100
    %v117 = vcvt.s32.f32 %v101
    %v118 = vcvt.s32.f32 %v102
    %v119 = vcvt.s32.f32 %v103
    %v120 = vcvt.s32.f32 %v104
    %v121 = vcvt.s32.f32 %v105
    %v122 = vcvt.s32.f32 %v106
    %v123 = vcvt.s32.f32 %v107
    %v124 = vcvt.s32.f32 %v108
    %v125 = vcvt.s32.f32 %v109
    %v126 = vcvt.s32.f32 %v110
    %v127 = vcvt.s32.f32 %v111
    %v128 = vcvt.s32.f32 %v112
    %v129 = vcvt.s32.f32 %v113
    %v130 = vcvt.s32.f32 %v114
    %v131 = vlaneseq
    %v132 = vand.u32 %v131, 127
    %v133 = vadd.s32 %v132, 128
    %v134 = vcvt.s32.f32 %v132
    %v135 = vcvt.s32.f32 %v133
    %vm136 = vcmp.lt.f32.partialorder %v115, 64.0
    %vm137 = vcmp.lt.f32.partialorder %v116, 64.0
    %vm138 = vcmp.lt.f32.partialorder %v117, 64.0
    %vm139 = vcmp.lt.f32.partialorder %v118, 64.0
    %vm140 = vcmp.lt.f32.partialorder %v119, 64.0
    %vm141 = vcmp.lt.f32.partialorder %v120, 64.0
    %vm142 = vcmp.lt.f32.partialorder %v121, 64.0
    %vm143 = vcmp.lt.f32.partialorder %v122, 64.0
    %vm144 = vcmp.lt.f32.partialorder %v123, 64.0
    %vm145 = vcmp.lt.f32.partialorder %v124, 64.0
    %vm146 = vcmp.lt.f32.partialorder %v125, 64.0
    %vm147 = vcmp.lt.f32.partialorder %v126, 64.0
    %vm148 = vcmp.lt.f32.partialorder %v127, 64.0
    %vm149 = vcmp.lt.f32.partialorder %v128, 64.0
    %vm150 = vcmp.lt.f32.partialorder %v129, 64.0
    %vm151 = vcmp.lt.f32.partialorder %v130, 64.0
    %v152 = vsub.f32 %v115, 64.0
    %v153 = vsub.f32 %v116, 64.0
    %v154 = vsub.f32 %v117, 64.0
    %v155 = vsub.f32 %v118, 64.0
    %v156 = vsub.f32 %v119, 64.0
    %v157 = vsub.f32 %v120, 64.0
    %v158 = vsub.f32 %v121, 64.0
    %v159 = vsub.f32 %v122, 64.0
    %v160 = vsub.f32 %v123, 64.0
    %v161 = vsub.f32 %v124, 64.0
    %v162 = vsub.f32 %v125, 64.0
    %v163 = vsub.f32 %v126, 64.0
    %v164 = vsub.f32 %v127, 64.0
    %v165 = vsub.f32 %v128, 64.0
    %v166 = vsub.f32 %v129, 64.0
    %v167 = vsub.f32 %v130, 64.0
    %v168 = vsel %vm136, %v115, %v152
    %v169 = vsel %vm137, %v116, %v153
    %v170 = vsel %vm138, %v117, %v154
    %v171 = vsel %vm139, %v118, %v155
    %v172 = vsel %vm140, %v119, %v156
    %v173 = vsel %vm141, %v120, %v157
    %v174 = vsel %vm142, %v121, %v158
    %v175 = vsel %vm143, %v122, %v159
    %v176 = vsel %vm144, %v123, %v160
    %v177 = vsel %vm145, %v124, %v161
    %v178 = vsel %vm146, %v125, %v162
    %v179 = vsel %vm147, %v126, %v163
    %v180 = vsel %vm148, %v127, %v164
    %v181 = vsel %vm149, %v128, %v165
    %v182 = vsel %vm150, %v129, %v166
    %v183 = vsel %vm151, %v130, %v167
    %v184 = vstv %s84
    %v185 = vstv %s91
    %v186 = vsel %vm136, %v184, %v185
    %v187 = vsel %vm137, %v184, %v185
    %v188 = vsel %vm138, %v184, %v185
    %v189 = vsel %vm139, %v184, %v185
    %v190 = vsel %vm140, %v184, %v185
    %v191 = vsel %vm141, %v184, %v185
    %v192 = vsel %vm142, %v184, %v185
    %v193 = vsel %vm143, %v184, %v185
    %v194 = vsel %vm144, %v184, %v185
    %v195 = vsel %vm145, %v184, %v185
    %v196 = vsel %vm146, %v184, %v185
    %v197 = vsel %vm147, %v184, %v185
    %v198 = vsel %vm148, %v184, %v185
    %v199 = vsel %vm149, %v184, %v185
    %v200 = vsel %vm150, %v184, %v185
    %v201 = vsel %vm151, %v184, %v185
    %v202 = vstv %s85
    %v203 = vstv %s92
    %v204 = vsel %vm136, %v202, %v203
    %v205 = vsel %vm137, %v202, %v203
    %v206 = vsel %vm138, %v202, %v203
    %v207 = vsel %vm139, %v202, %v203
    %v208 = vsel %vm140, %v202, %v203
    %v209 = vsel %vm141, %v202, %v203
    %v210 = vsel %vm142, %v202, %v203
    %v211 = vsel %vm143, %v202, %v203
    %v212 = vsel %vm144, %v202, %v203
    %v213 = vsel %vm145, %v202, %v203
    %v214 = vsel %vm146, %v202, %v203
    %v215 = vsel %vm147, %v202, %v203
    %v216 = vsel %vm148, %v202, %v203
    %v217 = vsel %vm149, %v202, %v203
    %v218 = vsel %vm150, %v202, %v203
    %v219 = vsel %vm151, %v202, %v203
    %v220 = vsub.f32 %v204, %v186
    %v221 = vsub.f32 %v205, %v187
    %v222 = vsub.f32 %v206, %v188
    %v223 = vsub.f32 %v207, %v189
    %v224 = vsub.f32 %v208, %v190
    %v225 = vsub.f32 %v209, %v191
    %v226 = vsub.f32 %v210, %v192
    %v227 = vsub.f32 %v211, %v193
    %v228 = vsub.f32 %v212, %v194
    %v229 = vsub.f32 %v213, %v195
    %v230 = vsub.f32 %v214, %v196
    %v231 = vsub.f32 %v215, %v197
    %v232 = vsub.f32 %v216, %v198
    %v233 = vsub.f32 %v217, %v199
    %v234 = vsub.f32 %v218, %v200
    %v235 = vsub.f32 %v219, %v201
    %v236 = vadd.f32 %v168, 0.5
    %v237 = vadd.f32 %v169, 0.5
    %v238 = vadd.f32 %v170, 0.5
    %v239 = vadd.f32 %v171, 0.5
    %v240 = vadd.f32 %v172, 0.5
    %v241 = vadd.f32 %v173, 0.5
    %v242 = vadd.f32 %v174, 0.5
    %v243 = vadd.f32 %v175, 0.5
    %v244 = vadd.f32 %v176, 0.5
    %v245 = vadd.f32 %v177, 0.5
    %v246 = vadd.f32 %v178, 0.5
    %v247 = vadd.f32 %v179, 0.5
    %v248 = vadd.f32 %v180, 0.5
    %v249 = vadd.f32 %v181, 0.5
    %v250 = vadd.f32 %v182, 0.5
    %v251 = vadd.f32 %v183, 0.5
    %v252 = vmul.f32 %v220, %v236
    %v253 = vmul.f32 %v221, %v237
    %v254 = vmul.f32 %v222, %v238
    %v255 = vmul.f32 %v223, %v239
    %v256 = vmul.f32 %v224, %v240
    %v257 = vmul.f32 %v225, %v241
    %v258 = vmul.f32 %v226, %v242
    %v259 = vmul.f32 %v227, %v243
    %v260 = vmul.f32 %v228, %v244
    %v261 = vmul.f32 %v229, %v245
    %v262 = vmul.f32 %v230, %v246
    %v263 = vmul.f32 %v231, %v247
    %v264 = vmul.f32 %v232, %v248
    %v265 = vmul.f32 %v233, %v249
    %v266 = vmul.f32 %v234, %v250
    %v267 = vmul.f32 %v235, %v251
    %v268 = vmul.f32 %v252, 0.015625
    %v269 = vmul.f32 %v253, 0.015625
    %v270 = vmul.f32 %v254, 0.015625
    %v271 = vmul.f32 %v255, 0.015625
    %v272 = vmul.f32 %v256, 0.015625
    %v273 = vmul.f32 %v257, 0.015625
    %v274 = vmul.f32 %v258, 0.015625
    %v275 = vmul.f32 %v259, 0.015625
    %v276 = vmul.f32 %v260, 0.015625
    %v277 = vmul.f32 %v261, 0.015625
    %v278 = vmul.f32 %v262, 0.015625
    %v279 = vmul.f32 %v263, 0.015625
    %v280 = vmul.f32 %v264, 0.015625
    %v281 = vmul.f32 %v265, 0.015625
    %v282 = vmul.f32 %v266, 0.015625
    %v283 = vmul.f32 %v267, 0.015625
    %v284 = vadd.f32 %v186, %v268
    %v285 = vadd.f32 %v187, %v269
    %v286 = vadd.f32 %v188, %v270
    %v287 = vadd.f32 %v189, %v271
    %v288 = vadd.f32 %v190, %v272
    %v289 = vadd.f32 %v191, %v273
    %v290 = vadd.f32 %v192, %v274
    %v291 = vadd.f32 %v193, %v275
    %v292 = vadd.f32 %v194, %v276
    %v293 = vadd.f32 %v195, %v277
    %v294 = vadd.f32 %v196, %v278
    %v295 = vadd.f32 %v197, %v279
    %v296 = vadd.f32 %v198, %v280
    %v297 = vadd.f32 %v199, %v281
    %v298 = vadd.f32 %v200, %v282
    %v299 = vadd.f32 %v201, %v283
    %v300 = vfloor.f32 %v284
    %v301 = vfloor.f32 %v285
    %v302 = vfloor.f32 %v286
    %v303 = vfloor.f32 %v287
    %v304 = vfloor.f32 %v288
    %v305 = vfloor.f32 %v289
    %v306 = vfloor.f32 %v290
    %v307 = vfloor.f32 %v291
    %v308 = vfloor.f32 %v292
    %v309 = vfloor.f32 %v293
    %v310 = vfloor.f32 %v294
    %v311 = vfloor.f32 %v295
    %v312 = vfloor.f32 %v296
    %v313 = vfloor.f32 %v297
    %v314 = vfloor.f32 %v298
    %v315 = vfloor.f32 %v299
    %v316 = vmax.f32 %v300, 0.0
    %v317 = vmax.f32 %v301, 0.0
    %v318 = vmax.f32 %v302, 0.0
    %v319 = vmax.f32 %v303, 0.0
    %v320 = vmax.f32 %v304, 0.0
    %v321 = vmax.f32 %v305, 0.0
    %v322 = vmax.f32 %v306, 0.0
    %v323 = vmax.f32 %v307, 0.0
    %v324 = vmax.f32 %v308, 0.0
    %v325 = vmax.f32 %v309, 0.0
    %v326 = vmax.f32 %v310, 0.0
    %v327 = vmax.f32 %v311, 0.0
    %v328 = vmax.f32 %v312, 0.0
    %v329 = vmax.f32 %v313, 0.0
    %v330 = vmax.f32 %v314, 0.0
    %v331 = vmax.f32 %v315, 0.0
    %v332 = vmin.f32 %v316, 191.0
    %v333 = vmin.f32 %v317, 191.0
    %v334 = vmin.f32 %v318, 191.0
    %v335 = vmin.f32 %v319, 191.0
    %v336 = vmin.f32 %v320, 191.0
    %v337 = vmin.f32 %v321, 191.0
    %v338 = vmin.f32 %v322, 191.0
    %v339 = vmin.f32 %v323, 191.0
    %v340 = vmin.f32 %v324, 191.0
    %v341 = vmin.f32 %v325, 191.0
    %v342 = vmin.f32 %v326, 191.0
    %v343 = vmin.f32 %v327, 191.0
    %v344 = vmin.f32 %v328, 191.0
    %v345 = vmin.f32 %v329, 191.0
    %v346 = vmin.f32 %v330, 191.0
    %v347 = vmin.f32 %v331, 191.0
    %vm348 = vcmp.eq.f32.partialorder %v134, %v332
    %vm349 = vcmp.eq.f32.partialorder %v135, %v332
    %vm350 = vcmp.eq.f32.partialorder %v134, %v333
    %vm351 = vcmp.eq.f32.partialorder %v135, %v333
    %vm352 = vcmp.eq.f32.partialorder %v134, %v334
    %vm353 = vcmp.eq.f32.partialorder %v135, %v334
    %vm354 = vcmp.eq.f32.partialorder %v134, %v335
    %vm355 = vcmp.eq.f32.partialorder %v135, %v335
    %vm356 = vcmp.eq.f32.partialorder %v134, %v336
    %vm357 = vcmp.eq.f32.partialorder %v135, %v336
    %vm358 = vcmp.eq.f32.partialorder %v134, %v337
    %vm359 = vcmp.eq.f32.partialorder %v135, %v337
    %vm360 = vcmp.eq.f32.partialorder %v134, %v338
    %vm361 = vcmp.eq.f32.partialorder %v135, %v338
    %vm362 = vcmp.eq.f32.partialorder %v134, %v339
    %vm363 = vcmp.eq.f32.partialorder %v135, %v339
    %vm364 = vcmp.eq.f32.partialorder %v134, %v340
    %vm365 = vcmp.eq.f32.partialorder %v135, %v340
    %vm366 = vcmp.eq.f32.partialorder %v134, %v341
    %vm367 = vcmp.eq.f32.partialorder %v135, %v341
    %vm368 = vcmp.eq.f32.partialorder %v134, %v342
    %vm369 = vcmp.eq.f32.partialorder %v135, %v342
    %vm370 = vcmp.eq.f32.partialorder %v134, %v343
    %vm371 = vcmp.eq.f32.partialorder %v135, %v343
    %vm372 = vcmp.eq.f32.partialorder %v134, %v344
    %vm373 = vcmp.eq.f32.partialorder %v135, %v344
    %vm374 = vcmp.eq.f32.partialorder %v134, %v345
    %vm375 = vcmp.eq.f32.partialorder %v135, %v345
    %vm376 = vcmp.eq.f32.partialorder %v134, %v346
    %vm377 = vcmp.eq.f32.partialorder %v135, %v346
    %vm378 = vcmp.eq.f32.partialorder %v134, %v347
    %vm379 = vcmp.eq.f32.partialorder %v135, %v347
    %v380 = vsel %vm348, 1.0, 0.0
    %v381 = vsel %vm349, 1.0, 0.0
    %v382 = vsel %vm350, 1.0, 0.0
    %v383 = vsel %vm351, 1.0, 0.0
    %v384 = vsel %vm352, 1.0, 0.0
    %v385 = vsel %vm353, 1.0, 0.0
    %v386 = vsel %vm354, 1.0, 0.0
    %v387 = vsel %vm355, 1.0, 0.0
    %v388 = vsel %vm356, 1.0, 0.0
    %v389 = vsel %vm357, 1.0, 0.0
    %v390 = vsel %vm358, 1.0, 0.0
    %v391 = vsel %vm359, 1.0, 0.0
    %v392 = vsel %vm360, 1.0, 0.0
    %v393 = vsel %vm361, 1.0, 0.0
    %v394 = vsel %vm362, 1.0, 0.0
    %v395 = vsel %vm363, 1.0, 0.0
    %v396 = vsel %vm364, 1.0, 0.0
    %v397 = vsel %vm365, 1.0, 0.0
    %v398 = vsel %vm366, 1.0, 0.0
    %v399 = vsel %vm367, 1.0, 0.0
    %v400 = vsel %vm368, 1.0, 0.0
    %v401 = vsel %vm369, 1.0, 0.0
    %v402 = vsel %vm370, 1.0, 0.0
    %v403 = vsel %vm371, 1.0, 0.0
    %v404 = vsel %vm372, 1.0, 0.0
    %v405 = vsel %vm373, 1.0, 0.0
    %v406 = vsel %vm374, 1.0, 0.0
    %v407 = vsel %vm375, 1.0, 0.0
    %v408 = vsel %vm376, 1.0, 0.0
    %v409 = vsel %vm377, 1.0, 0.0
    %v410 = vsel %vm378, 1.0, 0.0
    %v411 = vsel %vm379, 1.0, 0.0
    %v412 = vpack.c.bf16 %v382, %v380
    %v413 = vpack.c.bf16 %v383, %v381
    %v414 = vpack.c.bf16 %v386, %v384
    %v415 = vpack.c.bf16 %v387, %v385
    %v416 = vpack.c.bf16 %v390, %v388
    %v417 = vpack.c.bf16 %v391, %v389
    %v418 = vpack.c.bf16 %v394, %v392
    %v419 = vpack.c.bf16 %v395, %v393
    %v420 = vpack.c.bf16 %v398, %v396
    %v421 = vpack.c.bf16 %v399, %v397
    %v422 = vpack.c.bf16 %v402, %v400
    %v423 = vpack.c.bf16 %v403, %v401
    %v424 = vpack.c.bf16 %v406, %v404
    %v425 = vpack.c.bf16 %v407, %v405
    %v426 = vpack.c.bf16 %v410, %v408
    %v427 = vpack.c.bf16 %v411, %v409
    %v428 = vld [vmem:[%s2] sm:$0xff]
    %v429 = vld [vmem:[%s2 + $0x8] sm:$0xff]
    %v430 = vld [vmem:[%s2 + $0x10] sm:$0xf]
    %v431 = vld [vmem:[%s2 + $0x14] sm:$0xff]
    %v432 = vld [vmem:[%s2 + $0x1c] sm:$0xff]
    %v433 = vld [vmem:[%s2 + $0x24] sm:$0xf]
    %v434 = vld [vmem:[%s2 + $0x28] sm:$0xff]
    %v435 = vld [vmem:[%s2 + $0x30] sm:$0xff]
    %v436 = vld [vmem:[%s2 + $0x38] sm:$0xf]
    %v437 = vld [vmem:[%s2 + $0x3c] sm:$0xff]
    %v438 = vld [vmem:[%s2 + $0x44] sm:$0xff]
    %v439 = vld [vmem:[%s2 + $0x4c] sm:$0xf]
    %v440 = vld [vmem:[%s2 + $0x50] sm:$0xff]
    %v441 = vld [vmem:[%s2 + $0x58] sm:$0xff]
    %v442 = vld [vmem:[%s2 + $0x60] sm:$0xf]
    %v443 = vld [vmem:[%s2 + $0x64] sm:$0xff]
    %v444 = vld [vmem:[%s2 + $0x6c] sm:$0xff]
    %v445 = vld [vmem:[%s2 + $0x74] sm:$0xf]
    %v446 = vld [vmem:[%s2 + $0x78] sm:$0xff]
    %v447 = vld [vmem:[%s2 + $0x80] sm:$0xff]
    %v448 = vld [vmem:[%s2 + $0x88] sm:$0xf]
    %v449 = vld [vmem:[%s2 + $0x8c] sm:$0xff]
    %v450 = vld [vmem:[%s2 + $0x94] sm:$0xff]
    %v451 = vld [vmem:[%s2 + $0x9c] sm:$0xf]
    %v452 = vld [vmem:[%s2 + $0xa0] sm:$0xff]
    %v453 = vld [vmem:[%s2 + $0xa8] sm:$0xff]
    %v454 = vld [vmem:[%s2 + $0xb0] sm:$0xf]
    %v455 = vld [vmem:[%s2 + $0xb4] sm:$0xff]
    %v456 = vld [vmem:[%s2 + $0xbc] sm:$0xff]
    %v457 = vld [vmem:[%s2 + $0xc4] sm:$0xf]
    %v458 = vld [vmem:[%s2 + $0xc8] sm:$0xff]
    %v459 = vld [vmem:[%s2 + $0xd0] sm:$0xff]
    %v460 = vld [vmem:[%s2 + $0xd8] sm:$0xf]
    %v461 = vld [vmem:[%s2 + $0xdc] sm:$0xff]
    %v462 = vld [vmem:[%s2 + $0xe4] sm:$0xff]
    %v463 = vld [vmem:[%s2 + $0xec] sm:$0xf]
    %v464 = vld [vmem:[%s2 + $0xf0] sm:$0xff]
    %v465 = vld [vmem:[%s2 + $0xf8] sm:$0xff]
    %v466 = vld [vmem:[%s2 + $0x100] sm:$0xf]
    %v467 = vld [vmem:[%s2 + $0x104] sm:$0xff]
    %v468 = vld [vmem:[%s2 + $0x10c] sm:$0xff]
    %v469 = vld [vmem:[%s2 + $0x114] sm:$0xf]
    %v470 = vld [vmem:[%s2 + $0x118] sm:$0xff]
    %v471 = vld [vmem:[%s2 + $0x120] sm:$0xff]
    %v472 = vld [vmem:[%s2 + $0x128] sm:$0xf]
    %v473 = vld [vmem:[%s2 + $0x12c] sm:$0xff]
    %v474 = vld [vmem:[%s2 + $0x134] sm:$0xff]
    %v475 = vld [vmem:[%s2 + $0x13c] sm:$0xf]
    %v476 = vld [vmem:[%s2 + $0x140] sm:$0xff]
    %v477 = vld [vmem:[%s2 + $0x148] sm:$0xff]
    %v478 = vld [vmem:[%s2 + $0x150] sm:$0xf]
    %v479 = vld [vmem:[%s2 + $0x154] sm:$0xff]
    %v480 = vld [vmem:[%s2 + $0x15c] sm:$0xff]
    %v481 = vld [vmem:[%s2 + $0x164] sm:$0xf]
    %v482 = vld [vmem:[%s2 + $0x168] sm:$0xff]
    %v483 = vld [vmem:[%s2 + $0x170] sm:$0xff]
    %v484 = vld [vmem:[%s2 + $0x178] sm:$0xf]
    %v485 = vld [vmem:[%s2 + $0x17c] sm:$0xff]
    %v486 = vld [vmem:[%s2 + $0x184] sm:$0xff]
    %v487 = vld [vmem:[%s2 + $0x18c] sm:$0xf]
    %v488 = vld [vmem:[%s2 + $0x190] sm:$0xff]
    %v489 = vld [vmem:[%s2 + $0x198] sm:$0xff]
    %v490 = vld [vmem:[%s2 + $0x1a0] sm:$0xf]
    %v491 = vld [vmem:[%s2 + $0x1a4] sm:$0xff]
    %v492 = vld [vmem:[%s2 + $0x1ac] sm:$0xff]
    %v493 = vld [vmem:[%s2 + $0x1b4] sm:$0xf]
    %v494 = vld [vmem:[%s2 + $0x1b8] sm:$0xff]
    %v495 = vld [vmem:[%s2 + $0x1c0] sm:$0xff]
    %v496 = vld [vmem:[%s2 + $0x1c8] sm:$0xf]
    %v497 = vld [vmem:[%s2 + $0x1cc] sm:$0xff]
    %v498 = vld [vmem:[%s2 + $0x1d4] sm:$0xff]
    %v499 = vld [vmem:[%s2 + $0x1dc] sm:$0xf]
    %v572 = vunpack.c.l.b16 %v428
    %v573 = vunpack.c.h.b16 %v428
    %v574 = vunpack.c.l.b16 %v429
    %v575 = vunpack.c.h.b16 %v429
    %v576 = vunpack.c.l.b16 %v430
    %v577 = vunpack.c.l.b16 %v431
    %v578 = vunpack.c.h.b16 %v431
    %v579 = vunpack.c.l.b16 %v432
    %v580 = vunpack.c.h.b16 %v432
    %v581 = vunpack.c.l.b16 %v433
    %v582 = vunpack.c.l.b16 %v434
    %v583 = vunpack.c.h.b16 %v434
    %v584 = vunpack.c.l.b16 %v435
    %v585 = vunpack.c.h.b16 %v435
    %v586 = vunpack.c.l.b16 %v436
    %v587 = vunpack.c.l.b16 %v437
    %v588 = vunpack.c.h.b16 %v437
    %v589 = vunpack.c.l.b16 %v438
    %v590 = vunpack.c.h.b16 %v438
    %v591 = vunpack.c.l.b16 %v439
    %v592 = vunpack.c.l.b16 %v440
    %v593 = vunpack.c.h.b16 %v440
    %v594 = vunpack.c.l.b16 %v441
    %v595 = vunpack.c.h.b16 %v441
    %v596 = vunpack.c.l.b16 %v442
    %v597 = vunpack.c.l.b16 %v443
    %v598 = vunpack.c.h.b16 %v443
    %v599 = vunpack.c.l.b16 %v444
    %v600 = vunpack.c.h.b16 %v444
    %v601 = vunpack.c.l.b16 %v445
    %v602 = vunpack.c.l.b16 %v446
    %v603 = vunpack.c.h.b16 %v446
    %v604 = vunpack.c.l.b16 %v447
    %v605 = vunpack.c.h.b16 %v447
    %v606 = vunpack.c.l.b16 %v448
    %v607 = vunpack.c.l.b16 %v449
    %v608 = vunpack.c.h.b16 %v449
    %v609 = vunpack.c.l.b16 %v450
    %v610 = vunpack.c.h.b16 %v450
    %v611 = vunpack.c.l.b16 %v451
    %v612 = vunpack.c.l.b16 %v452
    %v613 = vunpack.c.h.b16 %v452
    %v614 = vunpack.c.l.b16 %v453
    %v615 = vunpack.c.h.b16 %v453
    %v616 = vunpack.c.l.b16 %v454
    %v617 = vunpack.c.l.b16 %v455
    %v618 = vunpack.c.h.b16 %v455
    %v619 = vunpack.c.l.b16 %v456
    %v620 = vunpack.c.h.b16 %v456
    %v621 = vunpack.c.l.b16 %v457
    %v622 = vunpack.c.l.b16 %v458
    %v623 = vunpack.c.h.b16 %v458
    %v624 = vunpack.c.l.b16 %v459
    %v625 = vunpack.c.h.b16 %v459
    %v626 = vunpack.c.l.b16 %v460
    %v627 = vunpack.c.l.b16 %v461
    %v628 = vunpack.c.h.b16 %v461
    %v629 = vunpack.c.l.b16 %v462
    %v630 = vunpack.c.h.b16 %v462
    %v631 = vunpack.c.l.b16 %v463
    %v632 = vunpack.c.l.b16 %v464
    %v633 = vunpack.c.h.b16 %v464
    %v634 = vunpack.c.l.b16 %v465
    %v635 = vunpack.c.h.b16 %v465
    %v636 = vunpack.c.l.b16 %v466
    %v637 = vunpack.c.l.b16 %v467
    %v638 = vunpack.c.h.b16 %v467
    %v639 = vunpack.c.l.b16 %v468
    %v640 = vunpack.c.h.b16 %v468
    %v641 = vunpack.c.l.b16 %v469
    %v642 = vunpack.c.l.b16 %v470
    %v643 = vunpack.c.h.b16 %v470
    %v644 = vunpack.c.l.b16 %v471
    %v645 = vunpack.c.h.b16 %v471
    %v646 = vunpack.c.l.b16 %v472
    %v647 = vunpack.c.l.b16 %v473
    %v648 = vunpack.c.h.b16 %v473
    %v649 = vunpack.c.l.b16 %v474
    %v650 = vunpack.c.h.b16 %v474
    %v651 = vunpack.c.l.b16 %v475
    %v652 = vunpack.c.l.b16 %v476
    %v653 = vunpack.c.h.b16 %v476
    %v654 = vunpack.c.l.b16 %v477
    %v655 = vunpack.c.h.b16 %v477
    %v656 = vunpack.c.l.b16 %v478
    %v657 = vunpack.c.l.b16 %v479
    %v658 = vunpack.c.h.b16 %v479
    %v659 = vunpack.c.l.b16 %v480
    %v660 = vunpack.c.h.b16 %v480
    %v661 = vunpack.c.l.b16 %v481
    %v662 = vunpack.c.l.b16 %v482
    %v663 = vunpack.c.h.b16 %v482
    %v664 = vunpack.c.l.b16 %v483
    %v665 = vunpack.c.h.b16 %v483
    %v666 = vunpack.c.l.b16 %v484
    %v667 = vunpack.c.l.b16 %v485
    %v668 = vunpack.c.h.b16 %v485
    %v669 = vunpack.c.l.b16 %v486
    %v670 = vunpack.c.h.b16 %v486
    %v671 = vunpack.c.l.b16 %v487
    %v672 = vunpack.c.l.b16 %v488
    %v673 = vunpack.c.h.b16 %v488
    %v674 = vunpack.c.l.b16 %v489
    %v675 = vunpack.c.h.b16 %v489
    %v676 = vunpack.c.l.b16 %v490
    %v677 = vunpack.c.l.b16 %v491
    %v678 = vunpack.c.h.b16 %v491
    %v679 = vunpack.c.l.b16 %v492
    %v680 = vunpack.c.h.b16 %v492
    %v681 = vunpack.c.l.b16 %v493
    %v682 = vunpack.c.l.b16 %v494
    %v683 = vunpack.c.h.b16 %v494
    %v684 = vunpack.c.l.b16 %v495
    %v685 = vunpack.c.h.b16 %v495
    %v686 = vunpack.c.l.b16 %v496
    %v687 = vunpack.c.l.b16 %v497
    %v688 = vunpack.c.h.b16 %v497
    %v689 = vunpack.c.l.b16 %v498
    %v690 = vunpack.c.h.b16 %v498
    %v691 = vunpack.c.l.b16 %v499
    %v692 = vpack.c.b16 %v577, %v572
    %v693 = vpack.c.b16 %v578, %v573
    %v694 = vpack.c.b16 %v579, %v574
    %v695 = vpack.c.b16 %v580, %v575
    %v696 = vpack.c.b16 %v581, %v576
    %v697 = vpack.c.b16 %v587, %v582
    %v698 = vpack.c.b16 %v588, %v583
    %v699 = vpack.c.b16 %v589, %v584
    %v700 = vpack.c.b16 %v590, %v585
    %v701 = vpack.c.b16 %v591, %v586
    %v702 = vpack.c.b16 %v597, %v592
    %v703 = vpack.c.b16 %v598, %v593
    %v704 = vpack.c.b16 %v599, %v594
    %v705 = vpack.c.b16 %v600, %v595
    %v706 = vpack.c.b16 %v601, %v596
    %v707 = vpack.c.b16 %v607, %v602
    %v708 = vpack.c.b16 %v608, %v603
    %v709 = vpack.c.b16 %v609, %v604
    %v710 = vpack.c.b16 %v610, %v605
    %v711 = vpack.c.b16 %v611, %v606
    %v712 = vpack.c.b16 %v617, %v612
    %v713 = vpack.c.b16 %v618, %v613
    %v714 = vpack.c.b16 %v619, %v614
    %v715 = vpack.c.b16 %v620, %v615
    %v716 = vpack.c.b16 %v621, %v616
    %v717 = vpack.c.b16 %v627, %v622
    %v718 = vpack.c.b16 %v628, %v623
    %v719 = vpack.c.b16 %v629, %v624
    %v720 = vpack.c.b16 %v630, %v625
    %v721 = vpack.c.b16 %v631, %v626
    %v722 = vpack.c.b16 %v637, %v632
    %v723 = vpack.c.b16 %v638, %v633
    %v724 = vpack.c.b16 %v639, %v634
    %v725 = vpack.c.b16 %v640, %v635
    %v726 = vpack.c.b16 %v641, %v636
    %v727 = vpack.c.b16 %v647, %v642
    %v728 = vpack.c.b16 %v648, %v643
    %v729 = vpack.c.b16 %v649, %v644
    %v730 = vpack.c.b16 %v650, %v645
    %v731 = vpack.c.b16 %v651, %v646
    %v732 = vpack.c.b16 %v657, %v652
    %v733 = vpack.c.b16 %v658, %v653
    %v734 = vpack.c.b16 %v659, %v654
    %v735 = vpack.c.b16 %v660, %v655
    %v736 = vpack.c.b16 %v661, %v656
    %v737 = vpack.c.b16 %v667, %v662
    %v738 = vpack.c.b16 %v668, %v663
    %v739 = vpack.c.b16 %v669, %v664
    %v740 = vpack.c.b16 %v670, %v665
    %v741 = vpack.c.b16 %v671, %v666
    %v742 = vpack.c.b16 %v677, %v672
    %v743 = vpack.c.b16 %v678, %v673
    %v744 = vpack.c.b16 %v679, %v674
    %v745 = vpack.c.b16 %v680, %v675
    %v746 = vpack.c.b16 %v681, %v676
    %v747 = vpack.c.b16 %v687, %v682
    %v748 = vpack.c.b16 %v688, %v683
    %v749 = vpack.c.b16 %v689, %v684
    %v750 = vpack.c.b16 %v690, %v685
    %v751 = vpack.c.b16 %v691, %v686
    %vm812 = vcmask 523264
    %v814 = vsel %vm812, %v413, 0
    %v817 = vsel %vm812, %v415, 0
    %v820 = vsel %vm812, %v417, 0
    %v823 = vsel %vm812, %v419, 0
    %v826 = vsel %vm812, %v421, 0
    %v829 = vsel %vm812, %v423, 0
    %v832 = vsel %vm812, %v425, 0
    %v835 = vsel %vm812, %v427, 0
    %837 = vmatprep.subr.bf16.mxu0 %v693
    %838 = vmatpush1.bf16.msra.mxu0 %v692
    %839 = vmatprep.subr.bf16.mxu0 %v698
    %840 = vmatpush1.bf16.msra.mxu0 %v697
    %841 = vmatprep.subr.bf16.mxu0 %v703
    %842 = vmatpush1.bf16.msra.mxu0 %v702
    %843 = vmatprep.subr.bf16.mxu0 %v708
    %844 = vmatpush1.bf16.msra.mxu0 %v707
    %845 = vmatprep.subr.bf16.mxu0 %v713
    %846 = vmatpush1.bf16.msra.mxu0 %v712
    %847 = vmatprep.subr.bf16.mxu0 %v718
    %848 = vmatpush1.bf16.msra.mxu0 %v717
    %849 = vmatprep.subr.bf16.mxu0 %v723
    %850 = vmatpush1.bf16.msra.mxu0 %v722
    %851 = vmatprep.subr.bf16.mxu0 %v728
    %852 = vmatpush1.bf16.msra.mxu0 %v727
    %853 = vmatprep.subr.bf16.mxu0 %v733
    %854 = vmatpush1.bf16.msra.mxu0 %v732
    %855 = vmatprep.subr.bf16.mxu0 %v738
    %856 = vmatpush1.bf16.msra.mxu0 %v737
    %857 = vmatprep.subr.bf16.mxu0 %v743
    %858 = vmatpush1.bf16.msra.mxu0 %v742
    %859 = vmatprep.subr.bf16.mxu0 %v748
    %860 = vmatpush1.bf16.msra.mxu0 %v747
    %861 = vmatprep.subr.bf16.mxu0 0
    %862 = vmatpush1.bf16.msra.mxu0 0
    %863 = vmatprep.subr.bf16.mxu0 0
    %864 = vmatpush1.bf16.msra.mxu0 0
    %865 = vmatprep.subr.bf16.mxu0 0
    %866 = vmatpush1.bf16.msra.mxu0 0
    %867 = vmatprep.subr.bf16.mxu0 0
    %868 = vmatpush1.bf16.msra.mxu0 0
    %869 = vmatprep.mubr.bf16.mxu0 %v814
    %870 = vmatmul.mubr.bf16.gmra.mrb[0].mxu0 %v412
    %v871 = vpop.f32.mrb[0].mxu0
    %v872 = vadd.f32 0.0, %v871
    %v873 = vpop.f32.mrb[0].mxu0
    %v874 = vadd.f32 0.0, %v873
    %v875 = vpop.f32.mrb[0].mxu0
    %v876 = vadd.f32 0.0, %v875
    %v877 = vpop.f32.mrb[0].mxu0
    %v878 = vadd.f32 0.0, %v877
    %879 = vmatprep.mubr.bf16.mxu0 %v817
    %880 = vmatmul.mubr.bf16.gmra.mrb[0].mxu0 %v414
    %v881 = vpop.f32.mrb[0].mxu0
    %v882 = vadd.f32 0.0, %v881
    %v883 = vpop.f32.mrb[0].mxu0
    %v884 = vadd.f32 0.0, %v883
    %v885 = vpop.f32.mrb[0].mxu0
    %v886 = vadd.f32 0.0, %v885
    %v887 = vpop.f32.mrb[0].mxu0
    %v888 = vadd.f32 0.0, %v887
    %889 = vmatprep.mubr.bf16.mxu0 %v820
    %890 = vmatmul.mubr.bf16.gmra.mrb[0].mxu0 %v416
    %v891 = vpop.f32.mrb[0].mxu0
    %v892 = vadd.f32 0.0, %v891
    %v893 = vpop.f32.mrb[0].mxu0
    %v894 = vadd.f32 0.0, %v893
    %v895 = vpop.f32.mrb[0].mxu0
    %v896 = vadd.f32 0.0, %v895
    %v897 = vpop.f32.mrb[0].mxu0
    %v898 = vadd.f32 0.0, %v897
    %899 = vmatprep.mubr.bf16.mxu0 %v823
    %900 = vmatmul.mubr.bf16.gmra.mrb[0].mxu0 %v418
    %v901 = vpop.f32.mrb[0].mxu0
    %v902 = vadd.f32 0.0, %v901
    %v903 = vpop.f32.mrb[0].mxu0
    %v904 = vadd.f32 0.0, %v903
    %v905 = vpop.f32.mrb[0].mxu0
    %v906 = vadd.f32 0.0, %v905
    %v907 = vpop.f32.mrb[0].mxu0
    %v908 = vadd.f32 0.0, %v907
    %909 = vmatprep.mubr.bf16.mxu0 %v826
    %910 = vmatmul.mubr.bf16.gmra.mrb[0].mxu0 %v420
    %v911 = vpop.f32.mrb[0].mxu0
    %v912 = vadd.f32 0.0, %v911
    %v913 = vpop.f32.mrb[0].mxu0
    %v914 = vadd.f32 0.0, %v913
    %v915 = vpop.f32.mrb[0].mxu0
    %v916 = vadd.f32 0.0, %v915
    %v917 = vpop.f32.mrb[0].mxu0
    %v918 = vadd.f32 0.0, %v917
    %919 = vmatprep.mubr.bf16.mxu0 %v829
    %920 = vmatmul.mubr.bf16.gmra.mrb[0].mxu0 %v422
    %v921 = vpop.f32.mrb[0].mxu0
    %v922 = vadd.f32 0.0, %v921
    %v923 = vpop.f32.mrb[0].mxu0
    %v924 = vadd.f32 0.0, %v923
    %v925 = vpop.f32.mrb[0].mxu0
    %v926 = vadd.f32 0.0, %v925
    %v927 = vpop.f32.mrb[0].mxu0
    %v928 = vadd.f32 0.0, %v927
    %929 = vmatprep.mubr.bf16.mxu0 %v832
    %930 = vmatmul.mubr.bf16.gmra.mrb[0].mxu0 %v424
    %v931 = vpop.f32.mrb[0].mxu0
    %v932 = vadd.f32 0.0, %v931
    %v933 = vpop.f32.mrb[0].mxu0
    %v934 = vadd.f32 0.0, %v933
    %v935 = vpop.f32.mrb[0].mxu0
    %v936 = vadd.f32 0.0, %v935
    %v937 = vpop.f32.mrb[0].mxu0
    %v938 = vadd.f32 0.0, %v937
    %939 = vmatprep.mubr.bf16.mxu0 %v835
    %940 = vmatmul.mubr.bf16.gmra.mrb[0].mxu0 %v426
    %v941 = vpop.f32.mrb[0].mxu0
    %v942 = vadd.f32 0.0, %v941
    %v943 = vpop.f32.mrb[0].mxu0
    %v944 = vadd.f32 0.0, %v943
    %v945 = vpop.f32.mrb[0].mxu0
    %v946 = vadd.f32 0.0, %v945
    %v947 = vpop.f32.mrb[0].mxu0
    %v948 = vadd.f32 0.0, %v947
    %949 = vdwg.mxu0
    %950 = vmatprep.subr.bf16.mxu0 %v695
    %951 = vmatpush1.bf16.msra.mxu0 %v694
    %952 = vmatprep.subr.bf16.mxu0 %v700
    %953 = vmatpush1.bf16.msra.mxu0 %v699
    %954 = vmatprep.subr.bf16.mxu0 %v705
    %955 = vmatpush1.bf16.msra.mxu0 %v704
    %956 = vmatprep.subr.bf16.mxu0 %v710
    %957 = vmatpush1.bf16.msra.mxu0 %v709
    %958 = vmatprep.subr.bf16.mxu0 %v715
    %959 = vmatpush1.bf16.msra.mxu0 %v714
    %960 = vmatprep.subr.bf16.mxu0 %v720
    %961 = vmatpush1.bf16.msra.mxu0 %v719
    %962 = vmatprep.subr.bf16.mxu0 %v725
    %963 = vmatpush1.bf16.msra.mxu0 %v724
    %964 = vmatprep.subr.bf16.mxu0 %v730
    %965 = vmatpush1.bf16.msra.mxu0 %v729
    %966 = vmatprep.subr.bf16.mxu0 %v735
    %967 = vmatpush1.bf16.msra.mxu0 %v734
    %968 = vmatprep.subr.bf16.mxu0 %v740
    %969 = vmatpush1.bf16.msra.mxu0 %v739
    %970 = vmatprep.subr.bf16.mxu0 %v745
    %971 = vmatpush1.bf16.msra.mxu0 %v744
    %972 = vmatprep.subr.bf16.mxu0 %v750
    %973 = vmatpush1.bf16.msra.mxu0 %v749
    %974 = vmatprep.subr.bf16.mxu0 0
    %975 = vmatpush1.bf16.msra.mxu0 0
    %976 = vmatprep.subr.bf16.mxu0 0
    %977 = vmatpush1.bf16.msra.mxu0 0
    %978 = vmatprep.subr.bf16.mxu0 0
    %979 = vmatpush1.bf16.msra.mxu0 0
    %980 = vmatprep.subr.bf16.mxu0 0
    %981 = vmatpush1.bf16.msra.mxu0 0
    %982 = vmatprep.mubr.bf16.mxu0 %v814
    %983 = vmatmul.mubr.bf16.gmra.mrb[0].mxu0 %v412
    %v984 = vpop.f32.mrb[0].mxu0
    %v985 = vadd.f32 0.0, %v984
    %v986 = vpop.f32.mrb[0].mxu0
    %v987 = vadd.f32 0.0, %v986
    %v988 = vpop.f32.mrb[0].mxu0
    %v989 = vadd.f32 0.0, %v988
    %v990 = vpop.f32.mrb[0].mxu0
    %v991 = vadd.f32 0.0, %v990
    %992 = vmatprep.mubr.bf16.mxu0 %v817
    %993 = vmatmul.mubr.bf16.gmra.mrb[0].mxu0 %v414
    %v994 = vpop.f32.mrb[0].mxu0
    %v995 = vadd.f32 0.0, %v994
    %v996 = vpop.f32.mrb[0].mxu0
    %v997 = vadd.f32 0.0, %v996
    %v998 = vpop.f32.mrb[0].mxu0
    %v999 = vadd.f32 0.0, %v998
    %v1000 = vpop.f32.mrb[0].mxu0
    %v1001 = vadd.f32 0.0, %v1000
    %1002 = vmatprep.mubr.bf16.mxu0 %v820
    %1003 = vmatmul.mubr.bf16.gmra.mrb[0].mxu0 %v416
    %v1004 = vpop.f32.mrb[0].mxu0
    %v1005 = vadd.f32 0.0, %v1004
    %v1006 = vpop.f32.mrb[0].mxu0
    %v1007 = vadd.f32 0.0, %v1006
    %v1008 = vpop.f32.mrb[0].mxu0
    %v1009 = vadd.f32 0.0, %v1008
    %v1010 = vpop.f32.mrb[0].mxu0
    %v1011 = vadd.f32 0.0, %v1010
    %1012 = vmatprep.mubr.bf16.mxu0 %v823
    %1013 = vmatmul.mubr.bf16.gmra.mrb[0].mxu0 %v418
    %v1014 = vpop.f32.mrb[0].mxu0
    %v1015 = vadd.f32 0.0, %v1014
    %v1016 = vpop.f32.mrb[0].mxu0
    %v1017 = vadd.f32 0.0, %v1016
    %v1018 = vpop.f32.mrb[0].mxu0
    %v1019 = vadd.f32 0.0, %v1018
    %v1020 = vpop.f32.mrb[0].mxu0
    %v1021 = vadd.f32 0.0, %v1020
    %1022 = vmatprep.mubr.bf16.mxu0 %v826
    %1023 = vmatmul.mubr.bf16.gmra.mrb[0].mxu0 %v420
    %v1024 = vpop.f32.mrb[0].mxu0
    %v1025 = vadd.f32 0.0, %v1024
    %v1026 = vpop.f32.mrb[0].mxu0
    %v1027 = vadd.f32 0.0, %v1026
    %v1028 = vpop.f32.mrb[0].mxu0
    %v1029 = vadd.f32 0.0, %v1028
    %v1030 = vpop.f32.mrb[0].mxu0
    %v1031 = vadd.f32 0.0, %v1030
    %1032 = vmatprep.mubr.bf16.mxu0 %v829
    %1033 = vmatmul.mubr.bf16.gmra.mrb[0].mxu0 %v422
    %v1034 = vpop.f32.mrb[0].mxu0
    %v1035 = vadd.f32 0.0, %v1034
    %v1036 = vpop.f32.mrb[0].mxu0
    %v1037 = vadd.f32 0.0, %v1036
    %v1038 = vpop.f32.mrb[0].mxu0
    %v1039 = vadd.f32 0.0, %v1038
    %v1040 = vpop.f32.mrb[0].mxu0
    %v1041 = vadd.f32 0.0, %v1040
    %1042 = vmatprep.mubr.bf16.mxu0 %v832
    %1043 = vmatmul.mubr.bf16.gmra.mrb[0].mxu0 %v424
    %v1044 = vpop.f32.mrb[0].mxu0
    %v1045 = vadd.f32 0.0, %v1044
    %v1046 = vpop.f32.mrb[0].mxu0
    %v1047 = vadd.f32 0.0, %v1046
    %v1048 = vpop.f32.mrb[0].mxu0
    %v1049 = vadd.f32 0.0, %v1048
    %v1050 = vpop.f32.mrb[0].mxu0
    %v1051 = vadd.f32 0.0, %v1050
    %1052 = vmatprep.mubr.bf16.mxu0 %v835
    %1053 = vmatmul.mubr.bf16.gmra.mrb[0].mxu0 %v426
    %v1054 = vpop.f32.mrb[0].mxu0
    %v1055 = vadd.f32 0.0, %v1054
    %v1056 = vpop.f32.mrb[0].mxu0
    %v1057 = vadd.f32 0.0, %v1056
    %v1058 = vpop.f32.mrb[0].mxu0
    %v1059 = vadd.f32 0.0, %v1058
    %v1060 = vpop.f32.mrb[0].mxu0
    %v1061 = vadd.f32 0.0, %v1060
    %1062 = vdwg.mxu0
    %1063 = vmatprep.subr.bf16.mxu0 0
    %1064 = vmatpush1.bf16.msra.mxu0 %v696
    %1065 = vmatprep.subr.bf16.mxu0 0
    %1066 = vmatpush1.bf16.msra.mxu0 %v701
    %1067 = vmatprep.subr.bf16.mxu0 0
    %1068 = vmatpush1.bf16.msra.mxu0 %v706
    %1069 = vmatprep.subr.bf16.mxu0 0
    %1070 = vmatpush1.bf16.msra.mxu0 %v711
    %1071 = vmatprep.subr.bf16.mxu0 0
    %1072 = vmatpush1.bf16.msra.mxu0 %v716
    %1073 = vmatprep.subr.bf16.mxu0 0
    %1074 = vmatpush1.bf16.msra.mxu0 %v721
    %1075 = vmatprep.subr.bf16.mxu0 0
    %1076 = vmatpush1.bf16.msra.mxu0 %v726
    %1077 = vmatprep.subr.bf16.mxu0 0
    %1078 = vmatpush1.bf16.msra.mxu0 %v731
    %1079 = vmatprep.subr.bf16.mxu0 0
    %1080 = vmatpush1.bf16.msra.mxu0 %v736
    %1081 = vmatprep.subr.bf16.mxu0 0
    %1082 = vmatpush1.bf16.msra.mxu0 %v741
    %1083 = vmatprep.subr.bf16.mxu0 0
    %1084 = vmatpush1.bf16.msra.mxu0 %v746
    %1085 = vmatprep.subr.bf16.mxu0 0
    %1086 = vmatpush1.bf16.msra.mxu0 %v751
    %1087 = vmatprep.subr.bf16.mxu0 0
    %1088 = vmatpush1.bf16.msra.mxu0 0
    %1089 = vmatprep.subr.bf16.mxu0 0
    %1090 = vmatpush1.bf16.msra.mxu0 0
    %1091 = vmatprep.subr.bf16.mxu0 0
    %1092 = vmatpush1.bf16.msra.mxu0 0
    %1093 = vmatprep.subr.bf16.mxu0 0
    %1094 = vmatpush1.bf16.msra.mxu0 0
    %1095 = vmatprep.mubr.bf16.mxu0 %v814
    %1096 = vmatmul.mubr.bf16.gmra.mrb[0].mxu0 %v412
    %v1097 = vpop.f32.mrb[0].mxu0
    %v1098 = vadd.f32 0.0, %v1097
    %v1099 = vpop.f32.mrb[0].mxu0
    %v1100 = vpop.f32.mrb[0].mxu0
    %v1101 = vadd.f32 0.0, %v1100
    %v1102 = vpop.f32.mrb[0].mxu0
    %1103 = vmatprep.mubr.bf16.mxu0 %v817
    %1104 = vmatmul.mubr.bf16.gmra.mrb[0].mxu0 %v414
    %v1105 = vpop.f32.mrb[0].mxu0
    %v1106 = vadd.f32 0.0, %v1105
    %v1107 = vpop.f32.mrb[0].mxu0
    %v1108 = vpop.f32.mrb[0].mxu0
    %v1109 = vadd.f32 0.0, %v1108
    %v1110 = vpop.f32.mrb[0].mxu0
    %1111 = vmatprep.mubr.bf16.mxu0 %v820
    %1112 = vmatmul.mubr.bf16.gmra.mrb[0].mxu0 %v416
    %v1113 = vpop.f32.mrb[0].mxu0
    %v1114 = vadd.f32 0.0, %v1113
    %v1115 = vpop.f32.mrb[0].mxu0
    %v1116 = vpop.f32.mrb[0].mxu0
    %v1117 = vadd.f32 0.0, %v1116
    %v1118 = vpop.f32.mrb[0].mxu0
    %1119 = vmatprep.mubr.bf16.mxu0 %v823
    %1120 = vmatmul.mubr.bf16.gmra.mrb[0].mxu0 %v418
    %v1121 = vpop.f32.mrb[0].mxu0
    %v1122 = vadd.f32 0.0, %v1121
    %v1123 = vpop.f32.mrb[0].mxu0
    %v1124 = vpop.f32.mrb[0].mxu0
    %v1125 = vadd.f32 0.0, %v1124
    %v1126 = vpop.f32.mrb[0].mxu0
    %1127 = vmatprep.mubr.bf16.mxu0 %v826
    %1128 = vmatmul.mubr.bf16.gmra.mrb[0].mxu0 %v420
    %v1129 = vpop.f32.mrb[0].mxu0
    %v1130 = vadd.f32 0.0, %v1129
    %v1131 = vpop.f32.mrb[0].mxu0
    %v1132 = vpop.f32.mrb[0].mxu0
    %v1133 = vadd.f32 0.0, %v1132
    %v1134 = vpop.f32.mrb[0].mxu0
    %1135 = vmatprep.mubr.bf16.mxu0 %v829
    %1136 = vmatmul.mubr.bf16.gmra.mrb[0].mxu0 %v422
    %v1137 = vpop.f32.mrb[0].mxu0
    %v1138 = vadd.f32 0.0, %v1137
    %v1139 = vpop.f32.mrb[0].mxu0
    %v1140 = vpop.f32.mrb[0].mxu0
    %v1141 = vadd.f32 0.0, %v1140
    %v1142 = vpop.f32.mrb[0].mxu0
    %1143 = vmatprep.mubr.bf16.mxu0 %v832
    %1144 = vmatmul.mubr.bf16.gmra.mrb[0].mxu0 %v424
    %v1145 = vpop.f32.mrb[0].mxu0
    %v1146 = vadd.f32 0.0, %v1145
    %v1147 = vpop.f32.mrb[0].mxu0
    %v1148 = vpop.f32.mrb[0].mxu0
    %v1149 = vadd.f32 0.0, %v1148
    %v1150 = vpop.f32.mrb[0].mxu0
    %1151 = vmatprep.mubr.bf16.mxu0 %v835
    %1152 = vmatmul.mubr.bf16.gmra.mrb[0].mxu0 %v426
    %v1153 = vpop.f32.mrb[0].mxu0
    %v1154 = vadd.f32 0.0, %v1153
    %v1155 = vpop.f32.mrb[0].mxu0
    %v1156 = vpop.f32.mrb[0].mxu0
    %v1157 = vadd.f32 0.0, %v1156
    %v1158 = vpop.f32.mrb[0].mxu0
    %1159 = vdwg.mxu0
    %v1160 = vpack.c.bf16 %v876, %v872
    %v1161 = vpack.c.bf16 %v878, %v874
    %v1162 = vpack.c.bf16 %v989, %v985
    %v1163 = vpack.c.bf16 %v991, %v987
    %v1164 = vpack.c.bf16 %v1101, %v1098
    %v1165 = vpack.c.bf16 %v886, %v882
    %v1166 = vpack.c.bf16 %v888, %v884
    %v1167 = vpack.c.bf16 %v999, %v995
    %v1168 = vpack.c.bf16 %v1001, %v997
    %v1169 = vpack.c.bf16 %v1109, %v1106
    %v1170 = vpack.c.bf16 %v896, %v892
    %v1171 = vpack.c.bf16 %v898, %v894
    %v1172 = vpack.c.bf16 %v1009, %v1005
    %v1173 = vpack.c.bf16 %v1011, %v1007
    %v1174 = vpack.c.bf16 %v1117, %v1114
    %v1175 = vpack.c.bf16 %v906, %v902
    %v1176 = vpack.c.bf16 %v908, %v904
    %v1177 = vpack.c.bf16 %v1019, %v1015
    %v1178 = vpack.c.bf16 %v1021, %v1017
    %v1179 = vpack.c.bf16 %v1125, %v1122
    %v1180 = vpack.c.bf16 %v916, %v912
    %v1181 = vpack.c.bf16 %v918, %v914
    %v1182 = vpack.c.bf16 %v1029, %v1025
    %v1183 = vpack.c.bf16 %v1031, %v1027
    %v1184 = vpack.c.bf16 %v1133, %v1130
    %v1185 = vpack.c.bf16 %v926, %v922
    %v1186 = vpack.c.bf16 %v928, %v924
    %v1187 = vpack.c.bf16 %v1039, %v1035
    %v1188 = vpack.c.bf16 %v1041, %v1037
    %v1189 = vpack.c.bf16 %v1141, %v1138
    %v1190 = vpack.c.bf16 %v936, %v932
    %v1191 = vpack.c.bf16 %v938, %v934
    %v1192 = vpack.c.bf16 %v1049, %v1045
    %v1193 = vpack.c.bf16 %v1051, %v1047
    %v1194 = vpack.c.bf16 %v1149, %v1146
    %v1195 = vpack.c.bf16 %v946, %v942
    %v1196 = vpack.c.bf16 %v948, %v944
    %v1197 = vpack.c.bf16 %v1059, %v1055
    %v1198 = vpack.c.bf16 %v1061, %v1057
    %v1199 = vpack.c.bf16 %v1157, %v1154
    %v1200 = vadd.s32 %v99, 128
    %v1201 = vadd.s32 %v99, 136
    %v1202 = vadd.s32 %v99, 144
    %v1203 = vadd.s32 %v99, 152
    %v1204 = vadd.s32 %v99, 160
    %v1205 = vadd.s32 %v99, 168
    %v1206 = vadd.s32 %v99, 176
    %v1207 = vadd.s32 %v99, 184
    %v1208 = vadd.s32 %v99, 192
    %v1209 = vadd.s32 %v99, 200
    %v1210 = vadd.s32 %v99, 208
    %v1211 = vadd.s32 %v99, 216
    %v1212 = vadd.s32 %v99, 224
    %v1213 = vadd.s32 %v99, 232
    %v1214 = vadd.s32 %v99, 240
    %v1215 = vadd.s32 %v99, 248
    %v1216 = vadd.s32 %v99, 256
    %v1217 = vadd.s32 %v99, 264
    %v1218 = vadd.s32 %v99, 272
    %v1219 = vadd.s32 %v99, 280
    %v1220 = vadd.s32 %v99, 288
    %v1221 = vadd.s32 %v99, 296
    %v1222 = vadd.s32 %v99, 304
    %v1223 = vadd.s32 %v99, 312
    %v1224 = vadd.s32 %v99, 320
    %v1225 = vadd.s32 %v99, 328
    %v1226 = vadd.s32 %v99, 336
    %v1227 = vadd.s32 %v99, 344
    %v1228 = vadd.s32 %v99, 352
    %v1229 = vadd.s32 %v99, 360
    %v1230 = vadd.s32 %v99, 368
    %v1231 = vadd.s32 %v99, 376
    %v1232 = vadd.s32 %v99, 384
    %v1233 = vadd.s32 %v99, 392
    %v1234 = vadd.s32 %v99, 400
    %v1235 = vadd.s32 %v99, 408
    %v1236 = vadd.s32 %v99, 416
    %v1237 = vadd.s32 %v99, 424
    %v1238 = vadd.s32 %v99, 432
    %v1239 = vadd.s32 %v99, 440
    %v1240 = vadd.s32 %v99, 448
    %v1241 = vadd.s32 %v99, 456
    %v1242 = vadd.s32 %v99, 464
    %v1243 = vadd.s32 %v99, 472
    %v1244 = vadd.s32 %v99, 480
    %v1245 = vadd.s32 %v99, 488
    %v1246 = vadd.s32 %v99, 496
    %v1247 = vadd.s32 %v99, 504
    %v1248 = vadd.s32 %v99, 512
    %v1249 = vadd.s32 %v99, 520
    %v1250 = vadd.s32 %v99, 528
    %v1251 = vadd.s32 %v99, 536
    %v1252 = vadd.s32 %v99, 544
    %v1253 = vadd.s32 %v99, 552
    %v1254 = vadd.s32 %v99, 560
    %v1255 = vadd.s32 %v99, 568
    %v1256 = vcvt.s32.f32 %v1200
    %v1257 = vcvt.s32.f32 %v1201
    %v1258 = vcvt.s32.f32 %v1202
    %v1259 = vcvt.s32.f32 %v1203
    %v1260 = vcvt.s32.f32 %v1204
    %v1261 = vcvt.s32.f32 %v1205
    %v1262 = vcvt.s32.f32 %v1206
    %v1263 = vcvt.s32.f32 %v1207
    %v1264 = vcvt.s32.f32 %v1208
    %v1265 = vcvt.s32.f32 %v1209
    %v1266 = vcvt.s32.f32 %v1210
    %v1267 = vcvt.s32.f32 %v1211
    %v1268 = vcvt.s32.f32 %v1212
    %v1269 = vcvt.s32.f32 %v1213
    %v1270 = vcvt.s32.f32 %v1214
    %v1271 = vcvt.s32.f32 %v1215
    %v1272 = vcvt.s32.f32 %v1216
    %v1273 = vcvt.s32.f32 %v1217
    %v1274 = vcvt.s32.f32 %v1218
    %v1275 = vcvt.s32.f32 %v1219
    %v1276 = vcvt.s32.f32 %v1220
    %v1277 = vcvt.s32.f32 %v1221
    %v1278 = vcvt.s32.f32 %v1222
    %v1279 = vcvt.s32.f32 %v1223
    %v1280 = vcvt.s32.f32 %v1224
    %v1281 = vcvt.s32.f32 %v1225
    %v1282 = vcvt.s32.f32 %v1226
    %v1283 = vcvt.s32.f32 %v1227
    %v1284 = vcvt.s32.f32 %v1228
    %v1285 = vcvt.s32.f32 %v1229
    %v1286 = vcvt.s32.f32 %v1230
    %v1287 = vcvt.s32.f32 %v1231
    %v1288 = vcvt.s32.f32 %v1232
    %v1289 = vcvt.s32.f32 %v1233
    %v1290 = vcvt.s32.f32 %v1234
    %v1291 = vcvt.s32.f32 %v1235
    %v1292 = vcvt.s32.f32 %v1236
    %v1293 = vcvt.s32.f32 %v1237
    %v1294 = vcvt.s32.f32 %v1238
    %v1295 = vcvt.s32.f32 %v1239
    %v1296 = vcvt.s32.f32 %v1240
    %v1297 = vcvt.s32.f32 %v1241
    %v1298 = vcvt.s32.f32 %v1242
    %v1299 = vcvt.s32.f32 %v1243
    %v1300 = vcvt.s32.f32 %v1244
    %v1301 = vcvt.s32.f32 %v1245
    %v1302 = vcvt.s32.f32 %v1246
    %v1303 = vcvt.s32.f32 %v1247
    %v1304 = vcvt.s32.f32 %v1248
    %v1305 = vcvt.s32.f32 %v1249
    %v1306 = vcvt.s32.f32 %v1250
    %v1307 = vcvt.s32.f32 %v1251
    %v1308 = vcvt.s32.f32 %v1252
    %v1309 = vcvt.s32.f32 %v1253
    %v1310 = vcvt.s32.f32 %v1254
    %v1311 = vcvt.s32.f32 %v1255
    %v1312 = vadd.f32 %v115, 0.5
    %v1313 = vadd.f32 %v116, 0.5
    %v1314 = vadd.f32 %v117, 0.5
    %v1315 = vadd.f32 %v118, 0.5
    %v1316 = vadd.f32 %v119, 0.5
    %v1317 = vadd.f32 %v120, 0.5
    %v1318 = vadd.f32 %v121, 0.5
    %v1319 = vadd.f32 %v122, 0.5
    %v1320 = vadd.f32 %v123, 0.5
    %v1321 = vadd.f32 %v124, 0.5
    %v1322 = vadd.f32 %v125, 0.5
    %v1323 = vadd.f32 %v126, 0.5
    %v1324 = vadd.f32 %v127, 0.5
    %v1325 = vadd.f32 %v128, 0.5
    %v1326 = vadd.f32 %v129, 0.5
    %v1327 = vadd.f32 %v130, 0.5
    %v1328 = vadd.f32 %v1256, 0.5
    %v1329 = vadd.f32 %v1257, 0.5
    %v1330 = vadd.f32 %v1258, 0.5
    %v1331 = vadd.f32 %v1259, 0.5
    %v1332 = vadd.f32 %v1260, 0.5
    %v1333 = vadd.f32 %v1261, 0.5
    %v1334 = vadd.f32 %v1262, 0.5
    %v1335 = vadd.f32 %v1263, 0.5
    %v1336 = vadd.f32 %v1264, 0.5
    %v1337 = vadd.f32 %v1265, 0.5
    %v1338 = vadd.f32 %v1266, 0.5
    %v1339 = vadd.f32 %v1267, 0.5
    %v1340 = vadd.f32 %v1268, 0.5
    %v1341 = vadd.f32 %v1269, 0.5
    %v1342 = vadd.f32 %v1270, 0.5
    %v1343 = vadd.f32 %v1271, 0.5
    %v1344 = vadd.f32 %v1272, 0.5
    %v1345 = vadd.f32 %v1273, 0.5
    %v1346 = vadd.f32 %v1274, 0.5
    %v1347 = vadd.f32 %v1275, 0.5
    %v1348 = vadd.f32 %v1276, 0.5
    %v1349 = vadd.f32 %v1277, 0.5
    %v1350 = vadd.f32 %v1278, 0.5
    %v1351 = vadd.f32 %v1279, 0.5
    %v1352 = vadd.f32 %v1280, 0.5
    %v1353 = vadd.f32 %v1281, 0.5
    %v1354 = vadd.f32 %v1282, 0.5
    %v1355 = vadd.f32 %v1283, 0.5
    %v1356 = vadd.f32 %v1284, 0.5
    %v1357 = vadd.f32 %v1285, 0.5
    %v1358 = vadd.f32 %v1286, 0.5
    %v1359 = vadd.f32 %v1287, 0.5
    %v1360 = vadd.f32 %v1288, 0.5
    %v1361 = vadd.f32 %v1289, 0.5
    %v1362 = vadd.f32 %v1290, 0.5
    %v1363 = vadd.f32 %v1291, 0.5
    %v1364 = vadd.f32 %v1292, 0.5
    %v1365 = vadd.f32 %v1293, 0.5
    %v1366 = vadd.f32 %v1294, 0.5
    %v1367 = vadd.f32 %v1295, 0.5
    %v1368 = vadd.f32 %v1296, 0.5
    %v1369 = vadd.f32 %v1297, 0.5
    %v1370 = vadd.f32 %v1298, 0.5
    %v1371 = vadd.f32 %v1299, 0.5
    %v1372 = vadd.f32 %v1300, 0.5
    %v1373 = vadd.f32 %v1301, 0.5
    %v1374 = vadd.f32 %v1302, 0.5
    %v1375 = vadd.f32 %v1303, 0.5
    %v1376 = vadd.f32 %v1304, 0.5
    %v1377 = vadd.f32 %v1305, 0.5
    %v1378 = vadd.f32 %v1306, 0.5
    %v1379 = vadd.f32 %v1307, 0.5
    %v1380 = vadd.f32 %v1308, 0.5
    %v1381 = vadd.f32 %v1309, 0.5
    %v1382 = vadd.f32 %v1310, 0.5
    %v1383 = vadd.f32 %v1311, 0.5
    %v1384 = vmul.f32 %v1312, 0.33333334
    %v1385 = vmul.f32 %v1313, 0.33333334
    %v1386 = vmul.f32 %v1314, 0.33333334
    %v1387 = vmul.f32 %v1315, 0.33333334
    %v1388 = vmul.f32 %v1316, 0.33333334
    %v1389 = vmul.f32 %v1317, 0.33333334
    %v1390 = vmul.f32 %v1318, 0.33333334
    %v1391 = vmul.f32 %v1319, 0.33333334
    %v1392 = vmul.f32 %v1320, 0.33333334
    %v1393 = vmul.f32 %v1321, 0.33333334
    %v1394 = vmul.f32 %v1322, 0.33333334
    %v1395 = vmul.f32 %v1323, 0.33333334
    %v1396 = vmul.f32 %v1324, 0.33333334
    %v1397 = vmul.f32 %v1325, 0.33333334
    %v1398 = vmul.f32 %v1326, 0.33333334
    %v1399 = vmul.f32 %v1327, 0.33333334
    %v1400 = vmul.f32 %v1328, 0.33333334
    %v1401 = vmul.f32 %v1329, 0.33333334
    %v1402 = vmul.f32 %v1330, 0.33333334
    %v1403 = vmul.f32 %v1331, 0.33333334
    %v1404 = vmul.f32 %v1332, 0.33333334
    %v1405 = vmul.f32 %v1333, 0.33333334
    %v1406 = vmul.f32 %v1334, 0.33333334
    %v1407 = vmul.f32 %v1335, 0.33333334
    %v1408 = vmul.f32 %v1336, 0.33333334
    %v1409 = vmul.f32 %v1337, 0.33333334
    %v1410 = vmul.f32 %v1338, 0.33333334
    %v1411 = vmul.f32 %v1339, 0.33333334
    %v1412 = vmul.f32 %v1340, 0.33333334
    %v1413 = vmul.f32 %v1341, 0.33333334
    %v1414 = vmul.f32 %v1342, 0.33333334
    %v1415 = vmul.f32 %v1343, 0.33333334
    %v1416 = vmul.f32 %v1344, 0.33333334
    %v1417 = vmul.f32 %v1345, 0.33333334
    %v1418 = vmul.f32 %v1346, 0.33333334
    %v1419 = vmul.f32 %v1347, 0.33333334
    %v1420 = vmul.f32 %v1348, 0.33333334
    %v1421 = vmul.f32 %v1349, 0.33333334
    %v1422 = vmul.f32 %v1350, 0.33333334
    %v1423 = vmul.f32 %v1351, 0.33333334
    %v1424 = vmul.f32 %v1352, 0.33333334
    %v1425 = vmul.f32 %v1353, 0.33333334
    %v1426 = vmul.f32 %v1354, 0.33333334
    %v1427 = vmul.f32 %v1355, 0.33333334
    %v1428 = vmul.f32 %v1356, 0.33333334
    %v1429 = vmul.f32 %v1357, 0.33333334
    %v1430 = vmul.f32 %v1358, 0.33333334
    %v1431 = vmul.f32 %v1359, 0.33333334
    %v1432 = vmul.f32 %v1360, 0.33333334
    %v1433 = vmul.f32 %v1361, 0.33333334
    %v1434 = vmul.f32 %v1362, 0.33333334
    %v1435 = vmul.f32 %v1363, 0.33333334
    %v1436 = vmul.f32 %v1364, 0.33333334
    %v1437 = vmul.f32 %v1365, 0.33333334
    %v1438 = vmul.f32 %v1366, 0.33333334
    %v1439 = vmul.f32 %v1367, 0.33333334
    %v1440 = vmul.f32 %v1368, 0.33333334
    %v1441 = vmul.f32 %v1369, 0.33333334
    %v1442 = vmul.f32 %v1370, 0.33333334
    %v1443 = vmul.f32 %v1371, 0.33333334
    %v1444 = vmul.f32 %v1372, 0.33333334
    %v1445 = vmul.f32 %v1373, 0.33333334
    %v1446 = vmul.f32 %v1374, 0.33333334
    %v1447 = vmul.f32 %v1375, 0.33333334
    %v1448 = vmul.f32 %v1376, 0.33333334
    %v1449 = vmul.f32 %v1377, 0.33333334
    %v1450 = vmul.f32 %v1378, 0.33333334
    %v1451 = vmul.f32 %v1379, 0.33333334
    %v1452 = vmul.f32 %v1380, 0.33333334
    %v1453 = vmul.f32 %v1381, 0.33333334
    %v1454 = vmul.f32 %v1382, 0.33333334
    %v1455 = vmul.f32 %v1383, 0.33333334
    %v1456 = vfloor.f32 %v1384
    %v1457 = vfloor.f32 %v1385
    %v1458 = vfloor.f32 %v1386
    %v1459 = vfloor.f32 %v1387
    %v1460 = vfloor.f32 %v1388
    %v1461 = vfloor.f32 %v1389
    %v1462 = vfloor.f32 %v1390
    %v1463 = vfloor.f32 %v1391
    %v1464 = vfloor.f32 %v1392
    %v1465 = vfloor.f32 %v1393
    %v1466 = vfloor.f32 %v1394
    %v1467 = vfloor.f32 %v1395
    %v1468 = vfloor.f32 %v1396
    %v1469 = vfloor.f32 %v1397
    %v1470 = vfloor.f32 %v1398
    %v1471 = vfloor.f32 %v1399
    %v1472 = vfloor.f32 %v1400
    %v1473 = vfloor.f32 %v1401
    %v1474 = vfloor.f32 %v1402
    %v1475 = vfloor.f32 %v1403
    %v1476 = vfloor.f32 %v1404
    %v1477 = vfloor.f32 %v1405
    %v1478 = vfloor.f32 %v1406
    %v1479 = vfloor.f32 %v1407
    %v1480 = vfloor.f32 %v1408
    %v1481 = vfloor.f32 %v1409
    %v1482 = vfloor.f32 %v1410
    %v1483 = vfloor.f32 %v1411
    %v1484 = vfloor.f32 %v1412
    %v1485 = vfloor.f32 %v1413
    %v1486 = vfloor.f32 %v1414
    %v1487 = vfloor.f32 %v1415
    %v1488 = vfloor.f32 %v1416
    %v1489 = vfloor.f32 %v1417
    %v1490 = vfloor.f32 %v1418
    %v1491 = vfloor.f32 %v1419
    %v1492 = vfloor.f32 %v1420
    %v1493 = vfloor.f32 %v1421
    %v1494 = vfloor.f32 %v1422
    %v1495 = vfloor.f32 %v1423
    %v1496 = vfloor.f32 %v1424
    %v1497 = vfloor.f32 %v1425
    %v1498 = vfloor.f32 %v1426
    %v1499 = vfloor.f32 %v1427
    %v1500 = vfloor.f32 %v1428
    %v1501 = vfloor.f32 %v1429
    %v1502 = vfloor.f32 %v1430
    %v1503 = vfloor.f32 %v1431
    %v1504 = vfloor.f32 %v1432
    %v1505 = vfloor.f32 %v1433
    %v1506 = vfloor.f32 %v1434
    %v1507 = vfloor.f32 %v1435
    %v1508 = vfloor.f32 %v1436
    %v1509 = vfloor.f32 %v1437
    %v1510 = vfloor.f32 %v1438
    %v1511 = vfloor.f32 %v1439
    %v1512 = vfloor.f32 %v1440
    %v1513 = vfloor.f32 %v1441
    %v1514 = vfloor.f32 %v1442
    %v1515 = vfloor.f32 %v1443
    %v1516 = vfloor.f32 %v1444
    %v1517 = vfloor.f32 %v1445
    %v1518 = vfloor.f32 %v1446
    %v1519 = vfloor.f32 %v1447
    %v1520 = vfloor.f32 %v1448
    %v1521 = vfloor.f32 %v1449
    %v1522 = vfloor.f32 %v1450
    %v1523 = vfloor.f32 %v1451
    %v1524 = vfloor.f32 %v1452
    %v1525 = vfloor.f32 %v1453
    %v1526 = vfloor.f32 %v1454
    %v1527 = vfloor.f32 %v1455
    %v1528 = vmul.f32 %v1456, 3.0
    %v1529 = vmul.f32 %v1457, 3.0
    %v1530 = vmul.f32 %v1458, 3.0
    %v1531 = vmul.f32 %v1459, 3.0
    %v1532 = vmul.f32 %v1460, 3.0
    %v1533 = vmul.f32 %v1461, 3.0
    %v1534 = vmul.f32 %v1462, 3.0
    %v1535 = vmul.f32 %v1463, 3.0
    %v1536 = vmul.f32 %v1464, 3.0
    %v1537 = vmul.f32 %v1465, 3.0
    %v1538 = vmul.f32 %v1466, 3.0
    %v1539 = vmul.f32 %v1467, 3.0
    %v1540 = vmul.f32 %v1468, 3.0
    %v1541 = vmul.f32 %v1469, 3.0
    %v1542 = vmul.f32 %v1470, 3.0
    %v1543 = vmul.f32 %v1471, 3.0
    %v1544 = vmul.f32 %v1472, 3.0
    %v1545 = vmul.f32 %v1473, 3.0
    %v1546 = vmul.f32 %v1474, 3.0
    %v1547 = vmul.f32 %v1475, 3.0
    %v1548 = vmul.f32 %v1476, 3.0
    %v1549 = vmul.f32 %v1477, 3.0
    %v1550 = vmul.f32 %v1478, 3.0
    %v1551 = vmul.f32 %v1479, 3.0
    %v1552 = vmul.f32 %v1480, 3.0
    %v1553 = vmul.f32 %v1481, 3.0
    %v1554 = vmul.f32 %v1482, 3.0
    %v1555 = vmul.f32 %v1483, 3.0
    %v1556 = vmul.f32 %v1484, 3.0
    %v1557 = vmul.f32 %v1485, 3.0
    %v1558 = vmul.f32 %v1486, 3.0
    %v1559 = vmul.f32 %v1487, 3.0
    %v1560 = vmul.f32 %v1488, 3.0
    %v1561 = vmul.f32 %v1489, 3.0
    %v1562 = vmul.f32 %v1490, 3.0
    %v1563 = vmul.f32 %v1491, 3.0
    %v1564 = vmul.f32 %v1492, 3.0
    %v1565 = vmul.f32 %v1493, 3.0
    %v1566 = vmul.f32 %v1494, 3.0
    %v1567 = vmul.f32 %v1495, 3.0
    %v1568 = vmul.f32 %v1496, 3.0
    %v1569 = vmul.f32 %v1497, 3.0
    %v1570 = vmul.f32 %v1498, 3.0
    %v1571 = vmul.f32 %v1499, 3.0
    %v1572 = vmul.f32 %v1500, 3.0
    %v1573 = vmul.f32 %v1501, 3.0
    %v1574 = vmul.f32 %v1502, 3.0
    %v1575 = vmul.f32 %v1503, 3.0
    %v1576 = vmul.f32 %v1504, 3.0
    %v1577 = vmul.f32 %v1505, 3.0
    %v1578 = vmul.f32 %v1506, 3.0
    %v1579 = vmul.f32 %v1507, 3.0
    %v1580 = vmul.f32 %v1508, 3.0
    %v1581 = vmul.f32 %v1509, 3.0
    %v1582 = vmul.f32 %v1510, 3.0
    %v1583 = vmul.f32 %v1511, 3.0
    %v1584 = vmul.f32 %v1512, 3.0
    %v1585 = vmul.f32 %v1513, 3.0
    %v1586 = vmul.f32 %v1514, 3.0
    %v1587 = vmul.f32 %v1515, 3.0
    %v1588 = vmul.f32 %v1516, 3.0
    %v1589 = vmul.f32 %v1517, 3.0
    %v1590 = vmul.f32 %v1518, 3.0
    %v1591 = vmul.f32 %v1519, 3.0
    %v1592 = vmul.f32 %v1520, 3.0
    %v1593 = vmul.f32 %v1521, 3.0
    %v1594 = vmul.f32 %v1522, 3.0
    %v1595 = vmul.f32 %v1523, 3.0
    %v1596 = vmul.f32 %v1524, 3.0
    %v1597 = vmul.f32 %v1525, 3.0
    %v1598 = vmul.f32 %v1526, 3.0
    %v1599 = vmul.f32 %v1527, 3.0
    %v1600 = vsub.f32 %v115, %v1528
    %v1601 = vsub.f32 %v116, %v1529
    %v1602 = vsub.f32 %v117, %v1530
    %v1603 = vsub.f32 %v118, %v1531
    %v1604 = vsub.f32 %v119, %v1532
    %v1605 = vsub.f32 %v120, %v1533
    %v1606 = vsub.f32 %v121, %v1534
    %v1607 = vsub.f32 %v122, %v1535
    %v1608 = vsub.f32 %v123, %v1536
    %v1609 = vsub.f32 %v124, %v1537
    %v1610 = vsub.f32 %v125, %v1538
    %v1611 = vsub.f32 %v126, %v1539
    %v1612 = vsub.f32 %v127, %v1540
    %v1613 = vsub.f32 %v128, %v1541
    %v1614 = vsub.f32 %v129, %v1542
    %v1615 = vsub.f32 %v130, %v1543
    %v1616 = vsub.f32 %v1256, %v1544
    %v1617 = vsub.f32 %v1257, %v1545
    %v1618 = vsub.f32 %v1258, %v1546
    %v1619 = vsub.f32 %v1259, %v1547
    %v1620 = vsub.f32 %v1260, %v1548
    %v1621 = vsub.f32 %v1261, %v1549
    %v1622 = vsub.f32 %v1262, %v1550
    %v1623 = vsub.f32 %v1263, %v1551
    %v1624 = vsub.f32 %v1264, %v1552
    %v1625 = vsub.f32 %v1265, %v1553
    %v1626 = vsub.f32 %v1266, %v1554
    %v1627 = vsub.f32 %v1267, %v1555
    %v1628 = vsub.f32 %v1268, %v1556
    %v1629 = vsub.f32 %v1269, %v1557
    %v1630 = vsub.f32 %v1270, %v1558
    %v1631 = vsub.f32 %v1271, %v1559
    %v1632 = vsub.f32 %v1272, %v1560
    %v1633 = vsub.f32 %v1273, %v1561
    %v1634 = vsub.f32 %v1274, %v1562
    %v1635 = vsub.f32 %v1275, %v1563
    %v1636 = vsub.f32 %v1276, %v1564
    %v1637 = vsub.f32 %v1277, %v1565
    %v1638 = vsub.f32 %v1278, %v1566
    %v1639 = vsub.f32 %v1279, %v1567
    %v1640 = vsub.f32 %v1280, %v1568
    %v1641 = vsub.f32 %v1281, %v1569
    %v1642 = vsub.f32 %v1282, %v1570
    %v1643 = vsub.f32 %v1283, %v1571
    %v1644 = vsub.f32 %v1284, %v1572
    %v1645 = vsub.f32 %v1285, %v1573
    %v1646 = vsub.f32 %v1286, %v1574
    %v1647 = vsub.f32 %v1287, %v1575
    %v1648 = vsub.f32 %v1288, %v1576
    %v1649 = vsub.f32 %v1289, %v1577
    %v1650 = vsub.f32 %v1290, %v1578
    %v1651 = vsub.f32 %v1291, %v1579
    %v1652 = vsub.f32 %v1292, %v1580
    %v1653 = vsub.f32 %v1293, %v1581
    %v1654 = vsub.f32 %v1294, %v1582
    %v1655 = vsub.f32 %v1295, %v1583
    %v1656 = vsub.f32 %v1296, %v1584
    %v1657 = vsub.f32 %v1297, %v1585
    %v1658 = vsub.f32 %v1298, %v1586
    %v1659 = vsub.f32 %v1299, %v1587
    %v1660 = vsub.f32 %v1300, %v1588
    %v1661 = vsub.f32 %v1301, %v1589
    %v1662 = vsub.f32 %v1302, %v1590
    %v1663 = vsub.f32 %v1303, %v1591
    %v1664 = vsub.f32 %v1304, %v1592
    %v1665 = vsub.f32 %v1305, %v1593
    %v1666 = vsub.f32 %v1306, %v1594
    %v1667 = vsub.f32 %v1307, %v1595
    %v1668 = vsub.f32 %v1308, %v1596
    %v1669 = vsub.f32 %v1309, %v1597
    %v1670 = vsub.f32 %v1310, %v1598
    %v1671 = vsub.f32 %v1311, %v1599
    %v1672 = vmul.f32 %v134, 0.015625
    %v1673 = vmul.f32 %v135, 0.015625
    %v1674 = vfloor.f32 %v1672
    %v1675 = vfloor.f32 %v1673
    %v1676 = vmul.f32 %v1674, 64.0
    %v1677 = vmul.f32 %v1675, 64.0
    %v1678 = vsub.f32 %v134, %v1676
    %v1679 = vsub.f32 %v135, %v1677
    %s1680 = ssub.f32 %s87, %s86
    %v1681 = vadd.f32 %v1678, 0.5
    %v1682 = vadd.f32 %v1679, 0.5
    %v1683 = vstv %s1680
    %v1684 = vmul.f32 %v1683, %v1681
    %v1685 = vmul.f32 %v1683, %v1682
    %v1686 = vmul.f32 %v1684, 0.015625
    %v1687 = vmul.f32 %v1685, 0.015625
    %v1688 = vstv %s86
    %v1689 = vadd.f32 %v1688, %v1686
    %v1690 = vadd.f32 %v1688, %v1687
    %v1691 = vfloor.f32 %v1689
    %v1692 = vfloor.f32 %v1690
    %v1693 = vmax.f32 %v1691, 0.0
    %v1694 = vmax.f32 %v1692, 0.0
    %v1695 = vmin.f32 %v1693, 191.0
    %v1696 = vmin.f32 %v1694, 191.0
    %vm1697 = vcmp.eq.f32.partialorder %v1456, %v1695
    %vm1698 = vcmp.eq.f32.partialorder %v1456, %v1696
    %vm1699 = vcmp.eq.f32.partialorder %v1457, %v1695
    %vm1700 = vcmp.eq.f32.partialorder %v1457, %v1696
    %vm1701 = vcmp.eq.f32.partialorder %v1458, %v1695
    %vm1702 = vcmp.eq.f32.partialorder %v1458, %v1696
    %vm1703 = vcmp.eq.f32.partialorder %v1459, %v1695
    %vm1704 = vcmp.eq.f32.partialorder %v1459, %v1696
    %vm1705 = vcmp.eq.f32.partialorder %v1460, %v1695
    %vm1706 = vcmp.eq.f32.partialorder %v1460, %v1696
    %vm1707 = vcmp.eq.f32.partialorder %v1461, %v1695
    %vm1708 = vcmp.eq.f32.partialorder %v1461, %v1696
    %vm1709 = vcmp.eq.f32.partialorder %v1462, %v1695
    %vm1710 = vcmp.eq.f32.partialorder %v1462, %v1696
    %vm1711 = vcmp.eq.f32.partialorder %v1463, %v1695
    %vm1712 = vcmp.eq.f32.partialorder %v1463, %v1696
    %vm1713 = vcmp.eq.f32.partialorder %v1464, %v1695
    %vm1714 = vcmp.eq.f32.partialorder %v1464, %v1696
    %vm1715 = vcmp.eq.f32.partialorder %v1465, %v1695
    %vm1716 = vcmp.eq.f32.partialorder %v1465, %v1696
    %vm1717 = vcmp.eq.f32.partialorder %v1466, %v1695
    %vm1718 = vcmp.eq.f32.partialorder %v1466, %v1696
    %vm1719 = vcmp.eq.f32.partialorder %v1467, %v1695
    %vm1720 = vcmp.eq.f32.partialorder %v1467, %v1696
    %vm1721 = vcmp.eq.f32.partialorder %v1468, %v1695
    %vm1722 = vcmp.eq.f32.partialorder %v1468, %v1696
    %vm1723 = vcmp.eq.f32.partialorder %v1469, %v1695
    %vm1724 = vcmp.eq.f32.partialorder %v1469, %v1696
    %vm1725 = vcmp.eq.f32.partialorder %v1470, %v1695
    %vm1726 = vcmp.eq.f32.partialorder %v1470, %v1696
    %vm1727 = vcmp.eq.f32.partialorder %v1471, %v1695
    %vm1728 = vcmp.eq.f32.partialorder %v1471, %v1696
    %vm1729 = vcmp.eq.f32.partialorder %v1472, %v1695
    %vm1730 = vcmp.eq.f32.partialorder %v1472, %v1696
    %vm1731 = vcmp.eq.f32.partialorder %v1473, %v1695
    %vm1732 = vcmp.eq.f32.partialorder %v1473, %v1696
    %vm1733 = vcmp.eq.f32.partialorder %v1474, %v1695
    %vm1734 = vcmp.eq.f32.partialorder %v1474, %v1696
    %vm1735 = vcmp.eq.f32.partialorder %v1475, %v1695
    %vm1736 = vcmp.eq.f32.partialorder %v1475, %v1696
    %vm1737 = vcmp.eq.f32.partialorder %v1476, %v1695
    %vm1738 = vcmp.eq.f32.partialorder %v1476, %v1696
    %vm1739 = vcmp.eq.f32.partialorder %v1477, %v1695
    %vm1740 = vcmp.eq.f32.partialorder %v1477, %v1696
    %vm1741 = vcmp.eq.f32.partialorder %v1478, %v1695
    %vm1742 = vcmp.eq.f32.partialorder %v1478, %v1696
    %vm1743 = vcmp.eq.f32.partialorder %v1479, %v1695
    %vm1744 = vcmp.eq.f32.partialorder %v1479, %v1696
    %vm1745 = vcmp.eq.f32.partialorder %v1480, %v1695
    %vm1746 = vcmp.eq.f32.partialorder %v1480, %v1696
    %vm1747 = vcmp.eq.f32.partialorder %v1481, %v1695
    %vm1748 = vcmp.eq.f32.partialorder %v1481, %v1696
    %vm1749 = vcmp.eq.f32.partialorder %v1482, %v1695
    %vm1750 = vcmp.eq.f32.partialorder %v1482, %v1696
    %vm1751 = vcmp.eq.f32.partialorder %v1483, %v1695
    %vm1752 = vcmp.eq.f32.partialorder %v1483, %v1696
    %vm1753 = vcmp.eq.f32.partialorder %v1484, %v1695
    %vm1754 = vcmp.eq.f32.partialorder %v1484, %v1696
    %vm1755 = vcmp.eq.f32.partialorder %v1485, %v1695
    %vm1756 = vcmp.eq.f32.partialorder %v1485, %v1696
    %vm1757 = vcmp.eq.f32.partialorder %v1486, %v1695
    %vm1758 = vcmp.eq.f32.partialorder %v1486, %v1696
    %vm1759 = vcmp.eq.f32.partialorder %v1487, %v1695
    %vm1760 = vcmp.eq.f32.partialorder %v1487, %v1696
    %vm1761 = vcmp.eq.f32.partialorder %v1488, %v1695
    %vm1762 = vcmp.eq.f32.partialorder %v1488, %v1696
    %vm1763 = vcmp.eq.f32.partialorder %v1489, %v1695
    %vm1764 = vcmp.eq.f32.partialorder %v1489, %v1696
    %vm1765 = vcmp.eq.f32.partialorder %v1490, %v1695
    %vm1766 = vcmp.eq.f32.partialorder %v1490, %v1696
    %vm1767 = vcmp.eq.f32.partialorder %v1491, %v1695
    %vm1768 = vcmp.eq.f32.partialorder %v1491, %v1696
    %vm1769 = vcmp.eq.f32.partialorder %v1492, %v1695
    %vm1770 = vcmp.eq.f32.partialorder %v1492, %v1696
    %vm1771 = vcmp.eq.f32.partialorder %v1493, %v1695
    %vm1772 = vcmp.eq.f32.partialorder %v1493, %v1696
    %vm1773 = vcmp.eq.f32.partialorder %v1494, %v1695
    %vm1774 = vcmp.eq.f32.partialorder %v1494, %v1696
    %vm1775 = vcmp.eq.f32.partialorder %v1495, %v1695
    %vm1776 = vcmp.eq.f32.partialorder %v1495, %v1696
    %vm1777 = vcmp.eq.f32.partialorder %v1496, %v1695
    %vm1778 = vcmp.eq.f32.partialorder %v1496, %v1696
    %vm1779 = vcmp.eq.f32.partialorder %v1497, %v1695
    %vm1780 = vcmp.eq.f32.partialorder %v1497, %v1696
    %vm1781 = vcmp.eq.f32.partialorder %v1498, %v1695
    %vm1782 = vcmp.eq.f32.partialorder %v1498, %v1696
    %vm1783 = vcmp.eq.f32.partialorder %v1499, %v1695
    %vm1784 = vcmp.eq.f32.partialorder %v1499, %v1696
    %vm1785 = vcmp.eq.f32.partialorder %v1500, %v1695
    %vm1786 = vcmp.eq.f32.partialorder %v1500, %v1696
    %vm1787 = vcmp.eq.f32.partialorder %v1501, %v1695
    %vm1788 = vcmp.eq.f32.partialorder %v1501, %v1696
    %vm1789 = vcmp.eq.f32.partialorder %v1502, %v1695
    %vm1790 = vcmp.eq.f32.partialorder %v1502, %v1696
    %vm1791 = vcmp.eq.f32.partialorder %v1503, %v1695
    %vm1792 = vcmp.eq.f32.partialorder %v1503, %v1696
    %vm1793 = vcmp.eq.f32.partialorder %v1504, %v1695
    %vm1794 = vcmp.eq.f32.partialorder %v1504, %v1696
    %vm1795 = vcmp.eq.f32.partialorder %v1505, %v1695
    %vm1796 = vcmp.eq.f32.partialorder %v1505, %v1696
    %vm1797 = vcmp.eq.f32.partialorder %v1506, %v1695
    %vm1798 = vcmp.eq.f32.partialorder %v1506, %v1696
    %vm1799 = vcmp.eq.f32.partialorder %v1507, %v1695
    %vm1800 = vcmp.eq.f32.partialorder %v1507, %v1696
    %vm1801 = vcmp.eq.f32.partialorder %v1508, %v1695
    %vm1802 = vcmp.eq.f32.partialorder %v1508, %v1696
    %vm1803 = vcmp.eq.f32.partialorder %v1509, %v1695
    %vm1804 = vcmp.eq.f32.partialorder %v1509, %v1696
    %vm1805 = vcmp.eq.f32.partialorder %v1510, %v1695
    %vm1806 = vcmp.eq.f32.partialorder %v1510, %v1696
    %vm1807 = vcmp.eq.f32.partialorder %v1511, %v1695
    %vm1808 = vcmp.eq.f32.partialorder %v1511, %v1696
    %vm1809 = vcmp.eq.f32.partialorder %v1512, %v1695
    %vm1810 = vcmp.eq.f32.partialorder %v1512, %v1696
    %vm1811 = vcmp.eq.f32.partialorder %v1513, %v1695
    %vm1812 = vcmp.eq.f32.partialorder %v1513, %v1696
    %vm1813 = vcmp.eq.f32.partialorder %v1514, %v1695
    %vm1814 = vcmp.eq.f32.partialorder %v1514, %v1696
    %vm1815 = vcmp.eq.f32.partialorder %v1515, %v1695
    %vm1816 = vcmp.eq.f32.partialorder %v1515, %v1696
    %vm1817 = vcmp.eq.f32.partialorder %v1516, %v1695
    %vm1818 = vcmp.eq.f32.partialorder %v1516, %v1696
    %vm1819 = vcmp.eq.f32.partialorder %v1517, %v1695
    %vm1820 = vcmp.eq.f32.partialorder %v1517, %v1696
    %vm1821 = vcmp.eq.f32.partialorder %v1518, %v1695
    %vm1822 = vcmp.eq.f32.partialorder %v1518, %v1696
    %vm1823 = vcmp.eq.f32.partialorder %v1519, %v1695
    %vm1824 = vcmp.eq.f32.partialorder %v1519, %v1696
    %vm1825 = vcmp.eq.f32.partialorder %v1520, %v1695
    %vm1826 = vcmp.eq.f32.partialorder %v1520, %v1696
    %vm1827 = vcmp.eq.f32.partialorder %v1521, %v1695
    %vm1828 = vcmp.eq.f32.partialorder %v1521, %v1696
    %vm1829 = vcmp.eq.f32.partialorder %v1522, %v1695
    %vm1830 = vcmp.eq.f32.partialorder %v1522, %v1696
    %vm1831 = vcmp.eq.f32.partialorder %v1523, %v1695
    %vm1832 = vcmp.eq.f32.partialorder %v1523, %v1696
    %vm1833 = vcmp.eq.f32.partialorder %v1524, %v1695
    %vm1834 = vcmp.eq.f32.partialorder %v1524, %v1696
    %vm1835 = vcmp.eq.f32.partialorder %v1525, %v1695
    %vm1836 = vcmp.eq.f32.partialorder %v1525, %v1696
    %vm1837 = vcmp.eq.f32.partialorder %v1526, %v1695
    %vm1838 = vcmp.eq.f32.partialorder %v1526, %v1696
    %vm1839 = vcmp.eq.f32.partialorder %v1527, %v1695
    %vm1840 = vcmp.eq.f32.partialorder %v1527, %v1696
    %vm1841 = vcmp.eq.f32.partialorder %v1600, %v1674
    %vm1842 = vcmp.eq.f32.partialorder %v1600, %v1675
    %vm1843 = vcmp.eq.f32.partialorder %v1601, %v1674
    %vm1844 = vcmp.eq.f32.partialorder %v1601, %v1675
    %vm1845 = vcmp.eq.f32.partialorder %v1602, %v1674
    %vm1846 = vcmp.eq.f32.partialorder %v1602, %v1675
    %vm1847 = vcmp.eq.f32.partialorder %v1603, %v1674
    %vm1848 = vcmp.eq.f32.partialorder %v1603, %v1675
    %vm1849 = vcmp.eq.f32.partialorder %v1604, %v1674
    %vm1850 = vcmp.eq.f32.partialorder %v1604, %v1675
    %vm1851 = vcmp.eq.f32.partialorder %v1605, %v1674
    %vm1852 = vcmp.eq.f32.partialorder %v1605, %v1675
    %vm1853 = vcmp.eq.f32.partialorder %v1606, %v1674
    %vm1854 = vcmp.eq.f32.partialorder %v1606, %v1675
    %vm1855 = vcmp.eq.f32.partialorder %v1607, %v1674
    %vm1856 = vcmp.eq.f32.partialorder %v1607, %v1675
    %vm1857 = vcmp.eq.f32.partialorder %v1608, %v1674
    %vm1858 = vcmp.eq.f32.partialorder %v1608, %v1675
    %vm1859 = vcmp.eq.f32.partialorder %v1609, %v1674
    %vm1860 = vcmp.eq.f32.partialorder %v1609, %v1675
    %vm1861 = vcmp.eq.f32.partialorder %v1610, %v1674
    %vm1862 = vcmp.eq.f32.partialorder %v1610, %v1675
    %vm1863 = vcmp.eq.f32.partialorder %v1611, %v1674
    %vm1864 = vcmp.eq.f32.partialorder %v1611, %v1675
    %vm1865 = vcmp.eq.f32.partialorder %v1612, %v1674
    %vm1866 = vcmp.eq.f32.partialorder %v1612, %v1675
    %vm1867 = vcmp.eq.f32.partialorder %v1613, %v1674
    %vm1868 = vcmp.eq.f32.partialorder %v1613, %v1675
    %vm1869 = vcmp.eq.f32.partialorder %v1614, %v1674
    %vm1870 = vcmp.eq.f32.partialorder %v1614, %v1675
    %vm1871 = vcmp.eq.f32.partialorder %v1615, %v1674
    %vm1872 = vcmp.eq.f32.partialorder %v1615, %v1675
    %vm1873 = vcmp.eq.f32.partialorder %v1616, %v1674
    %vm1874 = vcmp.eq.f32.partialorder %v1616, %v1675
    %vm1875 = vcmp.eq.f32.partialorder %v1617, %v1674
    %vm1876 = vcmp.eq.f32.partialorder %v1617, %v1675
    %vm1877 = vcmp.eq.f32.partialorder %v1618, %v1674
    %vm1878 = vcmp.eq.f32.partialorder %v1618, %v1675
    %vm1879 = vcmp.eq.f32.partialorder %v1619, %v1674
    %vm1880 = vcmp.eq.f32.partialorder %v1619, %v1675
    %vm1881 = vcmp.eq.f32.partialorder %v1620, %v1674
    %vm1882 = vcmp.eq.f32.partialorder %v1620, %v1675
    %vm1883 = vcmp.eq.f32.partialorder %v1621, %v1674
    %vm1884 = vcmp.eq.f32.partialorder %v1621, %v1675
    %vm1885 = vcmp.eq.f32.partialorder %v1622, %v1674
    %vm1886 = vcmp.eq.f32.partialorder %v1622, %v1675
    %vm1887 = vcmp.eq.f32.partialorder %v1623, %v1674
    %vm1888 = vcmp.eq.f32.partialorder %v1623, %v1675
    %vm1889 = vcmp.eq.f32.partialorder %v1624, %v1674
    %vm1890 = vcmp.eq.f32.partialorder %v1624, %v1675
    %vm1891 = vcmp.eq.f32.partialorder %v1625, %v1674
    %vm1892 = vcmp.eq.f32.partialorder %v1625, %v1675
    %vm1893 = vcmp.eq.f32.partialorder %v1626, %v1674
    %vm1894 = vcmp.eq.f32.partialorder %v1626, %v1675
    %vm1895 = vcmp.eq.f32.partialorder %v1627, %v1674
    %vm1896 = vcmp.eq.f32.partialorder %v1627, %v1675
    %vm1897 = vcmp.eq.f32.partialorder %v1628, %v1674
    %vm1898 = vcmp.eq.f32.partialorder %v1628, %v1675
    %vm1899 = vcmp.eq.f32.partialorder %v1629, %v1674
    %vm1900 = vcmp.eq.f32.partialorder %v1629, %v1675
    %vm1901 = vcmp.eq.f32.partialorder %v1630, %v1674
    %vm1902 = vcmp.eq.f32.partialorder %v1630, %v1675
    %vm1903 = vcmp.eq.f32.partialorder %v1631, %v1674
    %vm1904 = vcmp.eq.f32.partialorder %v1631, %v1675
    %vm1905 = vcmp.eq.f32.partialorder %v1632, %v1674
    %vm1906 = vcmp.eq.f32.partialorder %v1632, %v1675
    %vm1907 = vcmp.eq.f32.partialorder %v1633, %v1674
    %vm1908 = vcmp.eq.f32.partialorder %v1633, %v1675
    %vm1909 = vcmp.eq.f32.partialorder %v1634, %v1674
    %vm1910 = vcmp.eq.f32.partialorder %v1634, %v1675
    %vm1911 = vcmp.eq.f32.partialorder %v1635, %v1674
    %vm1912 = vcmp.eq.f32.partialorder %v1635, %v1675
    %vm1913 = vcmp.eq.f32.partialorder %v1636, %v1674
    %vm1914 = vcmp.eq.f32.partialorder %v1636, %v1675
    %vm1915 = vcmp.eq.f32.partialorder %v1637, %v1674
    %vm1916 = vcmp.eq.f32.partialorder %v1637, %v1675
    %vm1917 = vcmp.eq.f32.partialorder %v1638, %v1674
    %vm1918 = vcmp.eq.f32.partialorder %v1638, %v1675
    %vm1919 = vcmp.eq.f32.partialorder %v1639, %v1674
    %vm1920 = vcmp.eq.f32.partialorder %v1639, %v1675
    %vm1921 = vcmp.eq.f32.partialorder %v1640, %v1674
    %vm1922 = vcmp.eq.f32.partialorder %v1640, %v1675
    %vm1923 = vcmp.eq.f32.partialorder %v1641, %v1674
    %vm1924 = vcmp.eq.f32.partialorder %v1641, %v1675
    %vm1925 = vcmp.eq.f32.partialorder %v1642, %v1674
    %vm1926 = vcmp.eq.f32.partialorder %v1642, %v1675
    %vm1927 = vcmp.eq.f32.partialorder %v1643, %v1674
    %vm1928 = vcmp.eq.f32.partialorder %v1643, %v1675
    %vm1929 = vcmp.eq.f32.partialorder %v1644, %v1674
    %vm1930 = vcmp.eq.f32.partialorder %v1644, %v1675
    %vm1931 = vcmp.eq.f32.partialorder %v1645, %v1674
    %vm1932 = vcmp.eq.f32.partialorder %v1645, %v1675
    %vm1933 = vcmp.eq.f32.partialorder %v1646, %v1674
    %vm1934 = vcmp.eq.f32.partialorder %v1646, %v1675
    %vm1935 = vcmp.eq.f32.partialorder %v1647, %v1674
    %vm1936 = vcmp.eq.f32.partialorder %v1647, %v1675
    %vm1937 = vcmp.eq.f32.partialorder %v1648, %v1674
    %vm1938 = vcmp.eq.f32.partialorder %v1648, %v1675
    %vm1939 = vcmp.eq.f32.partialorder %v1649, %v1674
    %vm1940 = vcmp.eq.f32.partialorder %v1649, %v1675
    %vm1941 = vcmp.eq.f32.partialorder %v1650, %v1674
    %vm1942 = vcmp.eq.f32.partialorder %v1650, %v1675
    %vm1943 = vcmp.eq.f32.partialorder %v1651, %v1674
    %vm1944 = vcmp.eq.f32.partialorder %v1651, %v1675
    %vm1945 = vcmp.eq.f32.partialorder %v1652, %v1674
    %vm1946 = vcmp.eq.f32.partialorder %v1652, %v1675
    %vm1947 = vcmp.eq.f32.partialorder %v1653, %v1674
    %vm1948 = vcmp.eq.f32.partialorder %v1653, %v1675
    %vm1949 = vcmp.eq.f32.partialorder %v1654, %v1674
    %vm1950 = vcmp.eq.f32.partialorder %v1654, %v1675
    %vm1951 = vcmp.eq.f32.partialorder %v1655, %v1674
    %vm1952 = vcmp.eq.f32.partialorder %v1655, %v1675
    %vm1953 = vcmp.eq.f32.partialorder %v1656, %v1674
    %vm1954 = vcmp.eq.f32.partialorder %v1656, %v1675
    %vm1955 = vcmp.eq.f32.partialorder %v1657, %v1674
    %vm1956 = vcmp.eq.f32.partialorder %v1657, %v1675
    %vm1957 = vcmp.eq.f32.partialorder %v1658, %v1674
    %vm1958 = vcmp.eq.f32.partialorder %v1658, %v1675
    %vm1959 = vcmp.eq.f32.partialorder %v1659, %v1674
    %vm1960 = vcmp.eq.f32.partialorder %v1659, %v1675
    %vm1961 = vcmp.eq.f32.partialorder %v1660, %v1674
    %vm1962 = vcmp.eq.f32.partialorder %v1660, %v1675
    %vm1963 = vcmp.eq.f32.partialorder %v1661, %v1674
    %vm1964 = vcmp.eq.f32.partialorder %v1661, %v1675
    %vm1965 = vcmp.eq.f32.partialorder %v1662, %v1674
    %vm1966 = vcmp.eq.f32.partialorder %v1662, %v1675
    %vm1967 = vcmp.eq.f32.partialorder %v1663, %v1674
    %vm1968 = vcmp.eq.f32.partialorder %v1663, %v1675
    %vm1969 = vcmp.eq.f32.partialorder %v1664, %v1674
    %vm1970 = vcmp.eq.f32.partialorder %v1664, %v1675
    %vm1971 = vcmp.eq.f32.partialorder %v1665, %v1674
    %vm1972 = vcmp.eq.f32.partialorder %v1665, %v1675
    %vm1973 = vcmp.eq.f32.partialorder %v1666, %v1674
    %vm1974 = vcmp.eq.f32.partialorder %v1666, %v1675
    %vm1975 = vcmp.eq.f32.partialorder %v1667, %v1674
    %vm1976 = vcmp.eq.f32.partialorder %v1667, %v1675
    %vm1977 = vcmp.eq.f32.partialorder %v1668, %v1674
    %vm1978 = vcmp.eq.f32.partialorder %v1668, %v1675
    %vm1979 = vcmp.eq.f32.partialorder %v1669, %v1674
    %vm1980 = vcmp.eq.f32.partialorder %v1669, %v1675
    %vm1981 = vcmp.eq.f32.partialorder %v1670, %v1674
    %vm1982 = vcmp.eq.f32.partialorder %v1670, %v1675
    %vm1983 = vcmp.eq.f32.partialorder %v1671, %v1674
    %vm1984 = vcmp.eq.f32.partialorder %v1671, %v1675
    %vm1985 = vmand %vm1697, %vm1841
    %vm1986 = vmand %vm1698, %vm1842
    %vm1987 = vmand %vm1699, %vm1843
    %vm1988 = vmand %vm1700, %vm1844
    %vm1989 = vmand %vm1701, %vm1845
    %vm1990 = vmand %vm1702, %vm1846
    %vm1991 = vmand %vm1703, %vm1847
    %vm1992 = vmand %vm1704, %vm1848
    %vm1993 = vmand %vm1705, %vm1849
    %vm1994 = vmand %vm1706, %vm1850
    %vm1995 = vmand %vm1707, %vm1851
    %vm1996 = vmand %vm1708, %vm1852
    %vm1997 = vmand %vm1709, %vm1853
    %vm1998 = vmand %vm1710, %vm1854
    %vm1999 = vmand %vm1711, %vm1855
    %vm2000 = vmand %vm1712, %vm1856
    %vm2001 = vmand %vm1713, %vm1857
    %vm2002 = vmand %vm1714, %vm1858
    %vm2003 = vmand %vm1715, %vm1859
    %vm2004 = vmand %vm1716, %vm1860
    %vm2005 = vmand %vm1717, %vm1861
    %vm2006 = vmand %vm1718, %vm1862
    %vm2007 = vmand %vm1719, %vm1863
    %vm2008 = vmand %vm1720, %vm1864
    %vm2009 = vmand %vm1721, %vm1865
    %vm2010 = vmand %vm1722, %vm1866
    %vm2011 = vmand %vm1723, %vm1867
    %vm2012 = vmand %vm1724, %vm1868
    %vm2013 = vmand %vm1725, %vm1869
    %vm2014 = vmand %vm1726, %vm1870
    %vm2015 = vmand %vm1727, %vm1871
    %vm2016 = vmand %vm1728, %vm1872
    %vm2017 = vmand %vm1729, %vm1873
    %vm2018 = vmand %vm1730, %vm1874
    %vm2019 = vmand %vm1731, %vm1875
    %vm2020 = vmand %vm1732, %vm1876
    %vm2021 = vmand %vm1733, %vm1877
    %vm2022 = vmand %vm1734, %vm1878
    %vm2023 = vmand %vm1735, %vm1879
    %vm2024 = vmand %vm1736, %vm1880
    %vm2025 = vmand %vm1737, %vm1881
    %vm2026 = vmand %vm1738, %vm1882
    %vm2027 = vmand %vm1739, %vm1883
    %vm2028 = vmand %vm1740, %vm1884
    %vm2029 = vmand %vm1741, %vm1885
    %vm2030 = vmand %vm1742, %vm1886
    %vm2031 = vmand %vm1743, %vm1887
    %vm2032 = vmand %vm1744, %vm1888
    %vm2033 = vmand %vm1745, %vm1889
    %vm2034 = vmand %vm1746, %vm1890
    %vm2035 = vmand %vm1747, %vm1891
    %vm2036 = vmand %vm1748, %vm1892
    %vm2037 = vmand %vm1749, %vm1893
    %vm2038 = vmand %vm1750, %vm1894
    %vm2039 = vmand %vm1751, %vm1895
    %vm2040 = vmand %vm1752, %vm1896
    %vm2041 = vmand %vm1753, %vm1897
    %vm2042 = vmand %vm1754, %vm1898
    %vm2043 = vmand %vm1755, %vm1899
    %vm2044 = vmand %vm1756, %vm1900
    %vm2045 = vmand %vm1757, %vm1901
    %vm2046 = vmand %vm1758, %vm1902
    %vm2047 = vmand %vm1759, %vm1903
    %vm2048 = vmand %vm1760, %vm1904
    %vm2049 = vmand %vm1761, %vm1905
    %vm2050 = vmand %vm1762, %vm1906
    %vm2051 = vmand %vm1763, %vm1907
    %vm2052 = vmand %vm1764, %vm1908
    %vm2053 = vmand %vm1765, %vm1909
    %vm2054 = vmand %vm1766, %vm1910
    %vm2055 = vmand %vm1767, %vm1911
    %vm2056 = vmand %vm1768, %vm1912
    %vm2057 = vmand %vm1769, %vm1913
    %vm2058 = vmand %vm1770, %vm1914
    %vm2059 = vmand %vm1771, %vm1915
    %vm2060 = vmand %vm1772, %vm1916
    %vm2061 = vmand %vm1773, %vm1917
    %vm2062 = vmand %vm1774, %vm1918
    %vm2063 = vmand %vm1775, %vm1919
    %vm2064 = vmand %vm1776, %vm1920
    %vm2065 = vmand %vm1777, %vm1921
    %vm2066 = vmand %vm1778, %vm1922
    %vm2067 = vmand %vm1779, %vm1923
    %vm2068 = vmand %vm1780, %vm1924
    %vm2069 = vmand %vm1781, %vm1925
    %vm2070 = vmand %vm1782, %vm1926
    %vm2071 = vmand %vm1783, %vm1927
    %vm2072 = vmand %vm1784, %vm1928
    %vm2073 = vmand %vm1785, %vm1929
    %vm2074 = vmand %vm1786, %vm1930
    %vm2075 = vmand %vm1787, %vm1931
    %vm2076 = vmand %vm1788, %vm1932
    %vm2077 = vmand %vm1789, %vm1933
    %vm2078 = vmand %vm1790, %vm1934
    %vm2079 = vmand %vm1791, %vm1935
    %vm2080 = vmand %vm1792, %vm1936
    %vm2081 = vmand %vm1793, %vm1937
    %vm2082 = vmand %vm1794, %vm1938
    %vm2083 = vmand %vm1795, %vm1939
    %vm2084 = vmand %vm1796, %vm1940
    %vm2085 = vmand %vm1797, %vm1941
    %vm2086 = vmand %vm1798, %vm1942
    %vm2087 = vmand %vm1799, %vm1943
    %vm2088 = vmand %vm1800, %vm1944
    %vm2089 = vmand %vm1801, %vm1945
    %vm2090 = vmand %vm1802, %vm1946
    %vm2091 = vmand %vm1803, %vm1947
    %vm2092 = vmand %vm1804, %vm1948
    %vm2093 = vmand %vm1805, %vm1949
    %vm2094 = vmand %vm1806, %vm1950
    %vm2095 = vmand %vm1807, %vm1951
    %vm2096 = vmand %vm1808, %vm1952
    %vm2097 = vmand %vm1809, %vm1953
    %vm2098 = vmand %vm1810, %vm1954
    %vm2099 = vmand %vm1811, %vm1955
    %vm2100 = vmand %vm1812, %vm1956
    %vm2101 = vmand %vm1813, %vm1957
    %vm2102 = vmand %vm1814, %vm1958
    %vm2103 = vmand %vm1815, %vm1959
    %vm2104 = vmand %vm1816, %vm1960
    %vm2105 = vmand %vm1817, %vm1961
    %vm2106 = vmand %vm1818, %vm1962
    %vm2107 = vmand %vm1819, %vm1963
    %vm2108 = vmand %vm1820, %vm1964
    %vm2109 = vmand %vm1821, %vm1965
    %vm2110 = vmand %vm1822, %vm1966
    %vm2111 = vmand %vm1823, %vm1967
    %vm2112 = vmand %vm1824, %vm1968
    %vm2113 = vmand %vm1825, %vm1969
    %vm2114 = vmand %vm1826, %vm1970
    %vm2115 = vmand %vm1827, %vm1971
    %vm2116 = vmand %vm1828, %vm1972
    %vm2117 = vmand %vm1829, %vm1973
    %vm2118 = vmand %vm1830, %vm1974
    %vm2119 = vmand %vm1831, %vm1975
    %vm2120 = vmand %vm1832, %vm1976
    %vm2121 = vmand %vm1833, %vm1977
    %vm2122 = vmand %vm1834, %vm1978
    %vm2123 = vmand %vm1835, %vm1979
    %vm2124 = vmand %vm1836, %vm1980
    %vm2125 = vmand %vm1837, %vm1981
    %vm2126 = vmand %vm1838, %vm1982
    %vm2127 = vmand %vm1839, %vm1983
    %vm2128 = vmand %vm1840, %vm1984
    %v2129 = vsel %vm1985, 1.0, 0.0
    %v2130 = vsel %vm1986, 1.0, 0.0
    %v2131 = vsel %vm1987, 1.0, 0.0
    %v2132 = vsel %vm1988, 1.0, 0.0
    %v2133 = vsel %vm1989, 1.0, 0.0
    %v2134 = vsel %vm1990, 1.0, 0.0
    %v2135 = vsel %vm1991, 1.0, 0.0
    %v2136 = vsel %vm1992, 1.0, 0.0
    %v2137 = vsel %vm1993, 1.0, 0.0
    %v2138 = vsel %vm1994, 1.0, 0.0
    %v2139 = vsel %vm1995, 1.0, 0.0
    %v2140 = vsel %vm1996, 1.0, 0.0
    %v2141 = vsel %vm1997, 1.0, 0.0
    %v2142 = vsel %vm1998, 1.0, 0.0
    %v2143 = vsel %vm1999, 1.0, 0.0
    %v2144 = vsel %vm2000, 1.0, 0.0
    %v2145 = vsel %vm2001, 1.0, 0.0
    %v2146 = vsel %vm2002, 1.0, 0.0
    %v2147 = vsel %vm2003, 1.0, 0.0
    %v2148 = vsel %vm2004, 1.0, 0.0
    %v2149 = vsel %vm2005, 1.0, 0.0
    %v2150 = vsel %vm2006, 1.0, 0.0
    %v2151 = vsel %vm2007, 1.0, 0.0
    %v2152 = vsel %vm2008, 1.0, 0.0
    %v2153 = vsel %vm2009, 1.0, 0.0
    %v2154 = vsel %vm2010, 1.0, 0.0
    %v2155 = vsel %vm2011, 1.0, 0.0
    %v2156 = vsel %vm2012, 1.0, 0.0
    %v2157 = vsel %vm2013, 1.0, 0.0
    %v2158 = vsel %vm2014, 1.0, 0.0
    %v2159 = vsel %vm2015, 1.0, 0.0
    %v2160 = vsel %vm2016, 1.0, 0.0
    %v2161 = vsel %vm2017, 1.0, 0.0
    %v2162 = vsel %vm2018, 1.0, 0.0
    %v2163 = vsel %vm2019, 1.0, 0.0
    %v2164 = vsel %vm2020, 1.0, 0.0
    %v2165 = vsel %vm2021, 1.0, 0.0
    %v2166 = vsel %vm2022, 1.0, 0.0
    %v2167 = vsel %vm2023, 1.0, 0.0
    %v2168 = vsel %vm2024, 1.0, 0.0
    %v2169 = vsel %vm2025, 1.0, 0.0
    %v2170 = vsel %vm2026, 1.0, 0.0
    %v2171 = vsel %vm2027, 1.0, 0.0
    %v2172 = vsel %vm2028, 1.0, 0.0
    %v2173 = vsel %vm2029, 1.0, 0.0
    %v2174 = vsel %vm2030, 1.0, 0.0
    %v2175 = vsel %vm2031, 1.0, 0.0
    %v2176 = vsel %vm2032, 1.0, 0.0
    %v2177 = vsel %vm2033, 1.0, 0.0
    %v2178 = vsel %vm2034, 1.0, 0.0
    %v2179 = vsel %vm2035, 1.0, 0.0
    %v2180 = vsel %vm2036, 1.0, 0.0
    %v2181 = vsel %vm2037, 1.0, 0.0
    %v2182 = vsel %vm2038, 1.0, 0.0
    %v2183 = vsel %vm2039, 1.0, 0.0
    %v2184 = vsel %vm2040, 1.0, 0.0
    %v2185 = vsel %vm2041, 1.0, 0.0
    %v2186 = vsel %vm2042, 1.0, 0.0
    %v2187 = vsel %vm2043, 1.0, 0.0
    %v2188 = vsel %vm2044, 1.0, 0.0
    %v2189 = vsel %vm2045, 1.0, 0.0
    %v2190 = vsel %vm2046, 1.0, 0.0
    %v2191 = vsel %vm2047, 1.0, 0.0
    %v2192 = vsel %vm2048, 1.0, 0.0
    %v2193 = vsel %vm2049, 1.0, 0.0
    %v2194 = vsel %vm2050, 1.0, 0.0
    %v2195 = vsel %vm2051, 1.0, 0.0
    %v2196 = vsel %vm2052, 1.0, 0.0
    %v2197 = vsel %vm2053, 1.0, 0.0
    %v2198 = vsel %vm2054, 1.0, 0.0
    %v2199 = vsel %vm2055, 1.0, 0.0
    %v2200 = vsel %vm2056, 1.0, 0.0
    %v2201 = vsel %vm2057, 1.0, 0.0
    %v2202 = vsel %vm2058, 1.0, 0.0
    %v2203 = vsel %vm2059, 1.0, 0.0
    %v2204 = vsel %vm2060, 1.0, 0.0
    %v2205 = vsel %vm2061, 1.0, 0.0
    %v2206 = vsel %vm2062, 1.0, 0.0
    %v2207 = vsel %vm2063, 1.0, 0.0
    %v2208 = vsel %vm2064, 1.0, 0.0
    %v2209 = vsel %vm2065, 1.0, 0.0
    %v2210 = vsel %vm2066, 1.0, 0.0
    %v2211 = vsel %vm2067, 1.0, 0.0
    %v2212 = vsel %vm2068, 1.0, 0.0
    %v2213 = vsel %vm2069, 1.0, 0.0
    %v2214 = vsel %vm2070, 1.0, 0.0
    %v2215 = vsel %vm2071, 1.0, 0.0
    %v2216 = vsel %vm2072, 1.0, 0.0
    %v2217 = vsel %vm2073, 1.0, 0.0
    %v2218 = vsel %vm2074, 1.0, 0.0
    %v2219 = vsel %vm2075, 1.0, 0.0
    %v2220 = vsel %vm2076, 1.0, 0.0
    %v2221 = vsel %vm2077, 1.0, 0.0
    %v2222 = vsel %vm2078, 1.0, 0.0
    %v2223 = vsel %vm2079, 1.0, 0.0
    %v2224 = vsel %vm2080, 1.0, 0.0
    %v2225 = vsel %vm2081, 1.0, 0.0
    %v2226 = vsel %vm2082, 1.0, 0.0
    %v2227 = vsel %vm2083, 1.0, 0.0
    %v2228 = vsel %vm2084, 1.0, 0.0
    %v2229 = vsel %vm2085, 1.0, 0.0
    %v2230 = vsel %vm2086, 1.0, 0.0
    %v2231 = vsel %vm2087, 1.0, 0.0
    %v2232 = vsel %vm2088, 1.0, 0.0
    %v2233 = vsel %vm2089, 1.0, 0.0
    %v2234 = vsel %vm2090, 1.0, 0.0
    %v2235 = vsel %vm2091, 1.0, 0.0
    %v2236 = vsel %vm2092, 1.0, 0.0
    %v2237 = vsel %vm2093, 1.0, 0.0
    %v2238 = vsel %vm2094, 1.0, 0.0
    %v2239 = vsel %vm2095, 1.0, 0.0
    %v2240 = vsel %vm2096, 1.0, 0.0
    %v2241 = vsel %vm2097, 1.0, 0.0
    %v2242 = vsel %vm2098, 1.0, 0.0
    %v2243 = vsel %vm2099, 1.0, 0.0
    %v2244 = vsel %vm2100, 1.0, 0.0
    %v2245 = vsel %vm2101, 1.0, 0.0
    %v2246 = vsel %vm2102, 1.0, 0.0
    %v2247 = vsel %vm2103, 1.0, 0.0
    %v2248 = vsel %vm2104, 1.0, 0.0
    %v2249 = vsel %vm2105, 1.0, 0.0
    %v2250 = vsel %vm2106, 1.0, 0.0
    %v2251 = vsel %vm2107, 1.0, 0.0
    %v2252 = vsel %vm2108, 1.0, 0.0
    %v2253 = vsel %vm2109, 1.0, 0.0
    %v2254 = vsel %vm2110, 1.0, 0.0
    %v2255 = vsel %vm2111, 1.0, 0.0
    %v2256 = vsel %vm2112, 1.0, 0.0
    %v2257 = vsel %vm2113, 1.0, 0.0
    %v2258 = vsel %vm2114, 1.0, 0.0
    %v2259 = vsel %vm2115, 1.0, 0.0
    %v2260 = vsel %vm2116, 1.0, 0.0
    %v2261 = vsel %vm2117, 1.0, 0.0
    %v2262 = vsel %vm2118, 1.0, 0.0
    %v2263 = vsel %vm2119, 1.0, 0.0
    %v2264 = vsel %vm2120, 1.0, 0.0
    %v2265 = vsel %vm2121, 1.0, 0.0
    %v2266 = vsel %vm2122, 1.0, 0.0
    %v2267 = vsel %vm2123, 1.0, 0.0
    %v2268 = vsel %vm2124, 1.0, 0.0
    %v2269 = vsel %vm2125, 1.0, 0.0
    %v2270 = vsel %vm2126, 1.0, 0.0
    %v2271 = vsel %vm2127, 1.0, 0.0
    %v2272 = vsel %vm2128, 1.0, 0.0
    %v2273 = vpack.c.bf16 %v2131, %v2129
    %v2274 = vpack.c.bf16 %v2132, %v2130
    %v2275 = vpack.c.bf16 %v2135, %v2133
    %v2276 = vpack.c.bf16 %v2136, %v2134
    %v2277 = vpack.c.bf16 %v2139, %v2137
    %v2278 = vpack.c.bf16 %v2140, %v2138
    %v2279 = vpack.c.bf16 %v2143, %v2141
    %v2280 = vpack.c.bf16 %v2144, %v2142
    %v2281 = vpack.c.bf16 %v2147, %v2145
    %v2282 = vpack.c.bf16 %v2148, %v2146
    %v2283 = vpack.c.bf16 %v2151, %v2149
    %v2284 = vpack.c.bf16 %v2152, %v2150
    %v2285 = vpack.c.bf16 %v2155, %v2153
    %v2286 = vpack.c.bf16 %v2156, %v2154
    %v2287 = vpack.c.bf16 %v2159, %v2157
    %v2288 = vpack.c.bf16 %v2160, %v2158
    %v2289 = vpack.c.bf16 %v2163, %v2161
    %v2290 = vpack.c.bf16 %v2164, %v2162
    %v2291 = vpack.c.bf16 %v2167, %v2165
    %v2292 = vpack.c.bf16 %v2168, %v2166
    %v2293 = vpack.c.bf16 %v2171, %v2169
    %v2294 = vpack.c.bf16 %v2172, %v2170
    %v2295 = vpack.c.bf16 %v2175, %v2173
    %v2296 = vpack.c.bf16 %v2176, %v2174
    %v2297 = vpack.c.bf16 %v2179, %v2177
    %v2298 = vpack.c.bf16 %v2180, %v2178
    %v2299 = vpack.c.bf16 %v2183, %v2181
    %v2300 = vpack.c.bf16 %v2184, %v2182
    %v2301 = vpack.c.bf16 %v2187, %v2185
    %v2302 = vpack.c.bf16 %v2188, %v2186
    %v2303 = vpack.c.bf16 %v2191, %v2189
    %v2304 = vpack.c.bf16 %v2192, %v2190
    %v2305 = vpack.c.bf16 %v2195, %v2193
    %v2306 = vpack.c.bf16 %v2196, %v2194
    %v2307 = vpack.c.bf16 %v2199, %v2197
    %v2308 = vpack.c.bf16 %v2200, %v2198
    %v2309 = vpack.c.bf16 %v2203, %v2201
    %v2310 = vpack.c.bf16 %v2204, %v2202
    %v2311 = vpack.c.bf16 %v2207, %v2205
    %v2312 = vpack.c.bf16 %v2208, %v2206
    %v2313 = vpack.c.bf16 %v2211, %v2209
    %v2314 = vpack.c.bf16 %v2212, %v2210
    %v2315 = vpack.c.bf16 %v2215, %v2213
    %v2316 = vpack.c.bf16 %v2216, %v2214
    %v2317 = vpack.c.bf16 %v2219, %v2217
    %v2318 = vpack.c.bf16 %v2220, %v2218
    %v2319 = vpack.c.bf16 %v2223, %v2221
    %v2320 = vpack.c.bf16 %v2224, %v2222
    %v2321 = vpack.c.bf16 %v2227, %v2225
    %v2322 = vpack.c.bf16 %v2228, %v2226
    %v2323 = vpack.c.bf16 %v2231, %v2229
    %v2324 = vpack.c.bf16 %v2232, %v2230
    %v2325 = vpack.c.bf16 %v2235, %v2233
    %v2326 = vpack.c.bf16 %v2236, %v2234
    %v2327 = vpack.c.bf16 %v2239, %v2237
    %v2328 = vpack.c.bf16 %v2240, %v2238
    %v2329 = vpack.c.bf16 %v2243, %v2241
    %v2330 = vpack.c.bf16 %v2244, %v2242
    %v2331 = vpack.c.bf16 %v2247, %v2245
    %v2332 = vpack.c.bf16 %v2248, %v2246
    %v2333 = vpack.c.bf16 %v2251, %v2249
    %v2334 = vpack.c.bf16 %v2252, %v2250
    %v2335 = vpack.c.bf16 %v2255, %v2253
    %v2336 = vpack.c.bf16 %v2256, %v2254
    %v2337 = vpack.c.bf16 %v2259, %v2257
    %v2338 = vpack.c.bf16 %v2260, %v2258
    %v2339 = vpack.c.bf16 %v2263, %v2261
    %v2340 = vpack.c.bf16 %v2264, %v2262
    %v2341 = vpack.c.bf16 %v2267, %v2265
    %v2342 = vpack.c.bf16 %v2268, %v2266
    %v2343 = vpack.c.bf16 %v2271, %v2269
    %v2344 = vpack.c.bf16 %v2272, %v2270
    %s2345 = ssub.f32 %s94, %s93
    %v2346 = vstv %s2345
    %v2347 = vmul.f32 %v2346, %v1681
    %v2348 = vmul.f32 %v2346, %v1682
    %v2349 = vmul.f32 %v2347, 0.015625
    %v2350 = vmul.f32 %v2348, 0.015625
    %v2351 = vstv %s93
    %v2352 = vadd.f32 %v2351, %v2349
    %v2353 = vadd.f32 %v2351, %v2350
    %v2354 = vfloor.f32 %v2352
    %v2355 = vfloor.f32 %v2353
    %v2356 = vmax.f32 %v2354, 0.0
    %v2357 = vmax.f32 %v2355, 0.0
    %v2358 = vmin.f32 %v2356, 191.0
    %v2359 = vmin.f32 %v2357, 191.0
    %vm2360 = vcmp.eq.f32.partialorder %v1456, %v2358
    %vm2361 = vcmp.eq.f32.partialorder %v1456, %v2359
    %vm2362 = vcmp.eq.f32.partialorder %v1457, %v2358
    %vm2363 = vcmp.eq.f32.partialorder %v1457, %v2359
    %vm2364 = vcmp.eq.f32.partialorder %v1458, %v2358
    %vm2365 = vcmp.eq.f32.partialorder %v1458, %v2359
    %vm2366 = vcmp.eq.f32.partialorder %v1459, %v2358
    %vm2367 = vcmp.eq.f32.partialorder %v1459, %v2359
    %vm2368 = vcmp.eq.f32.partialorder %v1460, %v2358
    %vm2369 = vcmp.eq.f32.partialorder %v1460, %v2359
    %vm2370 = vcmp.eq.f32.partialorder %v1461, %v2358
    %vm2371 = vcmp.eq.f32.partialorder %v1461, %v2359
    %vm2372 = vcmp.eq.f32.partialorder %v1462, %v2358
    %vm2373 = vcmp.eq.f32.partialorder %v1462, %v2359
    %vm2374 = vcmp.eq.f32.partialorder %v1463, %v2358
    %vm2375 = vcmp.eq.f32.partialorder %v1463, %v2359
    %vm2376 = vcmp.eq.f32.partialorder %v1464, %v2358
    %vm2377 = vcmp.eq.f32.partialorder %v1464, %v2359
    %vm2378 = vcmp.eq.f32.partialorder %v1465, %v2358
    %vm2379 = vcmp.eq.f32.partialorder %v1465, %v2359
    %vm2380 = vcmp.eq.f32.partialorder %v1466, %v2358
    %vm2381 = vcmp.eq.f32.partialorder %v1466, %v2359
    %vm2382 = vcmp.eq.f32.partialorder %v1467, %v2358
    %vm2383 = vcmp.eq.f32.partialorder %v1467, %v2359
    %vm2384 = vcmp.eq.f32.partialorder %v1468, %v2358
    %vm2385 = vcmp.eq.f32.partialorder %v1468, %v2359
    %vm2386 = vcmp.eq.f32.partialorder %v1469, %v2358
    %vm2387 = vcmp.eq.f32.partialorder %v1469, %v2359
    %vm2388 = vcmp.eq.f32.partialorder %v1470, %v2358
    %vm2389 = vcmp.eq.f32.partialorder %v1470, %v2359
    %vm2390 = vcmp.eq.f32.partialorder %v1471, %v2358
    %vm2391 = vcmp.eq.f32.partialorder %v1471, %v2359
    %vm2392 = vcmp.eq.f32.partialorder %v1472, %v2358
    %vm2393 = vcmp.eq.f32.partialorder %v1472, %v2359
    %vm2394 = vcmp.eq.f32.partialorder %v1473, %v2358
    %vm2395 = vcmp.eq.f32.partialorder %v1473, %v2359
    %vm2396 = vcmp.eq.f32.partialorder %v1474, %v2358
    %vm2397 = vcmp.eq.f32.partialorder %v1474, %v2359
    %vm2398 = vcmp.eq.f32.partialorder %v1475, %v2358
    %vm2399 = vcmp.eq.f32.partialorder %v1475, %v2359
    %vm2400 = vcmp.eq.f32.partialorder %v1476, %v2358
    %vm2401 = vcmp.eq.f32.partialorder %v1476, %v2359
    %vm2402 = vcmp.eq.f32.partialorder %v1477, %v2358
    %vm2403 = vcmp.eq.f32.partialorder %v1477, %v2359
    %vm2404 = vcmp.eq.f32.partialorder %v1478, %v2358
    %vm2405 = vcmp.eq.f32.partialorder %v1478, %v2359
    %vm2406 = vcmp.eq.f32.partialorder %v1479, %v2358
    %vm2407 = vcmp.eq.f32.partialorder %v1479, %v2359
    %vm2408 = vcmp.eq.f32.partialorder %v1480, %v2358
    %vm2409 = vcmp.eq.f32.partialorder %v1480, %v2359
    %vm2410 = vcmp.eq.f32.partialorder %v1481, %v2358
    %vm2411 = vcmp.eq.f32.partialorder %v1481, %v2359
    %vm2412 = vcmp.eq.f32.partialorder %v1482, %v2358
    %vm2413 = vcmp.eq.f32.partialorder %v1482, %v2359
    %vm2414 = vcmp.eq.f32.partialorder %v1483, %v2358
    %vm2415 = vcmp.eq.f32.partialorder %v1483, %v2359
    %vm2416 = vcmp.eq.f32.partialorder %v1484, %v2358
    %vm2417 = vcmp.eq.f32.partialorder %v1484, %v2359
    %vm2418 = vcmp.eq.f32.partialorder %v1485, %v2358
    %vm2419 = vcmp.eq.f32.partialorder %v1485, %v2359
    %vm2420 = vcmp.eq.f32.partialorder %v1486, %v2358
    %vm2421 = vcmp.eq.f32.partialorder %v1486, %v2359
    %vm2422 = vcmp.eq.f32.partialorder %v1487, %v2358
    %vm2423 = vcmp.eq.f32.partialorder %v1487, %v2359
    %vm2424 = vcmp.eq.f32.partialorder %v1488, %v2358
    %vm2425 = vcmp.eq.f32.partialorder %v1488, %v2359
    %vm2426 = vcmp.eq.f32.partialorder %v1489, %v2358
    %vm2427 = vcmp.eq.f32.partialorder %v1489, %v2359
    %vm2428 = vcmp.eq.f32.partialorder %v1490, %v2358
    %vm2429 = vcmp.eq.f32.partialorder %v1490, %v2359
    %vm2430 = vcmp.eq.f32.partialorder %v1491, %v2358
    %vm2431 = vcmp.eq.f32.partialorder %v1491, %v2359
    %vm2432 = vcmp.eq.f32.partialorder %v1492, %v2358
    %vm2433 = vcmp.eq.f32.partialorder %v1492, %v2359
    %vm2434 = vcmp.eq.f32.partialorder %v1493, %v2358
    %vm2435 = vcmp.eq.f32.partialorder %v1493, %v2359
    %vm2436 = vcmp.eq.f32.partialorder %v1494, %v2358
    %vm2437 = vcmp.eq.f32.partialorder %v1494, %v2359
    %vm2438 = vcmp.eq.f32.partialorder %v1495, %v2358
    %vm2439 = vcmp.eq.f32.partialorder %v1495, %v2359
    %vm2440 = vcmp.eq.f32.partialorder %v1496, %v2358
    %vm2441 = vcmp.eq.f32.partialorder %v1496, %v2359
    %vm2442 = vcmp.eq.f32.partialorder %v1497, %v2358
    %vm2443 = vcmp.eq.f32.partialorder %v1497, %v2359
    %vm2444 = vcmp.eq.f32.partialorder %v1498, %v2358
    %vm2445 = vcmp.eq.f32.partialorder %v1498, %v2359
    %vm2446 = vcmp.eq.f32.partialorder %v1499, %v2358
    %vm2447 = vcmp.eq.f32.partialorder %v1499, %v2359
    %vm2448 = vcmp.eq.f32.partialorder %v1500, %v2358
    %vm2449 = vcmp.eq.f32.partialorder %v1500, %v2359
    %vm2450 = vcmp.eq.f32.partialorder %v1501, %v2358
    %vm2451 = vcmp.eq.f32.partialorder %v1501, %v2359
    %vm2452 = vcmp.eq.f32.partialorder %v1502, %v2358
    %vm2453 = vcmp.eq.f32.partialorder %v1502, %v2359
    %vm2454 = vcmp.eq.f32.partialorder %v1503, %v2358
    %vm2455 = vcmp.eq.f32.partialorder %v1503, %v2359
    %vm2456 = vcmp.eq.f32.partialorder %v1504, %v2358
    %vm2457 = vcmp.eq.f32.partialorder %v1504, %v2359
    %vm2458 = vcmp.eq.f32.partialorder %v1505, %v2358
    %vm2459 = vcmp.eq.f32.partialorder %v1505, %v2359
    %vm2460 = vcmp.eq.f32.partialorder %v1506, %v2358
    %vm2461 = vcmp.eq.f32.partialorder %v1506, %v2359
    %vm2462 = vcmp.eq.f32.partialorder %v1507, %v2358
    %vm2463 = vcmp.eq.f32.partialorder %v1507, %v2359
    %vm2464 = vcmp.eq.f32.partialorder %v1508, %v2358
    %vm2465 = vcmp.eq.f32.partialorder %v1508, %v2359
    %vm2466 = vcmp.eq.f32.partialorder %v1509, %v2358
    %vm2467 = vcmp.eq.f32.partialorder %v1509, %v2359
    %vm2468 = vcmp.eq.f32.partialorder %v1510, %v2358
    %vm2469 = vcmp.eq.f32.partialorder %v1510, %v2359
    %vm2470 = vcmp.eq.f32.partialorder %v1511, %v2358
    %vm2471 = vcmp.eq.f32.partialorder %v1511, %v2359
    %vm2472 = vcmp.eq.f32.partialorder %v1512, %v2358
    %vm2473 = vcmp.eq.f32.partialorder %v1512, %v2359
    %vm2474 = vcmp.eq.f32.partialorder %v1513, %v2358
    %vm2475 = vcmp.eq.f32.partialorder %v1513, %v2359
    %vm2476 = vcmp.eq.f32.partialorder %v1514, %v2358
    %vm2477 = vcmp.eq.f32.partialorder %v1514, %v2359
    %vm2478 = vcmp.eq.f32.partialorder %v1515, %v2358
    %vm2479 = vcmp.eq.f32.partialorder %v1515, %v2359
    %vm2480 = vcmp.eq.f32.partialorder %v1516, %v2358
    %vm2481 = vcmp.eq.f32.partialorder %v1516, %v2359
    %vm2482 = vcmp.eq.f32.partialorder %v1517, %v2358
    %vm2483 = vcmp.eq.f32.partialorder %v1517, %v2359
    %vm2484 = vcmp.eq.f32.partialorder %v1518, %v2358
    %vm2485 = vcmp.eq.f32.partialorder %v1518, %v2359
    %vm2486 = vcmp.eq.f32.partialorder %v1519, %v2358
    %vm2487 = vcmp.eq.f32.partialorder %v1519, %v2359
    %vm2488 = vcmp.eq.f32.partialorder %v1520, %v2358
    %vm2489 = vcmp.eq.f32.partialorder %v1520, %v2359
    %vm2490 = vcmp.eq.f32.partialorder %v1521, %v2358
    %vm2491 = vcmp.eq.f32.partialorder %v1521, %v2359
    %vm2492 = vcmp.eq.f32.partialorder %v1522, %v2358
    %vm2493 = vcmp.eq.f32.partialorder %v1522, %v2359
    %vm2494 = vcmp.eq.f32.partialorder %v1523, %v2358
    %vm2495 = vcmp.eq.f32.partialorder %v1523, %v2359
    %vm2496 = vcmp.eq.f32.partialorder %v1524, %v2358
    %vm2497 = vcmp.eq.f32.partialorder %v1524, %v2359
    %vm2498 = vcmp.eq.f32.partialorder %v1525, %v2358
    %vm2499 = vcmp.eq.f32.partialorder %v1525, %v2359
    %vm2500 = vcmp.eq.f32.partialorder %v1526, %v2358
    %vm2501 = vcmp.eq.f32.partialorder %v1526, %v2359
    %vm2502 = vcmp.eq.f32.partialorder %v1527, %v2358
    %vm2503 = vcmp.eq.f32.partialorder %v1527, %v2359
    %vm2504 = vmand %vm2360, %vm1841
    %vm2505 = vmand %vm2361, %vm1842
    %vm2506 = vmand %vm2362, %vm1843
    %vm2507 = vmand %vm2363, %vm1844
    %vm2508 = vmand %vm2364, %vm1845
    %vm2509 = vmand %vm2365, %vm1846
    %vm2510 = vmand %vm2366, %vm1847
    %vm2511 = vmand %vm2367, %vm1848
    %vm2512 = vmand %vm2368, %vm1849
    %vm2513 = vmand %vm2369, %vm1850
    %vm2514 = vmand %vm2370, %vm1851
    %vm2515 = vmand %vm2371, %vm1852
    %vm2516 = vmand %vm2372, %vm1853
    %vm2517 = vmand %vm2373, %vm1854
    %vm2518 = vmand %vm2374, %vm1855
    %vm2519 = vmand %vm2375, %vm1856
    %vm2520 = vmand %vm2376, %vm1857
    %vm2521 = vmand %vm2377, %vm1858
    %vm2522 = vmand %vm2378, %vm1859
    %vm2523 = vmand %vm2379, %vm1860
    %vm2524 = vmand %vm2380, %vm1861
    %vm2525 = vmand %vm2381, %vm1862
    %vm2526 = vmand %vm2382, %vm1863
    %vm2527 = vmand %vm2383, %vm1864
    %vm2528 = vmand %vm2384, %vm1865
    %vm2529 = vmand %vm2385, %vm1866
    %vm2530 = vmand %vm2386, %vm1867
    %vm2531 = vmand %vm2387, %vm1868
    %vm2532 = vmand %vm2388, %vm1869
    %vm2533 = vmand %vm2389, %vm1870
    %vm2534 = vmand %vm2390, %vm1871
    %vm2535 = vmand %vm2391, %vm1872
    %vm2536 = vmand %vm2392, %vm1873
    %vm2537 = vmand %vm2393, %vm1874
    %vm2538 = vmand %vm2394, %vm1875
    %vm2539 = vmand %vm2395, %vm1876
    %vm2540 = vmand %vm2396, %vm1877
    %vm2541 = vmand %vm2397, %vm1878
    %vm2542 = vmand %vm2398, %vm1879
    %vm2543 = vmand %vm2399, %vm1880
    %vm2544 = vmand %vm2400, %vm1881
    %vm2545 = vmand %vm2401, %vm1882
    %vm2546 = vmand %vm2402, %vm1883
    %vm2547 = vmand %vm2403, %vm1884
    %vm2548 = vmand %vm2404, %vm1885
    %vm2549 = vmand %vm2405, %vm1886
    %vm2550 = vmand %vm2406, %vm1887
    %vm2551 = vmand %vm2407, %vm1888
    %vm2552 = vmand %vm2408, %vm1889
    %vm2553 = vmand %vm2409, %vm1890
    %vm2554 = vmand %vm2410, %vm1891
    %vm2555 = vmand %vm2411, %vm1892
    %vm2556 = vmand %vm2412, %vm1893
    %vm2557 = vmand %vm2413, %vm1894
    %vm2558 = vmand %vm2414, %vm1895
    %vm2559 = vmand %vm2415, %vm1896
    %vm2560 = vmand %vm2416, %vm1897
    %vm2561 = vmand %vm2417, %vm1898
    %vm2562 = vmand %vm2418, %vm1899
    %vm2563 = vmand %vm2419, %vm1900
    %vm2564 = vmand %vm2420, %vm1901
    %vm2565 = vmand %vm2421, %vm1902
    %vm2566 = vmand %vm2422, %vm1903
    %vm2567 = vmand %vm2423, %vm1904
    %vm2568 = vmand %vm2424, %vm1905
    %vm2569 = vmand %vm2425, %vm1906
    %vm2570 = vmand %vm2426, %vm1907
    %vm2571 = vmand %vm2427, %vm1908
    %vm2572 = vmand %vm2428, %vm1909
    %vm2573 = vmand %vm2429, %vm1910
    %vm2574 = vmand %vm2430, %vm1911
    %vm2575 = vmand %vm2431, %vm1912
    %vm2576 = vmand %vm2432, %vm1913
    %vm2577 = vmand %vm2433, %vm1914
    %vm2578 = vmand %vm2434, %vm1915
    %vm2579 = vmand %vm2435, %vm1916
    %vm2580 = vmand %vm2436, %vm1917
    %vm2581 = vmand %vm2437, %vm1918
    %vm2582 = vmand %vm2438, %vm1919
    %vm2583 = vmand %vm2439, %vm1920
    %vm2584 = vmand %vm2440, %vm1921
    %vm2585 = vmand %vm2441, %vm1922
    %vm2586 = vmand %vm2442, %vm1923
    %vm2587 = vmand %vm2443, %vm1924
    %vm2588 = vmand %vm2444, %vm1925
    %vm2589 = vmand %vm2445, %vm1926
    %vm2590 = vmand %vm2446, %vm1927
    %vm2591 = vmand %vm2447, %vm1928
    %vm2592 = vmand %vm2448, %vm1929
    %vm2593 = vmand %vm2449, %vm1930
    %vm2594 = vmand %vm2450, %vm1931
    %vm2595 = vmand %vm2451, %vm1932
    %vm2596 = vmand %vm2452, %vm1933
    %vm2597 = vmand %vm2453, %vm1934
    %vm2598 = vmand %vm2454, %vm1935
    %vm2599 = vmand %vm2455, %vm1936
    %vm2600 = vmand %vm2456, %vm1937
    %vm2601 = vmand %vm2457, %vm1938
    %vm2602 = vmand %vm2458, %vm1939
    %vm2603 = vmand %vm2459, %vm1940
    %vm2604 = vmand %vm2460, %vm1941
    %vm2605 = vmand %vm2461, %vm1942
    %vm2606 = vmand %vm2462, %vm1943
    %vm2607 = vmand %vm2463, %vm1944
    %vm2608 = vmand %vm2464, %vm1945
    %vm2609 = vmand %vm2465, %vm1946
    %vm2610 = vmand %vm2466, %vm1947
    %vm2611 = vmand %vm2467, %vm1948
    %vm2612 = vmand %vm2468, %vm1949
    %vm2613 = vmand %vm2469, %vm1950
    %vm2614 = vmand %vm2470, %vm1951
    %vm2615 = vmand %vm2471, %vm1952
    %vm2616 = vmand %vm2472, %vm1953
    %vm2617 = vmand %vm2473, %vm1954
    %vm2618 = vmand %vm2474, %vm1955
    %vm2619 = vmand %vm2475, %vm1956
    %vm2620 = vmand %vm2476, %vm1957
    %vm2621 = vmand %vm2477, %vm1958
    %vm2622 = vmand %vm2478, %vm1959
    %vm2623 = vmand %vm2479, %vm1960
    %vm2624 = vmand %vm2480, %vm1961
    %vm2625 = vmand %vm2481, %vm1962
    %vm2626 = vmand %vm2482, %vm1963
    %vm2627 = vmand %vm2483, %vm1964
    %vm2628 = vmand %vm2484, %vm1965
    %vm2629 = vmand %vm2485, %vm1966
    %vm2630 = vmand %vm2486, %vm1967
    %vm2631 = vmand %vm2487, %vm1968
    %vm2632 = vmand %vm2488, %vm1969
    %vm2633 = vmand %vm2489, %vm1970
    %vm2634 = vmand %vm2490, %vm1971
    %vm2635 = vmand %vm2491, %vm1972
    %vm2636 = vmand %vm2492, %vm1973
    %vm2637 = vmand %vm2493, %vm1974
    %vm2638 = vmand %vm2494, %vm1975
    %vm2639 = vmand %vm2495, %vm1976
    %vm2640 = vmand %vm2496, %vm1977
    %vm2641 = vmand %vm2497, %vm1978
    %vm2642 = vmand %vm2498, %vm1979
    %vm2643 = vmand %vm2499, %vm1980
    %vm2644 = vmand %vm2500, %vm1981
    %vm2645 = vmand %vm2501, %vm1982
    %vm2646 = vmand %vm2502, %vm1983
    %vm2647 = vmand %vm2503, %vm1984
    %v2648 = vsel %vm2504, 1.0, 0.0
    %v2649 = vsel %vm2505, 1.0, 0.0
    %v2650 = vsel %vm2506, 1.0, 0.0
    %v2651 = vsel %vm2507, 1.0, 0.0
    %v2652 = vsel %vm2508, 1.0, 0.0
    %v2653 = vsel %vm2509, 1.0, 0.0
    %v2654 = vsel %vm2510, 1.0, 0.0
    %v2655 = vsel %vm2511, 1.0, 0.0
    %v2656 = vsel %vm2512, 1.0, 0.0
    %v2657 = vsel %vm2513, 1.0, 0.0
    %v2658 = vsel %vm2514, 1.0, 0.0
    %v2659 = vsel %vm2515, 1.0, 0.0
    %v2660 = vsel %vm2516, 1.0, 0.0
    %v2661 = vsel %vm2517, 1.0, 0.0
    %v2662 = vsel %vm2518, 1.0, 0.0
    %v2663 = vsel %vm2519, 1.0, 0.0
    %v2664 = vsel %vm2520, 1.0, 0.0
    %v2665 = vsel %vm2521, 1.0, 0.0
    %v2666 = vsel %vm2522, 1.0, 0.0
    %v2667 = vsel %vm2523, 1.0, 0.0
    %v2668 = vsel %vm2524, 1.0, 0.0
    %v2669 = vsel %vm2525, 1.0, 0.0
    %v2670 = vsel %vm2526, 1.0, 0.0
    %v2671 = vsel %vm2527, 1.0, 0.0
    %v2672 = vsel %vm2528, 1.0, 0.0
    %v2673 = vsel %vm2529, 1.0, 0.0
    %v2674 = vsel %vm2530, 1.0, 0.0
    %v2675 = vsel %vm2531, 1.0, 0.0
    %v2676 = vsel %vm2532, 1.0, 0.0
    %v2677 = vsel %vm2533, 1.0, 0.0
    %v2678 = vsel %vm2534, 1.0, 0.0
    %v2679 = vsel %vm2535, 1.0, 0.0
    %v2680 = vsel %vm2536, 1.0, 0.0
    %v2681 = vsel %vm2537, 1.0, 0.0
    %v2682 = vsel %vm2538, 1.0, 0.0
    %v2683 = vsel %vm2539, 1.0, 0.0
    %v2684 = vsel %vm2540, 1.0, 0.0
    %v2685 = vsel %vm2541, 1.0, 0.0
    %v2686 = vsel %vm2542, 1.0, 0.0
    %v2687 = vsel %vm2543, 1.0, 0.0
    %v2688 = vsel %vm2544, 1.0, 0.0
    %v2689 = vsel %vm2545, 1.0, 0.0
    %v2690 = vsel %vm2546, 1.0, 0.0
    %v2691 = vsel %vm2547, 1.0, 0.0
    %v2692 = vsel %vm2548, 1.0, 0.0
    %v2693 = vsel %vm2549, 1.0, 0.0
    %v2694 = vsel %vm2550, 1.0, 0.0
    %v2695 = vsel %vm2551, 1.0, 0.0
    %v2696 = vsel %vm2552, 1.0, 0.0
    %v2697 = vsel %vm2553, 1.0, 0.0
    %v2698 = vsel %vm2554, 1.0, 0.0
    %v2699 = vsel %vm2555, 1.0, 0.0
    %v2700 = vsel %vm2556, 1.0, 0.0
    %v2701 = vsel %vm2557, 1.0, 0.0
    %v2702 = vsel %vm2558, 1.0, 0.0
    %v2703 = vsel %vm2559, 1.0, 0.0
    %v2704 = vsel %vm2560, 1.0, 0.0
    %v2705 = vsel %vm2561, 1.0, 0.0
    %v2706 = vsel %vm2562, 1.0, 0.0
    %v2707 = vsel %vm2563, 1.0, 0.0
    %v2708 = vsel %vm2564, 1.0, 0.0
    %v2709 = vsel %vm2565, 1.0, 0.0
    %v2710 = vsel %vm2566, 1.0, 0.0
    %v2711 = vsel %vm2567, 1.0, 0.0
    %v2712 = vsel %vm2568, 1.0, 0.0
    %v2713 = vsel %vm2569, 1.0, 0.0
    %v2714 = vsel %vm2570, 1.0, 0.0
    %v2715 = vsel %vm2571, 1.0, 0.0
    %v2716 = vsel %vm2572, 1.0, 0.0
    %v2717 = vsel %vm2573, 1.0, 0.0
    %v2718 = vsel %vm2574, 1.0, 0.0
    %v2719 = vsel %vm2575, 1.0, 0.0
    %v2720 = vsel %vm2576, 1.0, 0.0
    %v2721 = vsel %vm2577, 1.0, 0.0
    %v2722 = vsel %vm2578, 1.0, 0.0
    %v2723 = vsel %vm2579, 1.0, 0.0
    %v2724 = vsel %vm2580, 1.0, 0.0
    %v2725 = vsel %vm2581, 1.0, 0.0
    %v2726 = vsel %vm2582, 1.0, 0.0
    %v2727 = vsel %vm2583, 1.0, 0.0
    %v2728 = vsel %vm2584, 1.0, 0.0
    %v2729 = vsel %vm2585, 1.0, 0.0
    %v2730 = vsel %vm2586, 1.0, 0.0
    %v2731 = vsel %vm2587, 1.0, 0.0
    %v2732 = vsel %vm2588, 1.0, 0.0
    %v2733 = vsel %vm2589, 1.0, 0.0
    %v2734 = vsel %vm2590, 1.0, 0.0
    %v2735 = vsel %vm2591, 1.0, 0.0
    %v2736 = vsel %vm2592, 1.0, 0.0
    %v2737 = vsel %vm2593, 1.0, 0.0
    %v2738 = vsel %vm2594, 1.0, 0.0
    %v2739 = vsel %vm2595, 1.0, 0.0
    %v2740 = vsel %vm2596, 1.0, 0.0
    %v2741 = vsel %vm2597, 1.0, 0.0
    %v2742 = vsel %vm2598, 1.0, 0.0
    %v2743 = vsel %vm2599, 1.0, 0.0
    %v2744 = vsel %vm2600, 1.0, 0.0
    %v2745 = vsel %vm2601, 1.0, 0.0
    %v2746 = vsel %vm2602, 1.0, 0.0
    %v2747 = vsel %vm2603, 1.0, 0.0
    %v2748 = vsel %vm2604, 1.0, 0.0
    %v2749 = vsel %vm2605, 1.0, 0.0
    %v2750 = vsel %vm2606, 1.0, 0.0
    %v2751 = vsel %vm2607, 1.0, 0.0
    %v2752 = vsel %vm2608, 1.0, 0.0
    %v2753 = vsel %vm2609, 1.0, 0.0
    %v2754 = vsel %vm2610, 1.0, 0.0
    %v2755 = vsel %vm2611, 1.0, 0.0
    %v2756 = vsel %vm2612, 1.0, 0.0
    %v2757 = vsel %vm2613, 1.0, 0.0
    %v2758 = vsel %vm2614, 1.0, 0.0
    %v2759 = vsel %vm2615, 1.0, 0.0
    %v2760 = vsel %vm2616, 1.0, 0.0
    %v2761 = vsel %vm2617, 1.0, 0.0
    %v2762 = vsel %vm2618, 1.0, 0.0
    %v2763 = vsel %vm2619, 1.0, 0.0
    %v2764 = vsel %vm2620, 1.0, 0.0
    %v2765 = vsel %vm2621, 1.0, 0.0
    %v2766 = vsel %vm2622, 1.0, 0.0
    %v2767 = vsel %vm2623, 1.0, 0.0
    %v2768 = vsel %vm2624, 1.0, 0.0
    %v2769 = vsel %vm2625, 1.0, 0.0
    %v2770 = vsel %vm2626, 1.0, 0.0
    %v2771 = vsel %vm2627, 1.0, 0.0
    %v2772 = vsel %vm2628, 1.0, 0.0
    %v2773 = vsel %vm2629, 1.0, 0.0
    %v2774 = vsel %vm2630, 1.0, 0.0
    %v2775 = vsel %vm2631, 1.0, 0.0
    %v2776 = vsel %vm2632, 1.0, 0.0
    %v2777 = vsel %vm2633, 1.0, 0.0
    %v2778 = vsel %vm2634, 1.0, 0.0
    %v2779 = vsel %vm2635, 1.0, 0.0
    %v2780 = vsel %vm2636, 1.0, 0.0
    %v2781 = vsel %vm2637, 1.0, 0.0
    %v2782 = vsel %vm2638, 1.0, 0.0
    %v2783 = vsel %vm2639, 1.0, 0.0
    %v2784 = vsel %vm2640, 1.0, 0.0
    %v2785 = vsel %vm2641, 1.0, 0.0
    %v2786 = vsel %vm2642, 1.0, 0.0
    %v2787 = vsel %vm2643, 1.0, 0.0
    %v2788 = vsel %vm2644, 1.0, 0.0
    %v2789 = vsel %vm2645, 1.0, 0.0
    %v2790 = vsel %vm2646, 1.0, 0.0
    %v2791 = vsel %vm2647, 1.0, 0.0
    %v2792 = vpack.c.bf16 %v2650, %v2648
    %v2793 = vpack.c.bf16 %v2651, %v2649
    %v2794 = vpack.c.bf16 %v2654, %v2652
    %v2795 = vpack.c.bf16 %v2655, %v2653
    %v2796 = vpack.c.bf16 %v2658, %v2656
    %v2797 = vpack.c.bf16 %v2659, %v2657
    %v2798 = vpack.c.bf16 %v2662, %v2660
    %v2799 = vpack.c.bf16 %v2663, %v2661
    %v2800 = vpack.c.bf16 %v2666, %v2664
    %v2801 = vpack.c.bf16 %v2667, %v2665
    %v2802 = vpack.c.bf16 %v2670, %v2668
    %v2803 = vpack.c.bf16 %v2671, %v2669
    %v2804 = vpack.c.bf16 %v2674, %v2672
    %v2805 = vpack.c.bf16 %v2675, %v2673
    %v2806 = vpack.c.bf16 %v2678, %v2676
    %v2807 = vpack.c.bf16 %v2679, %v2677
    %v2808 = vpack.c.bf16 %v2682, %v2680
    %v2809 = vpack.c.bf16 %v2683, %v2681
    %v2810 = vpack.c.bf16 %v2686, %v2684
    %v2811 = vpack.c.bf16 %v2687, %v2685
    %v2812 = vpack.c.bf16 %v2690, %v2688
    %v2813 = vpack.c.bf16 %v2691, %v2689
    %v2814 = vpack.c.bf16 %v2694, %v2692
    %v2815 = vpack.c.bf16 %v2695, %v2693
    %v2816 = vpack.c.bf16 %v2698, %v2696
    %v2817 = vpack.c.bf16 %v2699, %v2697
    %v2818 = vpack.c.bf16 %v2702, %v2700
    %v2819 = vpack.c.bf16 %v2703, %v2701
    %v2820 = vpack.c.bf16 %v2706, %v2704
    %v2821 = vpack.c.bf16 %v2707, %v2705
    %v2822 = vpack.c.bf16 %v2710, %v2708
    %v2823 = vpack.c.bf16 %v2711, %v2709
    %v2824 = vpack.c.bf16 %v2714, %v2712
    %v2825 = vpack.c.bf16 %v2715, %v2713
    %v2826 = vpack.c.bf16 %v2718, %v2716
    %v2827 = vpack.c.bf16 %v2719, %v2717
    %v2828 = vpack.c.bf16 %v2722, %v2720
    %v2829 = vpack.c.bf16 %v2723, %v2721
    %v2830 = vpack.c.bf16 %v2726, %v2724
    %v2831 = vpack.c.bf16 %v2727, %v2725
    %v2832 = vpack.c.bf16 %v2730, %v2728
    %v2833 = vpack.c.bf16 %v2731, %v2729
    %v2834 = vpack.c.bf16 %v2734, %v2732
    %v2835 = vpack.c.bf16 %v2735, %v2733
    %v2836 = vpack.c.bf16 %v2738, %v2736
    %v2837 = vpack.c.bf16 %v2739, %v2737
    %v2838 = vpack.c.bf16 %v2742, %v2740
    %v2839 = vpack.c.bf16 %v2743, %v2741
    %v2840 = vpack.c.bf16 %v2746, %v2744
    %v2841 = vpack.c.bf16 %v2747, %v2745
    %v2842 = vpack.c.bf16 %v2750, %v2748
    %v2843 = vpack.c.bf16 %v2751, %v2749
    %v2844 = vpack.c.bf16 %v2754, %v2752
    %v2845 = vpack.c.bf16 %v2755, %v2753
    %v2846 = vpack.c.bf16 %v2758, %v2756
    %v2847 = vpack.c.bf16 %v2759, %v2757
    %v2848 = vpack.c.bf16 %v2762, %v2760
    %v2849 = vpack.c.bf16 %v2763, %v2761
    %v2850 = vpack.c.bf16 %v2766, %v2764
    %v2851 = vpack.c.bf16 %v2767, %v2765
    %v2852 = vpack.c.bf16 %v2770, %v2768
    %v2853 = vpack.c.bf16 %v2771, %v2769
    %v2854 = vpack.c.bf16 %v2774, %v2772
    %v2855 = vpack.c.bf16 %v2775, %v2773
    %v2856 = vpack.c.bf16 %v2778, %v2776
    %v2857 = vpack.c.bf16 %v2779, %v2777
    %v2858 = vpack.c.bf16 %v2782, %v2780
    %v2859 = vpack.c.bf16 %v2783, %v2781
    %v2860 = vpack.c.bf16 %v2786, %v2784
    %v2861 = vpack.c.bf16 %v2787, %v2785
    %v2862 = vpack.c.bf16 %v2790, %v2788
    %v2863 = vpack.c.bf16 %v2791, %v2789
    %v2865 = vsel %vm812, %v1164, 0
    %v2868 = vsel %vm812, %v1169, 0
    %v2871 = vsel %vm812, %v1174, 0
    %v2874 = vsel %vm812, %v1179, 0
    %2876 = vmatprep.subr.bf16.mxu0 %v2274
    %2877 = vmatpush1.bf16.msra.mxu0 %v2273
    %2878 = vmatprep.subr.bf16.mxu0 %v2276
    %2879 = vmatpush1.bf16.msra.mxu0 %v2275
    %2880 = vmatprep.subr.bf16.mxu0 %v2278
    %2881 = vmatpush1.bf16.msra.mxu0 %v2277
    %2882 = vmatprep.subr.bf16.mxu0 %v2280
    %2883 = vmatpush1.bf16.msra.mxu0 %v2279
    %2884 = vmatprep.subr.bf16.mxu0 %v2282
    %2885 = vmatpush1.bf16.msra.mxu0 %v2281
    %2886 = vmatprep.subr.bf16.mxu0 %v2284
    %2887 = vmatpush1.bf16.msra.mxu0 %v2283
    %2888 = vmatprep.subr.bf16.mxu0 %v2286
    %2889 = vmatpush1.bf16.msra.mxu0 %v2285
    %2890 = vmatprep.subr.bf16.mxu0 %v2288
    %2891 = vmatpush1.bf16.msra.mxu0 %v2287
    %2892 = vmatprep.subr.bf16.mxu0 %v2290
    %2893 = vmatpush1.bf16.msra.mxu0 %v2289
    %2894 = vmatprep.subr.bf16.mxu0 %v2292
    %2895 = vmatpush1.bf16.msra.mxu0 %v2291
    %2896 = vmatprep.subr.bf16.mxu0 %v2294
    %2897 = vmatpush1.bf16.msra.mxu0 %v2293
    %2898 = vmatprep.subr.bf16.mxu0 %v2296
    %2899 = vmatpush1.bf16.msra.mxu0 %v2295
    %2900 = vmatprep.subr.bf16.mxu0 %v2298
    %2901 = vmatpush1.bf16.msra.mxu0 %v2297
    %2902 = vmatprep.subr.bf16.mxu0 %v2300
    %2903 = vmatpush1.bf16.msra.mxu0 %v2299
    %2904 = vmatprep.subr.bf16.mxu0 %v2302
    %2905 = vmatpush1.bf16.msra.mxu0 %v2301
    %2906 = vmatprep.subr.bf16.mxu0 %v2304
    %2907 = vmatpush1.bf16.msra.mxu0 %v2303
    %2908 = vmatprep.mubr.bf16.mxu0 %v1161
    %2909 = vmatmul.mubr.bf16.gmra.mrb[0].mxu0 %v1160
    %v2910 = vpop.f32.mrb[0].mxu0
    %v2911 = vadd.f32 0.0, %v2910
    %v2912 = vpop.f32.mrb[0].mxu0
    %v2913 = vadd.f32 0.0, %v2912
    %v2914 = vpop.f32.mrb[0].mxu0
    %v2915 = vadd.f32 0.0, %v2914
    %v2916 = vpop.f32.mrb[0].mxu0
    %v2917 = vadd.f32 0.0, %v2916
    %2918 = vmatprep.mubr.bf16.mxu0 %v1166
    %2919 = vmatmul.mubr.bf16.gmra.mrb[0].mxu0 %v1165
    %v2920 = vpop.f32.mrb[0].mxu0
    %v2921 = vadd.f32 0.0, %v2920
    %v2922 = vpop.f32.mrb[0].mxu0
    %v2923 = vadd.f32 0.0, %v2922
    %v2924 = vpop.f32.mrb[0].mxu0
    %v2925 = vadd.f32 0.0, %v2924
    %v2926 = vpop.f32.mrb[0].mxu0
    %v2927 = vadd.f32 0.0, %v2926
    %2928 = vmatprep.mubr.bf16.mxu0 %v1171
    %2929 = vmatmul.mubr.bf16.gmra.mrb[0].mxu0 %v1170
    %v2930 = vpop.f32.mrb[0].mxu0
    %v2931 = vadd.f32 0.0, %v2930
    %v2932 = vpop.f32.mrb[0].mxu0
    %v2933 = vadd.f32 0.0, %v2932
    %v2934 = vpop.f32.mrb[0].mxu0
    %v2935 = vadd.f32 0.0, %v2934
    %v2936 = vpop.f32.mrb[0].mxu0
    %v2937 = vadd.f32 0.0, %v2936
    %2938 = vmatprep.mubr.bf16.mxu0 %v1176
    %2939 = vmatmul.mubr.bf16.gmra.mrb[0].mxu0 %v1175
    %v2940 = vpop.f32.mrb[0].mxu0
    %v2941 = vadd.f32 0.0, %v2940
    %v2942 = vpop.f32.mrb[0].mxu0
    %v2943 = vadd.f32 0.0, %v2942
    %v2944 = vpop.f32.mrb[0].mxu0
    %v2945 = vadd.f32 0.0, %v2944
    %v2946 = vpop.f32.mrb[0].mxu0
    %v2947 = vadd.f32 0.0, %v2946
    %2948 = vdwg.mxu0
    %2949 = vmatprep.subr.bf16.mxu0 %v2306
    %2950 = vmatpush1.bf16.msra.mxu0 %v2305
    %2951 = vmatprep.subr.bf16.mxu0 %v2308
    %2952 = vmatpush1.bf16.msra.mxu0 %v2307
    %2953 = vmatprep.subr.bf16.mxu0 %v2310
    %2954 = vmatpush1.bf16.msra.mxu0 %v2309
    %2955 = vmatprep.subr.bf16.mxu0 %v2312
    %2956 = vmatpush1.bf16.msra.mxu0 %v2311
    %2957 = vmatprep.subr.bf16.mxu0 %v2314
    %2958 = vmatpush1.bf16.msra.mxu0 %v2313
    %2959 = vmatprep.subr.bf16.mxu0 %v2316
    %2960 = vmatpush1.bf16.msra.mxu0 %v2315
    %2961 = vmatprep.subr.bf16.mxu0 %v2318
    %2962 = vmatpush1.bf16.msra.mxu0 %v2317
    %2963 = vmatprep.subr.bf16.mxu0 %v2320
    %2964 = vmatpush1.bf16.msra.mxu0 %v2319
    %2965 = vmatprep.subr.bf16.mxu0 %v2322
    %2966 = vmatpush1.bf16.msra.mxu0 %v2321
    %2967 = vmatprep.subr.bf16.mxu0 %v2324
    %2968 = vmatpush1.bf16.msra.mxu0 %v2323
    %2969 = vmatprep.subr.bf16.mxu0 %v2326
    %2970 = vmatpush1.bf16.msra.mxu0 %v2325
    %2971 = vmatprep.subr.bf16.mxu0 %v2328
    %2972 = vmatpush1.bf16.msra.mxu0 %v2327
    %2973 = vmatprep.subr.bf16.mxu0 %v2330
    %2974 = vmatpush1.bf16.msra.mxu0 %v2329
    %2975 = vmatprep.subr.bf16.mxu0 %v2332
    %2976 = vmatpush1.bf16.msra.mxu0 %v2331
    %2977 = vmatprep.subr.bf16.mxu0 %v2334
    %2978 = vmatpush1.bf16.msra.mxu0 %v2333
    %2979 = vmatprep.subr.bf16.mxu0 %v2336
    %2980 = vmatpush1.bf16.msra.mxu0 %v2335
    %2981 = vmatprep.mubr.bf16.mxu0 %v1163
    %2982 = vmatmul.mubr.bf16.gmra.mrb[0].mxu0 %v1162
    %v2983 = vpop.f32.mrb[0].mxu0
    %v2984 = vadd.f32 %v2911, %v2983
    %v2985 = vpop.f32.mrb[0].mxu0
    %v2986 = vadd.f32 %v2913, %v2985
    %v2987 = vpop.f32.mrb[0].mxu0
    %v2988 = vadd.f32 %v2915, %v2987
    %v2989 = vpop.f32.mrb[0].mxu0
    %v2990 = vadd.f32 %v2917, %v2989
    %2991 = vmatprep.mubr.bf16.mxu0 %v1168
    %2992 = vmatmul.mubr.bf16.gmra.mrb[0].mxu0 %v1167
    %v2993 = vpop.f32.mrb[0].mxu0
    %v2994 = vadd.f32 %v2921, %v2993
    %v2995 = vpop.f32.mrb[0].mxu0
    %v2996 = vadd.f32 %v2923, %v2995
    %v2997 = vpop.f32.mrb[0].mxu0
    %v2998 = vadd.f32 %v2925, %v2997
    %v2999 = vpop.f32.mrb[0].mxu0
    %v3000 = vadd.f32 %v2927, %v2999
    %3001 = vmatprep.mubr.bf16.mxu0 %v1173
    %3002 = vmatmul.mubr.bf16.gmra.mrb[0].mxu0 %v1172
    %v3003 = vpop.f32.mrb[0].mxu0
    %v3004 = vadd.f32 %v2931, %v3003
    %v3005 = vpop.f32.mrb[0].mxu0
    %v3006 = vadd.f32 %v2933, %v3005
    %v3007 = vpop.f32.mrb[0].mxu0
    %v3008 = vadd.f32 %v2935, %v3007
    %v3009 = vpop.f32.mrb[0].mxu0
    %v3010 = vadd.f32 %v2937, %v3009
    %3011 = vmatprep.mubr.bf16.mxu0 %v1178
    %3012 = vmatmul.mubr.bf16.gmra.mrb[0].mxu0 %v1177
    %v3013 = vpop.f32.mrb[0].mxu0
    %v3014 = vadd.f32 %v2941, %v3013
    %v3015 = vpop.f32.mrb[0].mxu0
    %v3016 = vadd.f32 %v2943, %v3015
    %v3017 = vpop.f32.mrb[0].mxu0
    %v3018 = vadd.f32 %v2945, %v3017
    %v3019 = vpop.f32.mrb[0].mxu0
    %v3020 = vadd.f32 %v2947, %v3019
    %3021 = vdwg.mxu0
    %3022 = vmatprep.subr.bf16.mxu0 %v2338
    %3023 = vmatpush1.bf16.msra.mxu0 %v2337
    %3024 = vmatprep.subr.bf16.mxu0 %v2340
    %3025 = vmatpush1.bf16.msra.mxu0 %v2339
    %3026 = vmatprep.subr.bf16.mxu0 %v2342
    %3027 = vmatpush1.bf16.msra.mxu0 %v2341
    %3028 = vmatprep.subr.bf16.mxu0 %v2344
    %3029 = vmatpush1.bf16.msra.mxu0 %v2343
    %3030 = vmatprep.subr.bf16.mxu0 0
    %3031 = vmatpush1.bf16.msra.mxu0 0
    %3032 = vmatprep.subr.bf16.mxu0 0
    %3033 = vmatpush1.bf16.msra.mxu0 0
    %3034 = vmatprep.subr.bf16.mxu0 0
    %3035 = vmatpush1.bf16.msra.mxu0 0
    %3036 = vmatprep.subr.bf16.mxu0 0
    %3037 = vmatpush1.bf16.msra.mxu0 0
    %3038 = vmatprep.subr.bf16.mxu0 0
    %3039 = vmatpush1.bf16.msra.mxu0 0
    %3040 = vmatprep.subr.bf16.mxu0 0
    %3041 = vmatpush1.bf16.msra.mxu0 0
    %3042 = vmatprep.subr.bf16.mxu0 0
    %3043 = vmatpush1.bf16.msra.mxu0 0
    %3044 = vmatprep.subr.bf16.mxu0 0
    %3045 = vmatpush1.bf16.msra.mxu0 0
    %3046 = vmatprep.subr.bf16.mxu0 0
    %3047 = vmatpush1.bf16.msra.mxu0 0
    %3048 = vmatprep.subr.bf16.mxu0 0
    %3049 = vmatpush1.bf16.msra.mxu0 0
    %3050 = vmatprep.subr.bf16.mxu0 0
    %3051 = vmatpush1.bf16.msra.mxu0 0
    %3052 = vmatprep.subr.bf16.mxu0 0
    %3053 = vmatpush1.bf16.msra.mxu0 0
    %3054 = vmatprep.mubr.bf16.mxu0 0
    %3055 = vmatmul.mubr.bf16.gmra.mrb[0].mxu0 %v2865
    %v3056 = vpop.f32.mrb[0].mxu0
    %v3057 = vadd.f32 %v2984, %v3056
    %v3058 = vpop.f32.mrb[0].mxu0
    %v3059 = vadd.f32 %v2986, %v3058
    %v3060 = vpop.f32.mrb[0].mxu0
    %v3061 = vadd.f32 %v2988, %v3060
    %v3062 = vpop.f32.mrb[0].mxu0
    %v3063 = vadd.f32 %v2990, %v3062
    %3064 = vmatprep.mubr.bf16.mxu0 0
    %3065 = vmatmul.mubr.bf16.gmra.mrb[0].mxu0 %v2868
    %v3066 = vpop.f32.mrb[0].mxu0
    %v3067 = vadd.f32 %v2994, %v3066
    %v3068 = vpop.f32.mrb[0].mxu0
    %v3069 = vadd.f32 %v2996, %v3068
    %v3070 = vpop.f32.mrb[0].mxu0
    %v3071 = vadd.f32 %v2998, %v3070
    %v3072 = vpop.f32.mrb[0].mxu0
    %v3073 = vadd.f32 %v3000, %v3072
    %3074 = vmatprep.mubr.bf16.mxu0 0
    %3075 = vmatmul.mubr.bf16.gmra.mrb[0].mxu0 %v2871
    %v3076 = vpop.f32.mrb[0].mxu0
    %v3077 = vadd.f32 %v3004, %v3076
    %v3078 = vpop.f32.mrb[0].mxu0
    %v3079 = vadd.f32 %v3006, %v3078
    %v3080 = vpop.f32.mrb[0].mxu0
    %v3081 = vadd.f32 %v3008, %v3080
    %v3082 = vpop.f32.mrb[0].mxu0
    %v3083 = vadd.f32 %v3010, %v3082
    %3084 = vmatprep.mubr.bf16.mxu0 0
    %3085 = vmatmul.mubr.bf16.gmra.mrb[0].mxu0 %v2874
    %v3086 = vpop.f32.mrb[0].mxu0
    %v3087 = vadd.f32 %v3014, %v3086
    %v3088 = vpop.f32.mrb[0].mxu0
    %v3089 = vadd.f32 %v3016, %v3088
    %v3090 = vpop.f32.mrb[0].mxu0
    %v3091 = vadd.f32 %v3018, %v3090
    %v3092 = vpop.f32.mrb[0].mxu0
    %v3093 = vadd.f32 %v3020, %v3092
    %3094 = vdwg.mxu0
    %v3096 = vsel %vm812, %v1184, 0
    %v3099 = vsel %vm812, %v1189, 0
    %v3102 = vsel %vm812, %v1194, 0
    %v3105 = vsel %vm812, %v1199, 0
    %3107 = vmatprep.subr.bf16.mxu0 %v2793
    %3108 = vmatpush1.bf16.msra.mxu0 %v2792
    %3109 = vmatprep.subr.bf16.mxu0 %v2795
    %3110 = vmatpush1.bf16.msra.mxu0 %v2794
    %3111 = vmatprep.subr.bf16.mxu0 %v2797
    %3112 = vmatpush1.bf16.msra.mxu0 %v2796
    %3113 = vmatprep.subr.bf16.mxu0 %v2799
    %3114 = vmatpush1.bf16.msra.mxu0 %v2798
    %3115 = vmatprep.subr.bf16.mxu0 %v2801
    %3116 = vmatpush1.bf16.msra.mxu0 %v2800
    %3117 = vmatprep.subr.bf16.mxu0 %v2803
    %3118 = vmatpush1.bf16.msra.mxu0 %v2802
    %3119 = vmatprep.subr.bf16.mxu0 %v2805
    %3120 = vmatpush1.bf16.msra.mxu0 %v2804
    %3121 = vmatprep.subr.bf16.mxu0 %v2807
    %3122 = vmatpush1.bf16.msra.mxu0 %v2806
    %3123 = vmatprep.subr.bf16.mxu0 %v2809
    %3124 = vmatpush1.bf16.msra.mxu0 %v2808
    %3125 = vmatprep.subr.bf16.mxu0 %v2811
    %3126 = vmatpush1.bf16.msra.mxu0 %v2810
    %3127 = vmatprep.subr.bf16.mxu0 %v2813
    %3128 = vmatpush1.bf16.msra.mxu0 %v2812
    %3129 = vmatprep.subr.bf16.mxu0 %v2815
    %3130 = vmatpush1.bf16.msra.mxu0 %v2814
    %3131 = vmatprep.subr.bf16.mxu0 %v2817
    %3132 = vmatpush1.bf16.msra.mxu0 %v2816
    %3133 = vmatprep.subr.bf16.mxu0 %v2819
    %3134 = vmatpush1.bf16.msra.mxu0 %v2818
    %3135 = vmatprep.subr.bf16.mxu0 %v2821
    %3136 = vmatpush1.bf16.msra.mxu0 %v2820
    %3137 = vmatprep.subr.bf16.mxu0 %v2823
    %3138 = vmatpush1.bf16.msra.mxu0 %v2822
    %3139 = vmatprep.mubr.bf16.mxu0 %v1181
    %3140 = vmatmul.mubr.bf16.gmra.mrb[0].mxu0 %v1180
    %v3141 = vpop.f32.mrb[0].mxu0
    %v3142 = vadd.f32 0.0, %v3141
    %v3143 = vpop.f32.mrb[0].mxu0
    %v3144 = vadd.f32 0.0, %v3143
    %v3145 = vpop.f32.mrb[0].mxu0
    %v3146 = vadd.f32 0.0, %v3145
    %v3147 = vpop.f32.mrb[0].mxu0
    %v3148 = vadd.f32 0.0, %v3147
    %3149 = vmatprep.mubr.bf16.mxu0 %v1186
    %3150 = vmatmul.mubr.bf16.gmra.mrb[0].mxu0 %v1185
    %v3151 = vpop.f32.mrb[0].mxu0
    %v3152 = vadd.f32 0.0, %v3151
    %v3153 = vpop.f32.mrb[0].mxu0
    %v3154 = vadd.f32 0.0, %v3153
    %v3155 = vpop.f32.mrb[0].mxu0
    %v3156 = vadd.f32 0.0, %v3155
    %v3157 = vpop.f32.mrb[0].mxu0
    %v3158 = vadd.f32 0.0, %v3157
    %3159 = vmatprep.mubr.bf16.mxu0 %v1191
    %3160 = vmatmul.mubr.bf16.gmra.mrb[0].mxu0 %v1190
    %v3161 = vpop.f32.mrb[0].mxu0
    %v3162 = vadd.f32 0.0, %v3161
    %v3163 = vpop.f32.mrb[0].mxu0
    %v3164 = vadd.f32 0.0, %v3163
    %v3165 = vpop.f32.mrb[0].mxu0
    %v3166 = vadd.f32 0.0, %v3165
    %v3167 = vpop.f32.mrb[0].mxu0
    %v3168 = vadd.f32 0.0, %v3167
    %3169 = vmatprep.mubr.bf16.mxu0 %v1196
    %3170 = vmatmul.mubr.bf16.gmra.mrb[0].mxu0 %v1195
    %v3171 = vpop.f32.mrb[0].mxu0
    %v3172 = vadd.f32 0.0, %v3171
    %v3173 = vpop.f32.mrb[0].mxu0
    %v3174 = vadd.f32 0.0, %v3173
    %v3175 = vpop.f32.mrb[0].mxu0
    %v3176 = vadd.f32 0.0, %v3175
    %v3177 = vpop.f32.mrb[0].mxu0
    %v3178 = vadd.f32 0.0, %v3177
    %3179 = vdwg.mxu0
    %3180 = vmatprep.subr.bf16.mxu0 %v2825
    %3181 = vmatpush1.bf16.msra.mxu0 %v2824
    %3182 = vmatprep.subr.bf16.mxu0 %v2827
    %3183 = vmatpush1.bf16.msra.mxu0 %v2826
    %3184 = vmatprep.subr.bf16.mxu0 %v2829
    %3185 = vmatpush1.bf16.msra.mxu0 %v2828
    %3186 = vmatprep.subr.bf16.mxu0 %v2831
    %3187 = vmatpush1.bf16.msra.mxu0 %v2830
    %3188 = vmatprep.subr.bf16.mxu0 %v2833
    %3189 = vmatpush1.bf16.msra.mxu0 %v2832
    %3190 = vmatprep.subr.bf16.mxu0 %v2835
    %3191 = vmatpush1.bf16.msra.mxu0 %v2834
    %3192 = vmatprep.subr.bf16.mxu0 %v2837
    %3193 = vmatpush1.bf16.msra.mxu0 %v2836
    %3194 = vmatprep.subr.bf16.mxu0 %v2839
    %3195 = vmatpush1.bf16.msra.mxu0 %v2838
    %3196 = vmatprep.subr.bf16.mxu0 %v2841
    %3197 = vmatpush1.bf16.msra.mxu0 %v2840
    %3198 = vmatprep.subr.bf16.mxu0 %v2843
    %3199 = vmatpush1.bf16.msra.mxu0 %v2842
    %3200 = vmatprep.subr.bf16.mxu0 %v2845
    %3201 = vmatpush1.bf16.msra.mxu0 %v2844
    %3202 = vmatprep.subr.bf16.mxu0 %v2847
    %3203 = vmatpush1.bf16.msra.mxu0 %v2846
    %3204 = vmatprep.subr.bf16.mxu0 %v2849
    %3205 = vmatpush1.bf16.msra.mxu0 %v2848
    %3206 = vmatprep.subr.bf16.mxu0 %v2851
    %3207 = vmatpush1.bf16.msra.mxu0 %v2850
    %3208 = vmatprep.subr.bf16.mxu0 %v2853
    %3209 = vmatpush1.bf16.msra.mxu0 %v2852
    %3210 = vmatprep.subr.bf16.mxu0 %v2855
    %3211 = vmatpush1.bf16.msra.mxu0 %v2854
    %3212 = vmatprep.mubr.bf16.mxu0 %v1183
    %3213 = vmatmul.mubr.bf16.gmra.mrb[0].mxu0 %v1182
    %v3214 = vpop.f32.mrb[0].mxu0
    %v3215 = vadd.f32 %v3142, %v3214
    %v3216 = vpop.f32.mrb[0].mxu0
    %v3217 = vadd.f32 %v3144, %v3216
    %v3218 = vpop.f32.mrb[0].mxu0
    %v3219 = vadd.f32 %v3146, %v3218
    %v3220 = vpop.f32.mrb[0].mxu0
    %v3221 = vadd.f32 %v3148, %v3220
    %3222 = vmatprep.mubr.bf16.mxu0 %v1188
    %3223 = vmatmul.mubr.bf16.gmra.mrb[0].mxu0 %v1187
    %v3224 = vpop.f32.mrb[0].mxu0
    %v3225 = vadd.f32 %v3152, %v3224
    %v3226 = vpop.f32.mrb[0].mxu0
    %v3227 = vadd.f32 %v3154, %v3226
    %v3228 = vpop.f32.mrb[0].mxu0
    %v3229 = vadd.f32 %v3156, %v3228
    %v3230 = vpop.f32.mrb[0].mxu0
    %v3231 = vadd.f32 %v3158, %v3230
    %3232 = vmatprep.mubr.bf16.mxu0 %v1193
    %3233 = vmatmul.mubr.bf16.gmra.mrb[0].mxu0 %v1192
    %v3234 = vpop.f32.mrb[0].mxu0
    %v3235 = vadd.f32 %v3162, %v3234
    %v3236 = vpop.f32.mrb[0].mxu0
    %v3237 = vadd.f32 %v3164, %v3236
    %v3238 = vpop.f32.mrb[0].mxu0
    %v3239 = vadd.f32 %v3166, %v3238
    %v3240 = vpop.f32.mrb[0].mxu0
    %v3241 = vadd.f32 %v3168, %v3240
    %3242 = vmatprep.mubr.bf16.mxu0 %v1198
    %3243 = vmatmul.mubr.bf16.gmra.mrb[0].mxu0 %v1197
    %v3244 = vpop.f32.mrb[0].mxu0
    %v3245 = vadd.f32 %v3172, %v3244
    %v3246 = vpop.f32.mrb[0].mxu0
    %v3247 = vadd.f32 %v3174, %v3246
    %v3248 = vpop.f32.mrb[0].mxu0
    %v3249 = vadd.f32 %v3176, %v3248
    %v3250 = vpop.f32.mrb[0].mxu0
    %v3251 = vadd.f32 %v3178, %v3250
    %3252 = vdwg.mxu0
    %3253 = vmatprep.subr.bf16.mxu0 %v2857
    %3254 = vmatpush1.bf16.msra.mxu0 %v2856
    %3255 = vmatprep.subr.bf16.mxu0 %v2859
    %3256 = vmatpush1.bf16.msra.mxu0 %v2858
    %3257 = vmatprep.subr.bf16.mxu0 %v2861
    %3258 = vmatpush1.bf16.msra.mxu0 %v2860
    %3259 = vmatprep.subr.bf16.mxu0 %v2863
    %3260 = vmatpush1.bf16.msra.mxu0 %v2862
    %3261 = vmatprep.subr.bf16.mxu0 0
    %3262 = vmatpush1.bf16.msra.mxu0 0
    %3263 = vmatprep.subr.bf16.mxu0 0
    %3264 = vmatpush1.bf16.msra.mxu0 0
    %3265 = vmatprep.subr.bf16.mxu0 0
    %3266 = vmatpush1.bf16.msra.mxu0 0
    %3267 = vmatprep.subr.bf16.mxu0 0
    %3268 = vmatpush1.bf16.msra.mxu0 0
    %3269 = vmatprep.subr.bf16.mxu0 0
    %3270 = vmatpush1.bf16.msra.mxu0 0
    %3271 = vmatprep.subr.bf16.mxu0 0
    %3272 = vmatpush1.bf16.msra.mxu0 0
    %3273 = vmatprep.subr.bf16.mxu0 0
    %3274 = vmatpush1.bf16.msra.mxu0 0
    %3275 = vmatprep.subr.bf16.mxu0 0
    %3276 = vmatpush1.bf16.msra.mxu0 0
    %3277 = vmatprep.subr.bf16.mxu0 0
    %3278 = vmatpush1.bf16.msra.mxu0 0
    %3279 = vmatprep.subr.bf16.mxu0 0
    %3280 = vmatpush1.bf16.msra.mxu0 0
    %3281 = vmatprep.subr.bf16.mxu0 0
    %3282 = vmatpush1.bf16.msra.mxu0 0
    %3283 = vmatprep.subr.bf16.mxu0 0
    %3284 = vmatpush1.bf16.msra.mxu0 0
    %3285 = vmatprep.mubr.bf16.mxu0 0
    %3286 = vmatmul.mubr.bf16.gmra.mrb[0].mxu0 %v3096
    %v3287 = vpop.f32.mrb[0].mxu0
    %v3288 = vadd.f32 %v3215, %v3287
    %v3289 = vpop.f32.mrb[0].mxu0
    %v3290 = vadd.f32 %v3217, %v3289
    %v3291 = vpop.f32.mrb[0].mxu0
    %v3292 = vadd.f32 %v3219, %v3291
    %v3293 = vpop.f32.mrb[0].mxu0
    %v3294 = vadd.f32 %v3221, %v3293
    %3295 = vmatprep.mubr.bf16.mxu0 0
    %3296 = vmatmul.mubr.bf16.gmra.mrb[0].mxu0 %v3099
    %v3297 = vpop.f32.mrb[0].mxu0
    %v3298 = vadd.f32 %v3225, %v3297
    %v3299 = vpop.f32.mrb[0].mxu0
    %v3300 = vadd.f32 %v3227, %v3299
    %v3301 = vpop.f32.mrb[0].mxu0
    %v3302 = vadd.f32 %v3229, %v3301
    %v3303 = vpop.f32.mrb[0].mxu0
    %v3304 = vadd.f32 %v3231, %v3303
    %3305 = vmatprep.mubr.bf16.mxu0 0
    %3306 = vmatmul.mubr.bf16.gmra.mrb[0].mxu0 %v3102
    %v3307 = vpop.f32.mrb[0].mxu0
    %v3308 = vadd.f32 %v3235, %v3307
    %v3309 = vpop.f32.mrb[0].mxu0
    %v3310 = vadd.f32 %v3237, %v3309
    %v3311 = vpop.f32.mrb[0].mxu0
    %v3312 = vadd.f32 %v3239, %v3311
    %v3313 = vpop.f32.mrb[0].mxu0
    %v3314 = vadd.f32 %v3241, %v3313
    %3315 = vmatprep.mubr.bf16.mxu0 0
    %3316 = vmatmul.mubr.bf16.gmra.mrb[0].mxu0 %v3105
    %v3317 = vpop.f32.mrb[0].mxu0
    %v3318 = vadd.f32 %v3245, %v3317
    %v3319 = vpop.f32.mrb[0].mxu0
    %v3320 = vadd.f32 %v3247, %v3319
    %v3321 = vpop.f32.mrb[0].mxu0
    %v3322 = vadd.f32 %v3249, %v3321
    %v3323 = vpop.f32.mrb[0].mxu0
    %v3324 = vadd.f32 %v3251, %v3323
    %3325 = vdwg.mxu0
    %v3326 = vpack.c.bf16 %v3061, %v3057
    %v3327 = vpack.c.bf16 %v3063, %v3059
    %v3328 = vpack.c.bf16 %v3071, %v3067
    %v3329 = vpack.c.bf16 %v3073, %v3069
    %v3330 = vpack.c.bf16 %v3081, %v3077
    %v3331 = vpack.c.bf16 %v3083, %v3079
    %v3332 = vpack.c.bf16 %v3091, %v3087
    %v3333 = vpack.c.bf16 %v3093, %v3089
    %v3334 = vld [vmem:[%s3] sm:$0xf]
    %v3335 = vld [vmem:[%s3 + $0x4] sm:$0xf]
    %v3336 = vld [vmem:[%s3 + $0x8] sm:$0xf]
    %v3337 = vld [vmem:[%s3 + $0xc] sm:$0xf]
    %v3338 = vld [vmem:[%s3 + $0x10] sm:$0xf]
    %v3339 = vld [vmem:[%s3 + $0x14] sm:$0xf]
    %v3340 = vld [vmem:[%s3 + $0x18] sm:$0xf]
    %v3341 = vld [vmem:[%s3 + $0x1c] sm:$0xf]
    %v3342 = vld [vmem:[%s3 + $0x20] sm:$0xf]
    %v3343 = vld [vmem:[%s3 + $0x24] sm:$0xf]
    %v3344 = vld [vmem:[%s3 + $0x28] sm:$0xf]
    %v3345 = vld [vmem:[%s3 + $0x2c] sm:$0xf]
    %v3346 = vld [vmem:[%s3 + $0x30] sm:$0xf]
    %v3347 = vld [vmem:[%s3 + $0x34] sm:$0xf]
    %v3348 = vld [vmem:[%s3 + $0x38] sm:$0xf]
    %v3349 = vld [vmem:[%s3 + $0x3c] sm:$0xf]
    %v3350 = vld [vmem:[%s3 + $0x40] sm:$0xf]
    %v3351 = vld [vmem:[%s3 + $0x44] sm:$0xf]
    %v3352 = vld [vmem:[%s3 + $0x48] sm:$0xf]
    %v3353 = vld [vmem:[%s3 + $0x4c] sm:$0xf]
    %v3354 = vld [vmem:[%s3 + $0x50] sm:$0xf]
    %v3355 = vld [vmem:[%s3 + $0x54] sm:$0xf]
    %v3356 = vld [vmem:[%s3 + $0x58] sm:$0xf]
    %v3357 = vld [vmem:[%s3 + $0x5c] sm:$0xf]
    %v3358 = vld [vmem:[%s4] sm:$0x1]
    %v3360 = vlaneseq
    %v3361 = vshrl.u32 %v3360, 7
    %v3362 = vsub.s32 0, %v3361
    %v3363 = vrot.slane %v3358, %v3362
    %v3389 = vunpack.c.l.b16 %v3334
    %v3390 = vunpack.c.l.b16 %v3335
    %v3391 = vunpack.c.l.b16 %v3336
    %v3392 = vunpack.c.l.b16 %v3337
    %v3393 = vunpack.c.l.b16 %v3338
    %v3394 = vunpack.c.l.b16 %v3339
    %v3395 = vunpack.c.l.b16 %v3340
    %v3396 = vunpack.c.l.b16 %v3341
    %v3397 = vunpack.c.l.b16 %v3342
    %v3398 = vunpack.c.l.b16 %v3343
    %v3399 = vunpack.c.l.b16 %v3344
    %v3400 = vunpack.c.l.b16 %v3345
    %v3401 = vunpack.c.l.b16 %v3346
    %v3402 = vunpack.c.l.b16 %v3347
    %v3403 = vunpack.c.l.b16 %v3348
    %v3404 = vunpack.c.l.b16 %v3349
    %v3405 = vunpack.c.l.b16 %v3350
    %v3406 = vunpack.c.l.b16 %v3351
    %v3407 = vunpack.c.l.b16 %v3352
    %v3408 = vunpack.c.l.b16 %v3353
    %v3409 = vunpack.c.l.b16 %v3354
    %v3410 = vunpack.c.l.b16 %v3355
    %v3411 = vunpack.c.l.b16 %v3356
    %v3412 = vunpack.c.l.b16 %v3357
    %v3413 = vpack.c.b16 %v3390, %v3389
    %v3414 = vpack.c.b16 %v3392, %v3391
    %v3415 = vpack.c.b16 %v3394, %v3393
    %v3416 = vpack.c.b16 %v3396, %v3395
    %v3417 = vpack.c.b16 %v3398, %v3397
    %v3418 = vpack.c.b16 %v3400, %v3399
    %v3419 = vpack.c.b16 %v3402, %v3401
    %v3420 = vpack.c.b16 %v3404, %v3403
    %v3421 = vpack.c.b16 %v3406, %v3405
    %v3422 = vpack.c.b16 %v3408, %v3407
    %v3423 = vpack.c.b16 %v3410, %v3409
    %v3424 = vpack.c.b16 %v3412, %v3411
    %v3438 = vsel %vm812, %v3327, 0
    %v3441 = vsel %vm812, %v3329, 0
    %v3444 = vsel %vm812, %v3331, 0
    %v3447 = vsel %vm812, %v3333, 0
    %3449 = vmatprep.subr.bf16.mxu0 0
    %3450 = vmatpush1.bf16.msra.mxu0 %v3413
    %3451 = vmatprep.subr.bf16.mxu0 0
    %3452 = vmatpush1.bf16.msra.mxu0 %v3414
    %3453 = vmatprep.subr.bf16.mxu0 0
    %3454 = vmatpush1.bf16.msra.mxu0 %v3415
    %3455 = vmatprep.subr.bf16.mxu0 0
    %3456 = vmatpush1.bf16.msra.mxu0 %v3416
    %3457 = vmatprep.subr.bf16.mxu0 0
    %3458 = vmatpush1.bf16.msra.mxu0 %v3417
    %3459 = vmatprep.subr.bf16.mxu0 0
    %3460 = vmatpush1.bf16.msra.mxu0 %v3418
    %3461 = vmatprep.subr.bf16.mxu0 0
    %3462 = vmatpush1.bf16.msra.mxu0 %v3419
    %3463 = vmatprep.subr.bf16.mxu0 0
    %3464 = vmatpush1.bf16.msra.mxu0 %v3420
    %3465 = vmatprep.subr.bf16.mxu0 0
    %3466 = vmatpush1.bf16.msra.mxu0 %v3421
    %3467 = vmatprep.subr.bf16.mxu0 0
    %3468 = vmatpush1.bf16.msra.mxu0 %v3422
    %3469 = vmatprep.subr.bf16.mxu0 0
    %3470 = vmatpush1.bf16.msra.mxu0 %v3423
    %3471 = vmatprep.subr.bf16.mxu0 0
    %3472 = vmatpush1.bf16.msra.mxu0 %v3424
    %3473 = vmatprep.subr.bf16.mxu0 0
    %3474 = vmatpush1.bf16.msra.mxu0 0
    %3475 = vmatprep.subr.bf16.mxu0 0
    %3476 = vmatpush1.bf16.msra.mxu0 0
    %3477 = vmatprep.subr.bf16.mxu0 0
    %3478 = vmatpush1.bf16.msra.mxu0 0
    %3479 = vmatprep.subr.bf16.mxu0 0
    %3480 = vmatpush1.bf16.msra.mxu0 0
    %3481 = vmatprep.mubr.bf16.mxu0 %v3438
    %3482 = vmatmul.mubr.bf16.gmra.mrb[0].mxu0 %v3326
    %v3483 = vpop.f32.mrb[0].mxu0
    %v3484 = vadd.f32 %v3363, %v3483
    %v3485 = vpop.f32.mrb[0].mxu0
    %v3486 = vpop.f32.mrb[0].mxu0
    %v3487 = vadd.f32 %v3363, %v3486
    %v3488 = vpop.f32.mrb[0].mxu0
    %3489 = vmatprep.mubr.bf16.mxu0 %v3441
    %3490 = vmatmul.mubr.bf16.gmra.mrb[0].mxu0 %v3328
    %v3491 = vpop.f32.mrb[0].mxu0
    %v3492 = vadd.f32 %v3363, %v3491
    %v3493 = vpop.f32.mrb[0].mxu0
    %v3494 = vpop.f32.mrb[0].mxu0
    %v3495 = vadd.f32 %v3363, %v3494
    %v3496 = vpop.f32.mrb[0].mxu0
    %3497 = vmatprep.mubr.bf16.mxu0 %v3444
    %3498 = vmatmul.mubr.bf16.gmra.mrb[0].mxu0 %v3330
    %v3499 = vpop.f32.mrb[0].mxu0
    %v3500 = vadd.f32 %v3363, %v3499
    %v3501 = vpop.f32.mrb[0].mxu0
    %v3502 = vpop.f32.mrb[0].mxu0
    %v3503 = vadd.f32 %v3363, %v3502
    %v3504 = vpop.f32.mrb[0].mxu0
    %3505 = vmatprep.mubr.bf16.mxu0 %v3447
    %3506 = vmatmul.mubr.bf16.gmra.mrb[0].mxu0 %v3332
    %v3507 = vpop.f32.mrb[0].mxu0
    %v3508 = vadd.f32 %v3363, %v3507
    %v3509 = vpop.f32.mrb[0].mxu0
    %v3510 = vpop.f32.mrb[0].mxu0
    %v3511 = vadd.f32 %v3363, %v3510
    %v3512 = vpop.f32.mrb[0].mxu0
    %3513 = vdwg.mxu0
    %v3514 = vmul.f32 %v3484, %v3484
    %v3515 = vmul.f32 %v3487, %v3487
    %v3516 = vmul.f32 %v3492, %v3492
    %v3517 = vmul.f32 %v3495, %v3495
    %v3518 = vmul.f32 %v3500, %v3500
    %v3519 = vmul.f32 %v3503, %v3503
    %v3520 = vmul.f32 %v3508, %v3508
    %v3521 = vmul.f32 %v3511, %v3511
    %v3522 = vmul.f32 %v3484, %v3514
    %v3523 = vmul.f32 %v3487, %v3515
    %v3524 = vmul.f32 %v3492, %v3516
    %v3525 = vmul.f32 %v3495, %v3517
    %v3526 = vmul.f32 %v3500, %v3518
    %v3527 = vmul.f32 %v3503, %v3519
    %v3528 = vmul.f32 %v3508, %v3520
    %v3529 = vmul.f32 %v3511, %v3521
    %v3530 = vmul.f32 %v3522, 0.044715
    %v3531 = vmul.f32 %v3523, 0.044715
    %v3532 = vmul.f32 %v3524, 0.044715
    %v3533 = vmul.f32 %v3525, 0.044715
    %v3534 = vmul.f32 %v3526, 0.044715
    %v3535 = vmul.f32 %v3527, 0.044715
    %v3536 = vmul.f32 %v3528, 0.044715
    %v3537 = vmul.f32 %v3529, 0.044715
    %v3538 = vadd.f32 %v3484, %v3530
    %v3539 = vadd.f32 %v3487, %v3531
    %v3540 = vadd.f32 %v3492, %v3532
    %v3541 = vadd.f32 %v3495, %v3533
    %v3542 = vadd.f32 %v3500, %v3534
    %v3543 = vadd.f32 %v3503, %v3535
    %v3544 = vadd.f32 %v3508, %v3536
    %v3545 = vadd.f32 %v3511, %v3537
    %v3546 = vmul.f32 %v3538, 0.7978846
    %v3547 = vmul.f32 %v3539, 0.7978846
    %v3548 = vmul.f32 %v3540, 0.7978846
    %v3549 = vmul.f32 %v3541, 0.7978846
    %v3550 = vmul.f32 %v3542, 0.7978846
    %v3551 = vmul.f32 %v3543, 0.7978846
    %v3552 = vmul.f32 %v3544, 0.7978846
    %v3553 = vmul.f32 %v3545, 0.7978846
    %v3554 = vtanh.pop %v3546
    %v3555 = vtanh.pop %v3547
    %v3556 = vtanh.pop %v3548
    %v3557 = vtanh.pop %v3549
    %v3558 = vtanh.pop %v3550
    %v3559 = vtanh.pop %v3551
    %v3560 = vtanh.pop %v3552
    %v3561 = vtanh.pop %v3553
    %v3562 = vadd.f32 %v3554, 1.0
    %v3563 = vadd.f32 %v3555, 1.0
    %v3564 = vadd.f32 %v3556, 1.0
    %v3565 = vadd.f32 %v3557, 1.0
    %v3566 = vadd.f32 %v3558, 1.0
    %v3567 = vadd.f32 %v3559, 1.0
    %v3568 = vadd.f32 %v3560, 1.0
    %v3569 = vadd.f32 %v3561, 1.0
    %v3570 = vmul.f32 %v3562, 0.5
    %v3571 = vmul.f32 %v3563, 0.5
    %v3572 = vmul.f32 %v3564, 0.5
    %v3573 = vmul.f32 %v3565, 0.5
    %v3574 = vmul.f32 %v3566, 0.5
    %v3575 = vmul.f32 %v3567, 0.5
    %v3576 = vmul.f32 %v3568, 0.5
    %v3577 = vmul.f32 %v3569, 0.5
    %v3578 = vmul.f32 %v3484, %v3570
    %v3579 = vmul.f32 %v3487, %v3571
    %v3580 = vmul.f32 %v3492, %v3572
    %v3581 = vmul.f32 %v3495, %v3573
    %v3582 = vmul.f32 %v3500, %v3574
    %v3583 = vmul.f32 %v3503, %v3575
    %v3584 = vmul.f32 %v3508, %v3576
    %v3585 = vmul.f32 %v3511, %v3577
    %v3586 = vpack.c.bf16 %v3292, %v3288
    %v3587 = vpack.c.bf16 %v3294, %v3290
    %v3588 = vpack.c.bf16 %v3302, %v3298
    %v3589 = vpack.c.bf16 %v3304, %v3300
    %v3590 = vpack.c.bf16 %v3312, %v3308
    %v3591 = vpack.c.bf16 %v3314, %v3310
    %v3592 = vpack.c.bf16 %v3322, %v3318
    %v3593 = vpack.c.bf16 %v3324, %v3320
    %v3595 = vsel %vm812, %v3587, 0
    %v3598 = vsel %vm812, %v3589, 0
    %v3601 = vsel %vm812, %v3591, 0
    %v3604 = vsel %vm812, %v3593, 0
    %3606 = vmatprep.subr.bf16.mxu0 0
    %3607 = vmatpush1.bf16.msra.mxu0 %v3413
    %3608 = vmatprep.subr.bf16.mxu0 0
    %3609 = vmatpush1.bf16.msra.mxu0 %v3414
    %3610 = vmatprep.subr.bf16.mxu0 0
    %3611 = vmatpush1.bf16.msra.mxu0 %v3415
    %3612 = vmatprep.subr.bf16.mxu0 0
    %3613 = vmatpush1.bf16.msra.mxu0 %v3416
    %3614 = vmatprep.subr.bf16.mxu0 0
    %3615 = vmatpush1.bf16.msra.mxu0 %v3417
    %3616 = vmatprep.subr.bf16.mxu0 0
    %3617 = vmatpush1.bf16.msra.mxu0 %v3418
    %3618 = vmatprep.subr.bf16.mxu0 0
    %3619 = vmatpush1.bf16.msra.mxu0 %v3419
    %3620 = vmatprep.subr.bf16.mxu0 0
    %3621 = vmatpush1.bf16.msra.mxu0 %v3420
    %3622 = vmatprep.subr.bf16.mxu0 0
    %3623 = vmatpush1.bf16.msra.mxu0 %v3421
    %3624 = vmatprep.subr.bf16.mxu0 0
    %3625 = vmatpush1.bf16.msra.mxu0 %v3422
    %3626 = vmatprep.subr.bf16.mxu0 0
    %3627 = vmatpush1.bf16.msra.mxu0 %v3423
    %3628 = vmatprep.subr.bf16.mxu0 0
    %3629 = vmatpush1.bf16.msra.mxu0 %v3424
    %3630 = vmatprep.subr.bf16.mxu0 0
    %3631 = vmatpush1.bf16.msra.mxu0 0
    %3632 = vmatprep.subr.bf16.mxu0 0
    %3633 = vmatpush1.bf16.msra.mxu0 0
    %3634 = vmatprep.subr.bf16.mxu0 0
    %3635 = vmatpush1.bf16.msra.mxu0 0
    %3636 = vmatprep.subr.bf16.mxu0 0
    %3637 = vmatpush1.bf16.msra.mxu0 0
    %3638 = vmatprep.mubr.bf16.mxu0 %v3595
    %3639 = vmatmul.mubr.bf16.gmra.mrb[0].mxu0 %v3586
    %v3640 = vpop.f32.mrb[0].mxu0
    %v3641 = vadd.f32 %v3363, %v3640
    %v3642 = vpop.f32.mrb[0].mxu0
    %v3643 = vpop.f32.mrb[0].mxu0
    %v3644 = vadd.f32 %v3363, %v3643
    %v3645 = vpop.f32.mrb[0].mxu0
    %3646 = vmatprep.mubr.bf16.mxu0 %v3598
    %3647 = vmatmul.mubr.bf16.gmra.mrb[0].mxu0 %v3588
    %v3648 = vpop.f32.mrb[0].mxu0
    %v3649 = vadd.f32 %v3363, %v3648
    %v3650 = vpop.f32.mrb[0].mxu0
    %v3651 = vpop.f32.mrb[0].mxu0
    %v3652 = vadd.f32 %v3363, %v3651
    %v3653 = vpop.f32.mrb[0].mxu0
    %3654 = vmatprep.mubr.bf16.mxu0 %v3601
    %3655 = vmatmul.mubr.bf16.gmra.mrb[0].mxu0 %v3590
    %v3656 = vpop.f32.mrb[0].mxu0
    %v3657 = vadd.f32 %v3363, %v3656
    %v3658 = vpop.f32.mrb[0].mxu0
    %v3659 = vpop.f32.mrb[0].mxu0
    %v3660 = vadd.f32 %v3363, %v3659
    %v3661 = vpop.f32.mrb[0].mxu0
    %3662 = vmatprep.mubr.bf16.mxu0 %v3604
    %3663 = vmatmul.mubr.bf16.gmra.mrb[0].mxu0 %v3592
    %v3664 = vpop.f32.mrb[0].mxu0
    %v3665 = vadd.f32 %v3363, %v3664
    %v3666 = vpop.f32.mrb[0].mxu0
    %v3667 = vpop.f32.mrb[0].mxu0
    %v3668 = vadd.f32 %v3363, %v3667
    %v3669 = vpop.f32.mrb[0].mxu0
    %3670 = vdwg.mxu0
    %v3671 = vmul.f32 %v3641, %v3641
    %v3672 = vmul.f32 %v3644, %v3644
    %v3673 = vmul.f32 %v3649, %v3649
    %v3674 = vmul.f32 %v3652, %v3652
    %v3675 = vmul.f32 %v3657, %v3657
    %v3676 = vmul.f32 %v3660, %v3660
    %v3677 = vmul.f32 %v3665, %v3665
    %v3678 = vmul.f32 %v3668, %v3668
    %v3679 = vmul.f32 %v3641, %v3671
    %v3680 = vmul.f32 %v3644, %v3672
    %v3681 = vmul.f32 %v3649, %v3673
    %v3682 = vmul.f32 %v3652, %v3674
    %v3683 = vmul.f32 %v3657, %v3675
    %v3684 = vmul.f32 %v3660, %v3676
    %v3685 = vmul.f32 %v3665, %v3677
    %v3686 = vmul.f32 %v3668, %v3678
    %v3687 = vmul.f32 %v3679, 0.044715
    %v3688 = vmul.f32 %v3680, 0.044715
    %v3689 = vmul.f32 %v3681, 0.044715
    %v3690 = vmul.f32 %v3682, 0.044715
    %v3691 = vmul.f32 %v3683, 0.044715
    %v3692 = vmul.f32 %v3684, 0.044715
    %v3693 = vmul.f32 %v3685, 0.044715
    %v3694 = vmul.f32 %v3686, 0.044715
    %v3695 = vadd.f32 %v3641, %v3687
    %v3696 = vadd.f32 %v3644, %v3688
    %v3697 = vadd.f32 %v3649, %v3689
    %v3698 = vadd.f32 %v3652, %v3690
    %v3699 = vadd.f32 %v3657, %v3691
    %v3700 = vadd.f32 %v3660, %v3692
    %v3701 = vadd.f32 %v3665, %v3693
    %v3702 = vadd.f32 %v3668, %v3694
    %v3703 = vmul.f32 %v3695, 0.7978846
    %v3704 = vmul.f32 %v3696, 0.7978846
    %v3705 = vmul.f32 %v3697, 0.7978846
    %v3706 = vmul.f32 %v3698, 0.7978846
    %v3707 = vmul.f32 %v3699, 0.7978846
    %v3708 = vmul.f32 %v3700, 0.7978846
    %v3709 = vmul.f32 %v3701, 0.7978846
    %v3710 = vmul.f32 %v3702, 0.7978846
    %v3711 = vtanh.pop %v3703
    %v3712 = vtanh.pop %v3704
    %v3713 = vtanh.pop %v3705
    %v3714 = vtanh.pop %v3706
    %v3715 = vtanh.pop %v3707
    %v3716 = vtanh.pop %v3708
    %v3717 = vtanh.pop %v3709
    %v3718 = vtanh.pop %v3710
    %v3719 = vadd.f32 %v3711, 1.0
    %v3720 = vadd.f32 %v3712, 1.0
    %v3721 = vadd.f32 %v3713, 1.0
    %v3722 = vadd.f32 %v3714, 1.0
    %v3723 = vadd.f32 %v3715, 1.0
    %v3724 = vadd.f32 %v3716, 1.0
    %v3725 = vadd.f32 %v3717, 1.0
    %v3726 = vadd.f32 %v3718, 1.0
    %v3727 = vmul.f32 %v3719, 0.5
    %v3728 = vmul.f32 %v3720, 0.5
    %v3729 = vmul.f32 %v3721, 0.5
    %v3730 = vmul.f32 %v3722, 0.5
    %v3731 = vmul.f32 %v3723, 0.5
    %v3732 = vmul.f32 %v3724, 0.5
    %v3733 = vmul.f32 %v3725, 0.5
    %v3734 = vmul.f32 %v3726, 0.5
    %v3735 = vmul.f32 %v3641, %v3727
    %v3736 = vmul.f32 %v3644, %v3728
    %v3737 = vmul.f32 %v3649, %v3729
    %v3738 = vmul.f32 %v3652, %v3730
    %v3739 = vmul.f32 %v3657, %v3731
    %v3740 = vmul.f32 %v3660, %v3732
    %v3741 = vmul.f32 %v3665, %v3733
    %v3742 = vmul.f32 %v3668, %v3734
    %v3743 = vadd.f32 %v3578, %v3579
    %v3744 = vadd.f32 %v3743, %v3580
    %v3745 = vadd.f32 %v3744, %v3581
    %v3746 = vadd.f32 %v3745, %v3582
    %v3747 = vadd.f32 %v3746, %v3583
    %v3748 = vadd.f32 %v3747, %v3584
    %v3749 = vadd.f32 %v3748, %v3585
    %v3750 = vrot.slane %v3749, 4
    %v3751 = vadd.f32 %v3749, %v3750
    %v3752 = vrot.slane %v3751, 2
    %v3753 = vadd.f32 %v3751, %v3752
    %v3754 = vrot.slane %v3753, 1
    %v3755 = vadd.f32 %v3753, %v3754
    %v3756 = vrcp.pop 64.0
    %v3757 = vmul.f32 %v3755, %v3756
    %v3758 = vadd.f32 %v3735, %v3736
    %v3759 = vadd.f32 %v3758, %v3737
    %v3760 = vadd.f32 %v3759, %v3738
    %v3761 = vadd.f32 %v3760, %v3739
    %v3762 = vadd.f32 %v3761, %v3740
    %v3763 = vadd.f32 %v3762, %v3741
    %v3764 = vadd.f32 %v3763, %v3742
    %v3765 = vrot.slane %v3764, 4
    %v3766 = vadd.f32 %v3764, %v3765
    %v3767 = vrot.slane %v3766, 2
    %v3768 = vadd.f32 %v3766, %v3767
    %v3769 = vrot.slane %v3768, 1
    %v3770 = vadd.f32 %v3768, %v3769
    %v3771 = vmul.f32 %v3770, %v3756
    %vm3772 = vcmask 1040384
    %v3773 = vsel %vm3772, %v3757, %v3771
    %v3774 = vpack.c.bf16 %v3773, %v3773
    %v3775 = vld [vmem:[%s5] sm:$0xff]
    %v3776 = vld [vmem:[%s5 + $0x8] sm:$0xff]
    %v3777 = vld [vmem:[%s5 + $0x10] sm:$0xff]
    %v3778 = vld [vmem:[%s5 + $0x18] sm:$0xff]
    %v3779 = vld [vmem:[%s5 + $0x20] sm:$0xff]
    %v3780 = vld [vmem:[%s5 + $0x28] sm:$0xff]
    %v3781 = vld [vmem:[%s5 + $0x30] sm:$0xff]
    %v3782 = vld [vmem:[%s5 + $0x38] sm:$0xff]
    %v3783 = vld [vmem:[%s5 + $0x40] sm:$0xff]
    %v3784 = vld [vmem:[%s5 + $0x48] sm:$0xff]
    %v3785 = vld [vmem:[%s5 + $0x50] sm:$0xff]
    %v3786 = vld [vmem:[%s5 + $0x58] sm:$0xff]
    %v3787 = vld [vmem:[%s5 + $0x60] sm:$0xff]
    %v3788 = vld [vmem:[%s5 + $0x68] sm:$0xff]
    %v3789 = vld [vmem:[%s5 + $0x70] sm:$0xff]
    %v3790 = vld [vmem:[%s5 + $0x78] sm:$0xff]
    %v3791 = vld [vmem:[%s6] sm:$0x3]
    %v3793 = vlaneseq
    %v3794 = vshrl.u32 %v3793, 7
    %v3795 = vsub.s32 0, %v3794
    %v3796 = vrot.slane %v3791, %v3795
    %v3797 = vlaneseq
    %v3798 = vshrl.u32 %v3797, 7
    %v3799 = vsub.s32 1, %v3798
    %v3800 = vrot.slane %v3791, %v3799
    %v3819 = vunpack.c.l.b16 %v3775
    %v3820 = vunpack.c.h.b16 %v3775
    %v3821 = vunpack.c.l.b16 %v3776
    %v3822 = vunpack.c.h.b16 %v3776
    %v3823 = vunpack.c.l.b16 %v3777
    %v3824 = vunpack.c.h.b16 %v3777
    %v3825 = vunpack.c.l.b16 %v3778
    %v3826 = vunpack.c.h.b16 %v3778
    %v3827 = vunpack.c.l.b16 %v3779
    %v3828 = vunpack.c.h.b16 %v3779
    %v3829 = vunpack.c.l.b16 %v3780
    %v3830 = vunpack.c.h.b16 %v3780
    %v3831 = vunpack.c.l.b16 %v3781
    %v3832 = vunpack.c.h.b16 %v3781
    %v3833 = vunpack.c.l.b16 %v3782
    %v3834 = vunpack.c.h.b16 %v3782
    %v3835 = vunpack.c.l.b16 %v3783
    %v3836 = vunpack.c.h.b16 %v3783
    %v3837 = vunpack.c.l.b16 %v3784
    %v3838 = vunpack.c.h.b16 %v3784
    %v3839 = vunpack.c.l.b16 %v3785
    %v3840 = vunpack.c.h.b16 %v3785
    %v3841 = vunpack.c.l.b16 %v3786
    %v3842 = vunpack.c.h.b16 %v3786
    %v3843 = vunpack.c.l.b16 %v3787
    %v3844 = vunpack.c.h.b16 %v3787
    %v3845 = vunpack.c.l.b16 %v3788
    %v3846 = vunpack.c.h.b16 %v3788
    %v3847 = vunpack.c.l.b16 %v3789
    %v3848 = vunpack.c.h.b16 %v3789
    %v3849 = vunpack.c.l.b16 %v3790
    %v3850 = vunpack.c.h.b16 %v3790
    %v3851 = vpack.c.b16 %v3821, %v3819
    %v3852 = vpack.c.b16 %v3822, %v3820
    %v3853 = vpack.c.b16 %v3825, %v3823
    %v3854 = vpack.c.b16 %v3826, %v3824
    %v3855 = vpack.c.b16 %v3829, %v3827
    %v3856 = vpack.c.b16 %v3830, %v3828
    %v3857 = vpack.c.b16 %v3833, %v3831
    %v3858 = vpack.c.b16 %v3834, %v3832
    %v3859 = vpack.c.b16 %v3837, %v3835
    %v3860 = vpack.c.b16 %v3838, %v3836
    %v3861 = vpack.c.b16 %v3841, %v3839
    %v3862 = vpack.c.b16 %v3842, %v3840
    %v3863 = vpack.c.b16 %v3845, %v3843
    %v3864 = vpack.c.b16 %v3846, %v3844
    %v3865 = vpack.c.b16 %v3849, %v3847
    %v3866 = vpack.c.b16 %v3850, %v3848
    %3883 = vmatprep.subr.bf16.mxu0 %v3852
    %3884 = vmatpush1.bf16.msra.mxu0 %v3851
    %3885 = vmatprep.subr.bf16.mxu0 %v3854
    %3886 = vmatpush1.bf16.msra.mxu0 %v3853
    %3887 = vmatprep.subr.bf16.mxu0 %v3856
    %3888 = vmatpush1.bf16.msra.mxu0 %v3855
    %3889 = vmatprep.subr.bf16.mxu0 %v3858
    %3890 = vmatpush1.bf16.msra.mxu0 %v3857
    %3891 = vmatprep.subr.bf16.mxu0 %v3860
    %3892 = vmatpush1.bf16.msra.mxu0 %v3859
    %3893 = vmatprep.subr.bf16.mxu0 %v3862
    %3894 = vmatpush1.bf16.msra.mxu0 %v3861
    %3895 = vmatprep.subr.bf16.mxu0 %v3864
    %3896 = vmatpush1.bf16.msra.mxu0 %v3863
    %3897 = vmatprep.subr.bf16.mxu0 %v3866
    %3898 = vmatpush1.bf16.msra.mxu0 %v3865
    %3899 = vmatprep.subr.bf16.mxu0 0
    %3900 = vmatpush1.bf16.msra.mxu0 0
    %3901 = vmatprep.subr.bf16.mxu0 0
    %3902 = vmatpush1.bf16.msra.mxu0 0
    %3903 = vmatprep.subr.bf16.mxu0 0
    %3904 = vmatpush1.bf16.msra.mxu0 0
    %3905 = vmatprep.subr.bf16.mxu0 0
    %3906 = vmatpush1.bf16.msra.mxu0 0
    %3907 = vmatprep.subr.bf16.mxu0 0
    %3908 = vmatpush1.bf16.msra.mxu0 0
    %3909 = vmatprep.subr.bf16.mxu0 0
    %3910 = vmatpush1.bf16.msra.mxu0 0
    %3911 = vmatprep.subr.bf16.mxu0 0
    %3912 = vmatpush1.bf16.msra.mxu0 0
    %3913 = vmatprep.subr.bf16.mxu0 0
    %3914 = vmatpush1.bf16.msra.mxu0 0
    %3915 = vmatprep.mubr.bf16.mxu0 0
    %3916 = vmatmul.mubr.bf16.gmra.mrb[0].mxu0 %v3774
    %v3917 = vpop.f32.mrb[0].mxu0
    %v3918 = vadd.f32 %v3796, %v3917
    %v3919 = vpop.f32.mrb[0].mxu0
    %v3920 = vadd.f32 %v3800, %v3919
    %v3921 = vpop.f32.mrb[0].mxu0
    %v3922 = vpop.f32.mrb[0].mxu0
    %3923 = vdwg.mxu0
    %vm3924 = vcmp.lt.f32.partialorder %v134, 71.0
    %vm3925 = vcmp.lt.f32.partialorder %v135, 71.0
    %vm3926 = vcmp.ge.f32.partialorder %v134, 213.0
    %vm3927 = vcmp.ge.f32.partialorder %v135, 213.0
    %vm3928 = vcmp.lt.f32.partialorder %v134, 218.0
    %vm3929 = vcmp.lt.f32.partialorder %v135, 218.0
    %vm3930 = vmand %vm3926, %vm3928
    %vm3931 = vmand %vm3927, %vm3929
    %vm3932 = vmor %vm3924, %vm3930
    %vm3933 = vmor %vm3925, %vm3931
    %vm3934 = vcmp.ge.f32.partialorder %v134, 71.0
    %vm3935 = vcmp.ge.f32.partialorder %v135, 71.0
    %vm3936 = vcmp.lt.f32.partialorder %v134, 142.0
    %vm3937 = vcmp.lt.f32.partialorder %v135, 142.0
    %vm3938 = vmand %vm3934, %vm3936
    %vm3939 = vmand %vm3935, %vm3937
    %vm3940 = vcmp.ge.f32.partialorder %v134, 218.0
    %vm3941 = vcmp.ge.f32.partialorder %v135, 218.0
    %vm3942 = vcmp.lt.f32.partialorder %v134, 223.0
    %vm3943 = vcmp.lt.f32.partialorder %v135, 223.0
    %vm3944 = vmand %vm3940, %vm3942
    %vm3945 = vmand %vm3941, %vm3943
    %vm3946 = vmor %vm3938, %vm3944
    %vm3947 = vmor %vm3939, %vm3945
    %vm3948 = vcmp.lt.f32.partialorder %v115, 0.5
    %v3949 = vstv %s90
    %v3950 = vstv %s97
    %v3951 = vsel %vm3948, %v3949, %v3950
    %v3952 = vstv %s88
    %v3953 = vstv %s95
    %v3954 = vsel %vm3948, %v3952, %v3953
    %v3955 = vstv %s89
    %v3956 = vstv %s96
    %v3957 = vsel %vm3948, %v3955, %v3956
    %v3958 = vsub.f32 0.0, %v3918
    %v3959 = vsub.f32 0.0, %v3920
    %v3960 = vmul.f32 %v3958, 1.442695
    %v3961 = vpow.pop %v3960
    %v3962 = vmul.f32 %v3959, 1.442695
    %v3963 = vpow.pop %v3962
    %v3964 = vadd.f32 %v3961, 1.0
    %v3965 = vadd.f32 %v3963, 1.0
    %v3966 = vrcp.pop %v3964
    %v3967 = vmul.f32 1.0, %v3966
    %v3968 = vrcp.pop %v3965
    %v3969 = vmul.f32 1.0, %v3968
    %v3970 = vmul.f32 %v3967, %v3951
    %v3971 = vmul.f32 %v3969, %v3951
    %v3972 = vadd.f32 %v3970, %v3954
    %v3973 = vadd.f32 %v3971, %v3954
    %v3974 = vadd.f32 %v3970, %v3957
    %v3975 = vadd.f32 %v3971, %v3957
    %v3976 = vsel %vm3946, %v3974, %v3918
    %v3977 = vsel %vm3947, %v3975, %v3920
    %v3978 = vsel %vm3932, %v3972, %v3976
    %v3979 = vsel %vm3933, %v3973, %v3977
    %v3982 = vcombine.low %v3978, %v3979
    %v3984 = vunpack.c.l.s4 1983009808
    %v3985 = vunpack.c.0.s8 %v3984
    %v3986 = vlaneseq
    %v3987 = vshrl.u32 %v3986, 7
    %v3988 = vsub.s32 %v3985, %v3987
    %v3989 = vrot.slane %v3982, %v3988
    %3991 = vst [vmem:[%s21] sm:$0xf] %v3989
    %v3992 = vsel %vm3948, %v3978, 0.0
    %v3993 = vsel %vm3948, %v3979, 0.0
    %vm3994 = vcmask 1041408
    %v3995 = vsel %vm3994, %v3992, 0.0
    %v3996 = vrot.slane %v3995, 4
    %v3997 = vadd.f32 %v3995, %v3996
    %v3998 = vrot.slane %v3997, 2
    %v3999 = vadd.f32 %v3997, %v3998
    %v4000 = vrot.slane %v3999, 1
    %v4001 = vadd.f32 %v3999, %v4000
    %v4002 = vsel %vm3994, %v3993, 0.0
    %v4003 = vrot.slane %v4002, 4
    %v4004 = vadd.f32 %v4002, %v4003
    %v4005 = vrot.slane %v4004, 2
    %v4006 = vadd.f32 %v4004, %v4005
    %v4007 = vrot.slane %v4006, 1
    %v4008 = vadd.f32 %v4006, %v4007
    %vm4009 = vcmp.ge.f32.partialorder %v115, 0.5
    %v4010 = vsel %vm4009, %v3978, 0.0
    %v4011 = vsel %vm4009, %v3979, 0.0
    %v4012 = vsel %vm3994, %v4010, 0.0
    %v4013 = vrot.slane %v4012, 4
    %v4014 = vadd.f32 %v4012, %v4013
    %v4015 = vrot.slane %v4014, 2
    %v4016 = vadd.f32 %v4014, %v4015
    %v4017 = vrot.slane %v4016, 1
    %v4018 = vadd.f32 %v4016, %v4017
    %v4019 = vsel %vm3994, %v4011, 0.0
    %v4020 = vrot.slane %v4019, 4
    %v4021 = vadd.f32 %v4019, %v4020
    %v4022 = vrot.slane %v4021, 2
    %v4023 = vadd.f32 %v4021, %v4022
    %v4024 = vrot.slane %v4023, 1
    %v4025 = vadd.f32 %v4023, %v4024
    %v4026 = vld [vmem:[%s1] sm:$0xf]
    %v4027 = vld [vmem:[%s1 + $0x4] sm:$0xf]
    %v4028 = vld [vmem:[%s7] sm:$0xff]
    %v4029 = vld [vmem:[%s7 + $0x8] sm:$0xff]
    %v4030 = vld [vmem:[%s7 + $0x10] sm:$0xff]
    %v4031 = vld [vmem:[%s7 + $0x18] sm:$0xff]
    %v4032 = vld [vmem:[%s7 + $0x20] sm:$0xff]
    %v4033 = vld [vmem:[%s7 + $0x28] sm:$0xff]
    %v4034 = vld [vmem:[%s7 + $0x30] sm:$0xff]
    %v4035 = vld [vmem:[%s7 + $0x38] sm:$0xff]
    %v4036 = vld [vmem:[%s7 + $0x40] sm:$0xff]
    %v4037 = vld [vmem:[%s7 + $0x48] sm:$0xff]
    %v4038 = vld [vmem:[%s7 + $0x50] sm:$0xff]
    %v4039 = vld [vmem:[%s7 + $0x58] sm:$0xff]
    %v4040 = vld [vmem:[%s7 + $0x60] sm:$0xff]
    %v4041 = vld [vmem:[%s7 + $0x68] sm:$0xff]
    %v4042 = vld [vmem:[%s7 + $0x70] sm:$0xff]
    %v4043 = vld [vmem:[%s7 + $0x78] sm:$0xff]
    %v4044 = vld [vmem:[%s7 + $0x80] sm:$0xff]
    %v4045 = vld [vmem:[%s7 + $0x88] sm:$0xff]
    %v4046 = vld [vmem:[%s7 + $0x90] sm:$0xff]
    %v4047 = vld [vmem:[%s7 + $0x98] sm:$0xff]
    %v4048 = vld [vmem:[%s7 + $0xa0] sm:$0xff]
    %v4049 = vld [vmem:[%s7 + $0xa8] sm:$0xff]
    %v4050 = vld [vmem:[%s7 + $0xb0] sm:$0xff]
    %v4051 = vld [vmem:[%s7 + $0xb8] sm:$0xff]
    %v4052 = vld [vmem:[%s7 + $0xc0] sm:$0xff]
    %v4053 = vld [vmem:[%s7 + $0xc8] sm:$0xff]
    %v4054 = vld [vmem:[%s7 + $0xd0] sm:$0xff]
    %v4055 = vld [vmem:[%s7 + $0xd8] sm:$0xff]
    %v4056 = vld [vmem:[%s7 + $0xe0] sm:$0xff]
    %v4057 = vld [vmem:[%s7 + $0xe8] sm:$0xff]
    %v4058 = vld [vmem:[%s7 + $0xf0] sm:$0xff]
    %v4059 = vld [vmem:[%s7 + $0xf8] sm:$0xff]
    %v4060 = vld [vmem:[%s7 + $0x100] sm:$0xff]
    %v4061 = vld [vmem:[%s7 + $0x108] sm:$0xff]
    %v4062 = vld [vmem:[%s7 + $0x110] sm:$0xff]
    %v4063 = vld [vmem:[%s7 + $0x118] sm:$0xff]
    %v4064 = vld [vmem:[%s7 + $0x120] sm:$0xff]
    %v4065 = vld [vmem:[%s7 + $0x128] sm:$0xff]
    %v4066 = vld [vmem:[%s7 + $0x130] sm:$0xff]
    %v4067 = vld [vmem:[%s7 + $0x138] sm:$0xff]
    %v4068 = vld [vmem:[%s7 + $0x140] sm:$0xff]
    %v4069 = vld [vmem:[%s7 + $0x148] sm:$0xff]
    %v4070 = vld [vmem:[%s7 + $0x150] sm:$0xff]
    %v4071 = vld [vmem:[%s7 + $0x158] sm:$0xff]
    %v4072 = vld [vmem:[%s7 + $0x160] sm:$0xff]
    %v4073 = vld [vmem:[%s7 + $0x168] sm:$0xff]
    %v4074 = vld [vmem:[%s7 + $0x170] sm:$0xff]
    %v4075 = vld [vmem:[%s7 + $0x178] sm:$0xff]
    %v4076 = vld [vmem:[%s7 + $0x180] sm:$0xff]
    %v4077 = vld [vmem:[%s7 + $0x188] sm:$0xff]
    %v4078 = vld [vmem:[%s7 + $0x190] sm:$0xff]
    %v4079 = vld [vmem:[%s7 + $0x198] sm:$0xff]
    %v4080 = vld [vmem:[%s7 + $0x1a0] sm:$0xff]
    %v4081 = vld [vmem:[%s7 + $0x1a8] sm:$0xff]
    %v4082 = vld [vmem:[%s7 + $0x1b0] sm:$0xff]
    %v4083 = vld [vmem:[%s7 + $0x1b8] sm:$0xff]
    %v4084 = vld [vmem:[%s7 + $0x1c0] sm:$0xff]
    %v4085 = vld [vmem:[%s7 + $0x1c8] sm:$0xff]
    %v4086 = vld [vmem:[%s7 + $0x1d0] sm:$0xff]
    %v4087 = vld [vmem:[%s7 + $0x1d8] sm:$0xff]
    %v4088 = vld [vmem:[%s7 + $0x1e0] sm:$0xff]
    %v4089 = vld [vmem:[%s7 + $0x1e8] sm:$0xff]
    %v4090 = vld [vmem:[%s7 + $0x1f0] sm:$0xff]
    %v4091 = vld [vmem:[%s7 + $0x1f8] sm:$0xff]
    %v4092 = vld [vmem:[%s7 + $0x200] sm:$0xff]
    %v4093 = vld [vmem:[%s7 + $0x208] sm:$0xff]
    %v4094 = vld [vmem:[%s7 + $0x210] sm:$0xff]
    %v4095 = vld [vmem:[%s7 + $0x218] sm:$0xff]
    %v4096 = vld [vmem:[%s7 + $0x220] sm:$0xff]
    %v4097 = vld [vmem:[%s7 + $0x228] sm:$0xff]
    %v4098 = vld [vmem:[%s7 + $0x230] sm:$0xff]
    %v4099 = vld [vmem:[%s7 + $0x238] sm:$0xff]
    %v4100 = vld [vmem:[%s7 + $0x240] sm:$0xff]
    %v4101 = vld [vmem:[%s7 + $0x248] sm:$0xff]
    %v4102 = vld [vmem:[%s7 + $0x250] sm:$0xff]
    %v4103 = vld [vmem:[%s7 + $0x258] sm:$0xff]
    %v4104 = vld [vmem:[%s7 + $0x260] sm:$0xff]
    %v4105 = vld [vmem:[%s7 + $0x268] sm:$0xff]
    %v4106 = vld [vmem:[%s7 + $0x270] sm:$0xff]
    %v4107 = vld [vmem:[%s7 + $0x278] sm:$0xff]
    %v4108 = vld [vmem:[%s7 + $0x280] sm:$0xff]
    %v4109 = vld [vmem:[%s7 + $0x288] sm:$0xff]
    %v4110 = vld [vmem:[%s7 + $0x290] sm:$0xff]
    %v4111 = vld [vmem:[%s7 + $0x298] sm:$0xff]
    %v4112 = vld [vmem:[%s7 + $0x2a0] sm:$0xff]
    %v4113 = vld [vmem:[%s7 + $0x2a8] sm:$0xff]
    %v4114 = vld [vmem:[%s7 + $0x2b0] sm:$0xff]
    %v4115 = vld [vmem:[%s7 + $0x2b8] sm:$0xff]
    %v4116 = vld [vmem:[%s7 + $0x2c0] sm:$0xff]
    %v4117 = vld [vmem:[%s7 + $0x2c8] sm:$0xff]
    %v4118 = vld [vmem:[%s7 + $0x2d0] sm:$0xff]
    %v4119 = vld [vmem:[%s7 + $0x2d8] sm:$0xff]
    %v4120 = vld [vmem:[%s7 + $0x2e0] sm:$0xff]
    %v4121 = vld [vmem:[%s7 + $0x2e8] sm:$0xff]
    %v4122 = vld [vmem:[%s7 + $0x2f0] sm:$0xff]
    %v4123 = vld [vmem:[%s7 + $0x2f8] sm:$0xff]
    %v4124 = vld [vmem:[%s7 + $0x300] sm:$0xff]
    %v4125 = vld [vmem:[%s7 + $0x308] sm:$0xff]
    %v4126 = vld [vmem:[%s7 + $0x310] sm:$0xff]
    %v4127 = vld [vmem:[%s7 + $0x318] sm:$0xff]
    %v4128 = vld [vmem:[%s7 + $0x320] sm:$0xff]
    %v4129 = vld [vmem:[%s7 + $0x328] sm:$0xff]
    %v4130 = vld [vmem:[%s7 + $0x330] sm:$0xff]
    %v4131 = vld [vmem:[%s7 + $0x338] sm:$0xff]
    %v4132 = vld [vmem:[%s7 + $0x340] sm:$0xff]
    %v4133 = vld [vmem:[%s7 + $0x348] sm:$0xff]
    %v4134 = vld [vmem:[%s7 + $0x350] sm:$0xff]
    %v4135 = vld [vmem:[%s7 + $0x358] sm:$0xff]
    %v4136 = vld [vmem:[%s7 + $0x360] sm:$0xff]
    %v4137 = vld [vmem:[%s7 + $0x368] sm:$0xff]
    %v4138 = vld [vmem:[%s7 + $0x370] sm:$0xff]
    %v4139 = vld [vmem:[%s7 + $0x378] sm:$0xff]
    %v4140 = vld [vmem:[%s7 + $0x380] sm:$0xff]
    %v4141 = vld [vmem:[%s7 + $0x388] sm:$0xff]
    %v4142 = vld [vmem:[%s7 + $0x390] sm:$0xff]
    %v4143 = vld [vmem:[%s7 + $0x398] sm:$0xff]
    %v4144 = vld [vmem:[%s7 + $0x3a0] sm:$0xff]
    %v4145 = vld [vmem:[%s7 + $0x3a8] sm:$0xff]
    %v4146 = vld [vmem:[%s7 + $0x3b0] sm:$0xff]
    %v4147 = vld [vmem:[%s7 + $0x3b8] sm:$0xff]
    %v4148 = vld [vmem:[%s7 + $0x3c0] sm:$0xff]
    %v4149 = vld [vmem:[%s7 + $0x3c8] sm:$0xff]
    %v4150 = vld [vmem:[%s7 + $0x3d0] sm:$0xff]
    %v4151 = vld [vmem:[%s7 + $0x3d8] sm:$0xff]
    %v4152 = vld [vmem:[%s7 + $0x3e0] sm:$0xff]
    %v4153 = vld [vmem:[%s7 + $0x3e8] sm:$0xff]
    %v4154 = vld [vmem:[%s7 + $0x3f0] sm:$0xff]
    %v4155 = vld [vmem:[%s7 + $0x3f8] sm:$0xff]
    %v4156 = vld [vmem:[%s8] sm:$0xff]
    %v4157 = vld [vmem:[%s8 + $0x8] sm:$0xff]
    %v4158 = vld [vmem:[%s8 + $0x10] sm:$0xff]
    %v4159 = vld [vmem:[%s8 + $0x18] sm:$0xff]
    %v4160 = vld [vmem:[%s8 + $0x20] sm:$0xff]
    %v4161 = vld [vmem:[%s8 + $0x28] sm:$0xff]
    %v4162 = vld [vmem:[%s8 + $0x30] sm:$0xff]
    %v4163 = vld [vmem:[%s8 + $0x38] sm:$0xff]
    %v4164 = vld [vmem:[%s8 + $0x40] sm:$0xff]
    %v4165 = vld [vmem:[%s8 + $0x48] sm:$0xff]
    %v4166 = vld [vmem:[%s8 + $0x50] sm:$0xff]
    %v4167 = vld [vmem:[%s8 + $0x58] sm:$0xff]
    %v4168 = vld [vmem:[%s8 + $0x60] sm:$0xff]
    %v4169 = vld [vmem:[%s8 + $0x68] sm:$0xff]
    %v4170 = vld [vmem:[%s8 + $0x70] sm:$0xff]
    %v4171 = vld [vmem:[%s8 + $0x78] sm:$0xff]
    %v4172 = vld [vmem:[%s8 + $0x80] sm:$0xff]
    %v4173 = vld [vmem:[%s8 + $0x88] sm:$0xff]
    %v4174 = vld [vmem:[%s8 + $0x90] sm:$0xff]
    %v4175 = vld [vmem:[%s8 + $0x98] sm:$0xff]
    %v4176 = vld [vmem:[%s8 + $0xa0] sm:$0xff]
    %v4177 = vld [vmem:[%s8 + $0xa8] sm:$0xff]
    %v4178 = vld [vmem:[%s8 + $0xb0] sm:$0xff]
    %v4179 = vld [vmem:[%s8 + $0xb8] sm:$0xff]
    %v4180 = vld [vmem:[%s8 + $0xc0] sm:$0xff]
    %v4181 = vld [vmem:[%s8 + $0xc8] sm:$0xff]
    %v4182 = vld [vmem:[%s8 + $0xd0] sm:$0xff]
    %v4183 = vld [vmem:[%s8 + $0xd8] sm:$0xff]
    %v4184 = vld [vmem:[%s8 + $0xe0] sm:$0xff]
    %v4185 = vld [vmem:[%s8 + $0xe8] sm:$0xff]
    %v4186 = vld [vmem:[%s8 + $0xf0] sm:$0xff]
    %v4187 = vld [vmem:[%s8 + $0xf8] sm:$0xff]
    %v4188 = vld [vmem:[%s8 + $0x100] sm:$0xff]
    %v4189 = vld [vmem:[%s8 + $0x108] sm:$0xff]
    %v4190 = vld [vmem:[%s8 + $0x110] sm:$0xff]
    %v4191 = vld [vmem:[%s8 + $0x118] sm:$0xff]
    %v4192 = vld [vmem:[%s8 + $0x120] sm:$0xff]
    %v4193 = vld [vmem:[%s8 + $0x128] sm:$0xff]
    %v4194 = vld [vmem:[%s8 + $0x130] sm:$0xff]
    %v4195 = vld [vmem:[%s8 + $0x138] sm:$0xff]
    %v4196 = vld [vmem:[%s8 + $0x140] sm:$0xff]
    %v4197 = vld [vmem:[%s8 + $0x148] sm:$0xff]
    %v4198 = vld [vmem:[%s8 + $0x150] sm:$0xff]
    %v4199 = vld [vmem:[%s8 + $0x158] sm:$0xff]
    %v4200 = vld [vmem:[%s8 + $0x160] sm:$0xff]
    %v4201 = vld [vmem:[%s8 + $0x168] sm:$0xff]
    %v4202 = vld [vmem:[%s8 + $0x170] sm:$0xff]
    %v4203 = vld [vmem:[%s8 + $0x178] sm:$0xff]
    %v4204 = vld [vmem:[%s8 + $0x180] sm:$0xff]
    %v4205 = vld [vmem:[%s8 + $0x188] sm:$0xff]
    %v4206 = vld [vmem:[%s8 + $0x190] sm:$0xff]
    %v4207 = vld [vmem:[%s8 + $0x198] sm:$0xff]
    %v4208 = vld [vmem:[%s8 + $0x1a0] sm:$0xff]
    %v4209 = vld [vmem:[%s8 + $0x1a8] sm:$0xff]
    %v4210 = vld [vmem:[%s8 + $0x1b0] sm:$0xff]
    %v4211 = vld [vmem:[%s8 + $0x1b8] sm:$0xff]
    %v4212 = vld [vmem:[%s8 + $0x1c0] sm:$0xff]
    %v4213 = vld [vmem:[%s8 + $0x1c8] sm:$0xff]
    %v4214 = vld [vmem:[%s8 + $0x1d0] sm:$0xff]
    %v4215 = vld [vmem:[%s8 + $0x1d8] sm:$0xff]
    %v4216 = vld [vmem:[%s8 + $0x1e0] sm:$0xff]
    %v4217 = vld [vmem:[%s8 + $0x1e8] sm:$0xff]
    %v4218 = vld [vmem:[%s8 + $0x1f0] sm:$0xff]
    %v4219 = vld [vmem:[%s8 + $0x1f8] sm:$0xff]
    %4220 = vmatprep.subr.mxu0 %v4157
    %4221 = vmatpush1.msra.mxu0 %v4156
    %4222 = vmatprep.subr.mxu0 %v4159
    %4223 = vmatpush1.msra.mxu0 %v4158
    %4224 = vmatprep.subr.mxu0 %v4161
    %4225 = vmatpush1.msra.mxu0 %v4160
    %4226 = vmatprep.subr.mxu0 %v4163
    %4227 = vmatpush1.msra.mxu0 %v4162
    %4228 = vmatprep.subr.mxu0 %v4165
    %4229 = vmatpush1.msra.mxu0 %v4164
    %4230 = vmatprep.subr.mxu0 %v4167
    %4231 = vmatpush1.msra.mxu0 %v4166
    %4232 = vmatprep.subr.mxu0 %v4169
    %4233 = vmatpush1.msra.mxu0 %v4168
    %4234 = vmatprep.subr.mxu0 %v4171
    %4235 = vmatpush1.msra.mxu0 %v4170
    %4236 = vmatprep.subr.mxu0 %v4173
    %4237 = vmatpush1.msra.mxu0 %v4172
    %4238 = vmatprep.subr.mxu0 %v4175
    %4239 = vmatpush1.msra.mxu0 %v4174
    %4240 = vmatprep.subr.mxu0 %v4177
    %4241 = vmatpush1.msra.mxu0 %v4176
    %4242 = vmatprep.subr.mxu0 %v4179
    %4243 = vmatpush1.msra.mxu0 %v4178
    %4244 = vmatprep.subr.mxu0 %v4181
    %4245 = vmatpush1.msra.mxu0 %v4180
    %4246 = vmatprep.subr.mxu0 %v4183
    %4247 = vmatpush1.msra.mxu0 %v4182
    %4248 = vmatprep.subr.mxu0 %v4185
    %4249 = vmatpush1.msra.mxu0 %v4184
    %4250 = vmatprep.subr.mxu0 %v4187
    %4251 = vmatpush1.msra.mxu0 %v4186
    %4252 = vmatprep.subr.mxu0 %v4189
    %4253 = vmatpush1.msra.mxu0 %v4188
    %4254 = vmatprep.subr.mxu0 %v4191
    %4255 = vmatpush1.msra.mxu0 %v4190
    %4256 = vmatprep.subr.mxu0 %v4193
    %4257 = vmatpush1.msra.mxu0 %v4192
    %4258 = vmatprep.subr.mxu0 %v4195
    %4259 = vmatpush1.msra.mxu0 %v4194
    %4260 = vmatprep.subr.mxu0 %v4197
    %4261 = vmatpush1.msra.mxu0 %v4196
    %4262 = vmatprep.subr.mxu0 %v4199
    %4263 = vmatpush1.msra.mxu0 %v4198
    %4264 = vmatprep.subr.mxu0 %v4201
    %4265 = vmatpush1.msra.mxu0 %v4200
    %4266 = vmatprep.subr.mxu0 %v4203
    %4267 = vmatpush1.msra.mxu0 %v4202
    %4268 = vmatprep.subr.mxu0 %v4205
    %4269 = vmatpush1.msra.mxu0 %v4204
    %4270 = vmatprep.subr.mxu0 %v4207
    %4271 = vmatpush1.msra.mxu0 %v4206
    %4272 = vmatprep.subr.mxu0 %v4209
    %4273 = vmatpush1.msra.mxu0 %v4208
    %4274 = vmatprep.subr.mxu0 %v4211
    %4275 = vmatpush1.msra.mxu0 %v4210
    %4276 = vmatprep.subr.mxu0 %v4213
    %4277 = vmatpush1.msra.mxu0 %v4212
    %4278 = vmatprep.subr.mxu0 %v4215
    %4279 = vmatpush1.msra.mxu0 %v4214
    %4280 = vmatprep.subr.mxu0 %v4217
    %4281 = vmatpush1.msra.mxu0 %v4216
    %4282 = vmatprep.subr.mxu0 %v4219
    %4283 = vmatpush1.msra.mxu0 %v4218
    %4284 = vmatprep.mubr.f32.mxu0 %v4008
    %4285 = vmatmul.mubr.f32.gmra.mrb[0].mxu0 %v4001
    %v4286 = vpop.f32.mrb[0].mxu0
    %v4287 = vadd.f32 0.0, %v4286
    %v4288 = vpop.f32.mrb[0].mxu0
    %v4289 = vadd.f32 0.0, %v4288
    %4290 = vdwg.mxu0
    %v4292 = vlaneseq
    %v4293 = vshrl.u32 %v4292, 7
    %v4294 = vsub.s32 0, %v4293
    %v4295 = vrot.slane %v4026, %v4294
    %v4296 = vlaneseq
    %v4297 = vshrl.u32 %v4296, 7
    %v4298 = vsub.s32 1, %v4297
    %v4299 = vrot.slane %v4026, %v4298
    %v4300 = vlaneseq
    %v4301 = vshrl.u32 %v4300, 7
    %v4302 = vsub.s32 2, %v4301
    %v4303 = vrot.slane %v4026, %v4302
    %v4304 = vlaneseq
    %v4305 = vshrl.u32 %v4304, 7
    %v4306 = vsub.s32 3, %v4305
    %v4307 = vrot.slane %v4026, %v4306
    %4312 = vmatprep.subr.mxu0 %v4029
    %4313 = vmatpush1.msra.mxu0 %v4028
    %4314 = vmatprep.subr.mxu0 %v4031
    %4315 = vmatpush1.msra.mxu0 %v4030
    %4316 = vmatprep.subr.mxu0 %v4033
    %4317 = vmatpush1.msra.mxu0 %v4032
    %4318 = vmatprep.subr.mxu0 %v4035
    %4319 = vmatpush1.msra.mxu0 %v4034
    %4320 = vmatprep.subr.mxu0 %v4037
    %4321 = vmatpush1.msra.mxu0 %v4036
    %4322 = vmatprep.subr.mxu0 %v4039
    %4323 = vmatpush1.msra.mxu0 %v4038
    %4324 = vmatprep.subr.mxu0 %v4041
    %4325 = vmatpush1.msra.mxu0 %v4040
    %4326 = vmatprep.subr.mxu0 %v4043
    %4327 = vmatpush1.msra.mxu0 %v4042
    %4328 = vmatprep.subr.mxu0 %v4045
    %4329 = vmatpush1.msra.mxu0 %v4044
    %4330 = vmatprep.subr.mxu0 %v4047
    %4331 = vmatpush1.msra.mxu0 %v4046
    %4332 = vmatprep.subr.mxu0 %v4049
    %4333 = vmatpush1.msra.mxu0 %v4048
    %4334 = vmatprep.subr.mxu0 %v4051
    %4335 = vmatpush1.msra.mxu0 %v4050
    %4336 = vmatprep.subr.mxu0 %v4053
    %4337 = vmatpush1.msra.mxu0 %v4052
    %4338 = vmatprep.subr.mxu0 %v4055
    %4339 = vmatpush1.msra.mxu0 %v4054
    %4340 = vmatprep.subr.mxu0 %v4057
    %4341 = vmatpush1.msra.mxu0 %v4056
    %4342 = vmatprep.subr.mxu0 %v4059
    %4343 = vmatpush1.msra.mxu0 %v4058
    %4344 = vmatprep.subr.mxu0 %v4061
    %4345 = vmatpush1.msra.mxu0 %v4060
    %4346 = vmatprep.subr.mxu0 %v4063
    %4347 = vmatpush1.msra.mxu0 %v4062
    %4348 = vmatprep.subr.mxu0 %v4065
    %4349 = vmatpush1.msra.mxu0 %v4064
    %4350 = vmatprep.subr.mxu0 %v4067
    %4351 = vmatpush1.msra.mxu0 %v4066
    %4352 = vmatprep.subr.mxu0 %v4069
    %4353 = vmatpush1.msra.mxu0 %v4068
    %4354 = vmatprep.subr.mxu0 %v4071
    %4355 = vmatpush1.msra.mxu0 %v4070
    %4356 = vmatprep.subr.mxu0 %v4073
    %4357 = vmatpush1.msra.mxu0 %v4072
    %4358 = vmatprep.subr.mxu0 %v4075
    %4359 = vmatpush1.msra.mxu0 %v4074
    %4360 = vmatprep.subr.mxu0 %v4077
    %4361 = vmatpush1.msra.mxu0 %v4076
    %4362 = vmatprep.subr.mxu0 %v4079
    %4363 = vmatpush1.msra.mxu0 %v4078
    %4364 = vmatprep.subr.mxu0 %v4081
    %4365 = vmatpush1.msra.mxu0 %v4080
    %4366 = vmatprep.subr.mxu0 %v4083
    %4367 = vmatpush1.msra.mxu0 %v4082
    %4368 = vmatprep.subr.mxu0 %v4085
    %4369 = vmatpush1.msra.mxu0 %v4084
    %4370 = vmatprep.subr.mxu0 %v4087
    %4371 = vmatpush1.msra.mxu0 %v4086
    %4372 = vmatprep.subr.mxu0 %v4089
    %4373 = vmatpush1.msra.mxu0 %v4088
    %4374 = vmatprep.subr.mxu0 %v4091
    %4375 = vmatpush1.msra.mxu0 %v4090
    %4376 = vmatprep.mubr.f32.mxu0 %v4299
    %4377 = vmatmul.mubr.f32.gmra.mrb[0].mxu0 %v4295
    %v4378 = vpop.f32.mrb[0].mxu0
    %v4379 = vadd.f32 %v4287, %v4378
    %v4380 = vpop.f32.mrb[0].mxu0
    %v4381 = vadd.f32 %v4289, %v4380
    %4382 = vdwg.mxu0
    %4383 = vmatprep.subr.mxu0 %v4093
    %4384 = vmatpush1.msra.mxu0 %v4092
    %4385 = vmatprep.subr.mxu0 %v4095
    %4386 = vmatpush1.msra.mxu0 %v4094
    %4387 = vmatprep.subr.mxu0 %v4097
    %4388 = vmatpush1.msra.mxu0 %v4096
    %4389 = vmatprep.subr.mxu0 %v4099
    %4390 = vmatpush1.msra.mxu0 %v4098
    %4391 = vmatprep.subr.mxu0 %v4101
    %4392 = vmatpush1.msra.mxu0 %v4100
    %4393 = vmatprep.subr.mxu0 %v4103
    %4394 = vmatpush1.msra.mxu0 %v4102
    %4395 = vmatprep.subr.mxu0 %v4105
    %4396 = vmatpush1.msra.mxu0 %v4104
    %4397 = vmatprep.subr.mxu0 %v4107
    %4398 = vmatpush1.msra.mxu0 %v4106
    %4399 = vmatprep.subr.mxu0 %v4109
    %4400 = vmatpush1.msra.mxu0 %v4108
    %4401 = vmatprep.subr.mxu0 %v4111
    %4402 = vmatpush1.msra.mxu0 %v4110
    %4403 = vmatprep.subr.mxu0 %v4113
    %4404 = vmatpush1.msra.mxu0 %v4112
    %4405 = vmatprep.subr.mxu0 %v4115
    %4406 = vmatpush1.msra.mxu0 %v4114
    %4407 = vmatprep.subr.mxu0 %v4117
    %4408 = vmatpush1.msra.mxu0 %v4116
    %4409 = vmatprep.subr.mxu0 %v4119
    %4410 = vmatpush1.msra.mxu0 %v4118
    %4411 = vmatprep.subr.mxu0 %v4121
    %4412 = vmatpush1.msra.mxu0 %v4120
    %4413 = vmatprep.subr.mxu0 %v4123
    %4414 = vmatpush1.msra.mxu0 %v4122
    %4415 = vmatprep.subr.mxu0 %v4125
    %4416 = vmatpush1.msra.mxu0 %v4124
    %4417 = vmatprep.subr.mxu0 %v4127
    %4418 = vmatpush1.msra.mxu0 %v4126
    %4419 = vmatprep.subr.mxu0 %v4129
    %4420 = vmatpush1.msra.mxu0 %v4128
    %4421 = vmatprep.subr.mxu0 %v4131
    %4422 = vmatpush1.msra.mxu0 %v4130
    %4423 = vmatprep.subr.mxu0 %v4133
    %4424 = vmatpush1.msra.mxu0 %v4132
    %4425 = vmatprep.subr.mxu0 %v4135
    %4426 = vmatpush1.msra.mxu0 %v4134
    %4427 = vmatprep.subr.mxu0 %v4137
    %4428 = vmatpush1.msra.mxu0 %v4136
    %4429 = vmatprep.subr.mxu0 %v4139
    %4430 = vmatpush1.msra.mxu0 %v4138
    %4431 = vmatprep.subr.mxu0 %v4141
    %4432 = vmatpush1.msra.mxu0 %v4140
    %4433 = vmatprep.subr.mxu0 %v4143
    %4434 = vmatpush1.msra.mxu0 %v4142
    %4435 = vmatprep.subr.mxu0 %v4145
    %4436 = vmatpush1.msra.mxu0 %v4144
    %4437 = vmatprep.subr.mxu0 %v4147
    %4438 = vmatpush1.msra.mxu0 %v4146
    %4439 = vmatprep.subr.mxu0 %v4149
    %4440 = vmatpush1.msra.mxu0 %v4148
    %4441 = vmatprep.subr.mxu0 %v4151
    %4442 = vmatpush1.msra.mxu0 %v4150
    %4443 = vmatprep.subr.mxu0 %v4153
    %4444 = vmatpush1.msra.mxu0 %v4152
    %4445 = vmatprep.subr.mxu0 %v4155
    %4446 = vmatpush1.msra.mxu0 %v4154
    %4447 = vmatprep.mubr.f32.mxu0 %v4307
    %4448 = vmatmul.mubr.f32.gmra.mrb[0].mxu0 %v4303
    %v4449 = vpop.f32.mrb[0].mxu0
    %v4450 = vadd.f32 %v4379, %v4449
    %v4451 = vpop.f32.mrb[0].mxu0
    %v4452 = vadd.f32 %v4381, %v4451
    %4453 = vdwg.mxu0
    %v4454 = vld [vmem:[%s9] sm:$0xff]
    %v4455 = vld [vmem:[%s9 + $0x8] sm:$0xff]
    %v4456 = vld [vmem:[%s9 + $0x10] sm:$0xff]
    %v4457 = vld [vmem:[%s9 + $0x18] sm:$0xff]
    %v4458 = vld [vmem:[%s9 + $0x20] sm:$0xff]
    %v4459 = vld [vmem:[%s9 + $0x28] sm:$0xff]
    %v4460 = vld [vmem:[%s9 + $0x30] sm:$0xff]
    %v4461 = vld [vmem:[%s9 + $0x38] sm:$0xff]
    %v4462 = vld [vmem:[%s9 + $0x40] sm:$0xff]
    %v4463 = vld [vmem:[%s9 + $0x48] sm:$0xff]
    %v4464 = vld [vmem:[%s9 + $0x50] sm:$0xff]
    %v4465 = vld [vmem:[%s9 + $0x58] sm:$0xff]
    %v4466 = vld [vmem:[%s9 + $0x60] sm:$0xff]
    %v4467 = vld [vmem:[%s9 + $0x68] sm:$0xff]
    %v4468 = vld [vmem:[%s9 + $0x70] sm:$0xff]
    %v4469 = vld [vmem:[%s9 + $0x78] sm:$0xff]
    %v4470 = vld [vmem:[%s9 + $0x80] sm:$0xff]
    %v4471 = vld [vmem:[%s9 + $0x88] sm:$0xff]
    %v4472 = vld [vmem:[%s9 + $0x90] sm:$0xff]
    %v4473 = vld [vmem:[%s9 + $0x98] sm:$0xff]
    %v4474 = vld [vmem:[%s9 + $0xa0] sm:$0xff]
    %v4475 = vld [vmem:[%s9 + $0xa8] sm:$0xff]
    %v4476 = vld [vmem:[%s9 + $0xb0] sm:$0xff]
    %v4477 = vld [vmem:[%s9 + $0xb8] sm:$0xff]
    %v4478 = vld [vmem:[%s9 + $0xc0] sm:$0xff]
    %v4479 = vld [vmem:[%s9 + $0xc8] sm:$0xff]
    %v4480 = vld [vmem:[%s9 + $0xd0] sm:$0xff]
    %v4481 = vld [vmem:[%s9 + $0xd8] sm:$0xff]
    %v4482 = vld [vmem:[%s9 + $0xe0] sm:$0xff]
    %v4483 = vld [vmem:[%s9 + $0xe8] sm:$0xff]
    %v4484 = vld [vmem:[%s9 + $0xf0] sm:$0xff]
    %v4485 = vld [vmem:[%s9 + $0xf8] sm:$0xff]
    %v4486 = vld [vmem:[%s9 + $0x100] sm:$0xff]
    %v4487 = vld [vmem:[%s9 + $0x108] sm:$0xff]
    %v4488 = vld [vmem:[%s9 + $0x110] sm:$0xff]
    %v4489 = vld [vmem:[%s9 + $0x118] sm:$0xff]
    %v4490 = vld [vmem:[%s9 + $0x120] sm:$0xff]
    %v4491 = vld [vmem:[%s9 + $0x128] sm:$0xff]
    %v4492 = vld [vmem:[%s9 + $0x130] sm:$0xff]
    %v4493 = vld [vmem:[%s9 + $0x138] sm:$0xff]
    %v4494 = vld [vmem:[%s9 + $0x140] sm:$0xff]
    %v4495 = vld [vmem:[%s9 + $0x148] sm:$0xff]
    %v4496 = vld [vmem:[%s9 + $0x150] sm:$0xff]
    %v4497 = vld [vmem:[%s9 + $0x158] sm:$0xff]
    %v4498 = vld [vmem:[%s9 + $0x160] sm:$0xff]
    %v4499 = vld [vmem:[%s9 + $0x168] sm:$0xff]
    %v4500 = vld [vmem:[%s9 + $0x170] sm:$0xff]
    %v4501 = vld [vmem:[%s9 + $0x178] sm:$0xff]
    %v4502 = vld [vmem:[%s9 + $0x180] sm:$0xff]
    %v4503 = vld [vmem:[%s9 + $0x188] sm:$0xff]
    %v4504 = vld [vmem:[%s9 + $0x190] sm:$0xff]
    %v4505 = vld [vmem:[%s9 + $0x198] sm:$0xff]
    %v4506 = vld [vmem:[%s9 + $0x1a0] sm:$0xff]
    %v4507 = vld [vmem:[%s9 + $0x1a8] sm:$0xff]
    %v4508 = vld [vmem:[%s9 + $0x1b0] sm:$0xff]
    %v4509 = vld [vmem:[%s9 + $0x1b8] sm:$0xff]
    %v4510 = vld [vmem:[%s9 + $0x1c0] sm:$0xff]
    %v4511 = vld [vmem:[%s9 + $0x1c8] sm:$0xff]
    %v4512 = vld [vmem:[%s9 + $0x1d0] sm:$0xff]
    %v4513 = vld [vmem:[%s9 + $0x1d8] sm:$0xff]
    %v4514 = vld [vmem:[%s9 + $0x1e0] sm:$0xff]
    %v4515 = vld [vmem:[%s9 + $0x1e8] sm:$0xff]
    %v4516 = vld [vmem:[%s9 + $0x1f0] sm:$0xff]
    %v4517 = vld [vmem:[%s9 + $0x1f8] sm:$0xff]
    %4518 = vmatprep.subr.mxu0 %v4455
    %4519 = vmatpush1.msra.mxu0 %v4454
    %4520 = vmatprep.subr.mxu0 %v4457
    %4521 = vmatpush1.msra.mxu0 %v4456
    %4522 = vmatprep.subr.mxu0 %v4459
    %4523 = vmatpush1.msra.mxu0 %v4458
    %4524 = vmatprep.subr.mxu0 %v4461
    %4525 = vmatpush1.msra.mxu0 %v4460
    %4526 = vmatprep.subr.mxu0 %v4463
    %4527 = vmatpush1.msra.mxu0 %v4462
    %4528 = vmatprep.subr.mxu0 %v4465
    %4529 = vmatpush1.msra.mxu0 %v4464
    %4530 = vmatprep.subr.mxu0 %v4467
    %4531 = vmatpush1.msra.mxu0 %v4466
    %4532 = vmatprep.subr.mxu0 %v4469
    %4533 = vmatpush1.msra.mxu0 %v4468
    %4534 = vmatprep.subr.mxu0 %v4471
    %4535 = vmatpush1.msra.mxu0 %v4470
    %4536 = vmatprep.subr.mxu0 %v4473
    %4537 = vmatpush1.msra.mxu0 %v4472
    %4538 = vmatprep.subr.mxu0 %v4475
    %4539 = vmatpush1.msra.mxu0 %v4474
    %4540 = vmatprep.subr.mxu0 %v4477
    %4541 = vmatpush1.msra.mxu0 %v4476
    %4542 = vmatprep.subr.mxu0 %v4479
    %4543 = vmatpush1.msra.mxu0 %v4478
    %4544 = vmatprep.subr.mxu0 %v4481
    %4545 = vmatpush1.msra.mxu0 %v4480
    %4546 = vmatprep.subr.mxu0 %v4483
    %4547 = vmatpush1.msra.mxu0 %v4482
    %4548 = vmatprep.subr.mxu0 %v4485
    %4549 = vmatpush1.msra.mxu0 %v4484
    %4550 = vmatprep.subr.mxu0 %v4487
    %4551 = vmatpush1.msra.mxu0 %v4486
    %4552 = vmatprep.subr.mxu0 %v4489
    %4553 = vmatpush1.msra.mxu0 %v4488
    %4554 = vmatprep.subr.mxu0 %v4491
    %4555 = vmatpush1.msra.mxu0 %v4490
    %4556 = vmatprep.subr.mxu0 %v4493
    %4557 = vmatpush1.msra.mxu0 %v4492
    %4558 = vmatprep.subr.mxu0 %v4495
    %4559 = vmatpush1.msra.mxu0 %v4494
    %4560 = vmatprep.subr.mxu0 %v4497
    %4561 = vmatpush1.msra.mxu0 %v4496
    %4562 = vmatprep.subr.mxu0 %v4499
    %4563 = vmatpush1.msra.mxu0 %v4498
    %4564 = vmatprep.subr.mxu0 %v4501
    %4565 = vmatpush1.msra.mxu0 %v4500
    %4566 = vmatprep.subr.mxu0 %v4503
    %4567 = vmatpush1.msra.mxu0 %v4502
    %4568 = vmatprep.subr.mxu0 %v4505
    %4569 = vmatpush1.msra.mxu0 %v4504
    %4570 = vmatprep.subr.mxu0 %v4507
    %4571 = vmatpush1.msra.mxu0 %v4506
    %4572 = vmatprep.subr.mxu0 %v4509
    %4573 = vmatpush1.msra.mxu0 %v4508
    %4574 = vmatprep.subr.mxu0 %v4511
    %4575 = vmatpush1.msra.mxu0 %v4510
    %4576 = vmatprep.subr.mxu0 %v4513
    %4577 = vmatpush1.msra.mxu0 %v4512
    %4578 = vmatprep.subr.mxu0 %v4515
    %4579 = vmatpush1.msra.mxu0 %v4514
    %4580 = vmatprep.subr.mxu0 %v4517
    %4581 = vmatpush1.msra.mxu0 %v4516
    %4582 = vmatprep.mubr.f32.mxu0 %v4025
    %4583 = vmatmul.mubr.f32.gmra.mrb[0].mxu0 %v4018
    %v4584 = vpop.f32.mrb[0].mxu0
    %v4585 = vadd.f32 0.0, %v4584
    %v4586 = vpop.f32.mrb[0].mxu0
    %v4587 = vadd.f32 0.0, %v4586
    %4588 = vdwg.mxu0
    %v4589 = vadd.f32 %v4450, %v4585
    %v4590 = vadd.f32 %v4452, %v4587
    %v4591 = vld [vmem:[%s10] sm:$0xff]
    %v4592 = vld [vmem:[%s10 + $0x8] sm:$0xff]
    %v4593 = vld [vmem:[%s10 + $0x10] sm:$0xff]
    %v4594 = vld [vmem:[%s10 + $0x18] sm:$0xff]
    %v4595 = vld [vmem:[%s10 + $0x20] sm:$0xff]
    %v4596 = vld [vmem:[%s10 + $0x28] sm:$0xff]
    %v4597 = vld [vmem:[%s10 + $0x30] sm:$0xff]
    %v4598 = vld [vmem:[%s10 + $0x38] sm:$0xff]
    %v4599 = vld [vmem:[%s10 + $0x40] sm:$0xff]
    %v4600 = vld [vmem:[%s10 + $0x48] sm:$0xff]
    %v4601 = vld [vmem:[%s10 + $0x50] sm:$0xff]
    %v4602 = vld [vmem:[%s10 + $0x58] sm:$0xff]
    %v4603 = vld [vmem:[%s10 + $0x60] sm:$0xff]
    %v4604 = vld [vmem:[%s10 + $0x68] sm:$0xff]
    %v4605 = vld [vmem:[%s10 + $0x70] sm:$0xff]
    %v4606 = vld [vmem:[%s10 + $0x78] sm:$0xff]
    %v4607 = vld [vmem:[%s10 + $0x80] sm:$0xff]
    %v4608 = vld [vmem:[%s10 + $0x88] sm:$0xff]
    %v4609 = vld [vmem:[%s10 + $0x90] sm:$0xff]
    %v4610 = vld [vmem:[%s10 + $0x98] sm:$0xff]
    %v4611 = vld [vmem:[%s10 + $0xa0] sm:$0xff]
    %v4612 = vld [vmem:[%s10 + $0xa8] sm:$0xff]
    %v4613 = vld [vmem:[%s10 + $0xb0] sm:$0xff]
    %v4614 = vld [vmem:[%s10 + $0xb8] sm:$0xff]
    %v4615 = vld [vmem:[%s10 + $0xc0] sm:$0xff]
    %v4616 = vld [vmem:[%s10 + $0xc8] sm:$0xff]
    %v4617 = vld [vmem:[%s10 + $0xd0] sm:$0xff]
    %v4618 = vld [vmem:[%s10 + $0xd8] sm:$0xff]
    %v4619 = vld [vmem:[%s10 + $0xe0] sm:$0xff]
    %v4620 = vld [vmem:[%s10 + $0xe8] sm:$0xff]
    %v4621 = vld [vmem:[%s10 + $0xf0] sm:$0xff]
    %v4622 = vld [vmem:[%s10 + $0xf8] sm:$0xff]
    %v4623 = vld [vmem:[%s10 + $0x100] sm:$0xff]
    %v4624 = vld [vmem:[%s10 + $0x108] sm:$0xff]
    %v4625 = vld [vmem:[%s10 + $0x110] sm:$0xff]
    %v4626 = vld [vmem:[%s10 + $0x118] sm:$0xff]
    %v4627 = vld [vmem:[%s10 + $0x120] sm:$0xff]
    %v4628 = vld [vmem:[%s10 + $0x128] sm:$0xff]
    %v4629 = vld [vmem:[%s10 + $0x130] sm:$0xff]
    %v4630 = vld [vmem:[%s10 + $0x138] sm:$0xff]
    %v4631 = vld [vmem:[%s10 + $0x140] sm:$0xff]
    %v4632 = vld [vmem:[%s10 + $0x148] sm:$0xff]
    %v4633 = vld [vmem:[%s10 + $0x150] sm:$0xff]
    %v4634 = vld [vmem:[%s10 + $0x158] sm:$0xff]
    %v4635 = vld [vmem:[%s10 + $0x160] sm:$0xff]
    %v4636 = vld [vmem:[%s10 + $0x168] sm:$0xff]
    %v4637 = vld [vmem:[%s10 + $0x170] sm:$0xff]
    %v4638 = vld [vmem:[%s10 + $0x178] sm:$0xff]
    %v4639 = vld [vmem:[%s10 + $0x180] sm:$0xff]
    %v4640 = vld [vmem:[%s10 + $0x188] sm:$0xff]
    %v4641 = vld [vmem:[%s10 + $0x190] sm:$0xff]
    %v4642 = vld [vmem:[%s10 + $0x198] sm:$0xff]
    %v4643 = vld [vmem:[%s10 + $0x1a0] sm:$0xff]
    %v4644 = vld [vmem:[%s10 + $0x1a8] sm:$0xff]
    %v4645 = vld [vmem:[%s10 + $0x1b0] sm:$0xff]
    %v4646 = vld [vmem:[%s10 + $0x1b8] sm:$0xff]
    %v4647 = vld [vmem:[%s10 + $0x1c0] sm:$0xff]
    %v4648 = vld [vmem:[%s10 + $0x1c8] sm:$0xff]
    %v4649 = vld [vmem:[%s10 + $0x1d0] sm:$0xff]
    %v4650 = vld [vmem:[%s10 + $0x1d8] sm:$0xff]
    %v4651 = vld [vmem:[%s10 + $0x1e0] sm:$0xff]
    %v4652 = vld [vmem:[%s10 + $0x1e8] sm:$0xff]
    %v4653 = vld [vmem:[%s10 + $0x1f0] sm:$0xff]
    %v4654 = vld [vmem:[%s10 + $0x1f8] sm:$0xff]
    %4655 = vmatprep.subr.mxu0 %v4592
    %4656 = vmatpush1.msra.mxu0 %v4591
    %4657 = vmatprep.subr.mxu0 %v4594
    %4658 = vmatpush1.msra.mxu0 %v4593
    %4659 = vmatprep.subr.mxu0 %v4596
    %4660 = vmatpush1.msra.mxu0 %v4595
    %4661 = vmatprep.subr.mxu0 %v4598
    %4662 = vmatpush1.msra.mxu0 %v4597
    %4663 = vmatprep.subr.mxu0 %v4600
    %4664 = vmatpush1.msra.mxu0 %v4599
    %4665 = vmatprep.subr.mxu0 %v4602
    %4666 = vmatpush1.msra.mxu0 %v4601
    %4667 = vmatprep.subr.mxu0 %v4604
    %4668 = vmatpush1.msra.mxu0 %v4603
    %4669 = vmatprep.subr.mxu0 %v4606
    %4670 = vmatpush1.msra.mxu0 %v4605
    %4671 = vmatprep.subr.mxu0 %v4608
    %4672 = vmatpush1.msra.mxu0 %v4607
    %4673 = vmatprep.subr.mxu0 %v4610
    %4674 = vmatpush1.msra.mxu0 %v4609
    %4675 = vmatprep.subr.mxu0 %v4612
    %4676 = vmatpush1.msra.mxu0 %v4611
    %4677 = vmatprep.subr.mxu0 %v4614
    %4678 = vmatpush1.msra.mxu0 %v4613
    %4679 = vmatprep.subr.mxu0 %v4616
    %4680 = vmatpush1.msra.mxu0 %v4615
    %4681 = vmatprep.subr.mxu0 %v4618
    %4682 = vmatpush1.msra.mxu0 %v4617
    %4683 = vmatprep.subr.mxu0 %v4620
    %4684 = vmatpush1.msra.mxu0 %v4619
    %4685 = vmatprep.subr.mxu0 %v4622
    %4686 = vmatpush1.msra.mxu0 %v4621
    %4687 = vmatprep.subr.mxu0 %v4624
    %4688 = vmatpush1.msra.mxu0 %v4623
    %4689 = vmatprep.subr.mxu0 %v4626
    %4690 = vmatpush1.msra.mxu0 %v4625
    %4691 = vmatprep.subr.mxu0 %v4628
    %4692 = vmatpush1.msra.mxu0 %v4627
    %4693 = vmatprep.subr.mxu0 %v4630
    %4694 = vmatpush1.msra.mxu0 %v4629
    %4695 = vmatprep.subr.mxu0 %v4632
    %4696 = vmatpush1.msra.mxu0 %v4631
    %4697 = vmatprep.subr.mxu0 %v4634
    %4698 = vmatpush1.msra.mxu0 %v4633
    %4699 = vmatprep.subr.mxu0 %v4636
    %4700 = vmatpush1.msra.mxu0 %v4635
    %4701 = vmatprep.subr.mxu0 %v4638
    %4702 = vmatpush1.msra.mxu0 %v4637
    %4703 = vmatprep.subr.mxu0 %v4640
    %4704 = vmatpush1.msra.mxu0 %v4639
    %4705 = vmatprep.subr.mxu0 %v4642
    %4706 = vmatpush1.msra.mxu0 %v4641
    %4707 = vmatprep.subr.mxu0 %v4644
    %4708 = vmatpush1.msra.mxu0 %v4643
    %4709 = vmatprep.subr.mxu0 %v4646
    %4710 = vmatpush1.msra.mxu0 %v4645
    %4711 = vmatprep.subr.mxu0 %v4648
    %4712 = vmatpush1.msra.mxu0 %v4647
    %4713 = vmatprep.subr.mxu0 %v4650
    %4714 = vmatpush1.msra.mxu0 %v4649
    %4715 = vmatprep.subr.mxu0 %v4652
    %4716 = vmatpush1.msra.mxu0 %v4651
    %4717 = vmatprep.subr.mxu0 %v4654
    %4718 = vmatpush1.msra.mxu0 %v4653
    %4719 = vmatprep.mubr.f32.mxu0 %v4008
    %4720 = vmatmul.mubr.f32.gmra.mrb[0].mxu0 %v4001
    %v4721 = vpop.f32.mrb[0].mxu0
    %v4722 = vadd.f32 0.0, %v4721
    %v4723 = vpop.f32.mrb[0].mxu0
    %v4724 = vadd.f32 0.0, %v4723
    %4725 = vdwg.mxu0
    %v4727 = vlaneseq
    %v4728 = vshrl.u32 %v4727, 7
    %v4729 = vsub.s32 0, %v4728
    %v4730 = vrot.slane %v4027, %v4729
    %v4731 = vlaneseq
    %v4732 = vshrl.u32 %v4731, 7
    %v4733 = vsub.s32 1, %v4732
    %v4734 = vrot.slane %v4027, %v4733
    %v4735 = vlaneseq
    %v4736 = vshrl.u32 %v4735, 7
    %v4737 = vsub.s32 2, %v4736
    %v4738 = vrot.slane %v4027, %v4737
    %v4739 = vlaneseq
    %v4740 = vshrl.u32 %v4739, 7
    %v4741 = vsub.s32 3, %v4740
    %v4742 = vrot.slane %v4027, %v4741
    %4747 = vmatprep.subr.mxu0 %v4029
    %4748 = vmatpush1.msra.mxu0 %v4028
    %4749 = vmatprep.subr.mxu0 %v4031
    %4750 = vmatpush1.msra.mxu0 %v4030
    %4751 = vmatprep.subr.mxu0 %v4033
    %4752 = vmatpush1.msra.mxu0 %v4032
    %4753 = vmatprep.subr.mxu0 %v4035
    %4754 = vmatpush1.msra.mxu0 %v4034
    %4755 = vmatprep.subr.mxu0 %v4037
    %4756 = vmatpush1.msra.mxu0 %v4036
    %4757 = vmatprep.subr.mxu0 %v4039
    %4758 = vmatpush1.msra.mxu0 %v4038
    %4759 = vmatprep.subr.mxu0 %v4041
    %4760 = vmatpush1.msra.mxu0 %v4040
    %4761 = vmatprep.subr.mxu0 %v4043
    %4762 = vmatpush1.msra.mxu0 %v4042
    %4763 = vmatprep.subr.mxu0 %v4045
    %4764 = vmatpush1.msra.mxu0 %v4044
    %4765 = vmatprep.subr.mxu0 %v4047
    %4766 = vmatpush1.msra.mxu0 %v4046
    %4767 = vmatprep.subr.mxu0 %v4049
    %4768 = vmatpush1.msra.mxu0 %v4048
    %4769 = vmatprep.subr.mxu0 %v4051
    %4770 = vmatpush1.msra.mxu0 %v4050
    %4771 = vmatprep.subr.mxu0 %v4053
    %4772 = vmatpush1.msra.mxu0 %v4052
    %4773 = vmatprep.subr.mxu0 %v4055
    %4774 = vmatpush1.msra.mxu0 %v4054
    %4775 = vmatprep.subr.mxu0 %v4057
    %4776 = vmatpush1.msra.mxu0 %v4056
    %4777 = vmatprep.subr.mxu0 %v4059
    %4778 = vmatpush1.msra.mxu0 %v4058
    %4779 = vmatprep.subr.mxu0 %v4061
    %4780 = vmatpush1.msra.mxu0 %v4060
    %4781 = vmatprep.subr.mxu0 %v4063
    %4782 = vmatpush1.msra.mxu0 %v4062
    %4783 = vmatprep.subr.mxu0 %v4065
    %4784 = vmatpush1.msra.mxu0 %v4064
    %4785 = vmatprep.subr.mxu0 %v4067
    %4786 = vmatpush1.msra.mxu0 %v4066
    %4787 = vmatprep.subr.mxu0 %v4069
    %4788 = vmatpush1.msra.mxu0 %v4068
    %4789 = vmatprep.subr.mxu0 %v4071
    %4790 = vmatpush1.msra.mxu0 %v4070
    %4791 = vmatprep.subr.mxu0 %v4073
    %4792 = vmatpush1.msra.mxu0 %v4072
    %4793 = vmatprep.subr.mxu0 %v4075
    %4794 = vmatpush1.msra.mxu0 %v4074
    %4795 = vmatprep.subr.mxu0 %v4077
    %4796 = vmatpush1.msra.mxu0 %v4076
    %4797 = vmatprep.subr.mxu0 %v4079
    %4798 = vmatpush1.msra.mxu0 %v4078
    %4799 = vmatprep.subr.mxu0 %v4081
    %4800 = vmatpush1.msra.mxu0 %v4080
    %4801 = vmatprep.subr.mxu0 %v4083
    %4802 = vmatpush1.msra.mxu0 %v4082
    %4803 = vmatprep.subr.mxu0 %v4085
    %4804 = vmatpush1.msra.mxu0 %v4084
    %4805 = vmatprep.subr.mxu0 %v4087
    %4806 = vmatpush1.msra.mxu0 %v4086
    %4807 = vmatprep.subr.mxu0 %v4089
    %4808 = vmatpush1.msra.mxu0 %v4088
    %4809 = vmatprep.subr.mxu0 %v4091
    %4810 = vmatpush1.msra.mxu0 %v4090
    %4811 = vmatprep.mubr.f32.mxu0 %v4734
    %4812 = vmatmul.mubr.f32.gmra.mrb[0].mxu0 %v4730
    %v4813 = vpop.f32.mrb[0].mxu0
    %v4814 = vadd.f32 %v4722, %v4813
    %v4815 = vpop.f32.mrb[0].mxu0
    %v4816 = vadd.f32 %v4724, %v4815
    %4817 = vdwg.mxu0
    %4818 = vmatprep.subr.mxu0 %v4093
    %4819 = vmatpush1.msra.mxu0 %v4092
    %4820 = vmatprep.subr.mxu0 %v4095
    %4821 = vmatpush1.msra.mxu0 %v4094
    %4822 = vmatprep.subr.mxu0 %v4097
    %4823 = vmatpush1.msra.mxu0 %v4096
    %4824 = vmatprep.subr.mxu0 %v4099
    %4825 = vmatpush1.msra.mxu0 %v4098
    %4826 = vmatprep.subr.mxu0 %v4101
    %4827 = vmatpush1.msra.mxu0 %v4100
    %4828 = vmatprep.subr.mxu0 %v4103
    %4829 = vmatpush1.msra.mxu0 %v4102
    %4830 = vmatprep.subr.mxu0 %v4105
    %4831 = vmatpush1.msra.mxu0 %v4104
    %4832 = vmatprep.subr.mxu0 %v4107
    %4833 = vmatpush1.msra.mxu0 %v4106
    %4834 = vmatprep.subr.mxu0 %v4109
    %4835 = vmatpush1.msra.mxu0 %v4108
    %4836 = vmatprep.subr.mxu0 %v4111
    %4837 = vmatpush1.msra.mxu0 %v4110
    %4838 = vmatprep.subr.mxu0 %v4113
    %4839 = vmatpush1.msra.mxu0 %v4112
    %4840 = vmatprep.subr.mxu0 %v4115
    %4841 = vmatpush1.msra.mxu0 %v4114
    %4842 = vmatprep.subr.mxu0 %v4117
    %4843 = vmatpush1.msra.mxu0 %v4116
    %4844 = vmatprep.subr.mxu0 %v4119
    %4845 = vmatpush1.msra.mxu0 %v4118
    %4846 = vmatprep.subr.mxu0 %v4121
    %4847 = vmatpush1.msra.mxu0 %v4120
    %4848 = vmatprep.subr.mxu0 %v4123
    %4849 = vmatpush1.msra.mxu0 %v4122
    %4850 = vmatprep.subr.mxu0 %v4125
    %4851 = vmatpush1.msra.mxu0 %v4124
    %4852 = vmatprep.subr.mxu0 %v4127
    %4853 = vmatpush1.msra.mxu0 %v4126
    %4854 = vmatprep.subr.mxu0 %v4129
    %4855 = vmatpush1.msra.mxu0 %v4128
    %4856 = vmatprep.subr.mxu0 %v4131
    %4857 = vmatpush1.msra.mxu0 %v4130
    %4858 = vmatprep.subr.mxu0 %v4133
    %4859 = vmatpush1.msra.mxu0 %v4132
    %4860 = vmatprep.subr.mxu0 %v4135
    %4861 = vmatpush1.msra.mxu0 %v4134
    %4862 = vmatprep.subr.mxu0 %v4137
    %4863 = vmatpush1.msra.mxu0 %v4136
    %4864 = vmatprep.subr.mxu0 %v4139
    %4865 = vmatpush1.msra.mxu0 %v4138
    %4866 = vmatprep.subr.mxu0 %v4141
    %4867 = vmatpush1.msra.mxu0 %v4140
    %4868 = vmatprep.subr.mxu0 %v4143
    %4869 = vmatpush1.msra.mxu0 %v4142
    %4870 = vmatprep.subr.mxu0 %v4145
    %4871 = vmatpush1.msra.mxu0 %v4144
    %4872 = vmatprep.subr.mxu0 %v4147
    %4873 = vmatpush1.msra.mxu0 %v4146
    %4874 = vmatprep.subr.mxu0 %v4149
    %4875 = vmatpush1.msra.mxu0 %v4148
    %4876 = vmatprep.subr.mxu0 %v4151
    %4877 = vmatpush1.msra.mxu0 %v4150
    %4878 = vmatprep.subr.mxu0 %v4153
    %4879 = vmatpush1.msra.mxu0 %v4152
    %4880 = vmatprep.subr.mxu0 %v4155
    %4881 = vmatpush1.msra.mxu0 %v4154
    %4882 = vmatprep.mubr.f32.mxu0 %v4742
    %4883 = vmatmul.mubr.f32.gmra.mrb[0].mxu0 %v4738
    %v4884 = vpop.f32.mrb[0].mxu0
    %v4885 = vadd.f32 %v4814, %v4884
    %v4886 = vpop.f32.mrb[0].mxu0
    %v4887 = vadd.f32 %v4816, %v4886
    %4888 = vdwg.mxu0
    %v4889 = vld [vmem:[%s11] sm:$0xff]
    %v4890 = vld [vmem:[%s11 + $0x8] sm:$0xff]
    %v4891 = vld [vmem:[%s11 + $0x10] sm:$0xff]
    %v4892 = vld [vmem:[%s11 + $0x18] sm:$0xff]
    %v4893 = vld [vmem:[%s11 + $0x20] sm:$0xff]
    %v4894 = vld [vmem:[%s11 + $0x28] sm:$0xff]
    %v4895 = vld [vmem:[%s11 + $0x30] sm:$0xff]
    %v4896 = vld [vmem:[%s11 + $0x38] sm:$0xff]
    %v4897 = vld [vmem:[%s11 + $0x40] sm:$0xff]
    %v4898 = vld [vmem:[%s11 + $0x48] sm:$0xff]
    %v4899 = vld [vmem:[%s11 + $0x50] sm:$0xff]
    %v4900 = vld [vmem:[%s11 + $0x58] sm:$0xff]
    %v4901 = vld [vmem:[%s11 + $0x60] sm:$0xff]
    %v4902 = vld [vmem:[%s11 + $0x68] sm:$0xff]
    %v4903 = vld [vmem:[%s11 + $0x70] sm:$0xff]
    %v4904 = vld [vmem:[%s11 + $0x78] sm:$0xff]
    %v4905 = vld [vmem:[%s11 + $0x80] sm:$0xff]
    %v4906 = vld [vmem:[%s11 + $0x88] sm:$0xff]
    %v4907 = vld [vmem:[%s11 + $0x90] sm:$0xff]
    %v4908 = vld [vmem:[%s11 + $0x98] sm:$0xff]
    %v4909 = vld [vmem:[%s11 + $0xa0] sm:$0xff]
    %v4910 = vld [vmem:[%s11 + $0xa8] sm:$0xff]
    %v4911 = vld [vmem:[%s11 + $0xb0] sm:$0xff]
    %v4912 = vld [vmem:[%s11 + $0xb8] sm:$0xff]
    %v4913 = vld [vmem:[%s11 + $0xc0] sm:$0xff]
    %v4914 = vld [vmem:[%s11 + $0xc8] sm:$0xff]
    %v4915 = vld [vmem:[%s11 + $0xd0] sm:$0xff]
    %v4916 = vld [vmem:[%s11 + $0xd8] sm:$0xff]
    %v4917 = vld [vmem:[%s11 + $0xe0] sm:$0xff]
    %v4918 = vld [vmem:[%s11 + $0xe8] sm:$0xff]
    %v4919 = vld [vmem:[%s11 + $0xf0] sm:$0xff]
    %v4920 = vld [vmem:[%s11 + $0xf8] sm:$0xff]
    %v4921 = vld [vmem:[%s11 + $0x100] sm:$0xff]
    %v4922 = vld [vmem:[%s11 + $0x108] sm:$0xff]
    %v4923 = vld [vmem:[%s11 + $0x110] sm:$0xff]
    %v4924 = vld [vmem:[%s11 + $0x118] sm:$0xff]
    %v4925 = vld [vmem:[%s11 + $0x120] sm:$0xff]
    %v4926 = vld [vmem:[%s11 + $0x128] sm:$0xff]
    %v4927 = vld [vmem:[%s11 + $0x130] sm:$0xff]
    %v4928 = vld [vmem:[%s11 + $0x138] sm:$0xff]
    %v4929 = vld [vmem:[%s11 + $0x140] sm:$0xff]
    %v4930 = vld [vmem:[%s11 + $0x148] sm:$0xff]
    %v4931 = vld [vmem:[%s11 + $0x150] sm:$0xff]
    %v4932 = vld [vmem:[%s11 + $0x158] sm:$0xff]
    %v4933 = vld [vmem:[%s11 + $0x160] sm:$0xff]
    %v4934 = vld [vmem:[%s11 + $0x168] sm:$0xff]
    %v4935 = vld [vmem:[%s11 + $0x170] sm:$0xff]
    %v4936 = vld [vmem:[%s11 + $0x178] sm:$0xff]
    %v4937 = vld [vmem:[%s11 + $0x180] sm:$0xff]
    %v4938 = vld [vmem:[%s11 + $0x188] sm:$0xff]
    %v4939 = vld [vmem:[%s11 + $0x190] sm:$0xff]
    %v4940 = vld [vmem:[%s11 + $0x198] sm:$0xff]
    %v4941 = vld [vmem:[%s11 + $0x1a0] sm:$0xff]
    %v4942 = vld [vmem:[%s11 + $0x1a8] sm:$0xff]
    %v4943 = vld [vmem:[%s11 + $0x1b0] sm:$0xff]
    %v4944 = vld [vmem:[%s11 + $0x1b8] sm:$0xff]
    %v4945 = vld [vmem:[%s11 + $0x1c0] sm:$0xff]
    %v4946 = vld [vmem:[%s11 + $0x1c8] sm:$0xff]
    %v4947 = vld [vmem:[%s11 + $0x1d0] sm:$0xff]
    %v4948 = vld [vmem:[%s11 + $0x1d8] sm:$0xff]
    %v4949 = vld [vmem:[%s11 + $0x1e0] sm:$0xff]
    %v4950 = vld [vmem:[%s11 + $0x1e8] sm:$0xff]
    %v4951 = vld [vmem:[%s11 + $0x1f0] sm:$0xff]
    %v4952 = vld [vmem:[%s11 + $0x1f8] sm:$0xff]
    %4953 = vmatprep.subr.mxu0 %v4890
    %4954 = vmatpush1.msra.mxu0 %v4889
    %4955 = vmatprep.subr.mxu0 %v4892
    %4956 = vmatpush1.msra.mxu0 %v4891
    %4957 = vmatprep.subr.mxu0 %v4894
    %4958 = vmatpush1.msra.mxu0 %v4893
    %4959 = vmatprep.subr.mxu0 %v4896
    %4960 = vmatpush1.msra.mxu0 %v4895
    %4961 = vmatprep.subr.mxu0 %v4898
    %4962 = vmatpush1.msra.mxu0 %v4897
    %4963 = vmatprep.subr.mxu0 %v4900
    %4964 = vmatpush1.msra.mxu0 %v4899
    %4965 = vmatprep.subr.mxu0 %v4902
    %4966 = vmatpush1.msra.mxu0 %v4901
    %4967 = vmatprep.subr.mxu0 %v4904
    %4968 = vmatpush1.msra.mxu0 %v4903
    %4969 = vmatprep.subr.mxu0 %v4906
    %4970 = vmatpush1.msra.mxu0 %v4905
    %4971 = vmatprep.subr.mxu0 %v4908
    %4972 = vmatpush1.msra.mxu0 %v4907
    %4973 = vmatprep.subr.mxu0 %v4910
    %4974 = vmatpush1.msra.mxu0 %v4909
    %4975 = vmatprep.subr.mxu0 %v4912
    %4976 = vmatpush1.msra.mxu0 %v4911
    %4977 = vmatprep.subr.mxu0 %v4914
    %4978 = vmatpush1.msra.mxu0 %v4913
    %4979 = vmatprep.subr.mxu0 %v4916
    %4980 = vmatpush1.msra.mxu0 %v4915
    %4981 = vmatprep.subr.mxu0 %v4918
    %4982 = vmatpush1.msra.mxu0 %v4917
    %4983 = vmatprep.subr.mxu0 %v4920
    %4984 = vmatpush1.msra.mxu0 %v4919
    %4985 = vmatprep.subr.mxu0 %v4922
    %4986 = vmatpush1.msra.mxu0 %v4921
    %4987 = vmatprep.subr.mxu0 %v4924
    %4988 = vmatpush1.msra.mxu0 %v4923
    %4989 = vmatprep.subr.mxu0 %v4926
    %4990 = vmatpush1.msra.mxu0 %v4925
    %4991 = vmatprep.subr.mxu0 %v4928
    %4992 = vmatpush1.msra.mxu0 %v4927
    %4993 = vmatprep.subr.mxu0 %v4930
    %4994 = vmatpush1.msra.mxu0 %v4929
    %4995 = vmatprep.subr.mxu0 %v4932
    %4996 = vmatpush1.msra.mxu0 %v4931
    %4997 = vmatprep.subr.mxu0 %v4934
    %4998 = vmatpush1.msra.mxu0 %v4933
    %4999 = vmatprep.subr.mxu0 %v4936
    %5000 = vmatpush1.msra.mxu0 %v4935
    %5001 = vmatprep.subr.mxu0 %v4938
    %5002 = vmatpush1.msra.mxu0 %v4937
    %5003 = vmatprep.subr.mxu0 %v4940
    %5004 = vmatpush1.msra.mxu0 %v4939
    %5005 = vmatprep.subr.mxu0 %v4942
    %5006 = vmatpush1.msra.mxu0 %v4941
    %5007 = vmatprep.subr.mxu0 %v4944
    %5008 = vmatpush1.msra.mxu0 %v4943
    %5009 = vmatprep.subr.mxu0 %v4946
    %5010 = vmatpush1.msra.mxu0 %v4945
    %5011 = vmatprep.subr.mxu0 %v4948
    %5012 = vmatpush1.msra.mxu0 %v4947
    %5013 = vmatprep.subr.mxu0 %v4950
    %5014 = vmatpush1.msra.mxu0 %v4949
    %5015 = vmatprep.subr.mxu0 %v4952
    %5016 = vmatpush1.msra.mxu0 %v4951
    %5017 = vmatprep.mubr.f32.mxu0 %v4025
    %5018 = vmatmul.mubr.f32.gmra.mrb[0].mxu0 %v4018
    %v5019 = vpop.f32.mrb[0].mxu0
    %v5020 = vadd.f32 0.0, %v5019
    %v5021 = vpop.f32.mrb[0].mxu0
    %v5022 = vadd.f32 0.0, %v5021
    %5023 = vdwg.mxu0
    %v5024 = vadd.f32 %v4885, %v5020
    %v5025 = vadd.f32 %v4887, %v5022
    %v5026 = vld [vmem:[%s12] sm:$0xff]
    %v5027 = vld [vmem:[%s12 + $0x8] sm:$0xff]
    %v5028 = vld [vmem:[%s12 + $0x10] sm:$0xff]
    %v5029 = vld [vmem:[%s12 + $0x18] sm:$0xff]
    %v5030 = vld [vmem:[%s12 + $0x20] sm:$0xff]
    %v5031 = vld [vmem:[%s12 + $0x28] sm:$0xff]
    %v5032 = vld [vmem:[%s12 + $0x30] sm:$0xff]
    %v5033 = vld [vmem:[%s12 + $0x38] sm:$0xff]
    %5035 = vset.pattern.permute.xlu0 0
    %5036 = vperm.xlu0 %5035, %v5026
    %v5037 = vpop.permute.xlu0 %5036
    %5040 = vset.pattern.permute.xlu0 0
    %5041 = vperm.xlu0 %5040, %v5027
    %v5042 = vpop.permute.xlu0 %5041
    %5045 = vset.pattern.permute.xlu0 0
    %5046 = vperm.xlu0 %5045, %v5028
    %v5047 = vpop.permute.xlu0 %5046
    %5050 = vset.pattern.permute.xlu0 0
    %5051 = vperm.xlu0 %5050, %v5029
    %v5052 = vpop.permute.xlu0 %5051
    %5055 = vset.pattern.permute.xlu0 0
    %5056 = vperm.xlu0 %5055, %v5030
    %v5057 = vpop.permute.xlu0 %5056
    %5060 = vset.pattern.permute.xlu0 0
    %5061 = vperm.xlu0 %5060, %v5031
    %v5062 = vpop.permute.xlu0 %5061
    %5065 = vset.pattern.permute.xlu0 0
    %5066 = vperm.xlu0 %5065, %v5032
    %v5067 = vpop.permute.xlu0 %5066
    %5070 = vset.pattern.permute.xlu0 0
    %5071 = vperm.xlu0 %5070, %v5033
    %v5072 = vpop.permute.xlu0 %5071
    %v5074 = vlaneseq
    %v5075 = vshrl.u32 %v5074, 7
    %v5076 = vsub.s32 0, %v5075
    %v5077 = vrot.slane %v4589, %v5076
    %v5078 = vlaneseq
    %v5079 = vshrl.u32 %v5078, 7
    %v5080 = vsub.s32 0, %v5079
    %v5081 = vrot.slane %v4590, %v5080
    %v5082 = vmul.f32 %v5037, %v5077
    %v5083 = vmul.f32 %v5037, %v5081
    %v5084 = vmul.f32 %v5042, %v5077
    %v5085 = vmul.f32 %v5042, %v5081
    %v5086 = vmul.f32 %v5047, %v5077
    %v5087 = vmul.f32 %v5047, %v5081
    %v5088 = vmul.f32 %v5052, %v5077
    %v5089 = vmul.f32 %v5052, %v5081
    %v5090 = vmul.f32 %v5057, %v5077
    %v5091 = vmul.f32 %v5057, %v5081
    %v5092 = vmul.f32 %v5062, %v5077
    %v5093 = vmul.f32 %v5062, %v5081
    %v5094 = vmul.f32 %v5067, %v5077
    %v5095 = vmul.f32 %v5067, %v5081
    %v5096 = vmul.f32 %v5072, %v5077
    %v5097 = vmul.f32 %v5072, %v5081
    %v5098 = vld [vmem:[%s13] sm:$0xff]
    %v5099 = vld [vmem:[%s13 + $0x8] sm:$0xff]
    %v5100 = vld [vmem:[%s13 + $0x10] sm:$0xff]
    %v5101 = vld [vmem:[%s13 + $0x18] sm:$0xff]
    %v5102 = vld [vmem:[%s13 + $0x20] sm:$0xff]
    %v5103 = vld [vmem:[%s13 + $0x28] sm:$0xff]
    %v5104 = vld [vmem:[%s13 + $0x30] sm:$0xff]
    %v5105 = vld [vmem:[%s13 + $0x38] sm:$0xff]
    %5107 = vset.pattern.permute.xlu0 0
    %5108 = vperm.xlu0 %5107, %v5098
    %v5109 = vpop.permute.xlu0 %5108
    %5112 = vset.pattern.permute.xlu0 0
    %5113 = vperm.xlu0 %5112, %v5099
    %v5114 = vpop.permute.xlu0 %5113
    %5117 = vset.pattern.permute.xlu0 0
    %5118 = vperm.xlu0 %5117, %v5100
    %v5119 = vpop.permute.xlu0 %5118
    %5122 = vset.pattern.permute.xlu0 0
    %5123 = vperm.xlu0 %5122, %v5101
    %v5124 = vpop.permute.xlu0 %5123
    %5127 = vset.pattern.permute.xlu0 0
    %5128 = vperm.xlu0 %5127, %v5102
    %v5129 = vpop.permute.xlu0 %5128
    %5132 = vset.pattern.permute.xlu0 0
    %5133 = vperm.xlu0 %5132, %v5103
    %v5134 = vpop.permute.xlu0 %5133
    %5137 = vset.pattern.permute.xlu0 0
    %5138 = vperm.xlu0 %5137, %v5104
    %v5139 = vpop.permute.xlu0 %5138
    %5142 = vset.pattern.permute.xlu0 0
    %5143 = vperm.xlu0 %5142, %v5105
    %v5144 = vpop.permute.xlu0 %5143
    %v5146 = vlaneseq
    %v5147 = vshrl.u32 %v5146, 7
    %v5148 = vsub.s32 0, %v5147
    %v5149 = vrot.slane %v5024, %v5148
    %v5150 = vlaneseq
    %v5151 = vshrl.u32 %v5150, 7
    %v5152 = vsub.s32 0, %v5151
    %v5153 = vrot.slane %v5025, %v5152
    %v5154 = vmul.f32 %v5109, %v5149
    %v5155 = vmul.f32 %v5109, %v5153
    %v5156 = vmul.f32 %v5114, %v5149
    %v5157 = vmul.f32 %v5114, %v5153
    %v5158 = vmul.f32 %v5119, %v5149
    %v5159 = vmul.f32 %v5119, %v5153
    %v5160 = vmul.f32 %v5124, %v5149
    %v5161 = vmul.f32 %v5124, %v5153
    %v5162 = vmul.f32 %v5129, %v5149
    %v5163 = vmul.f32 %v5129, %v5153
    %v5164 = vmul.f32 %v5134, %v5149
    %v5165 = vmul.f32 %v5134, %v5153
    %v5166 = vmul.f32 %v5139, %v5149
    %v5167 = vmul.f32 %v5139, %v5153
    %v5168 = vmul.f32 %v5144, %v5149
    %v5169 = vmul.f32 %v5144, %v5153
    %v5170 = vadd.f32 %v5082, %v5154
    %v5171 = vadd.f32 %v5083, %v5155
    %v5172 = vadd.f32 %v5084, %v5156
    %v5173 = vadd.f32 %v5085, %v5157
    %v5174 = vadd.f32 %v5086, %v5158
    %v5175 = vadd.f32 %v5087, %v5159
    %v5176 = vadd.f32 %v5088, %v5160
    %v5177 = vadd.f32 %v5089, %v5161
    %v5178 = vadd.f32 %v5090, %v5162
    %v5179 = vadd.f32 %v5091, %v5163
    %v5180 = vadd.f32 %v5092, %v5164
    %v5181 = vadd.f32 %v5093, %v5165
    %v5182 = vadd.f32 %v5094, %v5166
    %v5183 = vadd.f32 %v5095, %v5167
    %v5184 = vadd.f32 %v5096, %v5168
    %v5185 = vadd.f32 %v5097, %v5169
    %v5186 = vld [vmem:[%s14] sm:$0xff]
    %v5187 = vld [vmem:[%s14 + $0x8] sm:$0xff]
    %v5188 = vld [vmem:[%s14 + $0x10] sm:$0xff]
    %v5189 = vld [vmem:[%s14 + $0x18] sm:$0xff]
    %v5190 = vld [vmem:[%s14 + $0x20] sm:$0xff]
    %v5191 = vld [vmem:[%s14 + $0x28] sm:$0xff]
    %v5192 = vld [vmem:[%s14 + $0x30] sm:$0xff]
    %v5193 = vld [vmem:[%s14 + $0x38] sm:$0xff]
    %5195 = vset.pattern.permute.xlu0 0
    %5196 = vperm.xlu0 %5195, %v5186
    %v5197 = vpop.permute.xlu0 %5196
    %5200 = vset.pattern.permute.xlu0 0
    %5201 = vperm.xlu0 %5200, %v5187
    %v5202 = vpop.permute.xlu0 %5201
    %5205 = vset.pattern.permute.xlu0 0
    %5206 = vperm.xlu0 %5205, %v5188
    %v5207 = vpop.permute.xlu0 %5206
    %5210 = vset.pattern.permute.xlu0 0
    %5211 = vperm.xlu0 %5210, %v5189
    %v5212 = vpop.permute.xlu0 %5211
    %5215 = vset.pattern.permute.xlu0 0
    %5216 = vperm.xlu0 %5215, %v5190
    %v5217 = vpop.permute.xlu0 %5216
    %5220 = vset.pattern.permute.xlu0 0
    %5221 = vperm.xlu0 %5220, %v5191
    %v5222 = vpop.permute.xlu0 %5221
    %5225 = vset.pattern.permute.xlu0 0
    %5226 = vperm.xlu0 %5225, %v5192
    %v5227 = vpop.permute.xlu0 %5226
    %5230 = vset.pattern.permute.xlu0 0
    %5231 = vperm.xlu0 %5230, %v5193
    %v5232 = vpop.permute.xlu0 %5231
    %v5234 = vadd.f32 %v5170, %v5197
    %v5235 = vadd.f32 %v5171, %v5197
    %v5236 = vadd.f32 %v5172, %v5202
    %v5237 = vadd.f32 %v5173, %v5202
    %v5238 = vadd.f32 %v5174, %v5207
    %v5239 = vadd.f32 %v5175, %v5207
    %v5240 = vadd.f32 %v5176, %v5212
    %v5241 = vadd.f32 %v5177, %v5212
    %v5242 = vadd.f32 %v5178, %v5217
    %v5243 = vadd.f32 %v5179, %v5217
    %v5244 = vadd.f32 %v5180, %v5222
    %v5245 = vadd.f32 %v5181, %v5222
    %v5246 = vadd.f32 %v5182, %v5227
    %v5247 = vadd.f32 %v5183, %v5227
    %v5248 = vadd.f32 %v5184, %v5232
    %v5249 = vadd.f32 %v5185, %v5232
    %v5250 = vpack.c.bf16 %v5236, %v5234
    %v5251 = vpack.c.bf16 %v5237, %v5235
    %v5252 = vpack.c.bf16 %v5240, %v5238
    %v5253 = vpack.c.bf16 %v5241, %v5239
    %v5254 = vpack.c.bf16 %v5244, %v5242
    %v5255 = vpack.c.bf16 %v5245, %v5243
    %v5256 = vpack.c.bf16 %v5248, %v5246
    %v5257 = vpack.c.bf16 %v5249, %v5247
    %v5258 = vld [vmem:[%s15] sm:$0xff]
    %v5259 = vld [vmem:[%s15 + $0x8] sm:$0xff]
    %v5260 = vld [vmem:[%s15 + $0x10] sm:$0xff]
    %v5261 = vld [vmem:[%s15 + $0x18] sm:$0xff]
    %v5262 = vld [vmem:[%s15 + $0x20] sm:$0xff]
    %v5263 = vld [vmem:[%s15 + $0x28] sm:$0xff]
    %v5264 = vld [vmem:[%s15 + $0x30] sm:$0xff]
    %v5265 = vld [vmem:[%s15 + $0x38] sm:$0xff]
    %v5266 = vld [vmem:[%s15 + $0x40] sm:$0xff]
    %v5267 = vld [vmem:[%s15 + $0x48] sm:$0xff]
    %v5268 = vld [vmem:[%s15 + $0x50] sm:$0xff]
    %v5269 = vld [vmem:[%s15 + $0x58] sm:$0xff]
    %v5270 = vld [vmem:[%s15 + $0x60] sm:$0xff]
    %v5271 = vld [vmem:[%s15 + $0x68] sm:$0xff]
    %v5272 = vld [vmem:[%s15 + $0x70] sm:$0xff]
    %v5273 = vld [vmem:[%s15 + $0x78] sm:$0xff]
    %v5274 = vld [vmem:[%s15 + $0x80] sm:$0xff]
    %v5275 = vld [vmem:[%s15 + $0x88] sm:$0xff]
    %v5276 = vld [vmem:[%s15 + $0x90] sm:$0xff]
    %v5277 = vld [vmem:[%s15 + $0x98] sm:$0xff]
    %v5278 = vld [vmem:[%s16] sm:$0x3]
    %v5280 = vlaneseq
    %v5281 = vshrl.u32 %v5280, 7
    %v5282 = vsub.s32 0, %v5281
    %v5283 = vrot.slane %v5278, %v5282
    %v5284 = vlaneseq
    %v5285 = vshrl.u32 %v5284, 7
    %v5286 = vsub.s32 1, %v5285
    %v5287 = vrot.slane %v5278, %v5286
    %v5310 = vunpack.c.l.b16 %v5258
    %v5311 = vunpack.c.h.b16 %v5258
    %v5312 = vunpack.c.l.b16 %v5259
    %v5313 = vunpack.c.h.b16 %v5259
    %v5314 = vunpack.c.l.b16 %v5260
    %v5315 = vunpack.c.h.b16 %v5260
    %v5316 = vunpack.c.l.b16 %v5261
    %v5317 = vunpack.c.h.b16 %v5261
    %v5318 = vunpack.c.l.b16 %v5262
    %v5319 = vunpack.c.h.b16 %v5262
    %v5320 = vunpack.c.l.b16 %v5263
    %v5321 = vunpack.c.h.b16 %v5263
    %v5322 = vunpack.c.l.b16 %v5264
    %v5323 = vunpack.c.h.b16 %v5264
    %v5324 = vunpack.c.l.b16 %v5265
    %v5325 = vunpack.c.h.b16 %v5265
    %v5326 = vunpack.c.l.b16 %v5266
    %v5327 = vunpack.c.h.b16 %v5266
    %v5328 = vunpack.c.l.b16 %v5267
    %v5329 = vunpack.c.h.b16 %v5267
    %v5330 = vunpack.c.l.b16 %v5268
    %v5331 = vunpack.c.h.b16 %v5268
    %v5332 = vunpack.c.l.b16 %v5269
    %v5333 = vunpack.c.h.b16 %v5269
    %v5334 = vunpack.c.l.b16 %v5270
    %v5335 = vunpack.c.h.b16 %v5270
    %v5336 = vunpack.c.l.b16 %v5271
    %v5337 = vunpack.c.h.b16 %v5271
    %v5338 = vunpack.c.l.b16 %v5272
    %v5339 = vunpack.c.h.b16 %v5272
    %v5340 = vunpack.c.l.b16 %v5273
    %v5341 = vunpack.c.h.b16 %v5273
    %v5342 = vunpack.c.l.b16 %v5274
    %v5343 = vunpack.c.h.b16 %v5274
    %v5344 = vunpack.c.l.b16 %v5275
    %v5345 = vunpack.c.h.b16 %v5275
    %v5346 = vunpack.c.l.b16 %v5276
    %v5347 = vunpack.c.h.b16 %v5276
    %v5348 = vunpack.c.l.b16 %v5277
    %v5349 = vunpack.c.h.b16 %v5277
    %v5350 = vpack.c.b16 %v5312, %v5310
    %v5351 = vpack.c.b16 %v5313, %v5311
    %v5352 = vpack.c.b16 %v5316, %v5314
    %v5353 = vpack.c.b16 %v5317, %v5315
    %v5354 = vpack.c.b16 %v5320, %v5318
    %v5355 = vpack.c.b16 %v5321, %v5319
    %v5356 = vpack.c.b16 %v5324, %v5322
    %v5357 = vpack.c.b16 %v5325, %v5323
    %v5358 = vpack.c.b16 %v5328, %v5326
    %v5359 = vpack.c.b16 %v5329, %v5327
    %v5360 = vpack.c.b16 %v5332, %v5330
    %v5361 = vpack.c.b16 %v5333, %v5331
    %v5362 = vpack.c.b16 %v5336, %v5334
    %v5363 = vpack.c.b16 %v5337, %v5335
    %v5364 = vpack.c.b16 %v5340, %v5338
    %v5365 = vpack.c.b16 %v5341, %v5339
    %v5366 = vpack.c.b16 %v5344, %v5342
    %v5367 = vpack.c.b16 %v5345, %v5343
    %v5368 = vpack.c.b16 %v5348, %v5346
    %v5369 = vpack.c.b16 %v5349, %v5347
    %vm5390 = vcmask 261120
    %v5392 = vsel %vm5390, %v5251, 0
    %v5395 = vsel %vm5390, %v5253, 0
    %v5398 = vsel %vm5390, %v5255, 0
    %v5401 = vsel %vm5390, %v5257, 0
    %5403 = vmatprep.subr.bf16.mxu0 %v5351
    %5404 = vmatpush1.bf16.msra.mxu0 %v5350
    %5405 = vmatprep.subr.bf16.mxu0 %v5353
    %5406 = vmatpush1.bf16.msra.mxu0 %v5352
    %5407 = vmatprep.subr.bf16.mxu0 %v5355
    %5408 = vmatpush1.bf16.msra.mxu0 %v5354
    %5409 = vmatprep.subr.bf16.mxu0 %v5357
    %5410 = vmatpush1.bf16.msra.mxu0 %v5356
    %5411 = vmatprep.subr.bf16.mxu0 %v5359
    %5412 = vmatpush1.bf16.msra.mxu0 %v5358
    %5413 = vmatprep.subr.bf16.mxu0 %v5361
    %5414 = vmatpush1.bf16.msra.mxu0 %v5360
    %5415 = vmatprep.subr.bf16.mxu0 %v5363
    %5416 = vmatpush1.bf16.msra.mxu0 %v5362
    %5417 = vmatprep.subr.bf16.mxu0 %v5365
    %5418 = vmatpush1.bf16.msra.mxu0 %v5364
    %5419 = vmatprep.subr.bf16.mxu0 %v5367
    %5420 = vmatpush1.bf16.msra.mxu0 %v5366
    %5421 = vmatprep.subr.bf16.mxu0 %v5369
    %5422 = vmatpush1.bf16.msra.mxu0 %v5368
    %5423 = vmatprep.subr.bf16.mxu0 0
    %5424 = vmatpush1.bf16.msra.mxu0 0
    %5425 = vmatprep.subr.bf16.mxu0 0
    %5426 = vmatpush1.bf16.msra.mxu0 0
    %5427 = vmatprep.subr.bf16.mxu0 0
    %5428 = vmatpush1.bf16.msra.mxu0 0
    %5429 = vmatprep.subr.bf16.mxu0 0
    %5430 = vmatpush1.bf16.msra.mxu0 0
    %5431 = vmatprep.subr.bf16.mxu0 0
    %5432 = vmatpush1.bf16.msra.mxu0 0
    %5433 = vmatprep.subr.bf16.mxu0 0
    %5434 = vmatpush1.bf16.msra.mxu0 0
    %5435 = vmatprep.mubr.bf16.mxu0 %v5392
    %5436 = vmatmul.mubr.bf16.gmra.mrb[0].mxu0 %v5250
    %v5437 = vpop.f32.mrb[0].mxu0
    %v5438 = vadd.f32 %v5283, %v5437
    %v5439 = vpop.f32.mrb[0].mxu0
    %v5440 = vadd.f32 %v5287, %v5439
    %v5441 = vpop.f32.mrb[0].mxu0
    %v5442 = vadd.f32 %v5283, %v5441
    %v5443 = vpop.f32.mrb[0].mxu0
    %v5444 = vadd.f32 %v5287, %v5443
    %5445 = vmatprep.mubr.bf16.mxu0 %v5395
    %5446 = vmatmul.mubr.bf16.gmra.mrb[0].mxu0 %v5252
    %v5447 = vpop.f32.mrb[0].mxu0
    %v5448 = vadd.f32 %v5283, %v5447
    %v5449 = vpop.f32.mrb[0].mxu0
    %v5450 = vadd.f32 %v5287, %v5449
    %v5451 = vpop.f32.mrb[0].mxu0
    %v5452 = vadd.f32 %v5283, %v5451
    %v5453 = vpop.f32.mrb[0].mxu0
    %v5454 = vadd.f32 %v5287, %v5453
    %5455 = vmatprep.mubr.bf16.mxu0 %v5398
    %5456 = vmatmul.mubr.bf16.gmra.mrb[0].mxu0 %v5254
    %v5457 = vpop.f32.mrb[0].mxu0
    %v5458 = vadd.f32 %v5283, %v5457
    %v5459 = vpop.f32.mrb[0].mxu0
    %v5460 = vadd.f32 %v5287, %v5459
    %v5461 = vpop.f32.mrb[0].mxu0
    %v5462 = vadd.f32 %v5283, %v5461
    %v5463 = vpop.f32.mrb[0].mxu0
    %v5464 = vadd.f32 %v5287, %v5463
    %5465 = vmatprep.mubr.bf16.mxu0 %v5401
    %5466 = vmatmul.mubr.bf16.gmra.mrb[0].mxu0 %v5256
    %v5467 = vpop.f32.mrb[0].mxu0
    %v5468 = vadd.f32 %v5283, %v5467
    %v5469 = vpop.f32.mrb[0].mxu0
    %v5470 = vadd.f32 %v5287, %v5469
    %v5471 = vpop.f32.mrb[0].mxu0
    %v5472 = vadd.f32 %v5283, %v5471
    %v5473 = vpop.f32.mrb[0].mxu0
    %v5474 = vadd.f32 %v5287, %v5473
    %5475 = vdwg.mxu0
    %v5476 = vmul.f32 %v5438, %v5438
    %v5477 = vmul.f32 %v5440, %v5440
    %v5478 = vmul.f32 %v5442, %v5442
    %v5479 = vmul.f32 %v5444, %v5444
    %v5480 = vmul.f32 %v5448, %v5448
    %v5481 = vmul.f32 %v5450, %v5450
    %v5482 = vmul.f32 %v5452, %v5452
    %v5483 = vmul.f32 %v5454, %v5454
    %v5484 = vmul.f32 %v5458, %v5458
    %v5485 = vmul.f32 %v5460, %v5460
    %v5486 = vmul.f32 %v5462, %v5462
    %v5487 = vmul.f32 %v5464, %v5464
    %v5488 = vmul.f32 %v5468, %v5468
    %v5489 = vmul.f32 %v5470, %v5470
    %v5490 = vmul.f32 %v5472, %v5472
    %v5491 = vmul.f32 %v5474, %v5474
    %v5492 = vmul.f32 %v5438, %v5476
    %v5493 = vmul.f32 %v5440, %v5477
    %v5494 = vmul.f32 %v5442, %v5478
    %v5495 = vmul.f32 %v5444, %v5479
    %v5496 = vmul.f32 %v5448, %v5480
    %v5497 = vmul.f32 %v5450, %v5481
    %v5498 = vmul.f32 %v5452, %v5482
    %v5499 = vmul.f32 %v5454, %v5483
    %v5500 = vmul.f32 %v5458, %v5484
    %v5501 = vmul.f32 %v5460, %v5485
    %v5502 = vmul.f32 %v5462, %v5486
    %v5503 = vmul.f32 %v5464, %v5487
    %v5504 = vmul.f32 %v5468, %v5488
    %v5505 = vmul.f32 %v5470, %v5489
    %v5506 = vmul.f32 %v5472, %v5490
    %v5507 = vmul.f32 %v5474, %v5491
    %v5508 = vmul.f32 %v5492, 0.044715
    %v5509 = vmul.f32 %v5493, 0.044715
    %v5510 = vmul.f32 %v5494, 0.044715
    %v5511 = vmul.f32 %v5495, 0.044715
    %v5512 = vmul.f32 %v5496, 0.044715
    %v5513 = vmul.f32 %v5497, 0.044715
    %v5514 = vmul.f32 %v5498, 0.044715
    %v5515 = vmul.f32 %v5499, 0.044715
    %v5516 = vmul.f32 %v5500, 0.044715
    %v5517 = vmul.f32 %v5501, 0.044715
    %v5518 = vmul.f32 %v5502, 0.044715
    %v5519 = vmul.f32 %v5503, 0.044715
    %v5520 = vmul.f32 %v5504, 0.044715
    %v5521 = vmul.f32 %v5505, 0.044715
    %v5522 = vmul.f32 %v5506, 0.044715
    %v5523 = vmul.f32 %v5507, 0.044715
    %v5524 = vadd.f32 %v5438, %v5508
    %v5525 = vadd.f32 %v5440, %v5509
    %v5526 = vadd.f32 %v5442, %v5510
    %v5527 = vadd.f32 %v5444, %v5511
    %v5528 = vadd.f32 %v5448, %v5512
    %v5529 = vadd.f32 %v5450, %v5513
    %v5530 = vadd.f32 %v5452, %v5514
    %v5531 = vadd.f32 %v5454, %v5515
    %v5532 = vadd.f32 %v5458, %v5516
    %v5533 = vadd.f32 %v5460, %v5517
    %v5534 = vadd.f32 %v5462, %v5518
    %v5535 = vadd.f32 %v5464, %v5519
    %v5536 = vadd.f32 %v5468, %v5520
    %v5537 = vadd.f32 %v5470, %v5521
    %v5538 = vadd.f32 %v5472, %v5522
    %v5539 = vadd.f32 %v5474, %v5523
    %v5540 = vmul.f32 %v5524, 0.7978846
    %v5541 = vmul.f32 %v5525, 0.7978846
    %v5542 = vmul.f32 %v5526, 0.7978846
    %v5543 = vmul.f32 %v5527, 0.7978846
    %v5544 = vmul.f32 %v5528, 0.7978846
    %v5545 = vmul.f32 %v5529, 0.7978846
    %v5546 = vmul.f32 %v5530, 0.7978846
    %v5547 = vmul.f32 %v5531, 0.7978846
    %v5548 = vmul.f32 %v5532, 0.7978846
    %v5549 = vmul.f32 %v5533, 0.7978846
    %v5550 = vmul.f32 %v5534, 0.7978846
    %v5551 = vmul.f32 %v5535, 0.7978846
    %v5552 = vmul.f32 %v5536, 0.7978846
    %v5553 = vmul.f32 %v5537, 0.7978846
    %v5554 = vmul.f32 %v5538, 0.7978846
    %v5555 = vmul.f32 %v5539, 0.7978846
    %v5556 = vtanh.pop %v5540
    %v5557 = vtanh.pop %v5541
    %v5558 = vtanh.pop %v5542
    %v5559 = vtanh.pop %v5543
    %v5560 = vtanh.pop %v5544
    %v5561 = vtanh.pop %v5545
    %v5562 = vtanh.pop %v5546
    %v5563 = vtanh.pop %v5547
    %v5564 = vtanh.pop %v5548
    %v5565 = vtanh.pop %v5549
    %v5566 = vtanh.pop %v5550
    %v5567 = vtanh.pop %v5551
    %v5568 = vtanh.pop %v5552
    %v5569 = vtanh.pop %v5553
    %v5570 = vtanh.pop %v5554
    %v5571 = vtanh.pop %v5555
    %v5572 = vadd.f32 %v5556, 1.0
    %v5573 = vadd.f32 %v5557, 1.0
    %v5574 = vadd.f32 %v5558, 1.0
    %v5575 = vadd.f32 %v5559, 1.0
    %v5576 = vadd.f32 %v5560, 1.0
    %v5577 = vadd.f32 %v5561, 1.0
    %v5578 = vadd.f32 %v5562, 1.0
    %v5579 = vadd.f32 %v5563, 1.0
    %v5580 = vadd.f32 %v5564, 1.0
    %v5581 = vadd.f32 %v5565, 1.0
    %v5582 = vadd.f32 %v5566, 1.0
    %v5583 = vadd.f32 %v5567, 1.0
    %v5584 = vadd.f32 %v5568, 1.0
    %v5585 = vadd.f32 %v5569, 1.0
    %v5586 = vadd.f32 %v5570, 1.0
    %v5587 = vadd.f32 %v5571, 1.0
    %v5588 = vmul.f32 %v5572, 0.5
    %v5589 = vmul.f32 %v5573, 0.5
    %v5590 = vmul.f32 %v5574, 0.5
    %v5591 = vmul.f32 %v5575, 0.5
    %v5592 = vmul.f32 %v5576, 0.5
    %v5593 = vmul.f32 %v5577, 0.5
    %v5594 = vmul.f32 %v5578, 0.5
    %v5595 = vmul.f32 %v5579, 0.5
    %v5596 = vmul.f32 %v5580, 0.5
    %v5597 = vmul.f32 %v5581, 0.5
    %v5598 = vmul.f32 %v5582, 0.5
    %v5599 = vmul.f32 %v5583, 0.5
    %v5600 = vmul.f32 %v5584, 0.5
    %v5601 = vmul.f32 %v5585, 0.5
    %v5602 = vmul.f32 %v5586, 0.5
    %v5603 = vmul.f32 %v5587, 0.5
    %v5604 = vmul.f32 %v5438, %v5588
    %v5605 = vmul.f32 %v5440, %v5589
    %v5606 = vmul.f32 %v5442, %v5590
    %v5607 = vmul.f32 %v5444, %v5591
    %v5608 = vmul.f32 %v5448, %v5592
    %v5609 = vmul.f32 %v5450, %v5593
    %v5610 = vmul.f32 %v5452, %v5594
    %v5611 = vmul.f32 %v5454, %v5595
    %v5612 = vmul.f32 %v5458, %v5596
    %v5613 = vmul.f32 %v5460, %v5597
    %v5614 = vmul.f32 %v5462, %v5598
    %v5615 = vmul.f32 %v5464, %v5599
    %v5616 = vmul.f32 %v5468, %v5600
    %v5617 = vmul.f32 %v5470, %v5601
    %v5618 = vmul.f32 %v5472, %v5602
    %v5619 = vmul.f32 %v5474, %v5603
    %v5620 = vadd.f32 %v5234, %v5604
    %v5621 = vadd.f32 %v5235, %v5605
    %v5622 = vadd.f32 %v5236, %v5606
    %v5623 = vadd.f32 %v5237, %v5607
    %v5624 = vadd.f32 %v5238, %v5608
    %v5625 = vadd.f32 %v5239, %v5609
    %v5626 = vadd.f32 %v5240, %v5610
    %v5627 = vadd.f32 %v5241, %v5611
    %v5628 = vadd.f32 %v5242, %v5612
    %v5629 = vadd.f32 %v5243, %v5613
    %v5630 = vadd.f32 %v5244, %v5614
    %v5631 = vadd.f32 %v5245, %v5615
    %v5632 = vadd.f32 %v5246, %v5616
    %v5633 = vadd.f32 %v5247, %v5617
    %v5634 = vadd.f32 %v5248, %v5618
    %v5635 = vadd.f32 %v5249, %v5619
    %v5636 = vld [vmem:[%s17] sm:$0xf]
    %v5637 = vld [vmem:[%s17 + $0x4] sm:$0xf]
    %v5638 = vld [vmem:[%s17 + $0x8] sm:$0xf]
    %v5639 = vld [vmem:[%s17 + $0xc] sm:$0xf]
    %v5640 = vld [vmem:[%s17 + $0x10] sm:$0xf]
    %v5641 = vld [vmem:[%s17 + $0x14] sm:$0xf]
    %v5642 = vld [vmem:[%s17 + $0x18] sm:$0xf]
    %v5643 = vld [vmem:[%s17 + $0x1c] sm:$0xf]
    %v5644 = vpack.c.bf16 %v5622, %v5620
    %v5645 = vpack.c.bf16 %v5623, %v5621
    %v5646 = vpack.c.bf16 %v5626, %v5624
    %v5647 = vpack.c.bf16 %v5627, %v5625
    %v5648 = vpack.c.bf16 %v5630, %v5628
    %v5649 = vpack.c.bf16 %v5631, %v5629
    %v5650 = vpack.c.bf16 %v5634, %v5632
    %v5651 = vpack.c.bf16 %v5635, %v5633
    %v5652 = vld [vmem:[%s18] sm:$0xff]
    %v5653 = vld [vmem:[%s18 + $0x8] sm:$0xff]
    %v5654 = vld [vmem:[%s18 + $0x10] sm:$0xff]
    %v5655 = vld [vmem:[%s18 + $0x18] sm:$0xff]
    %v5656 = vld [vmem:[%s18 + $0x20] sm:$0xff]
    %v5657 = vld [vmem:[%s18 + $0x28] sm:$0xff]
    %v5658 = vld [vmem:[%s18 + $0x30] sm:$0xff]
    %v5659 = vld [vmem:[%s18 + $0x38] sm:$0xff]
    %5661 = vset.pattern.permute.xlu0 0
    %5662 = vperm.xlu0 %5661, %v5652
    %v5663 = vpop.permute.xlu0 %5662
    %5666 = vset.pattern.permute.xlu0 0
    %5667 = vperm.xlu0 %5666, %v5653
    %v5668 = vpop.permute.xlu0 %5667
    %5671 = vset.pattern.permute.xlu0 0
    %5672 = vperm.xlu0 %5671, %v5654
    %v5673 = vpop.permute.xlu0 %5672
    %5676 = vset.pattern.permute.xlu0 0
    %5677 = vperm.xlu0 %5676, %v5655
    %v5678 = vpop.permute.xlu0 %5677
    %5681 = vset.pattern.permute.xlu0 0
    %5682 = vperm.xlu0 %5681, %v5656
    %v5683 = vpop.permute.xlu0 %5682
    %5686 = vset.pattern.permute.xlu0 0
    %5687 = vperm.xlu0 %5686, %v5657
    %v5688 = vpop.permute.xlu0 %5687
    %5691 = vset.pattern.permute.xlu0 0
    %5692 = vperm.xlu0 %5691, %v5658
    %v5693 = vpop.permute.xlu0 %5692
    %5696 = vset.pattern.permute.xlu0 0
    %5697 = vperm.xlu0 %5696, %v5659
    %v5698 = vpop.permute.xlu0 %5697
    %v5708 = vunpack.c.l.b16 %v5636
    %v5709 = vunpack.c.l.b16 %v5637
    %v5710 = vunpack.c.l.b16 %v5638
    %v5711 = vunpack.c.l.b16 %v5639
    %v5712 = vunpack.c.l.b16 %v5640
    %v5713 = vunpack.c.l.b16 %v5641
    %v5714 = vunpack.c.l.b16 %v5642
    %v5715 = vunpack.c.l.b16 %v5643
    %v5716 = vpack.c.b16 %v5709, %v5708
    %v5717 = vpack.c.b16 %v5711, %v5710
    %v5718 = vpack.c.b16 %v5713, %v5712
    %v5719 = vpack.c.b16 %v5715, %v5714
    %v5721 = vsel %vm812, %v5716, 0
    %v5724 = vsel %vm812, %v5717, 0
    %v5727 = vsel %vm812, %v5718, 0
    %v5730 = vsel %vm812, %v5719, 0
    %5732 = vmatprep.subr.bf16.mxu0 %v5645
    %5733 = vmatpush1.bf16.msra.mxu0 %v5644
    %5734 = vmatprep.subr.bf16.mxu0 %v5647
    %5735 = vmatpush1.bf16.msra.mxu0 %v5646
    %5736 = vmatprep.subr.bf16.mxu0 %v5649
    %5737 = vmatpush1.bf16.msra.mxu0 %v5648
    %5738 = vmatprep.subr.bf16.mxu0 %v5651
    %5739 = vmatpush1.bf16.msra.mxu0 %v5650
    %5740 = vmatprep.subr.bf16.mxu0 0
    %5741 = vmatpush1.bf16.msra.mxu0 0
    %5742 = vmatprep.subr.bf16.mxu0 0
    %5743 = vmatpush1.bf16.msra.mxu0 0
    %5744 = vmatprep.subr.bf16.mxu0 0
    %5745 = vmatpush1.bf16.msra.mxu0 0
    %5746 = vmatprep.subr.bf16.mxu0 0
    %5747 = vmatpush1.bf16.msra.mxu0 0
    %5748 = vmatprep.subr.bf16.mxu0 0
    %5749 = vmatpush1.bf16.msra.mxu0 0
    %5750 = vmatprep.subr.bf16.mxu0 0
    %5751 = vmatpush1.bf16.msra.mxu0 0
    %5752 = vmatprep.subr.bf16.mxu0 0
    %5753 = vmatpush1.bf16.msra.mxu0 0
    %5754 = vmatprep.subr.bf16.mxu0 0
    %5755 = vmatpush1.bf16.msra.mxu0 0
    %5756 = vmatprep.subr.bf16.mxu0 0
    %5757 = vmatpush1.bf16.msra.mxu0 0
    %5758 = vmatprep.subr.bf16.mxu0 0
    %5759 = vmatpush1.bf16.msra.mxu0 0
    %5760 = vmatprep.subr.bf16.mxu0 0
    %5761 = vmatpush1.bf16.msra.mxu0 0
    %5762 = vmatprep.subr.bf16.mxu0 0
    %5763 = vmatpush1.bf16.msra.mxu0 0
    %5764 = vmatprep.mubr.bf16.mxu0 0
    %5765 = vmatmul.mubr.bf16.gmra.mrb[0].mxu0 %v5721
    %v5766 = vpop.f32.mrb[0].mxu0
    %v5767 = vadd.f32 %v5663, %v5766
    %v5768 = vpop.f32.mrb[0].mxu0
    %v5769 = vadd.f32 %v5663, %v5768
    %v5770 = vpop.f32.mrb[0].mxu0
    %v5771 = vadd.f32 %v5668, %v5770
    %v5772 = vpop.f32.mrb[0].mxu0
    %v5773 = vadd.f32 %v5668, %v5772
    %5774 = vmatprep.mubr.bf16.mxu0 0
    %5775 = vmatmul.mubr.bf16.gmra.mrb[0].mxu0 %v5724
    %v5776 = vpop.f32.mrb[0].mxu0
    %v5777 = vadd.f32 %v5673, %v5776
    %v5778 = vpop.f32.mrb[0].mxu0
    %v5779 = vadd.f32 %v5673, %v5778
    %v5780 = vpop.f32.mrb[0].mxu0
    %v5781 = vadd.f32 %v5678, %v5780
    %v5782 = vpop.f32.mrb[0].mxu0
    %v5783 = vadd.f32 %v5678, %v5782
    %5784 = vmatprep.mubr.bf16.mxu0 0
    %5785 = vmatmul.mubr.bf16.gmra.mrb[0].mxu0 %v5727
    %v5786 = vpop.f32.mrb[0].mxu0
    %v5787 = vadd.f32 %v5683, %v5786
    %v5788 = vpop.f32.mrb[0].mxu0
    %v5789 = vadd.f32 %v5683, %v5788
    %v5790 = vpop.f32.mrb[0].mxu0
    %v5791 = vadd.f32 %v5688, %v5790
    %v5792 = vpop.f32.mrb[0].mxu0
    %v5793 = vadd.f32 %v5688, %v5792
    %5794 = vmatprep.mubr.bf16.mxu0 0
    %5795 = vmatmul.mubr.bf16.gmra.mrb[0].mxu0 %v5730
    %v5796 = vpop.f32.mrb[0].mxu0
    %v5797 = vadd.f32 %v5693, %v5796
    %v5798 = vpop.f32.mrb[0].mxu0
    %v5799 = vadd.f32 %v5693, %v5798
    %v5800 = vpop.f32.mrb[0].mxu0
    %v5801 = vadd.f32 %v5698, %v5800
    %v5802 = vpop.f32.mrb[0].mxu0
    %v5803 = vadd.f32 %v5698, %v5802
    %5804 = vdwg.mxu0
    %v5805 = vmul.f32 %v5767, %v5767
    %v5806 = vmul.f32 %v5769, %v5769
    %v5807 = vmul.f32 %v5771, %v5771
    %v5808 = vmul.f32 %v5773, %v5773
    %v5809 = vmul.f32 %v5777, %v5777
    %v5810 = vmul.f32 %v5779, %v5779
    %v5811 = vmul.f32 %v5781, %v5781
    %v5812 = vmul.f32 %v5783, %v5783
    %v5813 = vmul.f32 %v5787, %v5787
    %v5814 = vmul.f32 %v5789, %v5789
    %v5815 = vmul.f32 %v5791, %v5791
    %v5816 = vmul.f32 %v5793, %v5793
    %v5817 = vmul.f32 %v5797, %v5797
    %v5818 = vmul.f32 %v5799, %v5799
    %v5819 = vmul.f32 %v5801, %v5801
    %v5820 = vmul.f32 %v5803, %v5803
    %v5821 = vmul.f32 %v5767, %v5805
    %v5822 = vmul.f32 %v5769, %v5806
    %v5823 = vmul.f32 %v5771, %v5807
    %v5824 = vmul.f32 %v5773, %v5808
    %v5825 = vmul.f32 %v5777, %v5809
    %v5826 = vmul.f32 %v5779, %v5810
    %v5827 = vmul.f32 %v5781, %v5811
    %v5828 = vmul.f32 %v5783, %v5812
    %v5829 = vmul.f32 %v5787, %v5813
    %v5830 = vmul.f32 %v5789, %v5814
    %v5831 = vmul.f32 %v5791, %v5815
    %v5832 = vmul.f32 %v5793, %v5816
    %v5833 = vmul.f32 %v5797, %v5817
    %v5834 = vmul.f32 %v5799, %v5818
    %v5835 = vmul.f32 %v5801, %v5819
    %v5836 = vmul.f32 %v5803, %v5820
    %v5837 = vmul.f32 %v5821, 0.044715
    %v5838 = vmul.f32 %v5822, 0.044715
    %v5839 = vmul.f32 %v5823, 0.044715
    %v5840 = vmul.f32 %v5824, 0.044715
    %v5841 = vmul.f32 %v5825, 0.044715
    %v5842 = vmul.f32 %v5826, 0.044715
    %v5843 = vmul.f32 %v5827, 0.044715
    %v5844 = vmul.f32 %v5828, 0.044715
    %v5845 = vmul.f32 %v5829, 0.044715
    %v5846 = vmul.f32 %v5830, 0.044715
    %v5847 = vmul.f32 %v5831, 0.044715
    %v5848 = vmul.f32 %v5832, 0.044715
    %v5849 = vmul.f32 %v5833, 0.044715
    %v5850 = vmul.f32 %v5834, 0.044715
    %v5851 = vmul.f32 %v5835, 0.044715
    %v5852 = vmul.f32 %v5836, 0.044715
    %v5853 = vadd.f32 %v5767, %v5837
    %v5854 = vadd.f32 %v5769, %v5838
    %v5855 = vadd.f32 %v5771, %v5839
    %v5856 = vadd.f32 %v5773, %v5840
    %v5857 = vadd.f32 %v5777, %v5841
    %v5858 = vadd.f32 %v5779, %v5842
    %v5859 = vadd.f32 %v5781, %v5843
    %v5860 = vadd.f32 %v5783, %v5844
    %v5861 = vadd.f32 %v5787, %v5845
    %v5862 = vadd.f32 %v5789, %v5846
    %v5863 = vadd.f32 %v5791, %v5847
    %v5864 = vadd.f32 %v5793, %v5848
    %v5865 = vadd.f32 %v5797, %v5849
    %v5866 = vadd.f32 %v5799, %v5850
    %v5867 = vadd.f32 %v5801, %v5851
    %v5868 = vadd.f32 %v5803, %v5852
    %v5869 = vmul.f32 %v5853, 0.7978846
    %v5870 = vmul.f32 %v5854, 0.7978846
    %v5871 = vmul.f32 %v5855, 0.7978846
    %v5872 = vmul.f32 %v5856, 0.7978846
    %v5873 = vmul.f32 %v5857, 0.7978846
    %v5874 = vmul.f32 %v5858, 0.7978846
    %v5875 = vmul.f32 %v5859, 0.7978846
    %v5876 = vmul.f32 %v5860, 0.7978846
    %v5877 = vmul.f32 %v5861, 0.7978846
    %v5878 = vmul.f32 %v5862, 0.7978846
    %v5879 = vmul.f32 %v5863, 0.7978846
    %v5880 = vmul.f32 %v5864, 0.7978846
    %v5881 = vmul.f32 %v5865, 0.7978846
    %v5882 = vmul.f32 %v5866, 0.7978846
    %v5883 = vmul.f32 %v5867, 0.7978846
    %v5884 = vmul.f32 %v5868, 0.7978846
    %v5885 = vtanh.pop %v5869
    %v5886 = vtanh.pop %v5870
    %v5887 = vtanh.pop %v5871
    %v5888 = vtanh.pop %v5872
    %v5889 = vtanh.pop %v5873
    %v5890 = vtanh.pop %v5874
    %v5891 = vtanh.pop %v5875
    %v5892 = vtanh.pop %v5876
    %v5893 = vtanh.pop %v5877
    %v5894 = vtanh.pop %v5878
    %v5895 = vtanh.pop %v5879
    %v5896 = vtanh.pop %v5880
    %v5897 = vtanh.pop %v5881
    %v5898 = vtanh.pop %v5882
    %v5899 = vtanh.pop %v5883
    %v5900 = vtanh.pop %v5884
    %v5901 = vadd.f32 %v5885, 1.0
    %v5902 = vadd.f32 %v5886, 1.0
    %v5903 = vadd.f32 %v5887, 1.0
    %v5904 = vadd.f32 %v5888, 1.0
    %v5905 = vadd.f32 %v5889, 1.0
    %v5906 = vadd.f32 %v5890, 1.0
    %v5907 = vadd.f32 %v5891, 1.0
    %v5908 = vadd.f32 %v5892, 1.0
    %v5909 = vadd.f32 %v5893, 1.0
    %v5910 = vadd.f32 %v5894, 1.0
    %v5911 = vadd.f32 %v5895, 1.0
    %v5912 = vadd.f32 %v5896, 1.0
    %v5913 = vadd.f32 %v5897, 1.0
    %v5914 = vadd.f32 %v5898, 1.0
    %v5915 = vadd.f32 %v5899, 1.0
    %v5916 = vadd.f32 %v5900, 1.0
    %v5917 = vmul.f32 %v5901, 0.5
    %v5918 = vmul.f32 %v5902, 0.5
    %v5919 = vmul.f32 %v5903, 0.5
    %v5920 = vmul.f32 %v5904, 0.5
    %v5921 = vmul.f32 %v5905, 0.5
    %v5922 = vmul.f32 %v5906, 0.5
    %v5923 = vmul.f32 %v5907, 0.5
    %v5924 = vmul.f32 %v5908, 0.5
    %v5925 = vmul.f32 %v5909, 0.5
    %v5926 = vmul.f32 %v5910, 0.5
    %v5927 = vmul.f32 %v5911, 0.5
    %v5928 = vmul.f32 %v5912, 0.5
    %v5929 = vmul.f32 %v5913, 0.5
    %v5930 = vmul.f32 %v5914, 0.5
    %v5931 = vmul.f32 %v5915, 0.5
    %v5932 = vmul.f32 %v5916, 0.5
    %v5933 = vmul.f32 %v5767, %v5917
    %v5934 = vmul.f32 %v5769, %v5918
    %v5935 = vmul.f32 %v5771, %v5919
    %v5936 = vmul.f32 %v5773, %v5920
    %v5937 = vmul.f32 %v5777, %v5921
    %v5938 = vmul.f32 %v5779, %v5922
    %v5939 = vmul.f32 %v5781, %v5923
    %v5940 = vmul.f32 %v5783, %v5924
    %v5941 = vmul.f32 %v5787, %v5925
    %v5942 = vmul.f32 %v5789, %v5926
    %v5943 = vmul.f32 %v5791, %v5927
    %v5944 = vmul.f32 %v5793, %v5928
    %v5945 = vmul.f32 %v5797, %v5929
    %v5946 = vmul.f32 %v5799, %v5930
    %v5947 = vmul.f32 %v5801, %v5931
    %v5948 = vmul.f32 %v5803, %v5932
    %v5949 = vadd.f32 %v5620, %v5933
    %v5950 = vadd.f32 %v5621, %v5934
    %v5951 = vadd.f32 %v5622, %v5935
    %v5952 = vadd.f32 %v5623, %v5936
    %v5953 = vadd.f32 %v5624, %v5937
    %v5954 = vadd.f32 %v5625, %v5938
    %v5955 = vadd.f32 %v5626, %v5939
    %v5956 = vadd.f32 %v5627, %v5940
    %v5957 = vadd.f32 %v5628, %v5941
    %v5958 = vadd.f32 %v5629, %v5942
    %v5959 = vadd.f32 %v5630, %v5943
    %v5960 = vadd.f32 %v5631, %v5944
    %v5961 = vadd.f32 %v5632, %v5945
    %v5962 = vadd.f32 %v5633, %v5946
    %v5963 = vadd.f32 %v5634, %v5947
    %v5964 = vadd.f32 %v5635, %v5948
    %vm5965 = vcmp.lt.s32.totalorder %v132, 146
    %vm5966 = vcmp.lt.s32.totalorder %v133, 146
    %v5967 = vsel %vm5965, 1.0, 0.0
    %v5968 = vsel %vm5966, 1.0, 0.0
    %v5969 = vmul.f32 %v5949, %v5967
    %v5970 = vmul.f32 %v5950, %v5968
    %v5971 = vmul.f32 %v5951, %v5967
    %v5972 = vmul.f32 %v5952, %v5968
    %v5973 = vmul.f32 %v5953, %v5967
    %v5974 = vmul.f32 %v5954, %v5968
    %v5975 = vmul.f32 %v5955, %v5967
    %v5976 = vmul.f32 %v5956, %v5968
    %v5977 = vmul.f32 %v5957, %v5967
    %v5978 = vmul.f32 %v5958, %v5968
    %v5979 = vmul.f32 %v5959, %v5967
    %v5980 = vmul.f32 %v5960, %v5968
    %v5981 = vmul.f32 %v5961, %v5967
    %v5982 = vmul.f32 %v5962, %v5968
    %v5983 = vmul.f32 %v5963, %v5967
    %v5984 = vmul.f32 %v5964, %v5968
    %v5985 = vsel %vm5390, %v5970, 0.0
    %v5986 = vadd.f32 %v5969, %v5985
    %5987 = vadd.xlane.f32.xlu0 %v5986
    %v5988 = vpop.xlane.xlu0 %5987
    %v5989 = vsel %vm5390, %v5972, 0.0
    %v5990 = vadd.f32 %v5971, %v5989
    %5991 = vadd.xlane.f32.xlu0 %v5990
    %v5992 = vpop.xlane.xlu0 %5991
    %v5993 = vsel %vm5390, %v5974, 0.0
    %v5994 = vadd.f32 %v5973, %v5993
    %5995 = vadd.xlane.f32.xlu0 %v5994
    %v5996 = vpop.xlane.xlu0 %5995
    %v5997 = vsel %vm5390, %v5976, 0.0
    %v5998 = vadd.f32 %v5975, %v5997
    %5999 = vadd.xlane.f32.xlu0 %v5998
    %v6000 = vpop.xlane.xlu0 %5999
    %v6001 = vsel %vm5390, %v5978, 0.0
    %v6002 = vadd.f32 %v5977, %v6001
    %6003 = vadd.xlane.f32.xlu0 %v6002
    %v6004 = vpop.xlane.xlu0 %6003
    %v6005 = vsel %vm5390, %v5980, 0.0
    %v6006 = vadd.f32 %v5979, %v6005
    %6007 = vadd.xlane.f32.xlu0 %v6006
    %v6008 = vpop.xlane.xlu0 %6007
    %v6009 = vsel %vm5390, %v5982, 0.0
    %v6010 = vadd.f32 %v5981, %v6009
    %6011 = vadd.xlane.f32.xlu0 %v6010
    %v6012 = vpop.xlane.xlu0 %6011
    %v6013 = vsel %vm5390, %v5984, 0.0
    %v6014 = vadd.f32 %v5983, %v6013
    %6015 = vadd.xlane.f32.xlu0 %v6014
    %v6016 = vpop.xlane.xlu0 %6015
    %v6017 = vmul.f32 %v5988, 0.006849315
    %v6018 = vmul.f32 %v5992, 0.006849315
    %v6019 = vmul.f32 %v5996, 0.006849315
    %v6020 = vmul.f32 %v6000, 0.006849315
    %v6021 = vmul.f32 %v6004, 0.006849315
    %v6022 = vmul.f32 %v6008, 0.006849315
    %v6023 = vmul.f32 %v6012, 0.006849315
    %v6024 = vmul.f32 %v6016, 0.006849315
    %v6025 = vld [vmem:[%s19] sm:$0xff]
    %v6026 = vld [vmem:[%s19 + $0x8] sm:$0xff]
    %v6027 = vld [vmem:[%s19 + $0x10] sm:$0xff]
    %v6028 = vld [vmem:[%s19 + $0x18] sm:$0xff]
    %v6029 = vld [vmem:[%s19 + $0x20] sm:$0xff]
    %v6030 = vld [vmem:[%s19 + $0x28] sm:$0xff]
    %v6031 = vld [vmem:[%s19 + $0x30] sm:$0xff]
    %v6032 = vld [vmem:[%s19 + $0x38] sm:$0xff]
    %v6033 = vmul.f32 %v6025, %v6017
    %v6034 = vmul.f32 %v6026, %v6018
    %v6035 = vmul.f32 %v6027, %v6019
    %v6036 = vmul.f32 %v6028, %v6020
    %v6037 = vmul.f32 %v6029, %v6021
    %v6038 = vmul.f32 %v6030, %v6022
    %v6039 = vmul.f32 %v6031, %v6023
    %v6040 = vmul.f32 %v6032, %v6024
    %v6041 = vadd.f32 %v6033, %v6034
    %v6042 = vadd.f32 %v6041, %v6035
    %v6043 = vadd.f32 %v6042, %v6036
    %v6044 = vadd.f32 %v6043, %v6037
    %v6045 = vadd.f32 %v6044, %v6038
    %v6046 = vadd.f32 %v6045, %v6039
    %v6047 = vadd.f32 %v6046, %v6040
    %v6048 = vrot.slane %v6047, 4
    %v6049 = vadd.f32 %v6047, %v6048
    %v6050 = vrot.slane %v6049, 2
    %v6051 = vadd.f32 %v6049, %v6050
    %v6052 = vrot.slane %v6051, 1
    %v6053 = vadd.f32 %v6051, %v6052
    %v6054 = vld [vmem:[%s20] sm:$0x1]
    %v6055 = vadd.f32 %v6053, %v6054
    %6056 = vst [vmem:[%s22] sm:$0x1] %v6055
    // Predicated region
    $region90: #{forward.3} parent=1 // pred_check
      _
    $region91: #{forward.3} parent=1 // pred_check_branch
      %6058 = sbr.rel (0) target = $region93
    $region92: #{forward.3} parent=1 // pred_region
      _
    $region93: #{forward.3} parent=1 // pred_fallthru
      _
    // Predicated region
    $region94: #{forward.3} parent=1 // pred_check
      _
    $region95: #{forward.3} parent=1 // pred_check_branch
      %6060 = sbr.rel (0) target = $region97
    $region96: #{forward.3} parent=1 // pred_region
      _
    $region97: #{forward.3} parent=1 // pred_fallthru
      _
    // Predicated region
    $region98: #{forward.3} parent=1 // pred_check
      _
    $region99: #{forward.3} parent=1 // pred_check_branch
      %6062 = sbr.rel (0) target = $region101
    $region100: #{forward.3} parent=1 // pred_region
      _
    $region101: #{forward.3} parent=1 // pred_fallthru
      _
    // Predicated region
    $region102: #{forward.3} parent=1 // pred_check
      _
    $region103: #{forward.3} parent=1 // pred_check_branch
      %6064 = sbr.rel (0) target = $region105
    $region104: #{forward.3} parent=1 // pred_region
      _
    $region105: #{forward.3} parent=1 // pred_fallthru
      _
    %6065 = vsyncpa [#allocation3], 1

</llo_original>
